<compile_context>
chip_gen: v7x
topology: tpu7x:2x2x1
jax: 0.10.0
libtpu: 0.0.40
codegen_flags: <defaults>
</compile_context>

<pallas_src>
import math
import functools

import numpy as np
import jax
import jax.numpy as jnp
from jax.experimental import pallas as pl
from jax.experimental import pallas as _pl_unused_alias_guard  # noqa: F401
from jax.experimental.pallas import tpu as pltpu  # noqa: F401  (no TPU-specific params needed for a gridless fused kernel)

EPS = 1e-5          # PyTorch LayerNorm default
LANES = 128
SUBLANES = 8


# ----------------------------------------------------------------------------
# Host-side parameter packing: one lane-dense (rows, 128) slab + static layout
# ----------------------------------------------------------------------------
def _pack_to_slab(blocks):
    """Stack 2-D f32 arrays (cols <= 128) into one (rows, 128) slab.

    Every block starts at a sublane(8)-aligned row.  Returns (slab, row_offsets).
    """
    pieces, offsets, off = [], [], 0
    for a in blocks:
        a = jnp.asarray(a, jnp.float32)
        r, c = a.shape
        assert c <= LANES, "parameter block wider than 128 lanes"
        if off % SUBLANES:
            pad = SUBLANES - off % SUBLANES
            pieces.append(jnp.zeros((pad, LANES), jnp.float32))
            off += pad
        offsets.append(off)
        pieces.append(jnp.pad(a, ((0, 0), (0, LANES - c))))
        off += r
    if off % SUBLANES:
        pieces.append(jnp.zeros((SUBLANES - off % SUBLANES, LANES), jnp.float32))
    return jnp.concatenate(pieces, axis=0), tuple(offsets)


def prep_params(raw_params, num_heads, has_text=True):
    """PyTorch-layout raw params -> (packed param slab, static row-offset layout).

    Per attention stage the slab holds:
        W4   = [Wq^T*scale | Wk^T | Wv^T | Wo^T]          (E, 4E)
        bqkv = [bq*scale | bk | bv | 0]                    (1, 4E)
        misc = [bo | gamma | beta | 0]                     (1, 4E)
    FFN: W1^T (E,4E), b1 (1,4E), W2^T (4E,E), [b2|gamma|beta|0] (1,4E).
    """
    E = raw_params["self_attn"][0].shape[0]
    D = E // num_heads
    scale = 1.0 / math.sqrt(D)
    assert 4 * E <= LANES, "this packing assumes 4*embed_dim <= 128"

    def mha_blocks(p):
        wq, bq, wk, bk, wv, bv, wo, bo, g, beta = [jnp.asarray(t, jnp.float32) for t in p]
        z = jnp.zeros((1, E), jnp.float32)
        w4 = jnp.concatenate([wq.T * scale, wk.T, wv.T, wo.T], axis=1)
        b_qkv = jnp.concatenate([bq.reshape(1, E) * scale, bk.reshape(1, E),
                                 bv.reshape(1, E), z], axis=1)
        misc = jnp.concatenate([bo.reshape(1, E), g.reshape(1, E),
                                beta.reshape(1, E), z], axis=1)
        return [w4, b_qkv, misc]

    stage_names = (["text_attn"] if has_text else []) + ["self_attn", "image_attn"]
    blocks = []
    for name in stage_names:
        blocks += mha_blocks(raw_params[name])

    w1, b1, w2, b2, g, beta = [jnp.asarray(t, jnp.float32) for t in raw_params["ffn"]]
    F = w1.shape[0]
    assert F <= LANES
    z = jnp.zeros((1, E), jnp.float32)
    blocks += [w1.T,                                             # (E, F)
               b1.reshape(1, F),                                 # (1, F)
               w2.T,                                             # (F, E)
               jnp.concatenate([b2.reshape(1, E), g.reshape(1, E),
                                beta.reshape(1, E), z], axis=1)]

    slab, offsets = _pack_to_slab(blocks)
    n_stages = len(stage_names)
    stage_offs = tuple(tuple(offsets[3 * i:3 * i + 3]) for i in range(n_stages))
    ffn_offs = tuple(offsets[3 * n_stages:3 * n_stages + 4])
    return slab, (stage_offs, ffn_offs)


# ----------------------------------------------------------------------------
# In-kernel building blocks
# ----------------------------------------------------------------------------
def _layernorm(x, gamma, beta):
    mu = jnp.mean(x, axis=-1, keepdims=True)
    var = jnp.mean((x - mu) ** 2, axis=-1, keepdims=True)
    return (x - mu) * jax.lax.rsqrt(var + EPS) * gamma + beta


def _mha_stage(pslab_ref, offs, xq, xkv, B, Lq, Lk, H, D, E, need_weights):
    """One attention stage + residual + LayerNorm on folded-batch rows.

    xq: (B*Lq, E) query-side activations.  xkv: (B*Lk, E) key/value side, or None
    for self-attention (reuses the query-side fused projection).
    """
    w4_off, bqkv_off, misc_off = offs
    w4 = pslab_ref[w4_off:w4_off + E, :]                 # (E, 4E<=128)
    b_qkv = pslab_ref[bqkv_off:bqkv_off + 1, :]          # (1, 128)
    misc = pslab_ref[misc_off:misc_off + 1, :]           # (1, 128)
    bo, gamma, beta = misc[:, 0:E], misc[:, E:2 * E], misc[:, 2 * E:3 * E]

    # Fused projections: one full-width (rows, E) @ (E, 4E) matmul per side.
    # (Unused column blocks cost nothing extra — same MXU pass.)
    proj_q = jnp.dot(xq, w4, preferred_element_type=jnp.float32) + b_qkv
    proj_kv = proj_q if xkv is None else (
        jnp.dot(xkv, w4, preferred_element_type=jnp.float32) + b_qkv)
    q_all = proj_q[:, 0:E]                               # already scaled by 1/sqrt(D)
    k_all = proj_kv[:, E:2 * E]
    v_all = proj_kv[:, 2 * E:3 * E]

    # Per-head attention core, unfolded per batch (B, H tiny -> trace-time unrolled).
    ctx_rows, attn_rows = [], []
    for b in range(B):
        q = q_all[b * Lq:(b + 1) * Lq, :]                # (Lq, E)
        k = k_all[b * Lk:(b + 1) * Lk, :]                # (Lk, E)
        v = v_all[b * Lk:(b + 1) * Lk, :]
        ctx_heads, p_sum = [], None
        for h in range(H):
            sl = slice(h * D, (h + 1) * D)
            s = jnp.einsum('qd,kd->qk', q[:, sl], k[:, sl],
                           preferred_element_type=jnp.float32)       # (Lq, Lk)
            s = s - jnp.max(s, axis=-1, keepdims=True)
            p = jnp.exp(s)
            p = p * pl.reciprocal(jnp.sum(p, axis=-1, keepdims=True), approx=True)
            ctx_heads.append(jnp.dot(p, v[:, sl],
                                     preferred_element_type=jnp.float32))
            if need_weights:
                p_sum = p if p_sum is None else p_sum + p
        ctx_rows.append(jnp.concatenate(ctx_heads, axis=-1))          # (Lq, E)
        if need_weights:
            attn_rows.append(p_sum * (1.0 / H))                       # head-avg (Lq, Lk)

    ctx_all = jnp.concatenate(ctx_rows, axis=0)                       # (B*Lq, E)
    # Output projection: one full-width matmul; keep only the Wo^T column block.
    o = jnp.dot(ctx_all, w4, preferred_element_type=jnp.float32)[:, 3 * E:4 * E] + bo
    y = _layernorm(o + xq, gamma, beta)
    attn = jnp.concatenate(attn_rows, axis=0) if need_weights else None
    return y, attn


def _ffn_stage(pslab_ref, offs, x, E, F):
    w1_off, b1_off, w2_off, misc_off = offs
    w1 = pslab_ref[w1_off:w1_off + E, :]                 # (E, F<=128)
    b1 = pslab_ref[b1_off:b1_off + 1, :]                 # (1, 128)
    w2 = pslab_ref[w2_off:w2_off + F, 0:E]               # (F, E)
    misc = pslab_ref[misc_off:misc_off + 1, :]
    b2, gamma, beta = misc[:, 0:E], misc[:, E:2 * E], misc[:, 2 * E:3 * E]

    h = jnp.maximum(jnp.dot(x, w1, preferred_element_type=jnp.float32) + b1, 0.0)
    y = jnp.dot(h[:, 0:F], w2, preferred_element_type=jnp.float32) + b2
    return _layernorm(y + x, gamma, beta)


def _fused_kernel(has_text, dims, layout, *refs):
    B, Lq, Lt, Li, H, D, E = dims
    stage_offs, ffn_offs = layout
    if has_text:
        et_ref, tx_ref, im_ref, pslab_ref, out_ref = refs
    else:
        et_ref, im_ref, pslab_ref, out_ref = refs
        tx_ref = None

    x = et_ref[...].astype(jnp.float32)                  # (B*Lq, E)
    im = im_ref[...].astype(jnp.float32)                 # (B*Li, E)

    si = 0
    if has_text:                                         # expert -> text cross-attention
        tx = tx_ref[...].astype(jnp.float32)             # (B*Lt, E)
        x, _ = _mha_stage(pslab_ref, stage_offs[si], x, tx, B, Lq, Lt, H, D, E, False)
        si += 1
    # self-attention over the expert tokens
    x, _ = _mha_stage(pslab_ref, stage_offs[si], x, None, B, Lq, Lq, H, D, E, False)
    si += 1
    # expert -> image cross-attention (these attention weights are the module output)
    x, attn = _mha_stage(pslab_ref, stage_offs[si], x, im, B, Lq, Li, H, D, E, True)
    # FFN + residual + LayerNorm
    y = _ffn_stage(pslab_ref, ffn_offs, x, E, 4 * E)

    # Single lane-dense packed output: [ hidden (E) | head-averaged attn (Li) | zeros ].
    pad = LANES - E - Li
    parts = [y, attn]
    if pad > 0:
        parts.append(jnp.zeros((B * Lq, pad), jnp.float32))
    out_ref[...] = jnp.concatenate(parts, axis=-1).astype(out_ref.dtype)


# ----------------------------------------------------------------------------
# Forward pass (single, gridless pallas_call)
# ----------------------------------------------------------------------------
def expert_token_cross_attention(expert_tokens, image_patches, text_embeddings,
                                 pslab, layout, num_heads,
                                 text_dropout_rate=0.0, dropout_key=None):
    B, Lq, E = expert_tokens.shape
    Li = image_patches.shape[1]
    H = num_heads
    D = E // H
    has_text = text_embeddings is not None
    Lt = text_embeddings.shape[1] if has_text else 0
    assert E + Li <= LANES, "packed-output layout assumes embed_dim + num_patches <= 128"

    if has_text and text_dropout_rate > 0.0:
        # Whole-sequence per-batch text drop, exactly as written in the PyTorch
        # forward (no 1/(1-p) rescale).  With rate 0.0 it is a guaranteed no-op.
        if dropout_key is None:
            dropout_key = jax.random.PRNGKey(123)
        keep = jax.random.uniform(dropout_key, (B, 1, 1)) > text_dropout_rate
        text_embeddings = text_embeddings * keep.astype(text_embeddings.dtype)

    # Fold batch into the row (sublane) dimension host-side (free reshapes).
    inputs = [expert_tokens.reshape(B * Lq, E)]
    if has_text:
        inputs.append(text_embeddings.reshape(B * Lt, E))
    inputs.append(image_patches.reshape(B * Li, E))
    inputs.append(pslab)

    dims = (B, Lq, Lt, Li, H, D, E)
    kernel = functools.partial(_fused_kernel, has_text, dims, layout)

    # Gridless call: every operand (activations + the single parameter slab) is placed
    # whole in VMEM (total footprint ~160 KiB, far below VMEM on every generation),
    # so there is exactly one DMA per operand and one lane-dense output DMA.
    packed = pl.pallas_call(
        kernel,
        out_shape=jax.ShapeDtypeStruct((B * Lq, LANES), jnp.float32),
    )(*inputs)

    out = packed[:, 0:E].reshape(B, Lq, E).astype(expert_tokens.dtype)
    attn_weights = packed[:, E:E + Li].reshape(B, Lq, Li)
    return out, attn_weights


# ----------------------------------------------------------------------------
# Deterministic PyTorch-shaped "raw" parameter init
# ----------------------------------------------------------------------------
def init_mha_params(key, E):
    ks = jax.random.split(key, 8)
    s = 0.05
    wq = jax.random.normal(ks[0], (E, E), jnp.float32) * s
    wk = jax.random.normal(ks[1], (E, E), jnp.float32) * s
    wv = jax.random.normal(ks[2], (E, E), jnp.float32) * s
    wo = jax.random.normal(ks[3], (E, E), jnp.float32) * s
    bq = jax.random.normal(ks[4], (1, E), jnp.float32) * s
    bk = jax.random.normal(ks[5], (1, E), jnp.float32) * s
    bv = jax.random.normal(ks[6], (1, E), jnp.float32) * s
    bo = jax.random.normal(ks[7], (1, E), jnp.float32) * s
    g = jnp.ones((1, E), jnp.float32)
    beta = jnp.zeros((1, E), jnp.float32)
    return (wq, bq, wk, bk, wv, bv, wo, bo, g, beta)


def init_ffn_params(key, E):
    ks = jax.random.split(key, 4)
    s = 0.05
    w1 = jax.random.normal(ks[0], (4 * E, E), jnp.float32) * s
    b1 = jax.random.normal(ks[1], (1, 4 * E), jnp.float32) * s
    w2 = jax.random.normal(ks[2], (E, 4 * E), jnp.float32) * s
    b2 = jax.random.normal(ks[3], (1, E), jnp.float32) * s
    g = jnp.ones((1, E), jnp.float32)
    beta = jnp.zeros((1, E), jnp.float32)
    return (w1, b1, w2, b2, g, beta)


# ----------------------------------------------------------------------------
# Pure-JAX reference (PyTorch-layout params) for the sanity check
# ----------------------------------------------------------------------------
def _ref_mha_ln(xq, xkv, params, H):
    wq, bq, wk, bk, wv, bv, wo, bo, g, beta = params
    B, Lq, E = xq.shape
    Lk = xkv.shape[1]
    D = E // H
    q = xq @ wq.T + bq
    k = xkv @ wk.T + bk
    v = xkv @ wv.T + bv
    q = q.reshape(B, Lq, H, D).transpose(0, 2, 1, 3)
    k = k.reshape(B, Lk, H, D).transpose(0, 2, 1, 3)
    v = v.reshape(B, Lk, H, D).transpose(0, 2, 1, 3)
    s = jnp.einsum("bhqd,bhkd->bhqk", q, k) / math.sqrt(D)
    p = jax.nn.softmax(s, axis=-1)
    o = jnp.einsum("bhqk,bhkd->bhqd", p, v).transpose(0, 2, 1, 3).reshape(B, Lq, E)
    o = o @ wo.T + bo
    y = o + xq
    mu = jnp.mean(y, -1, keepdims=True)
    var = jnp.mean((y - mu) ** 2, -1, keepdims=True)
    return (y - mu) * jax.lax.rsqrt(var + EPS) * g + beta, p.mean(axis=1)


def _ref_forward(expert_tokens, image_patches, text_embeddings, params, H):
    et, _ = _ref_mha_ln(expert_tokens, text_embeddings, params["text_attn"], H)
    er, _ = _ref_mha_ln(et, et, params["self_attn"], H)
    ei, aw = _ref_mha_ln(er, image_patches, params["image_attn"], H)
    w1, b1, w2, b2, g, beta = params["ffn"]
    h = jnp.maximum(ei @ w1.T + b1, 0.0)
    y = h @ w2.T + b2 + ei
    mu = jnp.mean(y, -1, keepdims=True)
    var = jnp.mean((y - mu) ** 2, -1, keepdims=True)
    return (y - mu) * jax.lax.rsqrt(var + EPS) * g + beta, aw


# ----------------------------------------------------------------------------
if __name__ == "__main__":
    B = 2
    EMBED_DIM = 32
    NUM_HEADS = 4
    NUM_ABNORMALITIES = 14   # number of expert tokens (queries)
    NUM_PATCHES = 16
    TEXT_LEN = 8

    root = jax.random.PRNGKey(0)
    k_in, k_p1, k_p2, k_p3, k_p4 = jax.random.split(root, 5)
    k_e, k_i, k_t = jax.random.split(k_in, 3)

    expert_tokens = jax.random.normal(k_e, (B, NUM_ABNORMALITIES, EMBED_DIM), jnp.float32)
    image_patches = jax.random.normal(k_i, (B, NUM_PATCHES, EMBED_DIM), jnp.float32)
    text_embeddings = jax.random.normal(k_t, (B, TEXT_LEN, EMBED_DIM), jnp.float32)

    raw_params = {
        "text_attn": init_mha_params(k_p1, EMBED_DIM),
        "self_attn": init_mha_params(k_p2, EMBED_DIM),
        "image_attn": init_mha_params(k_p3, EMBED_DIM),
        "ffn": init_ffn_params(k_p4, EMBED_DIM),
    }
    pslab, layout = prep_params(raw_params, NUM_HEADS, has_text=True)

    out, attn_weights = expert_token_cross_attention(
        expert_tokens, image_patches, text_embeddings, pslab, layout, NUM_HEADS,
        text_dropout_rate=0.0)
    out = jax.block_until_ready(out)
    attn_weights = jax.block_until_ready(attn_weights)

    assert out.shape == (B, NUM_ABNORMALITIES, EMBED_DIM)
    assert attn_weights.shape == (B, NUM_ABNORMALITIES, NUM_PATCHES)

    # Sanity check vs a pure-JAX reference.  Tolerance is slightly looser than usual
    # because the kernel normalises the softmax with the EUP approximate reciprocal;
    # any structural error (wrong slice/head/residual) would be O(0.1+), far above this.
    ref_out, ref_aw = _ref_forward(expert_tokens, image_patches, text_embeddings,
                                   raw_params, NUM_HEADS)
    np.testing.assert_allclose(np.asarray(out), np.asarray(ref_out),
                               rtol=5e-3, atol=5e-3)
    np.testing.assert_allclose(np.asarray(attn_weights), np.asarray(ref_aw),
                               rtol=5e-3, atol=5e-3)

    print("KERNEL_OK")
</pallas_src>

<mosaic_0001>
module attributes {stable_mosaic.version = 11 : i64} {
  func.func @_fused_kernel(%arg0: memref<28x32xf32, #tpu.memory_space<vmem>>, %arg1: memref<16x32xf32, #tpu.memory_space<vmem>>, %arg2: memref<32x32xf32, #tpu.memory_space<vmem>>, %arg3: memref<320x128xf32, #tpu.memory_space<vmem>>, %arg4: memref<28x128xf32, #tpu.memory_space<vmem>>) attributes {dimension_semantics = [], scalar_prefetch = 0 : i64, scratch_operands = 0 : i64, tpu.core_type = #tpu.core_type<tc>} {
    %c0 = arith.constant 0 : index
    %c0_0 = arith.constant 0 : index
    %0 = vector.load %arg0[%c0, %c0_0] : memref<28x32xf32, #tpu.memory_space<vmem>>, vector<28x32xf32>
    %c0_1 = arith.constant 0 : index
    %c0_2 = arith.constant 0 : index
    %1 = vector.load %arg2[%c0_1, %c0_2] : memref<32x32xf32, #tpu.memory_space<vmem>>, vector<32x32xf32>
    %c0_3 = arith.constant 0 : index
    %c0_4 = arith.constant 0 : index
    %2 = vector.load %arg1[%c0_3, %c0_4] : memref<16x32xf32, #tpu.memory_space<vmem>>, vector<16x32xf32>
    %c0_5 = arith.constant 0 : index
    %c0_6 = arith.constant 0 : index
    %3 = vector.load %arg3[%c0_5, %c0_6] : memref<320x128xf32, #tpu.memory_space<vmem>>, vector<32x128xf32>
    %c32 = arith.constant 32 : index
    %c0_7 = arith.constant 0 : index
    %4 = vector.load %arg3[%c32, %c0_7] : memref<320x128xf32, #tpu.memory_space<vmem>>, vector<1x128xf32>
    %c40 = arith.constant 40 : index
    %c0_8 = arith.constant 0 : index
    %5 = vector.load %arg3[%c40, %c0_8] : memref<320x128xf32, #tpu.memory_space<vmem>>, vector<1x128xf32>
    %6 = vector.extract_strided_slice %5 {offsets = [0, 0], sizes = [1, 32], strides = [1, 1]} : vector<1x128xf32> to vector<1x32xf32>
    %7 = vector.extract_strided_slice %5 {offsets = [0, 32], sizes = [1, 32], strides = [1, 1]} : vector<1x128xf32> to vector<1x32xf32>
    %8 = vector.extract_strided_slice %5 {offsets = [0, 64], sizes = [1, 32], strides = [1, 1]} : vector<1x128xf32> to vector<1x32xf32>
    %cst = arith.constant dense<0.000000e+00> : vector<28x128xf32>
    %9 = tpu.matmul %0, %3, %cst {dimension_numbers = #tpu.dot_dimension_numbers<[1], [0], [0], [1], [0, 0, 1, 1], [], []>} : vector<28x32xf32>, vector<32x128xf32>, vector<28x128xf32> -> vector<28x128xf32>
    %10 = vector.broadcast %4 : vector<1x128xf32> to vector<28x128xf32>
    %11 = arith.addf %9, %10 : vector<28x128xf32>
    %cst_9 = arith.constant dense<0.000000e+00> : vector<16x128xf32>
    %12 = tpu.matmul %2, %3, %cst_9 {dimension_numbers = #tpu.dot_dimension_numbers<[1], [0], [0], [1], [0, 0, 1, 1], [], []>} : vector<16x32xf32>, vector<32x128xf32>, vector<16x128xf32> -> vector<16x128xf32>
    %13 = vector.broadcast %4 : vector<1x128xf32> to vector<16x128xf32>
    %14 = arith.addf %12, %13 : vector<16x128xf32>
    %15 = vector.extract_strided_slice %11 {offsets = [0, 0], sizes = [28, 32], strides = [1, 1]} : vector<28x128xf32> to vector<28x32xf32>
    %16 = vector.extract_strided_slice %14 {offsets = [0, 32], sizes = [16, 32], strides = [1, 1]} : vector<16x128xf32> to vector<16x32xf32>
    %17 = vector.extract_strided_slice %14 {offsets = [0, 64], sizes = [16, 32], strides = [1, 1]} : vector<16x128xf32> to vector<16x32xf32>
    %18 = vector.extract_strided_slice %15 {offsets = [0, 0], sizes = [14, 32], strides = [1, 1]} : vector<28x32xf32> to vector<14x32xf32>
    %19 = vector.extract_strided_slice %16 {offsets = [0, 0], sizes = [8, 32], strides = [1, 1]} : vector<16x32xf32> to vector<8x32xf32>
    %20 = vector.extract_strided_slice %17 {offsets = [0, 0], sizes = [8, 32], strides = [1, 1]} : vector<16x32xf32> to vector<8x32xf32>
    %21 = vector.extract_strided_slice %18 {offsets = [0, 0], sizes = [14, 8], strides = [1, 1]} : vector<14x32xf32> to vector<14x8xf32>
    %22 = vector.extract_strided_slice %19 {offsets = [0, 0], sizes = [8, 8], strides = [1, 1]} : vector<8x32xf32> to vector<8x8xf32>
    "tpu.trace_start"() <{level = 10 : i32, message = "qd,kd->qk"}> : () -> ()
    %cst_10 = arith.constant dense<0.000000e+00> : vector<14x8xf32>
    %23 = tpu.matmul %21, %22, %cst_10 {dimension_numbers = #tpu.dot_dimension_numbers<[1], [1], [0], [0], [0, 0, 1, 0], [], []>} : vector<14x8xf32>, vector<8x8xf32>, vector<14x8xf32> -> vector<14x8xf32>
    "tpu.trace_stop"() : () -> ()
    %cst_11 = arith.constant dense<0xFF800000> : vector<14xf32>
    %24 = vector.multi_reduction <maximumf>, %23, %cst_11 [1] : vector<14x8xf32> to vector<14xf32>
    %25 = vector.shape_cast %24 : vector<14xf32> to vector<14x1xf32>
    %26 = vector.broadcast %25 : vector<14x1xf32> to vector<14x8xf32>
    %27 = arith.subf %23, %26 : vector<14x8xf32>
    %28 = math.exp %27 : vector<14x8xf32>
    %cst_12 = arith.constant dense<0.000000e+00> : vector<14xf32>
    %29 = vector.multi_reduction <add>, %28, %cst_12 [1] : vector<14x8xf32> to vector<14xf32>
    %30 = vector.shape_cast %29 : vector<14xf32> to vector<14x1xf32>
    %31 = tpu.reciprocal %30 {approx = true} : vector<14x1xf32> -> vector<14x1xf32>
    %32 = vector.broadcast %31 : vector<14x1xf32> to vector<14x8xf32>
    %33 = arith.mulf %28, %32 : vector<14x8xf32>
    %34 = vector.extract_strided_slice %20 {offsets = [0, 0], sizes = [8, 8], strides = [1, 1]} : vector<8x32xf32> to vector<8x8xf32>
    %cst_13 = arith.constant dense<0.000000e+00> : vector<14x8xf32>
    %35 = tpu.matmul %33, %34, %cst_13 {dimension_numbers = #tpu.dot_dimension_numbers<[1], [0], [0], [1], [0, 0, 1, 1], [], []>} : vector<14x8xf32>, vector<8x8xf32>, vector<14x8xf32> -> vector<14x8xf32>
    %36 = vector.extract_strided_slice %18 {offsets = [0, 8], sizes = [14, 8], strides = [1, 1]} : vector<14x32xf32> to vector<14x8xf32>
    %37 = vector.extract_strided_slice %19 {offsets = [0, 8], sizes = [8, 8], strides = [1, 1]} : vector<8x32xf32> to vector<8x8xf32>
    "tpu.trace_start"() <{level = 10 : i32, message = "qd,kd->qk"}> : () -> ()
    %cst_14 = arith.constant dense<0.000000e+00> : vector<14x8xf32>
    %38 = tpu.matmul %36, %37, %cst_14 {dimension_numbers = #tpu.dot_dimension_numbers<[1], [1], [0], [0], [0, 0, 1, 0], [], []>} : vector<14x8xf32>, vector<8x8xf32>, vector<14x8xf32> -> vector<14x8xf32>
    "tpu.trace_stop"() : () -> ()
    %cst_15 = arith.constant dense<0xFF800000> : vector<14xf32>
    %39 = vector.multi_reduction <maximumf>, %38, %cst_15 [1] : vector<14x8xf32> to vector<14xf32>
    %40 = vector.shape_cast %39 : vector<14xf32> to vector<14x1xf32>
    %41 = vector.broadcast %40 : vector<14x1xf32> to vector<14x8xf32>
    %42 = arith.subf %38, %41 : vector<14x8xf32>
    %43 = math.exp %42 : vector<14x8xf32>
    %cst_16 = arith.constant dense<0.000000e+00> : vector<14xf32>
    %44 = vector.multi_reduction <add>, %43, %cst_16 [1] : vector<14x8xf32> to vector<14xf32>
    %45 = vector.shape_cast %44 : vector<14xf32> to vector<14x1xf32>
    %46 = tpu.reciprocal %45 {approx = true} : vector<14x1xf32> -> vector<14x1xf32>
    %47 = vector.broadcast %46 : vector<14x1xf32> to vector<14x8xf32>
    %48 = arith.mulf %43, %47 : vector<14x8xf32>
    %49 = vector.extract_strided_slice %20 {offsets = [0, 8], sizes = [8, 8], strides = [1, 1]} : vector<8x32xf32> to vector<8x8xf32>
    %cst_17 = arith.constant dense<0.000000e+00> : vector<14x8xf32>
    %50 = tpu.matmul %48, %49, %cst_17 {dimension_numbers = #tpu.dot_dimension_numbers<[1], [0], [0], [1], [0, 0, 1, 1], [], []>} : vector<14x8xf32>, vector<8x8xf32>, vector<14x8xf32> -> vector<14x8xf32>
    %51 = vector.extract_strided_slice %18 {offsets = [0, 16], sizes = [14, 8], strides = [1, 1]} : vector<14x32xf32> to vector<14x8xf32>
    %52 = vector.extract_strided_slice %19 {offsets = [0, 16], sizes = [8, 8], strides = [1, 1]} : vector<8x32xf32> to vector<8x8xf32>
    "tpu.trace_start"() <{level = 10 : i32, message = "qd,kd->qk"}> : () -> ()
    %cst_18 = arith.constant dense<0.000000e+00> : vector<14x8xf32>
    %53 = tpu.matmul %51, %52, %cst_18 {dimension_numbers = #tpu.dot_dimension_numbers<[1], [1], [0], [0], [0, 0, 1, 0], [], []>} : vector<14x8xf32>, vector<8x8xf32>, vector<14x8xf32> -> vector<14x8xf32>
    "tpu.trace_stop"() : () -> ()
    %cst_19 = arith.constant dense<0xFF800000> : vector<14xf32>
    %54 = vector.multi_reduction <maximumf>, %53, %cst_19 [1] : vector<14x8xf32> to vector<14xf32>
    %55 = vector.shape_cast %54 : vector<14xf32> to vector<14x1xf32>
    %56 = vector.broadcast %55 : vector<14x1xf32> to vector<14x8xf32>
    %57 = arith.subf %53, %56 : vector<14x8xf32>
    %58 = math.exp %57 : vector<14x8xf32>
    %cst_20 = arith.constant dense<0.000000e+00> : vector<14xf32>
    %59 = vector.multi_reduction <add>, %58, %cst_20 [1] : vector<14x8xf32> to vector<14xf32>
    %60 = vector.shape_cast %59 : vector<14xf32> to vector<14x1xf32>
    %61 = tpu.reciprocal %60 {approx = true} : vector<14x1xf32> -> vector<14x1xf32>
    %62 = vector.broadcast %61 : vector<14x1xf32> to vector<14x8xf32>
    %63 = arith.mulf %58, %62 : vector<14x8xf32>
    %64 = vector.extract_strided_slice %20 {offsets = [0, 16], sizes = [8, 8], strides = [1, 1]} : vector<8x32xf32> to vector<8x8xf32>
    %cst_21 = arith.constant dense<0.000000e+00> : vector<14x8xf32>
    %65 = tpu.matmul %63, %64, %cst_21 {dimension_numbers = #tpu.dot_dimension_numbers<[1], [0], [0], [1], [0, 0, 1, 1], [], []>} : vector<14x8xf32>, vector<8x8xf32>, vector<14x8xf32> -> vector<14x8xf32>
    %66 = vector.extract_strided_slice %18 {offsets = [0, 24], sizes = [14, 8], strides = [1, 1]} : vector<14x32xf32> to vector<14x8xf32>
    %67 = vector.extract_strided_slice %19 {offsets = [0, 24], sizes = [8, 8], strides = [1, 1]} : vector<8x32xf32> to vector<8x8xf32>
    "tpu.trace_start"() <{level = 10 : i32, message = "qd,kd->qk"}> : () -> ()
    %cst_22 = arith.constant dense<0.000000e+00> : vector<14x8xf32>
    %68 = tpu.matmul %66, %67, %cst_22 {dimension_numbers = #tpu.dot_dimension_numbers<[1], [1], [0], [0], [0, 0, 1, 0], [], []>} : vector<14x8xf32>, vector<8x8xf32>, vector<14x8xf32> -> vector<14x8xf32>
    "tpu.trace_stop"() : () -> ()
    %cst_23 = arith.constant dense<0xFF800000> : vector<14xf32>
    %69 = vector.multi_reduction <maximumf>, %68, %cst_23 [1] : vector<14x8xf32> to vector<14xf32>
    %70 = vector.shape_cast %69 : vector<14xf32> to vector<14x1xf32>
    %71 = vector.broadcast %70 : vector<14x1xf32> to vector<14x8xf32>
    %72 = arith.subf %68, %71 : vector<14x8xf32>
    %73 = math.exp %72 : vector<14x8xf32>
    %cst_24 = arith.constant dense<0.000000e+00> : vector<14xf32>
    %74 = vector.multi_reduction <add>, %73, %cst_24 [1] : vector<14x8xf32> to vector<14xf32>
    %75 = vector.shape_cast %74 : vector<14xf32> to vector<14x1xf32>
    %76 = tpu.reciprocal %75 {approx = true} : vector<14x1xf32> -> vector<14x1xf32>
    %77 = vector.broadcast %76 : vector<14x1xf32> to vector<14x8xf32>
    %78 = arith.mulf %73, %77 : vector<14x8xf32>
    %79 = vector.extract_strided_slice %20 {offsets = [0, 24], sizes = [8, 8], strides = [1, 1]} : vector<8x32xf32> to vector<8x8xf32>
    %cst_25 = arith.constant dense<0.000000e+00> : vector<14x8xf32>
    %80 = tpu.matmul %78, %79, %cst_25 {dimension_numbers = #tpu.dot_dimension_numbers<[1], [0], [0], [1], [0, 0, 1, 1], [], []>} : vector<14x8xf32>, vector<8x8xf32>, vector<14x8xf32> -> vector<14x8xf32>
    %81 = tpu.concatenate %35, %50, %65, %80 in 1 : vector<14x8xf32>, vector<14x8xf32>, vector<14x8xf32>, vector<14x8xf32> -> vector<14x32xf32>
    %82 = vector.extract_strided_slice %15 {offsets = [14, 0], sizes = [14, 32], strides = [1, 1]} : vector<28x32xf32> to vector<14x32xf32>
    %83 = vector.extract_strided_slice %16 {offsets = [8, 0], sizes = [8, 32], strides = [1, 1]} : vector<16x32xf32> to vector<8x32xf32>
    %84 = vector.extract_strided_slice %17 {offsets = [8, 0], sizes = [8, 32], strides = [1, 1]} : vector<16x32xf32> to vector<8x32xf32>
    %85 = vector.extract_strided_slice %82 {offsets = [0, 0], sizes = [14, 8], strides = [1, 1]} : vector<14x32xf32> to vector<14x8xf32>
    %86 = vector.extract_strided_slice %83 {offsets = [0, 0], sizes = [8, 8], strides = [1, 1]} : vector<8x32xf32> to vector<8x8xf32>
    "tpu.trace_start"() <{level = 10 : i32, message = "qd,kd->qk"}> : () -> ()
    %cst_26 = arith.constant dense<0.000000e+00> : vector<14x8xf32>
    %87 = tpu.matmul %85, %86, %cst_26 {dimension_numbers = #tpu.dot_dimension_numbers<[1], [1], [0], [0], [0, 0, 1, 0], [], []>} : vector<14x8xf32>, vector<8x8xf32>, vector<14x8xf32> -> vector<14x8xf32>
    "tpu.trace_stop"() : () -> ()
    %cst_27 = arith.constant dense<0xFF800000> : vector<14xf32>
    %88 = vector.multi_reduction <maximumf>, %87, %cst_27 [1] : vector<14x8xf32> to vector<14xf32>
    %89 = vector.shape_cast %88 : vector<14xf32> to vector<14x1xf32>
    %90 = vector.broadcast %89 : vector<14x1xf32> to vector<14x8xf32>
    %91 = arith.subf %87, %90 : vector<14x8xf32>
    %92 = math.exp %91 : vector<14x8xf32>
    %cst_28 = arith.constant dense<0.000000e+00> : vector<14xf32>
    %93 = vector.multi_reduction <add>, %92, %cst_28 [1] : vector<14x8xf32> to vector<14xf32>
    %94 = vector.shape_cast %93 : vector<14xf32> to vector<14x1xf32>
    %95 = tpu.reciprocal %94 {approx = true} : vector<14x1xf32> -> vector<14x1xf32>
    %96 = vector.broadcast %95 : vector<14x1xf32> to vector<14x8xf32>
    %97 = arith.mulf %92, %96 : vector<14x8xf32>
    %98 = vector.extract_strided_slice %84 {offsets = [0, 0], sizes = [8, 8], strides = [1, 1]} : vector<8x32xf32> to vector<8x8xf32>
    %cst_29 = arith.constant dense<0.000000e+00> : vector<14x8xf32>
    %99 = tpu.matmul %97, %98, %cst_29 {dimension_numbers = #tpu.dot_dimension_numbers<[1], [0], [0], [1], [0, 0, 1, 1], [], []>} : vector<14x8xf32>, vector<8x8xf32>, vector<14x8xf32> -> vector<14x8xf32>
    %100 = vector.extract_strided_slice %82 {offsets = [0, 8], sizes = [14, 8], strides = [1, 1]} : vector<14x32xf32> to vector<14x8xf32>
    %101 = vector.extract_strided_slice %83 {offsets = [0, 8], sizes = [8, 8], strides = [1, 1]} : vector<8x32xf32> to vector<8x8xf32>
    "tpu.trace_start"() <{level = 10 : i32, message = "qd,kd->qk"}> : () -> ()
    %cst_30 = arith.constant dense<0.000000e+00> : vector<14x8xf32>
    %102 = tpu.matmul %100, %101, %cst_30 {dimension_numbers = #tpu.dot_dimension_numbers<[1], [1], [0], [0], [0, 0, 1, 0], [], []>} : vector<14x8xf32>, vector<8x8xf32>, vector<14x8xf32> -> vector<14x8xf32>
    "tpu.trace_stop"() : () -> ()
    %cst_31 = arith.constant dense<0xFF800000> : vector<14xf32>
    %103 = vector.multi_reduction <maximumf>, %102, %cst_31 [1] : vector<14x8xf32> to vector<14xf32>
    %104 = vector.shape_cast %103 : vector<14xf32> to vector<14x1xf32>
    %105 = vector.broadcast %104 : vector<14x1xf32> to vector<14x8xf32>
    %106 = arith.subf %102, %105 : vector<14x8xf32>
    %107 = math.exp %106 : vector<14x8xf32>
    %cst_32 = arith.constant dense<0.000000e+00> : vector<14xf32>
    %108 = vector.multi_reduction <add>, %107, %cst_32 [1] : vector<14x8xf32> to vector<14xf32>
    %109 = vector.shape_cast %108 : vector<14xf32> to vector<14x1xf32>
    %110 = tpu.reciprocal %109 {approx = true} : vector<14x1xf32> -> vector<14x1xf32>
    %111 = vector.broadcast %110 : vector<14x1xf32> to vector<14x8xf32>
    %112 = arith.mulf %107, %111 : vector<14x8xf32>
    %113 = vector.extract_strided_slice %84 {offsets = [0, 8], sizes = [8, 8], strides = [1, 1]} : vector<8x32xf32> to vector<8x8xf32>
    %cst_33 = arith.constant dense<0.000000e+00> : vector<14x8xf32>
    %114 = tpu.matmul %112, %113, %cst_33 {dimension_numbers = #tpu.dot_dimension_numbers<[1], [0], [0], [1], [0, 0, 1, 1], [], []>} : vector<14x8xf32>, vector<8x8xf32>, vector<14x8xf32> -> vector<14x8xf32>
    %115 = vector.extract_strided_slice %82 {offsets = [0, 16], sizes = [14, 8], strides = [1, 1]} : vector<14x32xf32> to vector<14x8xf32>
    %116 = vector.extract_strided_slice %83 {offsets = [0, 16], sizes = [8, 8], strides = [1, 1]} : vector<8x32xf32> to vector<8x8xf32>
    "tpu.trace_start"() <{level = 10 : i32, message = "qd,kd->qk"}> : () -> ()
    %cst_34 = arith.constant dense<0.000000e+00> : vector<14x8xf32>
    %117 = tpu.matmul %115, %116, %cst_34 {dimension_numbers = #tpu.dot_dimension_numbers<[1], [1], [0], [0], [0, 0, 1, 0], [], []>} : vector<14x8xf32>, vector<8x8xf32>, vector<14x8xf32> -> vector<14x8xf32>
    "tpu.trace_stop"() : () -> ()
    %cst_35 = arith.constant dense<0xFF800000> : vector<14xf32>
    %118 = vector.multi_reduction <maximumf>, %117, %cst_35 [1] : vector<14x8xf32> to vector<14xf32>
    %119 = vector.shape_cast %118 : vector<14xf32> to vector<14x1xf32>
    %120 = vector.broadcast %119 : vector<14x1xf32> to vector<14x8xf32>
    %121 = arith.subf %117, %120 : vector<14x8xf32>
    %122 = math.exp %121 : vector<14x8xf32>
    %cst_36 = arith.constant dense<0.000000e+00> : vector<14xf32>
    %123 = vector.multi_reduction <add>, %122, %cst_36 [1] : vector<14x8xf32> to vector<14xf32>
    %124 = vector.shape_cast %123 : vector<14xf32> to vector<14x1xf32>
    %125 = tpu.reciprocal %124 {approx = true} : vector<14x1xf32> -> vector<14x1xf32>
    %126 = vector.broadcast %125 : vector<14x1xf32> to vector<14x8xf32>
    %127 = arith.mulf %122, %126 : vector<14x8xf32>
    %128 = vector.extract_strided_slice %84 {offsets = [0, 16], sizes = [8, 8], strides = [1, 1]} : vector<8x32xf32> to vector<8x8xf32>
    %cst_37 = arith.constant dense<0.000000e+00> : vector<14x8xf32>
    %129 = tpu.matmul %127, %128, %cst_37 {dimension_numbers = #tpu.dot_dimension_numbers<[1], [0], [0], [1], [0, 0, 1, 1], [], []>} : vector<14x8xf32>, vector<8x8xf32>, vector<14x8xf32> -> vector<14x8xf32>
    %130 = vector.extract_strided_slice %82 {offsets = [0, 24], sizes = [14, 8], strides = [1, 1]} : vector<14x32xf32> to vector<14x8xf32>
    %131 = vector.extract_strided_slice %83 {offsets = [0, 24], sizes = [8, 8], strides = [1, 1]} : vector<8x32xf32> to vector<8x8xf32>
    "tpu.trace_start"() <{level = 10 : i32, message = "qd,kd->qk"}> : () -> ()
    %cst_38 = arith.constant dense<0.000000e+00> : vector<14x8xf32>
    %132 = tpu.matmul %130, %131, %cst_38 {dimension_numbers = #tpu.dot_dimension_numbers<[1], [1], [0], [0], [0, 0, 1, 0], [], []>} : vector<14x8xf32>, vector<8x8xf32>, vector<14x8xf32> -> vector<14x8xf32>
    "tpu.trace_stop"() : () -> ()
    %cst_39 = arith.constant dense<0xFF800000> : vector<14xf32>
    %133 = vector.multi_reduction <maximumf>, %132, %cst_39 [1] : vector<14x8xf32> to vector<14xf32>
    %134 = vector.shape_cast %133 : vector<14xf32> to vector<14x1xf32>
    %135 = vector.broadcast %134 : vector<14x1xf32> to vector<14x8xf32>
    %136 = arith.subf %132, %135 : vector<14x8xf32>
    %137 = math.exp %136 : vector<14x8xf32>
    %cst_40 = arith.constant dense<0.000000e+00> : vector<14xf32>
    %138 = vector.multi_reduction <add>, %137, %cst_40 [1] : vector<14x8xf32> to vector<14xf32>
    %139 = vector.shape_cast %138 : vector<14xf32> to vector<14x1xf32>
    %140 = tpu.reciprocal %139 {approx = true} : vector<14x1xf32> -> vector<14x1xf32>
    %141 = vector.broadcast %140 : vector<14x1xf32> to vector<14x8xf32>
    %142 = arith.mulf %137, %141 : vector<14x8xf32>
    %143 = vector.extract_strided_slice %84 {offsets = [0, 24], sizes = [8, 8], strides = [1, 1]} : vector<8x32xf32> to vector<8x8xf32>
    %cst_41 = arith.constant dense<0.000000e+00> : vector<14x8xf32>
    %144 = tpu.matmul %142, %143, %cst_41 {dimension_numbers = #tpu.dot_dimension_numbers<[1], [0], [0], [1], [0, 0, 1, 1], [], []>} : vector<14x8xf32>, vector<8x8xf32>, vector<14x8xf32> -> vector<14x8xf32>
    %145 = tpu.concatenate %99, %114, %129, %144 in 1 : vector<14x8xf32>, vector<14x8xf32>, vector<14x8xf32>, vector<14x8xf32> -> vector<14x32xf32>
    %146 = tpu.concatenate %81, %145 in 0 : vector<14x32xf32>, vector<14x32xf32> -> vector<28x32xf32>
    %cst_42 = arith.constant dense<0.000000e+00> : vector<28x128xf32>
    %147 = tpu.matmul %146, %3, %cst_42 {dimension_numbers = #tpu.dot_dimension_numbers<[1], [0], [0], [1], [0, 0, 1, 1], [], []>} : vector<28x32xf32>, vector<32x128xf32>, vector<28x128xf32> -> vector<28x128xf32>
    %148 = vector.extract_strided_slice %147 {offsets = [0, 96], sizes = [28, 32], strides = [1, 1]} : vector<28x128xf32> to vector<28x32xf32>
    %149 = vector.broadcast %6 : vector<1x32xf32> to vector<28x32xf32>
    %150 = arith.addf %148, %149 : vector<28x32xf32>
    %151 = arith.addf %150, %0 : vector<28x32xf32>
    %cst_43 = arith.constant dense<0.000000e+00> : vector<28xf32>
    %152 = vector.multi_reduction <add>, %151, %cst_43 [1] : vector<28x32xf32> to vector<28xf32>
    %153 = vector.shape_cast %152 : vector<28xf32> to vector<28x1xf32>
    %cst_44 = arith.constant 3.200000e+01 : f32
    %154 = vector.broadcast %cst_44 : f32 to vector<28x1xf32>
    %155 = arith.divf %153, %154 : vector<28x1xf32>
    %156 = vector.broadcast %155 : vector<28x1xf32> to vector<28x32xf32>
    %157 = arith.subf %151, %156 : vector<28x32xf32>
    %158 = arith.mulf %157, %157 : vector<28x32xf32>
    %cst_45 = arith.constant dense<0.000000e+00> : vector<28xf32>
    %159 = vector.multi_reduction <add>, %158, %cst_45 [1] : vector<28x32xf32> to vector<28xf32>
    %160 = vector.shape_cast %159 : vector<28xf32> to vector<28x1xf32>
    %cst_46 = arith.constant 3.200000e+01 : f32
    %161 = vector.broadcast %cst_46 : f32 to vector<28x1xf32>
    %162 = arith.divf %160, %161 : vector<28x1xf32>
    %163 = vector.broadcast %155 : vector<28x1xf32> to vector<28x32xf32>
    %164 = arith.subf %151, %163 : vector<28x32xf32>
    %cst_47 = arith.constant 9.99999974E-6 : f32
    %165 = vector.broadcast %cst_47 : f32 to vector<28x1xf32>
    %166 = arith.addf %162, %165 : vector<28x1xf32>
    %167 = math.rsqrt %166 : vector<28x1xf32>
    %168 = vector.broadcast %167 : vector<28x1xf32> to vector<28x32xf32>
    %169 = arith.mulf %164, %168 : vector<28x32xf32>
    %170 = vector.broadcast %7 : vector<1x32xf32> to vector<28x32xf32>
    %171 = arith.mulf %169, %170 : vector<28x32xf32>
    %172 = vector.broadcast %8 : vector<1x32xf32> to vector<28x32xf32>
    %173 = arith.addf %171, %172 : vector<28x32xf32>
    %c48 = arith.constant 48 : index
    %c0_48 = arith.constant 0 : index
    %174 = vector.load %arg3[%c48, %c0_48] : memref<320x128xf32, #tpu.memory_space<vmem>>, vector<32x128xf32>
    %c80 = arith.constant 80 : index
    %c0_49 = arith.constant 0 : index
    %175 = vector.load %arg3[%c80, %c0_49] : memref<320x128xf32, #tpu.memory_space<vmem>>, vector<1x128xf32>
    %c88 = arith.constant 88 : index
    %c0_50 = arith.constant 0 : index
    %176 = vector.load %arg3[%c88, %c0_50] : memref<320x128xf32, #tpu.memory_space<vmem>>, vector<1x128xf32>
    %177 = vector.extract_strided_slice %176 {offsets = [0, 0], sizes = [1, 32], strides = [1, 1]} : vector<1x128xf32> to vector<1x32xf32>
    %178 = vector.extract_strided_slice %176 {offsets = [0, 32], sizes = [1, 32], strides = [1, 1]} : vector<1x128xf32> to vector<1x32xf32>
    %179 = vector.extract_strided_slice %176 {offsets = [0, 64], sizes = [1, 32], strides = [1, 1]} : vector<1x128xf32> to vector<1x32xf32>
    %cst_51 = arith.constant dense<0.000000e+00> : vector<28x128xf32>
    %180 = tpu.matmul %173, %174, %cst_51 {dimension_numbers = #tpu.dot_dimension_numbers<[1], [0], [0], [1], [0, 0, 1, 1], [], []>} : vector<28x32xf32>, vector<32x128xf32>, vector<28x128xf32> -> vector<28x128xf32>
    %181 = vector.broadcast %175 : vector<1x128xf32> to vector<28x128xf32>
    %182 = arith.addf %180, %181 : vector<28x128xf32>
    %183 = vector.extract_strided_slice %182 {offsets = [0, 0], sizes = [28, 32], strides = [1, 1]} : vector<28x128xf32> to vector<28x32xf32>
    %184 = vector.extract_strided_slice %182 {offsets = [0, 32], sizes = [28, 32], strides = [1, 1]} : vector<28x128xf32> to vector<28x32xf32>
    %185 = vector.extract_strided_slice %182 {offsets = [0, 64], sizes = [28, 32], strides = [1, 1]} : vector<28x128xf32> to vector<28x32xf32>
    %186 = vector.extract_strided_slice %183 {offsets = [0, 0], sizes = [14, 32], strides = [1, 1]} : vector<28x32xf32> to vector<14x32xf32>
    %187 = vector.extract_strided_slice %184 {offsets = [0, 0], sizes = [14, 32], strides = [1, 1]} : vector<28x32xf32> to vector<14x32xf32>
    %188 = vector.extract_strided_slice %185 {offsets = [0, 0], sizes = [14, 32], strides = [1, 1]} : vector<28x32xf32> to vector<14x32xf32>
    %189 = vector.extract_strided_slice %186 {offsets = [0, 0], sizes = [14, 8], strides = [1, 1]} : vector<14x32xf32> to vector<14x8xf32>
    %190 = vector.extract_strided_slice %187 {offsets = [0, 0], sizes = [14, 8], strides = [1, 1]} : vector<14x32xf32> to vector<14x8xf32>
    "tpu.trace_start"() <{level = 10 : i32, message = "qd,kd->qk"}> : () -> ()
    %cst_52 = arith.constant dense<0.000000e+00> : vector<14x14xf32>
    %191 = tpu.matmul %189, %190, %cst_52 {dimension_numbers = #tpu.dot_dimension_numbers<[1], [1], [0], [0], [0, 0, 1, 0], [], []>} : vector<14x8xf32>, vector<14x8xf32>, vector<14x14xf32> -> vector<14x14xf32>
    "tpu.trace_stop"() : () -> ()
    %cst_53 = arith.constant dense<0xFF800000> : vector<14xf32>
    %192 = vector.multi_reduction <maximumf>, %191, %cst_53 [1] : vector<14x14xf32> to vector<14xf32>
    %193 = vector.shape_cast %192 : vector<14xf32> to vector<14x1xf32>
    %194 = vector.broadcast %193 : vector<14x1xf32> to vector<14x14xf32>
    %195 = arith.subf %191, %194 : vector<14x14xf32>
    %196 = math.exp %195 : vector<14x14xf32>
    %cst_54 = arith.constant dense<0.000000e+00> : vector<14xf32>
    %197 = vector.multi_reduction <add>, %196, %cst_54 [1] : vector<14x14xf32> to vector<14xf32>
    %198 = vector.shape_cast %197 : vector<14xf32> to vector<14x1xf32>
    %199 = tpu.reciprocal %198 {approx = true} : vector<14x1xf32> -> vector<14x1xf32>
    %200 = vector.broadcast %199 : vector<14x1xf32> to vector<14x14xf32>
    %201 = arith.mulf %196, %200 : vector<14x14xf32>
    %202 = vector.extract_strided_slice %188 {offsets = [0, 0], sizes = [14, 8], strides = [1, 1]} : vector<14x32xf32> to vector<14x8xf32>
    %cst_55 = arith.constant dense<0.000000e+00> : vector<14x8xf32>
    %203 = tpu.matmul %201, %202, %cst_55 {dimension_numbers = #tpu.dot_dimension_numbers<[1], [0], [0], [1], [0, 0, 1, 1], [], []>} : vector<14x14xf32>, vector<14x8xf32>, vector<14x8xf32> -> vector<14x8xf32>
    %204 = vector.extract_strided_slice %186 {offsets = [0, 8], sizes = [14, 8], strides = [1, 1]} : vector<14x32xf32> to vector<14x8xf32>
    %205 = vector.extract_strided_slice %187 {offsets = [0, 8], sizes = [14, 8], strides = [1, 1]} : vector<14x32xf32> to vector<14x8xf32>
    "tpu.trace_start"() <{level = 10 : i32, message = "qd,kd->qk"}> : () -> ()
    %cst_56 = arith.constant dense<0.000000e+00> : vector<14x14xf32>
    %206 = tpu.matmul %204, %205, %cst_56 {dimension_numbers = #tpu.dot_dimension_numbers<[1], [1], [0], [0], [0, 0, 1, 0], [], []>} : vector<14x8xf32>, vector<14x8xf32>, vector<14x14xf32> -> vector<14x14xf32>
    "tpu.trace_stop"() : () -> ()
    %cst_57 = arith.constant dense<0xFF800000> : vector<14xf32>
    %207 = vector.multi_reduction <maximumf>, %206, %cst_57 [1] : vector<14x14xf32> to vector<14xf32>
    %208 = vector.shape_cast %207 : vector<14xf32> to vector<14x1xf32>
    %209 = vector.broadcast %208 : vector<14x1xf32> to vector<14x14xf32>
    %210 = arith.subf %206, %209 : vector<14x14xf32>
    %211 = math.exp %210 : vector<14x14xf32>
    %cst_58 = arith.constant dense<0.000000e+00> : vector<14xf32>
    %212 = vector.multi_reduction <add>, %211, %cst_58 [1] : vector<14x14xf32> to vector<14xf32>
    %213 = vector.shape_cast %212 : vector<14xf32> to vector<14x1xf32>
    %214 = tpu.reciprocal %213 {approx = true} : vector<14x1xf32> -> vector<14x1xf32>
    %215 = vector.broadcast %214 : vector<14x1xf32> to vector<14x14xf32>
    %216 = arith.mulf %211, %215 : vector<14x14xf32>
    %217 = vector.extract_strided_slice %188 {offsets = [0, 8], sizes = [14, 8], strides = [1, 1]} : vector<14x32xf32> to vector<14x8xf32>
    %cst_59 = arith.constant dense<0.000000e+00> : vector<14x8xf32>
    %218 = tpu.matmul %216, %217, %cst_59 {dimension_numbers = #tpu.dot_dimension_numbers<[1], [0], [0], [1], [0, 0, 1, 1], [], []>} : vector<14x14xf32>, vector<14x8xf32>, vector<14x8xf32> -> vector<14x8xf32>
    %219 = vector.extract_strided_slice %186 {offsets = [0, 16], sizes = [14, 8], strides = [1, 1]} : vector<14x32xf32> to vector<14x8xf32>
    %220 = vector.extract_strided_slice %187 {offsets = [0, 16], sizes = [14, 8], strides = [1, 1]} : vector<14x32xf32> to vector<14x8xf32>
    "tpu.trace_start"() <{level = 10 : i32, message = "qd,kd->qk"}> : () -> ()
    %cst_60 = arith.constant dense<0.000000e+00> : vector<14x14xf32>
    %221 = tpu.matmul %219, %220, %cst_60 {dimension_numbers = #tpu.dot_dimension_numbers<[1], [1], [0], [0], [0, 0, 1, 0], [], []>} : vector<14x8xf32>, vector<14x8xf32>, vector<14x14xf32> -> vector<14x14xf32>
    "tpu.trace_stop"() : () -> ()
    %cst_61 = arith.constant dense<0xFF800000> : vector<14xf32>
    %222 = vector.multi_reduction <maximumf>, %221, %cst_61 [1] : vector<14x14xf32> to vector<14xf32>
    %223 = vector.shape_cast %222 : vector<14xf32> to vector<14x1xf32>
    %224 = vector.broadcast %223 : vector<14x1xf32> to vector<14x14xf32>
    %225 = arith.subf %221, %224 : vector<14x14xf32>
    %226 = math.exp %225 : vector<14x14xf32>
    %cst_62 = arith.constant dense<0.000000e+00> : vector<14xf32>
    %227 = vector.multi_reduction <add>, %226, %cst_62 [1] : vector<14x14xf32> to vector<14xf32>
    %228 = vector.shape_cast %227 : vector<14xf32> to vector<14x1xf32>
    %229 = tpu.reciprocal %228 {approx = true} : vector<14x1xf32> -> vector<14x1xf32>
    %230 = vector.broadcast %229 : vector<14x1xf32> to vector<14x14xf32>
    %231 = arith.mulf %226, %230 : vector<14x14xf32>
    %232 = vector.extract_strided_slice %188 {offsets = [0, 16], sizes = [14, 8], strides = [1, 1]} : vector<14x32xf32> to vector<14x8xf32>
    %cst_63 = arith.constant dense<0.000000e+00> : vector<14x8xf32>
    %233 = tpu.matmul %231, %232, %cst_63 {dimension_numbers = #tpu.dot_dimension_numbers<[1], [0], [0], [1], [0, 0, 1, 1], [], []>} : vector<14x14xf32>, vector<14x8xf32>, vector<14x8xf32> -> vector<14x8xf32>
    %234 = vector.extract_strided_slice %186 {offsets = [0, 24], sizes = [14, 8], strides = [1, 1]} : vector<14x32xf32> to vector<14x8xf32>
    %235 = vector.extract_strided_slice %187 {offsets = [0, 24], sizes = [14, 8], strides = [1, 1]} : vector<14x32xf32> to vector<14x8xf32>
    "tpu.trace_start"() <{level = 10 : i32, message = "qd,kd->qk"}> : () -> ()
    %cst_64 = arith.constant dense<0.000000e+00> : vector<14x14xf32>
    %236 = tpu.matmul %234, %235, %cst_64 {dimension_numbers = #tpu.dot_dimension_numbers<[1], [1], [0], [0], [0, 0, 1, 0], [], []>} : vector<14x8xf32>, vector<14x8xf32>, vector<14x14xf32> -> vector<14x14xf32>
    "tpu.trace_stop"() : () -> ()
    %cst_65 = arith.constant dense<0xFF800000> : vector<14xf32>
    %237 = vector.multi_reduction <maximumf>, %236, %cst_65 [1] : vector<14x14xf32> to vector<14xf32>
    %238 = vector.shape_cast %237 : vector<14xf32> to vector<14x1xf32>
    %239 = vector.broadcast %238 : vector<14x1xf32> to vector<14x14xf32>
    %240 = arith.subf %236, %239 : vector<14x14xf32>
    %241 = math.exp %240 : vector<14x14xf32>
    %cst_66 = arith.constant dense<0.000000e+00> : vector<14xf32>
    %242 = vector.multi_reduction <add>, %241, %cst_66 [1] : vector<14x14xf32> to vector<14xf32>
    %243 = vector.shape_cast %242 : vector<14xf32> to vector<14x1xf32>
    %244 = tpu.reciprocal %243 {approx = true} : vector<14x1xf32> -> vector<14x1xf32>
    %245 = vector.broadcast %244 : vector<14x1xf32> to vector<14x14xf32>
    %246 = arith.mulf %241, %245 : vector<14x14xf32>
    %247 = vector.extract_strided_slice %188 {offsets = [0, 24], sizes = [14, 8], strides = [1, 1]} : vector<14x32xf32> to vector<14x8xf32>
    %cst_67 = arith.constant dense<0.000000e+00> : vector<14x8xf32>
    %248 = tpu.matmul %246, %247, %cst_67 {dimension_numbers = #tpu.dot_dimension_numbers<[1], [0], [0], [1], [0, 0, 1, 1], [], []>} : vector<14x14xf32>, vector<14x8xf32>, vector<14x8xf32> -> vector<14x8xf32>
    %249 = tpu.concatenate %203, %218, %233, %248 in 1 : vector<14x8xf32>, vector<14x8xf32>, vector<14x8xf32>, vector<14x8xf32> -> vector<14x32xf32>
    %250 = vector.extract_strided_slice %183 {offsets = [14, 0], sizes = [14, 32], strides = [1, 1]} : vector<28x32xf32> to vector<14x32xf32>
    %251 = vector.extract_strided_slice %184 {offsets = [14, 0], sizes = [14, 32], strides = [1, 1]} : vector<28x32xf32> to vector<14x32xf32>
    %252 = vector.extract_strided_slice %185 {offsets = [14, 0], sizes = [14, 32], strides = [1, 1]} : vector<28x32xf32> to vector<14x32xf32>
    %253 = vector.extract_strided_slice %250 {offsets = [0, 0], sizes = [14, 8], strides = [1, 1]} : vector<14x32xf32> to vector<14x8xf32>
    %254 = vector.extract_strided_slice %251 {offsets = [0, 0], sizes = [14, 8], strides = [1, 1]} : vector<14x32xf32> to vector<14x8xf32>
    "tpu.trace_start"() <{level = 10 : i32, message = "qd,kd->qk"}> : () -> ()
    %cst_68 = arith.constant dense<0.000000e+00> : vector<14x14xf32>
    %255 = tpu.matmul %253, %254, %cst_68 {dimension_numbers = #tpu.dot_dimension_numbers<[1], [1], [0], [0], [0, 0, 1, 0], [], []>} : vector<14x8xf32>, vector<14x8xf32>, vector<14x14xf32> -> vector<14x14xf32>
    "tpu.trace_stop"() : () -> ()
    %cst_69 = arith.constant dense<0xFF800000> : vector<14xf32>
    %256 = vector.multi_reduction <maximumf>, %255, %cst_69 [1] : vector<14x14xf32> to vector<14xf32>
    %257 = vector.shape_cast %256 : vector<14xf32> to vector<14x1xf32>
    %258 = vector.broadcast %257 : vector<14x1xf32> to vector<14x14xf32>
    %259 = arith.subf %255, %258 : vector<14x14xf32>
    %260 = math.exp %259 : vector<14x14xf32>
    %cst_70 = arith.constant dense<0.000000e+00> : vector<14xf32>
    %261 = vector.multi_reduction <add>, %260, %cst_70 [1] : vector<14x14xf32> to vector<14xf32>
    %262 = vector.shape_cast %261 : vector<14xf32> to vector<14x1xf32>
    %263 = tpu.reciprocal %262 {approx = true} : vector<14x1xf32> -> vector<14x1xf32>
    %264 = vector.broadcast %263 : vector<14x1xf32> to vector<14x14xf32>
    %265 = arith.mulf %260, %264 : vector<14x14xf32>
    %266 = vector.extract_strided_slice %252 {offsets = [0, 0], sizes = [14, 8], strides = [1, 1]} : vector<14x32xf32> to vector<14x8xf32>
    %cst_71 = arith.constant dense<0.000000e+00> : vector<14x8xf32>
    %267 = tpu.matmul %265, %266, %cst_71 {dimension_numbers = #tpu.dot_dimension_numbers<[1], [0], [0], [1], [0, 0, 1, 1], [], []>} : vector<14x14xf32>, vector<14x8xf32>, vector<14x8xf32> -> vector<14x8xf32>
    %268 = vector.extract_strided_slice %250 {offsets = [0, 8], sizes = [14, 8], strides = [1, 1]} : vector<14x32xf32> to vector<14x8xf32>
    %269 = vector.extract_strided_slice %251 {offsets = [0, 8], sizes = [14, 8], strides = [1, 1]} : vector<14x32xf32> to vector<14x8xf32>
    "tpu.trace_start"() <{level = 10 : i32, message = "qd,kd->qk"}> : () -> ()
    %cst_72 = arith.constant dense<0.000000e+00> : vector<14x14xf32>
    %270 = tpu.matmul %268, %269, %cst_72 {dimension_numbers = #tpu.dot_dimension_numbers<[1], [1], [0], [0], [0, 0, 1, 0], [], []>} : vector<14x8xf32>, vector<14x8xf32>, vector<14x14xf32> -> vector<14x14xf32>
    "tpu.trace_stop"() : () -> ()
    %cst_73 = arith.constant dense<0xFF800000> : vector<14xf32>
    %271 = vector.multi_reduction <maximumf>, %270, %cst_73 [1] : vector<14x14xf32> to vector<14xf32>
    %272 = vector.shape_cast %271 : vector<14xf32> to vector<14x1xf32>
    %273 = vector.broadcast %272 : vector<14x1xf32> to vector<14x14xf32>
    %274 = arith.subf %270, %273 : vector<14x14xf32>
    %275 = math.exp %274 : vector<14x14xf32>
    %cst_74 = arith.constant dense<0.000000e+00> : vector<14xf32>
    %276 = vector.multi_reduction <add>, %275, %cst_74 [1] : vector<14x14xf32> to vector<14xf32>
    %277 = vector.shape_cast %276 : vector<14xf32> to vector<14x1xf32>
    %278 = tpu.reciprocal %277 {approx = true} : vector<14x1xf32> -> vector<14x1xf32>
    %279 = vector.broadcast %278 : vector<14x1xf32> to vector<14x14xf32>
    %280 = arith.mulf %275, %279 : vector<14x14xf32>
    %281 = vector.extract_strided_slice %252 {offsets = [0, 8], sizes = [14, 8], strides = [1, 1]} : vector<14x32xf32> to vector<14x8xf32>
    %cst_75 = arith.constant dense<0.000000e+00> : vector<14x8xf32>
    %282 = tpu.matmul %280, %281, %cst_75 {dimension_numbers = #tpu.dot_dimension_numbers<[1], [0], [0], [1], [0, 0, 1, 1], [], []>} : vector<14x14xf32>, vector<14x8xf32>, vector<14x8xf32> -> vector<14x8xf32>
    %283 = vector.extract_strided_slice %250 {offsets = [0, 16], sizes = [14, 8], strides = [1, 1]} : vector<14x32xf32> to vector<14x8xf32>
    %284 = vector.extract_strided_slice %251 {offsets = [0, 16], sizes = [14, 8], strides = [1, 1]} : vector<14x32xf32> to vector<14x8xf32>
    "tpu.trace_start"() <{level = 10 : i32, message = "qd,kd->qk"}> : () -> ()
    %cst_76 = arith.constant dense<0.000000e+00> : vector<14x14xf32>
    %285 = tpu.matmul %283, %284, %cst_76 {dimension_numbers = #tpu.dot_dimension_numbers<[1], [1], [0], [0], [0, 0, 1, 0], [], []>} : vector<14x8xf32>, vector<14x8xf32>, vector<14x14xf32> -> vector<14x14xf32>
    "tpu.trace_stop"() : () -> ()
    %cst_77 = arith.constant dense<0xFF800000> : vector<14xf32>
    %286 = vector.multi_reduction <maximumf>, %285, %cst_77 [1] : vector<14x14xf32> to vector<14xf32>
    %287 = vector.shape_cast %286 : vector<14xf32> to vector<14x1xf32>
    %288 = vector.broadcast %287 : vector<14x1xf32> to vector<14x14xf32>
    %289 = arith.subf %285, %288 : vector<14x14xf32>
    %290 = math.exp %289 : vector<14x14xf32>
    %cst_78 = arith.constant dense<0.000000e+00> : vector<14xf32>
    %291 = vector.multi_reduction <add>, %290, %cst_78 [1] : vector<14x14xf32> to vector<14xf32>
    %292 = vector.shape_cast %291 : vector<14xf32> to vector<14x1xf32>
    %293 = tpu.reciprocal %292 {approx = true} : vector<14x1xf32> -> vector<14x1xf32>
    %294 = vector.broadcast %293 : vector<14x1xf32> to vector<14x14xf32>
    %295 = arith.mulf %290, %294 : vector<14x14xf32>
    %296 = vector.extract_strided_slice %252 {offsets = [0, 16], sizes = [14, 8], strides = [1, 1]} : vector<14x32xf32> to vector<14x8xf32>
    %cst_79 = arith.constant dense<0.000000e+00> : vector<14x8xf32>
    %297 = tpu.matmul %295, %296, %cst_79 {dimension_numbers = #tpu.dot_dimension_numbers<[1], [0], [0], [1], [0, 0, 1, 1], [], []>} : vector<14x14xf32>, vector<14x8xf32>, vector<14x8xf32> -> vector<14x8xf32>
    %298 = vector.extract_strided_slice %250 {offsets = [0, 24], sizes = [14, 8], strides = [1, 1]} : vector<14x32xf32> to vector<14x8xf32>
    %299 = vector.extract_strided_slice %251 {offsets = [0, 24], sizes = [14, 8], strides = [1, 1]} : vector<14x32xf32> to vector<14x8xf32>
    "tpu.trace_start"() <{level = 10 : i32, message = "qd,kd->qk"}> : () -> ()
    %cst_80 = arith.constant dense<0.000000e+00> : vector<14x14xf32>
    %300 = tpu.matmul %298, %299, %cst_80 {dimension_numbers = #tpu.dot_dimension_numbers<[1], [1], [0], [0], [0, 0, 1, 0], [], []>} : vector<14x8xf32>, vector<14x8xf32>, vector<14x14xf32> -> vector<14x14xf32>
    "tpu.trace_stop"() : () -> ()
    %cst_81 = arith.constant dense<0xFF800000> : vector<14xf32>
    %301 = vector.multi_reduction <maximumf>, %300, %cst_81 [1] : vector<14x14xf32> to vector<14xf32>
    %302 = vector.shape_cast %301 : vector<14xf32> to vector<14x1xf32>
    %303 = vector.broadcast %302 : vector<14x1xf32> to vector<14x14xf32>
    %304 = arith.subf %300, %303 : vector<14x14xf32>
    %305 = math.exp %304 : vector<14x14xf32>
    %cst_82 = arith.constant dense<0.000000e+00> : vector<14xf32>
    %306 = vector.multi_reduction <add>, %305, %cst_82 [1] : vector<14x14xf32> to vector<14xf32>
    %307 = vector.shape_cast %306 : vector<14xf32> to vector<14x1xf32>
    %308 = tpu.reciprocal %307 {approx = true} : vector<14x1xf32> -> vector<14x1xf32>
    %309 = vector.broadcast %308 : vector<14x1xf32> to vector<14x14xf32>
    %310 = arith.mulf %305, %309 : vector<14x14xf32>
    %311 = vector.extract_strided_slice %252 {offsets = [0, 24], sizes = [14, 8], strides = [1, 1]} : vector<14x32xf32> to vector<14x8xf32>
    %cst_83 = arith.constant dense<0.000000e+00> : vector<14x8xf32>
    %312 = tpu.matmul %310, %311, %cst_83 {dimension_numbers = #tpu.dot_dimension_numbers<[1], [0], [0], [1], [0, 0, 1, 1], [], []>} : vector<14x14xf32>, vector<14x8xf32>, vector<14x8xf32> -> vector<14x8xf32>
    %313 = tpu.concatenate %267, %282, %297, %312 in 1 : vector<14x8xf32>, vector<14x8xf32>, vector<14x8xf32>, vector<14x8xf32> -> vector<14x32xf32>
    %314 = tpu.concatenate %249, %313 in 0 : vector<14x32xf32>, vector<14x32xf32> -> vector<28x32xf32>
    %cst_84 = arith.constant dense<0.000000e+00> : vector<28x128xf32>
    %315 = tpu.matmul %314, %174, %cst_84 {dimension_numbers = #tpu.dot_dimension_numbers<[1], [0], [0], [1], [0, 0, 1, 1], [], []>} : vector<28x32xf32>, vector<32x128xf32>, vector<28x128xf32> -> vector<28x128xf32>
    %316 = vector.extract_strided_slice %315 {offsets = [0, 96], sizes = [28, 32], strides = [1, 1]} : vector<28x128xf32> to vector<28x32xf32>
    %317 = vector.broadcast %177 : vector<1x32xf32> to vector<28x32xf32>
    %318 = arith.addf %316, %317 : vector<28x32xf32>
    %319 = arith.addf %318, %173 : vector<28x32xf32>
    %cst_85 = arith.constant dense<0.000000e+00> : vector<28xf32>
    %320 = vector.multi_reduction <add>, %319, %cst_85 [1] : vector<28x32xf32> to vector<28xf32>
    %321 = vector.shape_cast %320 : vector<28xf32> to vector<28x1xf32>
    %cst_86 = arith.constant 3.200000e+01 : f32
    %322 = vector.broadcast %cst_86 : f32 to vector<28x1xf32>
    %323 = arith.divf %321, %322 : vector<28x1xf32>
    %324 = vector.broadcast %323 : vector<28x1xf32> to vector<28x32xf32>
    %325 = arith.subf %319, %324 : vector<28x32xf32>
    %326 = arith.mulf %325, %325 : vector<28x32xf32>
    %cst_87 = arith.constant dense<0.000000e+00> : vector<28xf32>
    %327 = vector.multi_reduction <add>, %326, %cst_87 [1] : vector<28x32xf32> to vector<28xf32>
    %328 = vector.shape_cast %327 : vector<28xf32> to vector<28x1xf32>
    %cst_88 = arith.constant 3.200000e+01 : f32
    %329 = vector.broadcast %cst_88 : f32 to vector<28x1xf32>
    %330 = arith.divf %328, %329 : vector<28x1xf32>
    %331 = vector.broadcast %323 : vector<28x1xf32> to vector<28x32xf32>
    %332 = arith.subf %319, %331 : vector<28x32xf32>
    %cst_89 = arith.constant 9.99999974E-6 : f32
    %333 = vector.broadcast %cst_89 : f32 to vector<28x1xf32>
    %334 = arith.addf %330, %333 : vector<28x1xf32>
    %335 = math.rsqrt %334 : vector<28x1xf32>
    %336 = vector.broadcast %335 : vector<28x1xf32> to vector<28x32xf32>
    %337 = arith.mulf %332, %336 : vector<28x32xf32>
    %338 = vector.broadcast %178 : vector<1x32xf32> to vector<28x32xf32>
    %339 = arith.mulf %337, %338 : vector<28x32xf32>
    %340 = vector.broadcast %179 : vector<1x32xf32> to vector<28x32xf32>
    %341 = arith.addf %339, %340 : vector<28x32xf32>
    %c96 = arith.constant 96 : index
    %c0_90 = arith.constant 0 : index
    %342 = vector.load %arg3[%c96, %c0_90] : memref<320x128xf32, #tpu.memory_space<vmem>>, vector<32x128xf32>
    %c128 = arith.constant 128 : index
    %c0_91 = arith.constant 0 : index
    %343 = vector.load %arg3[%c128, %c0_91] : memref<320x128xf32, #tpu.memory_space<vmem>>, vector<1x128xf32>
    %c136 = arith.constant 136 : index
    %c0_92 = arith.constant 0 : index
    %344 = vector.load %arg3[%c136, %c0_92] : memref<320x128xf32, #tpu.memory_space<vmem>>, vector<1x128xf32>
    %345 = vector.extract_strided_slice %344 {offsets = [0, 0], sizes = [1, 32], strides = [1, 1]} : vector<1x128xf32> to vector<1x32xf32>
    %346 = vector.extract_strided_slice %344 {offsets = [0, 32], sizes = [1, 32], strides = [1, 1]} : vector<1x128xf32> to vector<1x32xf32>
    %347 = vector.extract_strided_slice %344 {offsets = [0, 64], sizes = [1, 32], strides = [1, 1]} : vector<1x128xf32> to vector<1x32xf32>
    %cst_93 = arith.constant dense<0.000000e+00> : vector<28x128xf32>
    %348 = tpu.matmul %341, %342, %cst_93 {dimension_numbers = #tpu.dot_dimension_numbers<[1], [0], [0], [1], [0, 0, 1, 1], [], []>} : vector<28x32xf32>, vector<32x128xf32>, vector<28x128xf32> -> vector<28x128xf32>
    %349 = vector.broadcast %343 : vector<1x128xf32> to vector<28x128xf32>
    %350 = arith.addf %348, %349 : vector<28x128xf32>
    %cst_94 = arith.constant dense<0.000000e+00> : vector<32x128xf32>
    %351 = tpu.matmul %1, %342, %cst_94 {dimension_numbers = #tpu.dot_dimension_numbers<[1], [0], [0], [1], [0, 0, 1, 1], [], []>} : vector<32x32xf32>, vector<32x128xf32>, vector<32x128xf32> -> vector<32x128xf32>
    %352 = vector.broadcast %343 : vector<1x128xf32> to vector<32x128xf32>
    %353 = arith.addf %351, %352 : vector<32x128xf32>
    %354 = vector.extract_strided_slice %350 {offsets = [0, 0], sizes = [28, 32], strides = [1, 1]} : vector<28x128xf32> to vector<28x32xf32>
    %355 = vector.extract_strided_slice %353 {offsets = [0, 32], sizes = [32, 32], strides = [1, 1]} : vector<32x128xf32> to vector<32x32xf32>
    %356 = vector.extract_strided_slice %353 {offsets = [0, 64], sizes = [32, 32], strides = [1, 1]} : vector<32x128xf32> to vector<32x32xf32>
    %357 = vector.extract_strided_slice %354 {offsets = [0, 0], sizes = [14, 32], strides = [1, 1]} : vector<28x32xf32> to vector<14x32xf32>
    %358 = vector.extract_strided_slice %355 {offsets = [0, 0], sizes = [16, 32], strides = [1, 1]} : vector<32x32xf32> to vector<16x32xf32>
    %359 = vector.extract_strided_slice %356 {offsets = [0, 0], sizes = [16, 32], strides = [1, 1]} : vector<32x32xf32> to vector<16x32xf32>
    %360 = vector.extract_strided_slice %357 {offsets = [0, 0], sizes = [14, 8], strides = [1, 1]} : vector<14x32xf32> to vector<14x8xf32>
    %361 = vector.extract_strided_slice %358 {offsets = [0, 0], sizes = [16, 8], strides = [1, 1]} : vector<16x32xf32> to vector<16x8xf32>
    "tpu.trace_start"() <{level = 10 : i32, message = "qd,kd->qk"}> : () -> ()
    %cst_95 = arith.constant dense<0.000000e+00> : vector<14x16xf32>
    %362 = tpu.matmul %360, %361, %cst_95 {dimension_numbers = #tpu.dot_dimension_numbers<[1], [1], [0], [0], [0, 0, 1, 0], [], []>} : vector<14x8xf32>, vector<16x8xf32>, vector<14x16xf32> -> vector<14x16xf32>
    "tpu.trace_stop"() : () -> ()
    %cst_96 = arith.constant dense<0xFF800000> : vector<14xf32>
    %363 = vector.multi_reduction <maximumf>, %362, %cst_96 [1] : vector<14x16xf32> to vector<14xf32>
    %364 = vector.shape_cast %363 : vector<14xf32> to vector<14x1xf32>
    %365 = vector.broadcast %364 : vector<14x1xf32> to vector<14x16xf32>
    %366 = arith.subf %362, %365 : vector<14x16xf32>
    %367 = math.exp %366 : vector<14x16xf32>
    %cst_97 = arith.constant dense<0.000000e+00> : vector<14xf32>
    %368 = vector.multi_reduction <add>, %367, %cst_97 [1] : vector<14x16xf32> to vector<14xf32>
    %369 = vector.shape_cast %368 : vector<14xf32> to vector<14x1xf32>
    %370 = tpu.reciprocal %369 {approx = true} : vector<14x1xf32> -> vector<14x1xf32>
    %371 = vector.broadcast %370 : vector<14x1xf32> to vector<14x16xf32>
    %372 = arith.mulf %367, %371 : vector<14x16xf32>
    %373 = vector.extract_strided_slice %359 {offsets = [0, 0], sizes = [16, 8], strides = [1, 1]} : vector<16x32xf32> to vector<16x8xf32>
    %cst_98 = arith.constant dense<0.000000e+00> : vector<14x8xf32>
    %374 = tpu.matmul %372, %373, %cst_98 {dimension_numbers = #tpu.dot_dimension_numbers<[1], [0], [0], [1], [0, 0, 1, 1], [], []>} : vector<14x16xf32>, vector<16x8xf32>, vector<14x8xf32> -> vector<14x8xf32>
    %375 = vector.extract_strided_slice %357 {offsets = [0, 8], sizes = [14, 8], strides = [1, 1]} : vector<14x32xf32> to vector<14x8xf32>
    %376 = vector.extract_strided_slice %358 {offsets = [0, 8], sizes = [16, 8], strides = [1, 1]} : vector<16x32xf32> to vector<16x8xf32>
    "tpu.trace_start"() <{level = 10 : i32, message = "qd,kd->qk"}> : () -> ()
    %cst_99 = arith.constant dense<0.000000e+00> : vector<14x16xf32>
    %377 = tpu.matmul %375, %376, %cst_99 {dimension_numbers = #tpu.dot_dimension_numbers<[1], [1], [0], [0], [0, 0, 1, 0], [], []>} : vector<14x8xf32>, vector<16x8xf32>, vector<14x16xf32> -> vector<14x16xf32>
    "tpu.trace_stop"() : () -> ()
    %cst_100 = arith.constant dense<0xFF800000> : vector<14xf32>
    %378 = vector.multi_reduction <maximumf>, %377, %cst_100 [1] : vector<14x16xf32> to vector<14xf32>
    %379 = vector.shape_cast %378 : vector<14xf32> to vector<14x1xf32>
    %380 = vector.broadcast %379 : vector<14x1xf32> to vector<14x16xf32>
    %381 = arith.subf %377, %380 : vector<14x16xf32>
    %382 = math.exp %381 : vector<14x16xf32>
    %cst_101 = arith.constant dense<0.000000e+00> : vector<14xf32>
    %383 = vector.multi_reduction <add>, %382, %cst_101 [1] : vector<14x16xf32> to vector<14xf32>
    %384 = vector.shape_cast %383 : vector<14xf32> to vector<14x1xf32>
    %385 = tpu.reciprocal %384 {approx = true} : vector<14x1xf32> -> vector<14x1xf32>
    %386 = vector.broadcast %385 : vector<14x1xf32> to vector<14x16xf32>
    %387 = arith.mulf %382, %386 : vector<14x16xf32>
    %388 = vector.extract_strided_slice %359 {offsets = [0, 8], sizes = [16, 8], strides = [1, 1]} : vector<16x32xf32> to vector<16x8xf32>
    %cst_102 = arith.constant dense<0.000000e+00> : vector<14x8xf32>
    %389 = tpu.matmul %387, %388, %cst_102 {dimension_numbers = #tpu.dot_dimension_numbers<[1], [0], [0], [1], [0, 0, 1, 1], [], []>} : vector<14x16xf32>, vector<16x8xf32>, vector<14x8xf32> -> vector<14x8xf32>
    %390 = arith.addf %372, %387 : vector<14x16xf32>
    %391 = vector.extract_strided_slice %357 {offsets = [0, 16], sizes = [14, 8], strides = [1, 1]} : vector<14x32xf32> to vector<14x8xf32>
    %392 = vector.extract_strided_slice %358 {offsets = [0, 16], sizes = [16, 8], strides = [1, 1]} : vector<16x32xf32> to vector<16x8xf32>
    "tpu.trace_start"() <{level = 10 : i32, message = "qd,kd->qk"}> : () -> ()
    %cst_103 = arith.constant dense<0.000000e+00> : vector<14x16xf32>
    %393 = tpu.matmul %391, %392, %cst_103 {dimension_numbers = #tpu.dot_dimension_numbers<[1], [1], [0], [0], [0, 0, 1, 0], [], []>} : vector<14x8xf32>, vector<16x8xf32>, vector<14x16xf32> -> vector<14x16xf32>
    "tpu.trace_stop"() : () -> ()
    %cst_104 = arith.constant dense<0xFF800000> : vector<14xf32>
    %394 = vector.multi_reduction <maximumf>, %393, %cst_104 [1] : vector<14x16xf32> to vector<14xf32>
    %395 = vector.shape_cast %394 : vector<14xf32> to vector<14x1xf32>
    %396 = vector.broadcast %395 : vector<14x1xf32> to vector<14x16xf32>
    %397 = arith.subf %393, %396 : vector<14x16xf32>
    %398 = math.exp %397 : vector<14x16xf32>
    %cst_105 = arith.constant dense<0.000000e+00> : vector<14xf32>
    %399 = vector.multi_reduction <add>, %398, %cst_105 [1] : vector<14x16xf32> to vector<14xf32>
    %400 = vector.shape_cast %399 : vector<14xf32> to vector<14x1xf32>
    %401 = tpu.reciprocal %400 {approx = true} : vector<14x1xf32> -> vector<14x1xf32>
    %402 = vector.broadcast %401 : vector<14x1xf32> to vector<14x16xf32>
    %403 = arith.mulf %398, %402 : vector<14x16xf32>
    %404 = vector.extract_strided_slice %359 {offsets = [0, 16], sizes = [16, 8], strides = [1, 1]} : vector<16x32xf32> to vector<16x8xf32>
    %cst_106 = arith.constant dense<0.000000e+00> : vector<14x8xf32>
    %405 = tpu.matmul %403, %404, %cst_106 {dimension_numbers = #tpu.dot_dimension_numbers<[1], [0], [0], [1], [0, 0, 1, 1], [], []>} : vector<14x16xf32>, vector<16x8xf32>, vector<14x8xf32> -> vector<14x8xf32>
    %406 = arith.addf %390, %403 : vector<14x16xf32>
    %407 = vector.extract_strided_slice %357 {offsets = [0, 24], sizes = [14, 8], strides = [1, 1]} : vector<14x32xf32> to vector<14x8xf32>
    %408 = vector.extract_strided_slice %358 {offsets = [0, 24], sizes = [16, 8], strides = [1, 1]} : vector<16x32xf32> to vector<16x8xf32>
    "tpu.trace_start"() <{level = 10 : i32, message = "qd,kd->qk"}> : () -> ()
    %cst_107 = arith.constant dense<0.000000e+00> : vector<14x16xf32>
    %409 = tpu.matmul %407, %408, %cst_107 {dimension_numbers = #tpu.dot_dimension_numbers<[1], [1], [0], [0], [0, 0, 1, 0], [], []>} : vector<14x8xf32>, vector<16x8xf32>, vector<14x16xf32> -> vector<14x16xf32>
    "tpu.trace_stop"() : () -> ()
    %cst_108 = arith.constant dense<0xFF800000> : vector<14xf32>
    %410 = vector.multi_reduction <maximumf>, %409, %cst_108 [1] : vector<14x16xf32> to vector<14xf32>
    %411 = vector.shape_cast %410 : vector<14xf32> to vector<14x1xf32>
    %412 = vector.broadcast %411 : vector<14x1xf32> to vector<14x16xf32>
    %413 = arith.subf %409, %412 : vector<14x16xf32>
    %414 = math.exp %413 : vector<14x16xf32>
    %cst_109 = arith.constant dense<0.000000e+00> : vector<14xf32>
    %415 = vector.multi_reduction <add>, %414, %cst_109 [1] : vector<14x16xf32> to vector<14xf32>
    %416 = vector.shape_cast %415 : vector<14xf32> to vector<14x1xf32>
    %417 = tpu.reciprocal %416 {approx = true} : vector<14x1xf32> -> vector<14x1xf32>
    %418 = vector.broadcast %417 : vector<14x1xf32> to vector<14x16xf32>
    %419 = arith.mulf %414, %418 : vector<14x16xf32>
    %420 = vector.extract_strided_slice %359 {offsets = [0, 24], sizes = [16, 8], strides = [1, 1]} : vector<16x32xf32> to vector<16x8xf32>
    %cst_110 = arith.constant dense<0.000000e+00> : vector<14x8xf32>
    %421 = tpu.matmul %419, %420, %cst_110 {dimension_numbers = #tpu.dot_dimension_numbers<[1], [0], [0], [1], [0, 0, 1, 1], [], []>} : vector<14x16xf32>, vector<16x8xf32>, vector<14x8xf32> -> vector<14x8xf32>
    %422 = arith.addf %406, %419 : vector<14x16xf32>
    %423 = tpu.concatenate %374, %389, %405, %421 in 1 : vector<14x8xf32>, vector<14x8xf32>, vector<14x8xf32>, vector<14x8xf32> -> vector<14x32xf32>
    %cst_111 = arith.constant 2.500000e-01 : f32
    %424 = vector.broadcast %cst_111 : f32 to vector<14x16xf32>
    %425 = arith.mulf %422, %424 : vector<14x16xf32>
    %426 = vector.extract_strided_slice %354 {offsets = [14, 0], sizes = [14, 32], strides = [1, 1]} : vector<28x32xf32> to vector<14x32xf32>
    %427 = vector.extract_strided_slice %355 {offsets = [16, 0], sizes = [16, 32], strides = [1, 1]} : vector<32x32xf32> to vector<16x32xf32>
    %428 = vector.extract_strided_slice %356 {offsets = [16, 0], sizes = [16, 32], strides = [1, 1]} : vector<32x32xf32> to vector<16x32xf32>
    %429 = vector.extract_strided_slice %426 {offsets = [0, 0], sizes = [14, 8], strides = [1, 1]} : vector<14x32xf32> to vector<14x8xf32>
    %430 = vector.extract_strided_slice %427 {offsets = [0, 0], sizes = [16, 8], strides = [1, 1]} : vector<16x32xf32> to vector<16x8xf32>
    "tpu.trace_start"() <{level = 10 : i32, message = "qd,kd->qk"}> : () -> ()
    %cst_112 = arith.constant dense<0.000000e+00> : vector<14x16xf32>
    %431 = tpu.matmul %429, %430, %cst_112 {dimension_numbers = #tpu.dot_dimension_numbers<[1], [1], [0], [0], [0, 0, 1, 0], [], []>} : vector<14x8xf32>, vector<16x8xf32>, vector<14x16xf32> -> vector<14x16xf32>
    "tpu.trace_stop"() : () -> ()
    %cst_113 = arith.constant dense<0xFF800000> : vector<14xf32>
    %432 = vector.multi_reduction <maximumf>, %431, %cst_113 [1] : vector<14x16xf32> to vector<14xf32>
    %433 = vector.shape_cast %432 : vector<14xf32> to vector<14x1xf32>
    %434 = vector.broadcast %433 : vector<14x1xf32> to vector<14x16xf32>
    %435 = arith.subf %431, %434 : vector<14x16xf32>
    %436 = math.exp %435 : vector<14x16xf32>
    %cst_114 = arith.constant dense<0.000000e+00> : vector<14xf32>
    %437 = vector.multi_reduction <add>, %436, %cst_114 [1] : vector<14x16xf32> to vector<14xf32>
    %438 = vector.shape_cast %437 : vector<14xf32> to vector<14x1xf32>
    %439 = tpu.reciprocal %438 {approx = true} : vector<14x1xf32> -> vector<14x1xf32>
    %440 = vector.broadcast %439 : vector<14x1xf32> to vector<14x16xf32>
    %441 = arith.mulf %436, %440 : vector<14x16xf32>
    %442 = vector.extract_strided_slice %428 {offsets = [0, 0], sizes = [16, 8], strides = [1, 1]} : vector<16x32xf32> to vector<16x8xf32>
    %cst_115 = arith.constant dense<0.000000e+00> : vector<14x8xf32>
    %443 = tpu.matmul %441, %442, %cst_115 {dimension_numbers = #tpu.dot_dimension_numbers<[1], [0], [0], [1], [0, 0, 1, 1], [], []>} : vector<14x16xf32>, vector<16x8xf32>, vector<14x8xf32> -> vector<14x8xf32>
    %444 = vector.extract_strided_slice %426 {offsets = [0, 8], sizes = [14, 8], strides = [1, 1]} : vector<14x32xf32> to vector<14x8xf32>
    %445 = vector.extract_strided_slice %427 {offsets = [0, 8], sizes = [16, 8], strides = [1, 1]} : vector<16x32xf32> to vector<16x8xf32>
    "tpu.trace_start"() <{level = 10 : i32, message = "qd,kd->qk"}> : () -> ()
    %cst_116 = arith.constant dense<0.000000e+00> : vector<14x16xf32>
    %446 = tpu.matmul %444, %445, %cst_116 {dimension_numbers = #tpu.dot_dimension_numbers<[1], [1], [0], [0], [0, 0, 1, 0], [], []>} : vector<14x8xf32>, vector<16x8xf32>, vector<14x16xf32> -> vector<14x16xf32>
    "tpu.trace_stop"() : () -> ()
    %cst_117 = arith.constant dense<0xFF800000> : vector<14xf32>
    %447 = vector.multi_reduction <maximumf>, %446, %cst_117 [1] : vector<14x16xf32> to vector<14xf32>
    %448 = vector.shape_cast %447 : vector<14xf32> to vector<14x1xf32>
    %449 = vector.broadcast %448 : vector<14x1xf32> to vector<14x16xf32>
    %450 = arith.subf %446, %449 : vector<14x16xf32>
    %451 = math.exp %450 : vector<14x16xf32>
    %cst_118 = arith.constant dense<0.000000e+00> : vector<14xf32>
    %452 = vector.multi_reduction <add>, %451, %cst_118 [1] : vector<14x16xf32> to vector<14xf32>
    %453 = vector.shape_cast %452 : vector<14xf32> to vector<14x1xf32>
    %454 = tpu.reciprocal %453 {approx = true} : vector<14x1xf32> -> vector<14x1xf32>
    %455 = vector.broadcast %454 : vector<14x1xf32> to vector<14x16xf32>
    %456 = arith.mulf %451, %455 : vector<14x16xf32>
    %457 = vector.extract_strided_slice %428 {offsets = [0, 8], sizes = [16, 8], strides = [1, 1]} : vector<16x32xf32> to vector<16x8xf32>
    %cst_119 = arith.constant dense<0.000000e+00> : vector<14x8xf32>
    %458 = tpu.matmul %456, %457, %cst_119 {dimension_numbers = #tpu.dot_dimension_numbers<[1], [0], [0], [1], [0, 0, 1, 1], [], []>} : vector<14x16xf32>, vector<16x8xf32>, vector<14x8xf32> -> vector<14x8xf32>
    %459 = arith.addf %441, %456 : vector<14x16xf32>
    %460 = vector.extract_strided_slice %426 {offsets = [0, 16], sizes = [14, 8], strides = [1, 1]} : vector<14x32xf32> to vector<14x8xf32>
    %461 = vector.extract_strided_slice %427 {offsets = [0, 16], sizes = [16, 8], strides = [1, 1]} : vector<16x32xf32> to vector<16x8xf32>
    "tpu.trace_start"() <{level = 10 : i32, message = "qd,kd->qk"}> : () -> ()
    %cst_120 = arith.constant dense<0.000000e+00> : vector<14x16xf32>
    %462 = tpu.matmul %460, %461, %cst_120 {dimension_numbers = #tpu.dot_dimension_numbers<[1], [1], [0], [0], [0, 0, 1, 0], [], []>} : vector<14x8xf32>, vector<16x8xf32>, vector<14x16xf32> -> vector<14x16xf32>
    "tpu.trace_stop"() : () -> ()
    %cst_121 = arith.constant dense<0xFF800000> : vector<14xf32>
    %463 = vector.multi_reduction <maximumf>, %462, %cst_121 [1] : vector<14x16xf32> to vector<14xf32>
    %464 = vector.shape_cast %463 : vector<14xf32> to vector<14x1xf32>
    %465 = vector.broadcast %464 : vector<14x1xf32> to vector<14x16xf32>
    %466 = arith.subf %462, %465 : vector<14x16xf32>
    %467 = math.exp %466 : vector<14x16xf32>
    %cst_122 = arith.constant dense<0.000000e+00> : vector<14xf32>
    %468 = vector.multi_reduction <add>, %467, %cst_122 [1] : vector<14x16xf32> to vector<14xf32>
    %469 = vector.shape_cast %468 : vector<14xf32> to vector<14x1xf32>
    %470 = tpu.reciprocal %469 {approx = true} : vector<14x1xf32> -> vector<14x1xf32>
    %471 = vector.broadcast %470 : vector<14x1xf32> to vector<14x16xf32>
    %472 = arith.mulf %467, %471 : vector<14x16xf32>
    %473 = vector.extract_strided_slice %428 {offsets = [0, 16], sizes = [16, 8], strides = [1, 1]} : vector<16x32xf32> to vector<16x8xf32>
    %cst_123 = arith.constant dense<0.000000e+00> : vector<14x8xf32>
    %474 = tpu.matmul %472, %473, %cst_123 {dimension_numbers = #tpu.dot_dimension_numbers<[1], [0], [0], [1], [0, 0, 1, 1], [], []>} : vector<14x16xf32>, vector<16x8xf32>, vector<14x8xf32> -> vector<14x8xf32>
    %475 = arith.addf %459, %472 : vector<14x16xf32>
    %476 = vector.extract_strided_slice %426 {offsets = [0, 24], sizes = [14, 8], strides = [1, 1]} : vector<14x32xf32> to vector<14x8xf32>
    %477 = vector.extract_strided_slice %427 {offsets = [0, 24], sizes = [16, 8], strides = [1, 1]} : vector<16x32xf32> to vector<16x8xf32>
    "tpu.trace_start"() <{level = 10 : i32, message = "qd,kd->qk"}> : () -> ()
    %cst_124 = arith.constant dense<0.000000e+00> : vector<14x16xf32>
    %478 = tpu.matmul %476, %477, %cst_124 {dimension_numbers = #tpu.dot_dimension_numbers<[1], [1], [0], [0], [0, 0, 1, 0], [], []>} : vector<14x8xf32>, vector<16x8xf32>, vector<14x16xf32> -> vector<14x16xf32>
    "tpu.trace_stop"() : () -> ()
    %cst_125 = arith.constant dense<0xFF800000> : vector<14xf32>
    %479 = vector.multi_reduction <maximumf>, %478, %cst_125 [1] : vector<14x16xf32> to vector<14xf32>
    %480 = vector.shape_cast %479 : vector<14xf32> to vector<14x1xf32>
    %481 = vector.broadcast %480 : vector<14x1xf32> to vector<14x16xf32>
    %482 = arith.subf %478, %481 : vector<14x16xf32>
    %483 = math.exp %482 : vector<14x16xf32>
    %cst_126 = arith.constant dense<0.000000e+00> : vector<14xf32>
    %484 = vector.multi_reduction <add>, %483, %cst_126 [1] : vector<14x16xf32> to vector<14xf32>
    %485 = vector.shape_cast %484 : vector<14xf32> to vector<14x1xf32>
    %486 = tpu.reciprocal %485 {approx = true} : vector<14x1xf32> -> vector<14x1xf32>
    %487 = vector.broadcast %486 : vector<14x1xf32> to vector<14x16xf32>
    %488 = arith.mulf %483, %487 : vector<14x16xf32>
    %489 = vector.extract_strided_slice %428 {offsets = [0, 24], sizes = [16, 8], strides = [1, 1]} : vector<16x32xf32> to vector<16x8xf32>
    %cst_127 = arith.constant dense<0.000000e+00> : vector<14x8xf32>
    %490 = tpu.matmul %488, %489, %cst_127 {dimension_numbers = #tpu.dot_dimension_numbers<[1], [0], [0], [1], [0, 0, 1, 1], [], []>} : vector<14x16xf32>, vector<16x8xf32>, vector<14x8xf32> -> vector<14x8xf32>
    %491 = arith.addf %475, %488 : vector<14x16xf32>
    %492 = tpu.concatenate %443, %458, %474, %490 in 1 : vector<14x8xf32>, vector<14x8xf32>, vector<14x8xf32>, vector<14x8xf32> -> vector<14x32xf32>
    %cst_128 = arith.constant 2.500000e-01 : f32
    %493 = vector.broadcast %cst_128 : f32 to vector<14x16xf32>
    %494 = arith.mulf %491, %493 : vector<14x16xf32>
    %495 = tpu.concatenate %423, %492 in 0 : vector<14x32xf32>, vector<14x32xf32> -> vector<28x32xf32>
    %cst_129 = arith.constant dense<0.000000e+00> : vector<28x128xf32>
    %496 = tpu.matmul %495, %342, %cst_129 {dimension_numbers = #tpu.dot_dimension_numbers<[1], [0], [0], [1], [0, 0, 1, 1], [], []>} : vector<28x32xf32>, vector<32x128xf32>, vector<28x128xf32> -> vector<28x128xf32>
    %497 = vector.extract_strided_slice %496 {offsets = [0, 96], sizes = [28, 32], strides = [1, 1]} : vector<28x128xf32> to vector<28x32xf32>
    %498 = vector.broadcast %345 : vector<1x32xf32> to vector<28x32xf32>
    %499 = arith.addf %497, %498 : vector<28x32xf32>
    %500 = arith.addf %499, %341 : vector<28x32xf32>
    %cst_130 = arith.constant dense<0.000000e+00> : vector<28xf32>
    %501 = vector.multi_reduction <add>, %500, %cst_130 [1] : vector<28x32xf32> to vector<28xf32>
    %502 = vector.shape_cast %501 : vector<28xf32> to vector<28x1xf32>
    %cst_131 = arith.constant 3.200000e+01 : f32
    %503 = vector.broadcast %cst_131 : f32 to vector<28x1xf32>
    %504 = arith.divf %502, %503 : vector<28x1xf32>
    %505 = vector.broadcast %504 : vector<28x1xf32> to vector<28x32xf32>
    %506 = arith.subf %500, %505 : vector<28x32xf32>
    %507 = arith.mulf %506, %506 : vector<28x32xf32>
    %cst_132 = arith.constant dense<0.000000e+00> : vector<28xf32>
    %508 = vector.multi_reduction <add>, %507, %cst_132 [1] : vector<28x32xf32> to vector<28xf32>
    %509 = vector.shape_cast %508 : vector<28xf32> to vector<28x1xf32>
    %cst_133 = arith.constant 3.200000e+01 : f32
    %510 = vector.broadcast %cst_133 : f32 to vector<28x1xf32>
    %511 = arith.divf %509, %510 : vector<28x1xf32>
    %512 = vector.broadcast %504 : vector<28x1xf32> to vector<28x32xf32>
    %513 = arith.subf %500, %512 : vector<28x32xf32>
    %cst_134 = arith.constant 9.99999974E-6 : f32
    %514 = vector.broadcast %cst_134 : f32 to vector<28x1xf32>
    %515 = arith.addf %511, %514 : vector<28x1xf32>
    %516 = math.rsqrt %515 : vector<28x1xf32>
    %517 = vector.broadcast %516 : vector<28x1xf32> to vector<28x32xf32>
    %518 = arith.mulf %513, %517 : vector<28x32xf32>
    %519 = vector.broadcast %346 : vector<1x32xf32> to vector<28x32xf32>
    %520 = arith.mulf %518, %519 : vector<28x32xf32>
    %521 = vector.broadcast %347 : vector<1x32xf32> to vector<28x32xf32>
    %522 = arith.addf %520, %521 : vector<28x32xf32>
    %523 = tpu.concatenate %425, %494 in 0 : vector<14x16xf32>, vector<14x16xf32> -> vector<28x16xf32>
    %c144 = arith.constant 144 : index
    %c0_135 = arith.constant 0 : index
    %524 = vector.load %arg3[%c144, %c0_135] : memref<320x128xf32, #tpu.memory_space<vmem>>, vector<32x128xf32>
    %c176 = arith.constant 176 : index
    %c0_136 = arith.constant 0 : index
    %525 = vector.load %arg3[%c176, %c0_136] : memref<320x128xf32, #tpu.memory_space<vmem>>, vector<1x128xf32>
    %c184 = arith.constant 184 : index
    %c0_137 = arith.constant 0 : index
    %526 = vector.load %arg3[%c184, %c0_137] : memref<320x128xf32, #tpu.memory_space<vmem>>, vector<128x32xf32>
    %c312 = arith.constant 312 : index
    %c0_138 = arith.constant 0 : index
    %527 = vector.load %arg3[%c312, %c0_138] : memref<320x128xf32, #tpu.memory_space<vmem>>, vector<1x128xf32>
    %528 = vector.extract_strided_slice %527 {offsets = [0, 0], sizes = [1, 32], strides = [1, 1]} : vector<1x128xf32> to vector<1x32xf32>
    %529 = vector.extract_strided_slice %527 {offsets = [0, 32], sizes = [1, 32], strides = [1, 1]} : vector<1x128xf32> to vector<1x32xf32>
    %530 = vector.extract_strided_slice %527 {offsets = [0, 64], sizes = [1, 32], strides = [1, 1]} : vector<1x128xf32> to vector<1x32xf32>
    %cst_139 = arith.constant dense<0.000000e+00> : vector<28x128xf32>
    %531 = tpu.matmul %522, %524, %cst_139 {dimension_numbers = #tpu.dot_dimension_numbers<[1], [0], [0], [1], [0, 0, 1, 1], [], []>} : vector<28x32xf32>, vector<32x128xf32>, vector<28x128xf32> -> vector<28x128xf32>
    %532 = vector.broadcast %525 : vector<1x128xf32> to vector<28x128xf32>
    %533 = arith.addf %531, %532 : vector<28x128xf32>
    %cst_140 = arith.constant 0.000000e+00 : f32
    %534 = vector.broadcast %cst_140 : f32 to vector<28x128xf32>
    %535 = arith.maximumf %533, %534 : vector<28x128xf32>
    %cst_141 = arith.constant dense<0.000000e+00> : vector<28x32xf32>
    %536 = tpu.matmul %535, %526, %cst_141 {dimension_numbers = #tpu.dot_dimension_numbers<[1], [0], [0], [1], [0, 0, 1, 1], [], []>} : vector<28x128xf32>, vector<128x32xf32>, vector<28x32xf32> -> vector<28x32xf32>
    %537 = vector.broadcast %528 : vector<1x32xf32> to vector<28x32xf32>
    %538 = arith.addf %536, %537 : vector<28x32xf32>
    %539 = arith.addf %538, %522 : vector<28x32xf32>
    %cst_142 = arith.constant dense<0.000000e+00> : vector<28xf32>
    %540 = vector.multi_reduction <add>, %539, %cst_142 [1] : vector<28x32xf32> to vector<28xf32>
    %541 = vector.shape_cast %540 : vector<28xf32> to vector<28x1xf32>
    %cst_143 = arith.constant 3.200000e+01 : f32
    %542 = vector.broadcast %cst_143 : f32 to vector<28x1xf32>
    %543 = arith.divf %541, %542 : vector<28x1xf32>
    %544 = vector.broadcast %543 : vector<28x1xf32> to vector<28x32xf32>
    %545 = arith.subf %539, %544 : vector<28x32xf32>
    %546 = arith.mulf %545, %545 : vector<28x32xf32>
    %cst_144 = arith.constant dense<0.000000e+00> : vector<28xf32>
    %547 = vector.multi_reduction <add>, %546, %cst_144 [1] : vector<28x32xf32> to vector<28xf32>
    %548 = vector.shape_cast %547 : vector<28xf32> to vector<28x1xf32>
    %cst_145 = arith.constant 3.200000e+01 : f32
    %549 = vector.broadcast %cst_145 : f32 to vector<28x1xf32>
    %550 = arith.divf %548, %549 : vector<28x1xf32>
    %551 = vector.broadcast %543 : vector<28x1xf32> to vector<28x32xf32>
    %552 = arith.subf %539, %551 : vector<28x32xf32>
    %cst_146 = arith.constant 9.99999974E-6 : f32
    %553 = vector.broadcast %cst_146 : f32 to vector<28x1xf32>
    %554 = arith.addf %550, %553 : vector<28x1xf32>
    %555 = math.rsqrt %554 : vector<28x1xf32>
    %556 = vector.broadcast %555 : vector<28x1xf32> to vector<28x32xf32>
    %557 = arith.mulf %552, %556 : vector<28x32xf32>
    %558 = vector.broadcast %529 : vector<1x32xf32> to vector<28x32xf32>
    %559 = arith.mulf %557, %558 : vector<28x32xf32>
    %560 = vector.broadcast %530 : vector<1x32xf32> to vector<28x32xf32>
    %561 = arith.addf %559, %560 : vector<28x32xf32>
    %cst_147 = arith.constant 0.000000e+00 : f32
    %562 = vector.broadcast %cst_147 : f32 to vector<28x80xf32>
    %563 = tpu.concatenate %561, %523, %562 in 1 : vector<28x32xf32>, vector<28x16xf32>, vector<28x80xf32> -> vector<28x128xf32>
    %c0_148 = arith.constant 0 : index
    %c0_149 = arith.constant 0 : index
    %564 = vector.load %arg4[%c0_148, %c0_149] : memref<28x128xf32, #tpu.memory_space<vmem>>, vector<28x128xf32>
    tpu.vector_store %arg4[%c0_148, %c0_149], %563 {strides = array<i32>} : memref<28x128xf32, #tpu.memory_space<vmem>>, vector<28x128xf32>,
    return
  }
}

</mosaic_0001>

<llo_original>
// kernel: tpu_custom_call.1
$region0: #{tpu_custom_call.1}
  #allocation0 [shape = 'u32[]', space=smem, size = 0x4, offset = 0x4, fixed_abs, tag = 'smem constant byte address 0x4 - core index']
  #allocation1 [shape = 'u32[144,128]{1,0:T(1,128)}', space=vmem, size = 0x12000, scoped, tag = 'internal scratch']
  %s0 = inlined_call_operand.hbm [shape: f32[28,32], index: 0, kind: input, shape index: {}]
  %s1 = inlined_call_operand.hbm [shape: f32[16,32], index: 1, kind: input, shape index: {}]
  %s2 = inlined_call_operand.hbm [shape: f32[32,32], index: 2, kind: input, shape index: {}]
  %s3 = inlined_call_operand.hbm [shape: f32[320,128], index: 3, kind: input, shape index: {}]
  %s4 = inlined_call_operand.hbm [shape: f32[28,128], index: 4, kind: output, shape index: {}]
  %s5 = sld [smem:[#allocation0]]
  $region42: #{tpu_custom_call.1} parent=0
    _
  %s7 = ssub.s32 1, %s5
  %s8 = scalar_select 0, %s7, %s5
  $region1: #{tpu_custom_call.1} parent=0
    #allocation2 [shape = 'u8[16384]{0}', space=vmem, size = 0x4000, scoped, tag = 'input window, operand 0, single buffered']
    #allocation3 [shape = 's32[1]{0}', space=sflag, size = 0x4, scoped, tag = 'scoped memory for tpu_custom_call.1']
    #allocation4 [shape = 's32[1]{0}', space=sflag, size = 0x4, scoped, tag = 'scoped memory for tpu_custom_call.1']
    #allocation5 [shape = 'u8[8192]{0}', space=vmem, size = 0x2000, scoped, tag = 'input window, operand 1, single buffered']
    #allocation6 [shape = 's32[1]{0}', space=sflag, size = 0x4, scoped, tag = 'scoped memory for tpu_custom_call.1']
    #allocation7 [shape = 'u8[16384]{0}', space=vmem, size = 0x4000, scoped, tag = 'input window, operand 2, single buffered']
    #allocation8 [shape = 'u8[163840]{0}', space=vmem, size = 0x28000, scoped, tag = 'input window, operand 3, single buffered']
    #allocation9 [shape = 's32[1]{0}', space=sflag, size = 0x4, scoped, tag = 'scoped memory for tpu_custom_call.1']
    #allocation10 [shape = 'u8[16384]{0}', space=vmem, size = 0x4000, scoped, tag = 'output window, operand 0, single buffered']
    %9 = vsyncpa [#allocation3], 0
    %10 = vsyncpa [#allocation6], 0
    %11 = vsyncpa [#allocation9], 0
    %12 = vsyncpa [#allocation4], 0
    // Predicated region
    $region2: #{tpu_custom_call.1} parent=1 // pred_check
      _
    $region3: #{tpu_custom_call.1} parent=1 // pred_check_branch
      %14 = sbr.rel (0) target = $region5
    $region4: #{tpu_custom_call.1} parent=1 // pred_region
      %s16 = ssub.s32 512, 512
      %17 = vsyncadd [#allocation3], %s16
      %s18 = sshll.u32 [#allocation2], 4
      %s19 = int_to_ptr.vmem [resolvable:$true] %s18
      %24 = dma.hbm_to_vmem [thread:$0]  %s0, 512, %s19, [#allocation3], 128, 128, 8
    $region5: #{tpu_custom_call.1} parent=1 // pred_fallthru
      _
    // Predicated region
    $region6: #{tpu_custom_call.1} parent=1 // pred_check
      _
    $region7: #{tpu_custom_call.1} parent=1 // pred_check_branch
      %26 = sbr.rel (0) target = $region9
    $region8: #{tpu_custom_call.1} parent=1 // pred_region
      %s28 = ssub.s32 256, 256
      %29 = vsyncadd [#allocation6], %s28
      %s30 = sshll.u32 [#allocation5], 4
      %s31 = int_to_ptr.vmem [resolvable:$true] %s30
      %36 = dma.hbm_to_vmem [thread:$0]  %s1, 256, %s31, [#allocation6], 128, 128, 8
    $region9: #{tpu_custom_call.1} parent=1 // pred_fallthru
      _
    // Predicated region
    $region10: #{tpu_custom_call.1} parent=1 // pred_check
      _
    $region11: #{tpu_custom_call.1} parent=1 // pred_check_branch
      %38 = sbr.rel (0) target = $region13
    $region12: #{tpu_custom_call.1} parent=1 // pred_region
      %s40 = ssub.s32 512, 512
      %41 = vsyncadd [#allocation6], %s40
      %s42 = sshll.u32 [#allocation7], 4
      %s43 = int_to_ptr.vmem [resolvable:$true] %s42
      %48 = dma.hbm_to_vmem [thread:$0]  %s2, 512, %s43, [#allocation6], 128, 128, 8
    $region13: #{tpu_custom_call.1} parent=1 // pred_fallthru
      _
    // Predicated region
    $region14: #{tpu_custom_call.1} parent=1 // pred_check
      _
    $region15: #{tpu_custom_call.1} parent=1 // pred_check_branch
      %50 = sbr.rel (0) target = $region17
    $region16: #{tpu_custom_call.1} parent=1 // pred_region
      %s52 = ssub.s32 5120, 5120
      %53 = vsyncadd [#allocation9], %s52
      %s54 = sshll.u32 [#allocation8], 4
      %s55 = int_to_ptr.vmem [resolvable:$true] %s54
      %60 = dma.hbm_to_vmem [thread:$0]  %s3, 5120, %s55, [#allocation9], 128, 128, 8
    $region17: #{tpu_custom_call.1} parent=1 // pred_fallthru
      _
    // Predicated region
    $region18: #{tpu_custom_call.1} parent=1 // pred_check
      _
    $region19: #{tpu_custom_call.1} parent=1 // pred_check_branch
      %62 = sbr.rel (0) target = $region21
    $region20: #{tpu_custom_call.1} parent=1 // pred_region
      %63 = dma.done [#allocation3], 512
    $region21: #{tpu_custom_call.1} parent=1 // pred_fallthru
      _
    // Predicated region
    $region22: #{tpu_custom_call.1} parent=1 // pred_check
      _
    $region23: #{tpu_custom_call.1} parent=1 // pred_check_branch
      %65 = sbr.rel (0) target = $region25
    $region24: #{tpu_custom_call.1} parent=1 // pred_region
      %66 = dma.done [#allocation6], 256
    $region25: #{tpu_custom_call.1} parent=1 // pred_fallthru
      _
    // Predicated region
    $region26: #{tpu_custom_call.1} parent=1 // pred_check
      _
    $region27: #{tpu_custom_call.1} parent=1 // pred_check_branch
      %68 = sbr.rel (0) target = $region29
    $region28: #{tpu_custom_call.1} parent=1 // pred_region
      %69 = dma.done [#allocation6], 512
    $region29: #{tpu_custom_call.1} parent=1 // pred_fallthru
      _
    // Predicated region
    $region30: #{tpu_custom_call.1} parent=1 // pred_check
      _
    $region31: #{tpu_custom_call.1} parent=1 // pred_check_branch
      %71 = sbr.rel (0) target = $region33
    $region32: #{tpu_custom_call.1} parent=1 // pred_region
      %72 = dma.done [#allocation9], 5120
    $region33: #{tpu_custom_call.1} parent=1 // pred_fallthru
      _
    %v73 = vld [vmem:[#allocation2] sm:$0xff]
    %v74 = vld [vmem:[#allocation2 + $0x8] sm:$0xff]
    %v75 = vld [vmem:[#allocation2 + $0x10] sm:$0xff]
    %v76 = vld [vmem:[#allocation2 + $0x18] sm:$0xf]
    %v77 = vld [vmem:[#allocation7] sm:$0xff]
    %v78 = vld [vmem:[#allocation7 + $0x8] sm:$0xff]
    %v79 = vld [vmem:[#allocation7 + $0x10] sm:$0xff]
    %v80 = vld [vmem:[#allocation7 + $0x18] sm:$0xff]
    %v81 = vld [vmem:[#allocation5] sm:$0xff]
    %v82 = vld [vmem:[#allocation5 + $0x8] sm:$0xff]
    %v83 = vld [vmem:[#allocation8] sm:$0xff]
    %v84 = vld [vmem:[#allocation8 + $0x8] sm:$0xff]
    %v85 = vld [vmem:[#allocation8 + $0x10] sm:$0xff]
    %v86 = vld [vmem:[#allocation8 + $0x18] sm:$0xff]
    %v87 = vld [vmem:[#allocation8 + $0x20] sm:$0x1]
    %v88 = vld [vmem:[#allocation8 + $0x28] sm:$0x1]
    %v89 = vlaneseq
    %v90 = vshrl.u32 %v89, 7
    %v91 = vsub.s32 0, %v90
    %v92 = vrot.slane %v87, %v91
    %vm93 = vcmask 261120
    %v95 = vsel %vm93, %v73, 0
    %v98 = vsel %vm93, %v74, 0
    %v101 = vsel %vm93, %v75, 0
    %v104 = vsel %vm93, %v76, 0
    %106 = vmatprep.subr.mxu0 0.0
    %107 = vmatpush1.msra.mxu0 %v83
    %108 = vmatprep.subr.mxu0 0.0
    %109 = vmatpush1.msra.mxu0 %v84
    %110 = vmatprep.subr.mxu0 0.0
    %111 = vmatpush1.msra.mxu0 %v85
    %112 = vmatprep.subr.mxu0 0.0
    %113 = vmatpush1.msra.mxu0 %v86
    %114 = vmatprep.subr.mxu0 0.0
    %115 = vmatpush1.msra.mxu0 0.0
    %116 = vmatprep.subr.mxu0 0.0
    %117 = vmatpush1.msra.mxu0 0.0
    %118 = vmatprep.subr.mxu0 0.0
    %119 = vmatpush1.msra.mxu0 0.0
    %120 = vmatprep.subr.mxu0 0.0
    %121 = vmatpush1.msra.mxu0 0.0
    %122 = vmatprep.subr.mxu0 0.0
    %123 = vmatpush1.msra.mxu0 0.0
    %124 = vmatprep.subr.mxu0 0.0
    %125 = vmatpush1.msra.mxu0 0.0
    %126 = vmatprep.subr.mxu0 0.0
    %127 = vmatpush1.msra.mxu0 0.0
    %128 = vmatprep.subr.mxu0 0.0
    %129 = vmatpush1.msra.mxu0 0.0
    %130 = vmatprep.subr.mxu0 0.0
    %131 = vmatpush1.msra.mxu0 0.0
    %132 = vmatprep.subr.mxu0 0.0
    %133 = vmatpush1.msra.mxu0 0.0
    %134 = vmatprep.subr.mxu0 0.0
    %135 = vmatpush1.msra.mxu0 0.0
    %136 = vmatprep.subr.mxu0 0.0
    %137 = vmatpush1.msra.mxu0 0.0
    %138 = vmatprep.subr.mxu0 0.0
    %139 = vmatpush1.msra.mxu0 0.0
    %140 = vmatprep.subr.mxu0 0.0
    %141 = vmatpush1.msra.mxu0 0.0
    %142 = vmatprep.subr.mxu0 0.0
    %143 = vmatpush1.msra.mxu0 0.0
    %144 = vmatprep.subr.mxu0 0.0
    %145 = vmatpush1.msra.mxu0 0.0
    %146 = vmatprep.subr.mxu0 0.0
    %147 = vmatpush1.msra.mxu0 0.0
    %148 = vmatprep.subr.mxu0 0.0
    %149 = vmatpush1.msra.mxu0 0.0
    %150 = vmatprep.subr.mxu0 0.0
    %151 = vmatpush1.msra.mxu0 0.0
    %152 = vmatprep.subr.mxu0 0.0
    %153 = vmatpush1.msra.mxu0 0.0
    %154 = vmatprep.subr.mxu0 0.0
    %155 = vmatpush1.msra.mxu0 0.0
    %156 = vmatprep.subr.mxu0 0.0
    %157 = vmatpush1.msra.mxu0 0.0
    %158 = vmatprep.subr.mxu0 0.0
    %159 = vmatpush1.msra.mxu0 0.0
    %160 = vmatprep.subr.mxu0 0.0
    %161 = vmatpush1.msra.mxu0 0.0
    %162 = vmatprep.subr.mxu0 0.0
    %163 = vmatpush1.msra.mxu0 0.0
    %164 = vmatprep.subr.mxu0 0.0
    %165 = vmatpush1.msra.mxu0 0.0
    %166 = vmatprep.subr.mxu0 0.0
    %167 = vmatpush1.msra.mxu0 0.0
    %168 = vmatprep.subr.mxu0 0.0
    %169 = vmatpush1.msra.mxu0 0.0
    %170 = vmatprep.mubr.f32.mxu0 0.0
    %171 = vmatmul.mubr.f32.gmra.mrb[0].mxu0 %v95
    %v172 = vpop.f32.mrb[0].mxu0
    %v173 = vadd.f32 %v92, %v172
    %v174 = vpop.f32.mrb[0].mxu0
    %175 = vmatprep.mubr.f32.mxu0 0.0
    %176 = vmatmul.mubr.f32.gmra.mrb[0].mxu0 %v98
    %v177 = vpop.f32.mrb[0].mxu0
    %v178 = vadd.f32 %v92, %v177
    %v179 = vpop.f32.mrb[0].mxu0
    %180 = vmatprep.mubr.f32.mxu0 0.0
    %181 = vmatmul.mubr.f32.gmra.mrb[0].mxu0 %v101
    %v182 = vpop.f32.mrb[0].mxu0
    %v183 = vadd.f32 %v92, %v182
    %v184 = vpop.f32.mrb[0].mxu0
    %185 = vmatprep.mubr.f32.mxu0 0.0
    %186 = vmatmul.mubr.f32.gmra.mrb[0].mxu0 %v104
    %v187 = vpop.f32.mrb[0].mxu0
    %v188 = vadd.f32 %v92, %v187
    %v189 = vpop.f32.mrb[0].mxu0
    %190 = vdwg.mxu0
    %v192 = vsel %vm93, %v81, 0
    %v195 = vsel %vm93, %v82, 0
    %197 = vmatprep.subr.mxu0 0.0
    %198 = vmatpush1.msra.mxu0 %v83
    %199 = vmatprep.subr.mxu0 0.0
    %200 = vmatpush1.msra.mxu0 %v84
    %201 = vmatprep.subr.mxu0 0.0
    %202 = vmatpush1.msra.mxu0 %v85
    %203 = vmatprep.subr.mxu0 0.0
    %204 = vmatpush1.msra.mxu0 %v86
    %205 = vmatprep.subr.mxu0 0.0
    %206 = vmatpush1.msra.mxu0 0.0
    %207 = vmatprep.subr.mxu0 0.0
    %208 = vmatpush1.msra.mxu0 0.0
    %209 = vmatprep.subr.mxu0 0.0
    %210 = vmatpush1.msra.mxu0 0.0
    %211 = vmatprep.subr.mxu0 0.0
    %212 = vmatpush1.msra.mxu0 0.0
    %213 = vmatprep.subr.mxu0 0.0
    %214 = vmatpush1.msra.mxu0 0.0
    %215 = vmatprep.subr.mxu0 0.0
    %216 = vmatpush1.msra.mxu0 0.0
    %217 = vmatprep.subr.mxu0 0.0
    %218 = vmatpush1.msra.mxu0 0.0
    %219 = vmatprep.subr.mxu0 0.0
    %220 = vmatpush1.msra.mxu0 0.0
    %221 = vmatprep.subr.mxu0 0.0
    %222 = vmatpush1.msra.mxu0 0.0
    %223 = vmatprep.subr.mxu0 0.0
    %224 = vmatpush1.msra.mxu0 0.0
    %225 = vmatprep.subr.mxu0 0.0
    %226 = vmatpush1.msra.mxu0 0.0
    %227 = vmatprep.subr.mxu0 0.0
    %228 = vmatpush1.msra.mxu0 0.0
    %229 = vmatprep.subr.mxu0 0.0
    %230 = vmatpush1.msra.mxu0 0.0
    %231 = vmatprep.subr.mxu0 0.0
    %232 = vmatpush1.msra.mxu0 0.0
    %233 = vmatprep.subr.mxu0 0.0
    %234 = vmatpush1.msra.mxu0 0.0
    %235 = vmatprep.subr.mxu0 0.0
    %236 = vmatpush1.msra.mxu0 0.0
    %237 = vmatprep.subr.mxu0 0.0
    %238 = vmatpush1.msra.mxu0 0.0
    %239 = vmatprep.subr.mxu0 0.0
    %240 = vmatpush1.msra.mxu0 0.0
    %241 = vmatprep.subr.mxu0 0.0
    %242 = vmatpush1.msra.mxu0 0.0
    %243 = vmatprep.subr.mxu0 0.0
    %244 = vmatpush1.msra.mxu0 0.0
    %245 = vmatprep.subr.mxu0 0.0
    %246 = vmatpush1.msra.mxu0 0.0
    %247 = vmatprep.subr.mxu0 0.0
    %248 = vmatpush1.msra.mxu0 0.0
    %249 = vmatprep.subr.mxu0 0.0
    %250 = vmatpush1.msra.mxu0 0.0
    %251 = vmatprep.subr.mxu0 0.0
    %252 = vmatpush1.msra.mxu0 0.0
    %253 = vmatprep.subr.mxu0 0.0
    %254 = vmatpush1.msra.mxu0 0.0
    %255 = vmatprep.subr.mxu0 0.0
    %256 = vmatpush1.msra.mxu0 0.0
    %257 = vmatprep.subr.mxu0 0.0
    %258 = vmatpush1.msra.mxu0 0.0
    %259 = vmatprep.subr.mxu0 0.0
    %260 = vmatpush1.msra.mxu0 0.0
    %261 = vmatprep.mubr.f32.mxu0 0.0
    %262 = vmatmul.mubr.f32.gmra.mrb[0].mxu0 %v192
    %v263 = vpop.f32.mrb[0].mxu0
    %v264 = vadd.f32 %v92, %v263
    %v265 = vpop.f32.mrb[0].mxu0
    %266 = vmatprep.mubr.f32.mxu0 0.0
    %267 = vmatmul.mubr.f32.gmra.mrb[0].mxu0 %v195
    %v268 = vpop.f32.mrb[0].mxu0
    %v269 = vadd.f32 %v92, %v268
    %v270 = vpop.f32.mrb[0].mxu0
    %271 = vdwg.mxu0
    %273 = vrot.lane.b32.xlu0 %v264, 96
    %v274 = vpop.permute.xlu0 %273
    %vm275 = vcmask 64512
    %v277 = vsel %vm275, %v173, 0
    %v280 = vsel %vm275, %v178, 0
    %v282 = vsel %vm275, %v274, 0
    %284 = vmatprep.subr.mxu0 0.0
    %285 = vmatpush1.xpose.msra.mxu0 %v282
    %286 = vmatprep.subr.mxu0 0.0
    %287 = vmatpush1.xpose.msra.mxu0 0.0
    %288 = vmatprep.subr.mxu0 0.0
    %289 = vmatpush1.xpose.msra.mxu0 0.0
    %290 = vmatprep.subr.mxu0 0.0
    %291 = vmatpush1.xpose.msra.mxu0 0.0
    %292 = vmatprep.subr.mxu0 0.0
    %293 = vmatpush1.xpose.msra.mxu0 0.0
    %294 = vmatprep.subr.mxu0 0.0
    %295 = vmatpush1.xpose.msra.mxu0 0.0
    %296 = vmatprep.subr.mxu0 0.0
    %297 = vmatpush1.xpose.msra.mxu0 0.0
    %298 = vmatprep.subr.mxu0 0.0
    %299 = vmatpush1.xpose.msra.mxu0 0.0
    %300 = vmatprep.subr.mxu0 0.0
    %301 = vmatpush1.xpose.msra.mxu0 0.0
    %302 = vmatprep.subr.mxu0 0.0
    %303 = vmatpush1.xpose.msra.mxu0 0.0
    %304 = vmatprep.subr.mxu0 0.0
    %305 = vmatpush1.xpose.msra.mxu0 0.0
    %306 = vmatprep.subr.mxu0 0.0
    %307 = vmatpush1.xpose.msra.mxu0 0.0
    %308 = vmatprep.subr.mxu0 0.0
    %309 = vmatpush1.xpose.msra.mxu0 0.0
    %310 = vmatprep.subr.mxu0 0.0
    %311 = vmatpush1.xpose.msra.mxu0 0.0
    %312 = vmatprep.subr.mxu0 0.0
    %313 = vmatpush1.xpose.msra.mxu0 0.0
    %314 = vmatprep.subr.mxu0 0.0
    %315 = vmatpush1.xpose.msra.mxu0 0.0
    %316 = vmatprep.subr.mxu0 0.0
    %317 = vmatpush1.xpose.msra.mxu0 0.0
    %318 = vmatprep.subr.mxu0 0.0
    %319 = vmatpush1.xpose.msra.mxu0 0.0
    %320 = vmatprep.subr.mxu0 0.0
    %321 = vmatpush1.xpose.msra.mxu0 0.0
    %322 = vmatprep.subr.mxu0 0.0
    %323 = vmatpush1.xpose.msra.mxu0 0.0
    %324 = vmatprep.subr.mxu0 0.0
    %325 = vmatpush1.xpose.msra.mxu0 0.0
    %326 = vmatprep.subr.mxu0 0.0
    %327 = vmatpush1.xpose.msra.mxu0 0.0
    %328 = vmatprep.subr.mxu0 0.0
    %329 = vmatpush1.xpose.msra.mxu0 0.0
    %330 = vmatprep.subr.mxu0 0.0
    %331 = vmatpush1.xpose.msra.mxu0 0.0
    %332 = vmatprep.subr.mxu0 0.0
    %333 = vmatpush1.xpose.msra.mxu0 0.0
    %334 = vmatprep.subr.mxu0 0.0
    %335 = vmatpush1.xpose.msra.mxu0 0.0
    %336 = vmatprep.subr.mxu0 0.0
    %337 = vmatpush1.xpose.msra.mxu0 0.0
    %338 = vmatprep.subr.mxu0 0.0
    %339 = vmatpush1.xpose.msra.mxu0 0.0
    %340 = vmatprep.subr.mxu0 0.0
    %341 = vmatpush1.xpose.msra.mxu0 0.0
    %342 = vmatprep.subr.mxu0 0.0
    %343 = vmatpush1.xpose.msra.mxu0 0.0
    %344 = vmatprep.subr.mxu0 0.0
    %345 = vmatpush1.xpose.msra.mxu0 0.0
    %346 = vmatprep.subr.mxu0 0.0
    %347 = vmatpush1.xpose.msra.mxu0 0.0
    %348 = vmatprep.mubr.f32.mxu0 0.0
    %349 = vmatmul.mubr.f32.gmra.mrb[0].mxu0 %v277
    %v350 = vpop.f32.mrb[0].mxu0
    %v351 = vadd.f32 0.0, %v350
    %v352 = vpop.f32.mrb[0].mxu0
    %353 = vmatprep.mubr.f32.mxu0 0.0
    %354 = vmatmul.mubr.f32.gmra.mrb[0].mxu0 %v280
    %v355 = vpop.f32.mrb[0].mxu0
    %v356 = vadd.f32 0.0, %v355
    %v357 = vpop.f32.mrb[0].mxu0
    %358 = vdwg.mxu0
    %v359 = vsel %vm275, %v351, -inf
    %360 = vmax.xlane.f32.xlu0 %v359
    %v361 = vpop.xlane.xlu0 %360
    %vm362 = vcmask 62464
    %v363 = vsel %vm362, %v356, -inf
    %364 = vmax.xlane.f32.xlu0 %v363
    %v365 = vpop.xlane.xlu0 %364
    %v366 = vsub.f32 %v351, %v361
    %v367 = vsub.f32 %v356, %v365
    %v368 = vmul.f32 %v366, 1.442695
    %v369 = vpow.pop %v368
    %v370 = vmul.f32 %v367, 1.442695
    %v371 = vpow.pop %v370
    %v372 = vsel %vm275, %v369, 0.0
    %373 = vadd.xlane.f32.xlu0 %v372
    %v374 = vpop.xlane.xlu0 %373
    %v375 = vsel %vm362, %v371, 0.0
    %376 = vadd.xlane.f32.xlu0 %v375
    %v377 = vpop.xlane.xlu0 %376
    %v378 = vrcp.pop %v374
    %v379 = vrcp.pop %v377
    %v380 = vmul.f32 %v369, %v378
    %v381 = vmul.f32 %v371, %v379
    %382 = vrot.lane.b32.xlu0 %v264, 64
    %v383 = vpop.permute.xlu0 %382
    %v386 = vsel %vm275, %v380, 0
    %v389 = vsel %vm275, %v381, 0
    %391 = vmatprep.subr.mxu0 0.0
    %392 = vmatpush1.msra.mxu0 %v383
    %393 = vmatprep.subr.mxu0 0.0
    %394 = vmatpush1.msra.mxu0 0.0
    %395 = vmatprep.subr.mxu0 0.0
    %396 = vmatpush1.msra.mxu0 0.0
    %397 = vmatprep.subr.mxu0 0.0
    %398 = vmatpush1.msra.mxu0 0.0
    %399 = vmatprep.subr.mxu0 0.0
    %400 = vmatpush1.msra.mxu0 0.0
    %401 = vmatprep.subr.mxu0 0.0
    %402 = vmatpush1.msra.mxu0 0.0
    %403 = vmatprep.subr.mxu0 0.0
    %404 = vmatpush1.msra.mxu0 0.0
    %405 = vmatprep.subr.mxu0 0.0
    %406 = vmatpush1.msra.mxu0 0.0
    %407 = vmatprep.subr.mxu0 0.0
    %408 = vmatpush1.msra.mxu0 0.0
    %409 = vmatprep.subr.mxu0 0.0
    %410 = vmatpush1.msra.mxu0 0.0
    %411 = vmatprep.subr.mxu0 0.0
    %412 = vmatpush1.msra.mxu0 0.0
    %413 = vmatprep.subr.mxu0 0.0
    %414 = vmatpush1.msra.mxu0 0.0
    %415 = vmatprep.subr.mxu0 0.0
    %416 = vmatpush1.msra.mxu0 0.0
    %417 = vmatprep.subr.mxu0 0.0
    %418 = vmatpush1.msra.mxu0 0.0
    %419 = vmatprep.subr.mxu0 0.0
    %420 = vmatpush1.msra.mxu0 0.0
    %421 = vmatprep.subr.mxu0 0.0
    %422 = vmatpush1.msra.mxu0 0.0
    %423 = vmatprep.subr.mxu0 0.0
    %424 = vmatpush1.msra.mxu0 0.0
    %425 = vmatprep.subr.mxu0 0.0
    %426 = vmatpush1.msra.mxu0 0.0
    %427 = vmatprep.subr.mxu0 0.0
    %428 = vmatpush1.msra.mxu0 0.0
    %429 = vmatprep.subr.mxu0 0.0
    %430 = vmatpush1.msra.mxu0 0.0
    %431 = vmatprep.subr.mxu0 0.0
    %432 = vmatpush1.msra.mxu0 0.0
    %433 = vmatprep.subr.mxu0 0.0
    %434 = vmatpush1.msra.mxu0 0.0
    %435 = vmatprep.subr.mxu0 0.0
    %436 = vmatpush1.msra.mxu0 0.0
    %437 = vmatprep.subr.mxu0 0.0
    %438 = vmatpush1.msra.mxu0 0.0
    %439 = vmatprep.subr.mxu0 0.0
    %440 = vmatpush1.msra.mxu0 0.0
    %441 = vmatprep.subr.mxu0 0.0
    %442 = vmatpush1.msra.mxu0 0.0
    %443 = vmatprep.subr.mxu0 0.0
    %444 = vmatpush1.msra.mxu0 0.0
    %445 = vmatprep.subr.mxu0 0.0
    %446 = vmatpush1.msra.mxu0 0.0
    %447 = vmatprep.subr.mxu0 0.0
    %448 = vmatpush1.msra.mxu0 0.0
    %449 = vmatprep.subr.mxu0 0.0
    %450 = vmatpush1.msra.mxu0 0.0
    %451 = vmatprep.subr.mxu0 0.0
    %452 = vmatpush1.msra.mxu0 0.0
    %453 = vmatprep.subr.mxu0 0.0
    %454 = vmatpush1.msra.mxu0 0.0
    %455 = vmatprep.mubr.f32.mxu0 0.0
    %456 = vmatmul.mubr.f32.gmra.mrb[0].mxu0 %v386
    %v457 = vpop.f32.mrb[0].mxu0
    %v458 = vadd.f32 0.0, %v457
    %v459 = vpop.f32.mrb[0].mxu0
    %460 = vmatprep.mubr.f32.mxu0 0.0
    %461 = vmatmul.mubr.f32.gmra.mrb[0].mxu0 %v389
    %v462 = vpop.f32.mrb[0].mxu0
    %v463 = vadd.f32 0.0, %v462
    %v464 = vpop.f32.mrb[0].mxu0
    %465 = vdwg.mxu0
    %466 = vrot.lane.b32.xlu0 %v173, 120
    %v467 = vpop.permute.xlu0 %466
    %468 = vrot.lane.b32.xlu0 %v178, 120
    %v469 = vpop.permute.xlu0 %468
    %470 = vrot.lane.b32.xlu0 %v264, 88
    %v471 = vpop.permute.xlu0 %470
    %v472 = vsel %vm275, %v467, 0
    %v474 = vsel %vm275, %v469, 0
    %v476 = vsel %vm275, %v471, 0
    %478 = vmatprep.subr.mxu0 0.0
    %479 = vmatpush1.xpose.msra.mxu0 %v476
    %480 = vmatprep.subr.mxu0 0.0
    %481 = vmatpush1.xpose.msra.mxu0 0.0
    %482 = vmatprep.subr.mxu0 0.0
    %483 = vmatpush1.xpose.msra.mxu0 0.0
    %484 = vmatprep.subr.mxu0 0.0
    %485 = vmatpush1.xpose.msra.mxu0 0.0
    %486 = vmatprep.subr.mxu0 0.0
    %487 = vmatpush1.xpose.msra.mxu0 0.0
    %488 = vmatprep.subr.mxu0 0.0
    %489 = vmatpush1.xpose.msra.mxu0 0.0
    %490 = vmatprep.subr.mxu0 0.0
    %491 = vmatpush1.xpose.msra.mxu0 0.0
    %492 = vmatprep.subr.mxu0 0.0
    %493 = vmatpush1.xpose.msra.mxu0 0.0
    %494 = vmatprep.subr.mxu0 0.0
    %495 = vmatpush1.xpose.msra.mxu0 0.0
    %496 = vmatprep.subr.mxu0 0.0
    %497 = vmatpush1.xpose.msra.mxu0 0.0
    %498 = vmatprep.subr.mxu0 0.0
    %499 = vmatpush1.xpose.msra.mxu0 0.0
    %500 = vmatprep.subr.mxu0 0.0
    %501 = vmatpush1.xpose.msra.mxu0 0.0
    %502 = vmatprep.subr.mxu0 0.0
    %503 = vmatpush1.xpose.msra.mxu0 0.0
    %504 = vmatprep.subr.mxu0 0.0
    %505 = vmatpush1.xpose.msra.mxu0 0.0
    %506 = vmatprep.subr.mxu0 0.0
    %507 = vmatpush1.xpose.msra.mxu0 0.0
    %508 = vmatprep.subr.mxu0 0.0
    %509 = vmatpush1.xpose.msra.mxu0 0.0
    %510 = vmatprep.subr.mxu0 0.0
    %511 = vmatpush1.xpose.msra.mxu0 0.0
    %512 = vmatprep.subr.mxu0 0.0
    %513 = vmatpush1.xpose.msra.mxu0 0.0
    %514 = vmatprep.subr.mxu0 0.0
    %515 = vmatpush1.xpose.msra.mxu0 0.0
    %516 = vmatprep.subr.mxu0 0.0
    %517 = vmatpush1.xpose.msra.mxu0 0.0
    %518 = vmatprep.subr.mxu0 0.0
    %519 = vmatpush1.xpose.msra.mxu0 0.0
    %520 = vmatprep.subr.mxu0 0.0
    %521 = vmatpush1.xpose.msra.mxu0 0.0
    %522 = vmatprep.subr.mxu0 0.0
    %523 = vmatpush1.xpose.msra.mxu0 0.0
    %524 = vmatprep.subr.mxu0 0.0
    %525 = vmatpush1.xpose.msra.mxu0 0.0
    %526 = vmatprep.subr.mxu0 0.0
    %527 = vmatpush1.xpose.msra.mxu0 0.0
    %528 = vmatprep.subr.mxu0 0.0
    %529 = vmatpush1.xpose.msra.mxu0 0.0
    %530 = vmatprep.subr.mxu0 0.0
    %531 = vmatpush1.xpose.msra.mxu0 0.0
    %532 = vmatprep.subr.mxu0 0.0
    %533 = vmatpush1.xpose.msra.mxu0 0.0
    %534 = vmatprep.subr.mxu0 0.0
    %535 = vmatpush1.xpose.msra.mxu0 0.0
    %536 = vmatprep.subr.mxu0 0.0
    %537 = vmatpush1.xpose.msra.mxu0 0.0
    %538 = vmatprep.subr.mxu0 0.0
    %539 = vmatpush1.xpose.msra.mxu0 0.0
    %540 = vmatprep.subr.mxu0 0.0
    %541 = vmatpush1.xpose.msra.mxu0 0.0
    %542 = vmatprep.mubr.f32.mxu0 0.0
    %543 = vmatmul.mubr.f32.gmra.mrb[0].mxu0 %v472
    %v544 = vpop.f32.mrb[0].mxu0
    %v545 = vadd.f32 0.0, %v544
    %v546 = vpop.f32.mrb[0].mxu0
    %547 = vmatprep.mubr.f32.mxu0 0.0
    %548 = vmatmul.mubr.f32.gmra.mrb[0].mxu0 %v474
    %v549 = vpop.f32.mrb[0].mxu0
    %v550 = vadd.f32 0.0, %v549
    %v551 = vpop.f32.mrb[0].mxu0
    %552 = vdwg.mxu0
    %v553 = vsel %vm275, %v545, -inf
    %554 = vmax.xlane.f32.xlu0 %v553
    %v555 = vpop.xlane.xlu0 %554
    %v556 = vsel %vm362, %v550, -inf
    %557 = vmax.xlane.f32.xlu0 %v556
    %v558 = vpop.xlane.xlu0 %557
    %v559 = vsub.f32 %v545, %v555
    %v560 = vsub.f32 %v550, %v558
    %v561 = vmul.f32 %v559, 1.442695
    %v562 = vpow.pop %v561
    %v563 = vmul.f32 %v560, 1.442695
    %v564 = vpow.pop %v563
    %v565 = vsel %vm275, %v562, 0.0
    %566 = vadd.xlane.f32.xlu0 %v565
    %v567 = vpop.xlane.xlu0 %566
    %v568 = vsel %vm362, %v564, 0.0
    %569 = vadd.xlane.f32.xlu0 %v568
    %v570 = vpop.xlane.xlu0 %569
    %v571 = vrcp.pop %v567
    %v572 = vrcp.pop %v570
    %v573 = vmul.f32 %v562, %v571
    %v574 = vmul.f32 %v564, %v572
    %575 = vrot.lane.b32.xlu0 %v264, 56
    %v576 = vpop.permute.xlu0 %575
    %v579 = vsel %vm275, %v573, 0
    %v582 = vsel %vm275, %v574, 0
    %584 = vmatprep.subr.mxu0 0.0
    %585 = vmatpush1.msra.mxu0 %v576
    %586 = vmatprep.subr.mxu0 0.0
    %587 = vmatpush1.msra.mxu0 0.0
    %588 = vmatprep.subr.mxu0 0.0
    %589 = vmatpush1.msra.mxu0 0.0
    %590 = vmatprep.subr.mxu0 0.0
    %591 = vmatpush1.msra.mxu0 0.0
    %592 = vmatprep.subr.mxu0 0.0
    %593 = vmatpush1.msra.mxu0 0.0
    %594 = vmatprep.subr.mxu0 0.0
    %595 = vmatpush1.msra.mxu0 0.0
    %596 = vmatprep.subr.mxu0 0.0
    %597 = vmatpush1.msra.mxu0 0.0
    %598 = vmatprep.subr.mxu0 0.0
    %599 = vmatpush1.msra.mxu0 0.0
    %600 = vmatprep.subr.mxu0 0.0
    %601 = vmatpush1.msra.mxu0 0.0
    %602 = vmatprep.subr.mxu0 0.0
    %603 = vmatpush1.msra.mxu0 0.0
    %604 = vmatprep.subr.mxu0 0.0
    %605 = vmatpush1.msra.mxu0 0.0
    %606 = vmatprep.subr.mxu0 0.0
    %607 = vmatpush1.msra.mxu0 0.0
    %608 = vmatprep.subr.mxu0 0.0
    %609 = vmatpush1.msra.mxu0 0.0
    %610 = vmatprep.subr.mxu0 0.0
    %611 = vmatpush1.msra.mxu0 0.0
    %612 = vmatprep.subr.mxu0 0.0
    %613 = vmatpush1.msra.mxu0 0.0
    %614 = vmatprep.subr.mxu0 0.0
    %615 = vmatpush1.msra.mxu0 0.0
    %616 = vmatprep.subr.mxu0 0.0
    %617 = vmatpush1.msra.mxu0 0.0
    %618 = vmatprep.subr.mxu0 0.0
    %619 = vmatpush1.msra.mxu0 0.0
    %620 = vmatprep.subr.mxu0 0.0
    %621 = vmatpush1.msra.mxu0 0.0
    %622 = vmatprep.subr.mxu0 0.0
    %623 = vmatpush1.msra.mxu0 0.0
    %624 = vmatprep.subr.mxu0 0.0
    %625 = vmatpush1.msra.mxu0 0.0
    %626 = vmatprep.subr.mxu0 0.0
    %627 = vmatpush1.msra.mxu0 0.0
    %628 = vmatprep.subr.mxu0 0.0
    %629 = vmatpush1.msra.mxu0 0.0
    %630 = vmatprep.subr.mxu0 0.0
    %631 = vmatpush1.msra.mxu0 0.0
    %632 = vmatprep.subr.mxu0 0.0
    %633 = vmatpush1.msra.mxu0 0.0
    %634 = vmatprep.subr.mxu0 0.0
    %635 = vmatpush1.msra.mxu0 0.0
    %636 = vmatprep.subr.mxu0 0.0
    %637 = vmatpush1.msra.mxu0 0.0
    %638 = vmatprep.subr.mxu0 0.0
    %639 = vmatpush1.msra.mxu0 0.0
    %640 = vmatprep.subr.mxu0 0.0
    %641 = vmatpush1.msra.mxu0 0.0
    %642 = vmatprep.subr.mxu0 0.0
    %643 = vmatpush1.msra.mxu0 0.0
    %644 = vmatprep.subr.mxu0 0.0
    %645 = vmatpush1.msra.mxu0 0.0
    %646 = vmatprep.subr.mxu0 0.0
    %647 = vmatpush1.msra.mxu0 0.0
    %648 = vmatprep.mubr.f32.mxu0 0.0
    %649 = vmatmul.mubr.f32.gmra.mrb[0].mxu0 %v579
    %v650 = vpop.f32.mrb[0].mxu0
    %v651 = vadd.f32 0.0, %v650
    %v652 = vpop.f32.mrb[0].mxu0
    %653 = vmatprep.mubr.f32.mxu0 0.0
    %654 = vmatmul.mubr.f32.gmra.mrb[0].mxu0 %v582
    %v655 = vpop.f32.mrb[0].mxu0
    %v656 = vadd.f32 0.0, %v655
    %v657 = vpop.f32.mrb[0].mxu0
    %658 = vdwg.mxu0
    %659 = vrot.lane.b32.xlu0 %v173, 112
    %v660 = vpop.permute.xlu0 %659
    %661 = vrot.lane.b32.xlu0 %v178, 112
    %v662 = vpop.permute.xlu0 %661
    %663 = vrot.lane.b32.xlu0 %v264, 80
    %v664 = vpop.permute.xlu0 %663
    %v665 = vsel %vm275, %v660, 0
    %v667 = vsel %vm275, %v662, 0
    %v669 = vsel %vm275, %v664, 0
    %671 = vmatprep.subr.mxu0 0.0
    %672 = vmatpush1.xpose.msra.mxu0 %v669
    %673 = vmatprep.subr.mxu0 0.0
    %674 = vmatpush1.xpose.msra.mxu0 0.0
    %675 = vmatprep.subr.mxu0 0.0
    %676 = vmatpush1.xpose.msra.mxu0 0.0
    %677 = vmatprep.subr.mxu0 0.0
    %678 = vmatpush1.xpose.msra.mxu0 0.0
    %679 = vmatprep.subr.mxu0 0.0
    %680 = vmatpush1.xpose.msra.mxu0 0.0
    %681 = vmatprep.subr.mxu0 0.0
    %682 = vmatpush1.xpose.msra.mxu0 0.0
    %683 = vmatprep.subr.mxu0 0.0
    %684 = vmatpush1.xpose.msra.mxu0 0.0
    %685 = vmatprep.subr.mxu0 0.0
    %686 = vmatpush1.xpose.msra.mxu0 0.0
    %687 = vmatprep.subr.mxu0 0.0
    %688 = vmatpush1.xpose.msra.mxu0 0.0
    %689 = vmatprep.subr.mxu0 0.0
    %690 = vmatpush1.xpose.msra.mxu0 0.0
    %691 = vmatprep.subr.mxu0 0.0
    %692 = vmatpush1.xpose.msra.mxu0 0.0
    %693 = vmatprep.subr.mxu0 0.0
    %694 = vmatpush1.xpose.msra.mxu0 0.0
    %695 = vmatprep.subr.mxu0 0.0
    %696 = vmatpush1.xpose.msra.mxu0 0.0
    %697 = vmatprep.subr.mxu0 0.0
    %698 = vmatpush1.xpose.msra.mxu0 0.0
    %699 = vmatprep.subr.mxu0 0.0
    %700 = vmatpush1.xpose.msra.mxu0 0.0
    %701 = vmatprep.subr.mxu0 0.0
    %702 = vmatpush1.xpose.msra.mxu0 0.0
    %703 = vmatprep.subr.mxu0 0.0
    %704 = vmatpush1.xpose.msra.mxu0 0.0
    %705 = vmatprep.subr.mxu0 0.0
    %706 = vmatpush1.xpose.msra.mxu0 0.0
    %707 = vmatprep.subr.mxu0 0.0
    %708 = vmatpush1.xpose.msra.mxu0 0.0
    %709 = vmatprep.subr.mxu0 0.0
    %710 = vmatpush1.xpose.msra.mxu0 0.0
    %711 = vmatprep.subr.mxu0 0.0
    %712 = vmatpush1.xpose.msra.mxu0 0.0
    %713 = vmatprep.subr.mxu0 0.0
    %714 = vmatpush1.xpose.msra.mxu0 0.0
    %715 = vmatprep.subr.mxu0 0.0
    %716 = vmatpush1.xpose.msra.mxu0 0.0
    %717 = vmatprep.subr.mxu0 0.0
    %718 = vmatpush1.xpose.msra.mxu0 0.0
    %719 = vmatprep.subr.mxu0 0.0
    %720 = vmatpush1.xpose.msra.mxu0 0.0
    %721 = vmatprep.subr.mxu0 0.0
    %722 = vmatpush1.xpose.msra.mxu0 0.0
    %723 = vmatprep.subr.mxu0 0.0
    %724 = vmatpush1.xpose.msra.mxu0 0.0
    %725 = vmatprep.subr.mxu0 0.0
    %726 = vmatpush1.xpose.msra.mxu0 0.0
    %727 = vmatprep.subr.mxu0 0.0
    %728 = vmatpush1.xpose.msra.mxu0 0.0
    %729 = vmatprep.subr.mxu0 0.0
    %730 = vmatpush1.xpose.msra.mxu0 0.0
    %731 = vmatprep.subr.mxu0 0.0
    %732 = vmatpush1.xpose.msra.mxu0 0.0
    %733 = vmatprep.subr.mxu0 0.0
    %734 = vmatpush1.xpose.msra.mxu0 0.0
    %735 = vmatprep.mubr.f32.mxu0 0.0
    %736 = vmatmul.mubr.f32.gmra.mrb[0].mxu0 %v665
    %v737 = vpop.f32.mrb[0].mxu0
    %v738 = vadd.f32 0.0, %v737
    %v739 = vpop.f32.mrb[0].mxu0
    %740 = vmatprep.mubr.f32.mxu0 0.0
    %741 = vmatmul.mubr.f32.gmra.mrb[0].mxu0 %v667
    %v742 = vpop.f32.mrb[0].mxu0
    %v743 = vadd.f32 0.0, %v742
    %v744 = vpop.f32.mrb[0].mxu0
    %745 = vdwg.mxu0
    %v746 = vsel %vm275, %v738, -inf
    %747 = vmax.xlane.f32.xlu0 %v746
    %v748 = vpop.xlane.xlu0 %747
    %v749 = vsel %vm362, %v743, -inf
    %750 = vmax.xlane.f32.xlu0 %v749
    %v751 = vpop.xlane.xlu0 %750
    %v752 = vsub.f32 %v738, %v748
    %v753 = vsub.f32 %v743, %v751
    %v754 = vmul.f32 %v752, 1.442695
    %v755 = vpow.pop %v754
    %v756 = vmul.f32 %v753, 1.442695
    %v757 = vpow.pop %v756
    %v758 = vsel %vm275, %v755, 0.0
    %759 = vadd.xlane.f32.xlu0 %v758
    %v760 = vpop.xlane.xlu0 %759
    %v761 = vsel %vm362, %v757, 0.0
    %762 = vadd.xlane.f32.xlu0 %v761
    %v763 = vpop.xlane.xlu0 %762
    %v764 = vrcp.pop %v760
    %v765 = vrcp.pop %v763
    %v766 = vmul.f32 %v755, %v764
    %v767 = vmul.f32 %v757, %v765
    %768 = vrot.lane.b32.xlu0 %v264, 48
    %v769 = vpop.permute.xlu0 %768
    %v772 = vsel %vm275, %v766, 0
    %v775 = vsel %vm275, %v767, 0
    %777 = vmatprep.subr.mxu0 0.0
    %778 = vmatpush1.msra.mxu0 %v769
    %779 = vmatprep.subr.mxu0 0.0
    %780 = vmatpush1.msra.mxu0 0.0
    %781 = vmatprep.subr.mxu0 0.0
    %782 = vmatpush1.msra.mxu0 0.0
    %783 = vmatprep.subr.mxu0 0.0
    %784 = vmatpush1.msra.mxu0 0.0
    %785 = vmatprep.subr.mxu0 0.0
    %786 = vmatpush1.msra.mxu0 0.0
    %787 = vmatprep.subr.mxu0 0.0
    %788 = vmatpush1.msra.mxu0 0.0
    %789 = vmatprep.subr.mxu0 0.0
    %790 = vmatpush1.msra.mxu0 0.0
    %791 = vmatprep.subr.mxu0 0.0
    %792 = vmatpush1.msra.mxu0 0.0
    %793 = vmatprep.subr.mxu0 0.0
    %794 = vmatpush1.msra.mxu0 0.0
    %795 = vmatprep.subr.mxu0 0.0
    %796 = vmatpush1.msra.mxu0 0.0
    %797 = vmatprep.subr.mxu0 0.0
    %798 = vmatpush1.msra.mxu0 0.0
    %799 = vmatprep.subr.mxu0 0.0
    %800 = vmatpush1.msra.mxu0 0.0
    %801 = vmatprep.subr.mxu0 0.0
    %802 = vmatpush1.msra.mxu0 0.0
    %803 = vmatprep.subr.mxu0 0.0
    %804 = vmatpush1.msra.mxu0 0.0
    %805 = vmatprep.subr.mxu0 0.0
    %806 = vmatpush1.msra.mxu0 0.0
    %807 = vmatprep.subr.mxu0 0.0
    %808 = vmatpush1.msra.mxu0 0.0
    %809 = vmatprep.subr.mxu0 0.0
    %810 = vmatpush1.msra.mxu0 0.0
    %811 = vmatprep.subr.mxu0 0.0
    %812 = vmatpush1.msra.mxu0 0.0
    %813 = vmatprep.subr.mxu0 0.0
    %814 = vmatpush1.msra.mxu0 0.0
    %815 = vmatprep.subr.mxu0 0.0
    %816 = vmatpush1.msra.mxu0 0.0
    %817 = vmatprep.subr.mxu0 0.0
    %818 = vmatpush1.msra.mxu0 0.0
    %819 = vmatprep.subr.mxu0 0.0
    %820 = vmatpush1.msra.mxu0 0.0
    %821 = vmatprep.subr.mxu0 0.0
    %822 = vmatpush1.msra.mxu0 0.0
    %823 = vmatprep.subr.mxu0 0.0
    %824 = vmatpush1.msra.mxu0 0.0
    %825 = vmatprep.subr.mxu0 0.0
    %826 = vmatpush1.msra.mxu0 0.0
    %827 = vmatprep.subr.mxu0 0.0
    %828 = vmatpush1.msra.mxu0 0.0
    %829 = vmatprep.subr.mxu0 0.0
    %830 = vmatpush1.msra.mxu0 0.0
    %831 = vmatprep.subr.mxu0 0.0
    %832 = vmatpush1.msra.mxu0 0.0
    %833 = vmatprep.subr.mxu0 0.0
    %834 = vmatpush1.msra.mxu0 0.0
    %835 = vmatprep.subr.mxu0 0.0
    %836 = vmatpush1.msra.mxu0 0.0
    %837 = vmatprep.subr.mxu0 0.0
    %838 = vmatpush1.msra.mxu0 0.0
    %839 = vmatprep.subr.mxu0 0.0
    %840 = vmatpush1.msra.mxu0 0.0
    %841 = vmatprep.mubr.f32.mxu0 0.0
    %842 = vmatmul.mubr.f32.gmra.mrb[0].mxu0 %v772
    %v843 = vpop.f32.mrb[0].mxu0
    %v844 = vadd.f32 0.0, %v843
    %v845 = vpop.f32.mrb[0].mxu0
    %846 = vmatprep.mubr.f32.mxu0 0.0
    %847 = vmatmul.mubr.f32.gmra.mrb[0].mxu0 %v775
    %v848 = vpop.f32.mrb[0].mxu0
    %v849 = vadd.f32 0.0, %v848
    %v850 = vpop.f32.mrb[0].mxu0
    %851 = vdwg.mxu0
    %852 = vrot.lane.b32.xlu0 %v173, 104
    %v853 = vpop.permute.xlu0 %852
    %854 = vrot.lane.b32.xlu0 %v178, 104
    %v855 = vpop.permute.xlu0 %854
    %856 = vrot.lane.b32.xlu0 %v264, 72
    %v857 = vpop.permute.xlu0 %856
    %v858 = vsel %vm275, %v853, 0
    %v860 = vsel %vm275, %v855, 0
    %v862 = vsel %vm275, %v857, 0
    %864 = vmatprep.subr.mxu0 0.0
    %865 = vmatpush1.xpose.msra.mxu0 %v862
    %866 = vmatprep.subr.mxu0 0.0
    %867 = vmatpush1.xpose.msra.mxu0 0.0
    %868 = vmatprep.subr.mxu0 0.0
    %869 = vmatpush1.xpose.msra.mxu0 0.0
    %870 = vmatprep.subr.mxu0 0.0
    %871 = vmatpush1.xpose.msra.mxu0 0.0
    %872 = vmatprep.subr.mxu0 0.0
    %873 = vmatpush1.xpose.msra.mxu0 0.0
    %874 = vmatprep.subr.mxu0 0.0
    %875 = vmatpush1.xpose.msra.mxu0 0.0
    %876 = vmatprep.subr.mxu0 0.0
    %877 = vmatpush1.xpose.msra.mxu0 0.0
    %878 = vmatprep.subr.mxu0 0.0
    %879 = vmatpush1.xpose.msra.mxu0 0.0
    %880 = vmatprep.subr.mxu0 0.0
    %881 = vmatpush1.xpose.msra.mxu0 0.0
    %882 = vmatprep.subr.mxu0 0.0
    %883 = vmatpush1.xpose.msra.mxu0 0.0
    %884 = vmatprep.subr.mxu0 0.0
    %885 = vmatpush1.xpose.msra.mxu0 0.0
    %886 = vmatprep.subr.mxu0 0.0
    %887 = vmatpush1.xpose.msra.mxu0 0.0
    %888 = vmatprep.subr.mxu0 0.0
    %889 = vmatpush1.xpose.msra.mxu0 0.0
    %890 = vmatprep.subr.mxu0 0.0
    %891 = vmatpush1.xpose.msra.mxu0 0.0
    %892 = vmatprep.subr.mxu0 0.0
    %893 = vmatpush1.xpose.msra.mxu0 0.0
    %894 = vmatprep.subr.mxu0 0.0
    %895 = vmatpush1.xpose.msra.mxu0 0.0
    %896 = vmatprep.subr.mxu0 0.0
    %897 = vmatpush1.xpose.msra.mxu0 0.0
    %898 = vmatprep.subr.mxu0 0.0
    %899 = vmatpush1.xpose.msra.mxu0 0.0
    %900 = vmatprep.subr.mxu0 0.0
    %901 = vmatpush1.xpose.msra.mxu0 0.0
    %902 = vmatprep.subr.mxu0 0.0
    %903 = vmatpush1.xpose.msra.mxu0 0.0
    %904 = vmatprep.subr.mxu0 0.0
    %905 = vmatpush1.xpose.msra.mxu0 0.0
    %906 = vmatprep.subr.mxu0 0.0
    %907 = vmatpush1.xpose.msra.mxu0 0.0
    %908 = vmatprep.subr.mxu0 0.0
    %909 = vmatpush1.xpose.msra.mxu0 0.0
    %910 = vmatprep.subr.mxu0 0.0
    %911 = vmatpush1.xpose.msra.mxu0 0.0
    %912 = vmatprep.subr.mxu0 0.0
    %913 = vmatpush1.xpose.msra.mxu0 0.0
    %914 = vmatprep.subr.mxu0 0.0
    %915 = vmatpush1.xpose.msra.mxu0 0.0
    %916 = vmatprep.subr.mxu0 0.0
    %917 = vmatpush1.xpose.msra.mxu0 0.0
    %918 = vmatprep.subr.mxu0 0.0
    %919 = vmatpush1.xpose.msra.mxu0 0.0
    %920 = vmatprep.subr.mxu0 0.0
    %921 = vmatpush1.xpose.msra.mxu0 0.0
    %922 = vmatprep.subr.mxu0 0.0
    %923 = vmatpush1.xpose.msra.mxu0 0.0
    %924 = vmatprep.subr.mxu0 0.0
    %925 = vmatpush1.xpose.msra.mxu0 0.0
    %926 = vmatprep.subr.mxu0 0.0
    %927 = vmatpush1.xpose.msra.mxu0 0.0
    %928 = vmatprep.mubr.f32.mxu0 0.0
    %929 = vmatmul.mubr.f32.gmra.mrb[0].mxu0 %v858
    %v930 = vpop.f32.mrb[0].mxu0
    %v931 = vadd.f32 0.0, %v930
    %v932 = vpop.f32.mrb[0].mxu0
    %933 = vmatprep.mubr.f32.mxu0 0.0
    %934 = vmatmul.mubr.f32.gmra.mrb[0].mxu0 %v860
    %v935 = vpop.f32.mrb[0].mxu0
    %v936 = vadd.f32 0.0, %v935
    %v937 = vpop.f32.mrb[0].mxu0
    %938 = vdwg.mxu0
    %v939 = vsel %vm275, %v931, -inf
    %940 = vmax.xlane.f32.xlu0 %v939
    %v941 = vpop.xlane.xlu0 %940
    %v942 = vsel %vm362, %v936, -inf
    %943 = vmax.xlane.f32.xlu0 %v942
    %v944 = vpop.xlane.xlu0 %943
    %v945 = vsub.f32 %v931, %v941
    %v946 = vsub.f32 %v936, %v944
    %v947 = vmul.f32 %v945, 1.442695
    %v948 = vpow.pop %v947
    %v949 = vmul.f32 %v946, 1.442695
    %v950 = vpow.pop %v949
    %v951 = vsel %vm275, %v948, 0.0
    %952 = vadd.xlane.f32.xlu0 %v951
    %v953 = vpop.xlane.xlu0 %952
    %v954 = vsel %vm362, %v950, 0.0
    %955 = vadd.xlane.f32.xlu0 %v954
    %v956 = vpop.xlane.xlu0 %955
    %v957 = vrcp.pop %v953
    %v958 = vrcp.pop %v956
    %v959 = vmul.f32 %v948, %v957
    %v960 = vmul.f32 %v950, %v958
    %961 = vrot.lane.b32.xlu0 %v264, 40
    %v962 = vpop.permute.xlu0 %961
    %v965 = vsel %vm275, %v959, 0
    %v968 = vsel %vm275, %v960, 0
    %970 = vmatprep.subr.mxu0 0.0
    %971 = vmatpush1.msra.mxu0 %v962
    %972 = vmatprep.subr.mxu0 0.0
    %973 = vmatpush1.msra.mxu0 0.0
    %974 = vmatprep.subr.mxu0 0.0
    %975 = vmatpush1.msra.mxu0 0.0
    %976 = vmatprep.subr.mxu0 0.0
    %977 = vmatpush1.msra.mxu0 0.0
    %978 = vmatprep.subr.mxu0 0.0
    %979 = vmatpush1.msra.mxu0 0.0
    %980 = vmatprep.subr.mxu0 0.0
    %981 = vmatpush1.msra.mxu0 0.0
    %982 = vmatprep.subr.mxu0 0.0
    %983 = vmatpush1.msra.mxu0 0.0
    %984 = vmatprep.subr.mxu0 0.0
    %985 = vmatpush1.msra.mxu0 0.0
    %986 = vmatprep.subr.mxu0 0.0
    %987 = vmatpush1.msra.mxu0 0.0
    %988 = vmatprep.subr.mxu0 0.0
    %989 = vmatpush1.msra.mxu0 0.0
    %990 = vmatprep.subr.mxu0 0.0
    %991 = vmatpush1.msra.mxu0 0.0
    %992 = vmatprep.subr.mxu0 0.0
    %993 = vmatpush1.msra.mxu0 0.0
    %994 = vmatprep.subr.mxu0 0.0
    %995 = vmatpush1.msra.mxu0 0.0
    %996 = vmatprep.subr.mxu0 0.0
    %997 = vmatpush1.msra.mxu0 0.0
    %998 = vmatprep.subr.mxu0 0.0
    %999 = vmatpush1.msra.mxu0 0.0
    %1000 = vmatprep.subr.mxu0 0.0
    %1001 = vmatpush1.msra.mxu0 0.0
    %1002 = vmatprep.subr.mxu0 0.0
    %1003 = vmatpush1.msra.mxu0 0.0
    %1004 = vmatprep.subr.mxu0 0.0
    %1005 = vmatpush1.msra.mxu0 0.0
    %1006 = vmatprep.subr.mxu0 0.0
    %1007 = vmatpush1.msra.mxu0 0.0
    %1008 = vmatprep.subr.mxu0 0.0
    %1009 = vmatpush1.msra.mxu0 0.0
    %1010 = vmatprep.subr.mxu0 0.0
    %1011 = vmatpush1.msra.mxu0 0.0
    %1012 = vmatprep.subr.mxu0 0.0
    %1013 = vmatpush1.msra.mxu0 0.0
    %1014 = vmatprep.subr.mxu0 0.0
    %1015 = vmatpush1.msra.mxu0 0.0
    %1016 = vmatprep.subr.mxu0 0.0
    %1017 = vmatpush1.msra.mxu0 0.0
    %1018 = vmatprep.subr.mxu0 0.0
    %1019 = vmatpush1.msra.mxu0 0.0
    %1020 = vmatprep.subr.mxu0 0.0
    %1021 = vmatpush1.msra.mxu0 0.0
    %1022 = vmatprep.subr.mxu0 0.0
    %1023 = vmatpush1.msra.mxu0 0.0
    %1024 = vmatprep.subr.mxu0 0.0
    %1025 = vmatpush1.msra.mxu0 0.0
    %1026 = vmatprep.subr.mxu0 0.0
    %1027 = vmatpush1.msra.mxu0 0.0
    %1028 = vmatprep.subr.mxu0 0.0
    %1029 = vmatpush1.msra.mxu0 0.0
    %1030 = vmatprep.subr.mxu0 0.0
    %1031 = vmatpush1.msra.mxu0 0.0
    %1032 = vmatprep.subr.mxu0 0.0
    %1033 = vmatpush1.msra.mxu0 0.0
    %1034 = vmatprep.mubr.f32.mxu0 0.0
    %1035 = vmatmul.mubr.f32.gmra.mrb[0].mxu0 %v965
    %v1036 = vpop.f32.mrb[0].mxu0
    %v1037 = vadd.f32 0.0, %v1036
    %v1038 = vpop.f32.mrb[0].mxu0
    %1039 = vmatprep.mubr.f32.mxu0 0.0
    %1040 = vmatmul.mubr.f32.gmra.mrb[0].mxu0 %v968
    %v1041 = vpop.f32.mrb[0].mxu0
    %v1042 = vadd.f32 0.0, %v1041
    %v1043 = vpop.f32.mrb[0].mxu0
    %1044 = vdwg.mxu0
    %1047 = vrot.lane.b32.xlu0 %v651, 8
    %v1048 = vpop.permute.xlu0 %1047
    %1049 = vrot.lane.b32.xlu0 %v656, 8
    %v1050 = vpop.permute.xlu0 %1049
    %1055 = vrot.lane.b32.xlu0 %v844, 16
    %v1056 = vpop.permute.xlu0 %1055
    %1057 = vrot.lane.b32.xlu0 %v849, 16
    %v1058 = vpop.permute.xlu0 %1057
    %1063 = vrot.lane.b32.xlu0 %v1037, 24
    %v1064 = vpop.permute.xlu0 %1063
    %1065 = vrot.lane.b32.xlu0 %v1042, 24
    %v1066 = vpop.permute.xlu0 %1065
    %v1069 = vsel %vm275, %v458, %v1048
    %v1070 = vsel %vm275, %v463, %v1050
    %vm1071 = vcmask 130048
    %v1072 = vsel %vm1071, %v1069, %v1056
    %v1073 = vsel %vm1071, %v1070, %v1058
    %vm1074 = vcmask 195584
    %v1075 = vsel %vm1074, %v1072, %v1064
    %v1076 = vsel %vm1074, %v1073, %v1066
    %vm1079 = vcmask 1041408
    %v1080 = vrot.slane %v178, 6
    %v1081 = vrot.slane %v183, 6
    %v1082 = vsel %vm1079, %v1080, %v1081
    %v1083 = vrot.slane %v188, 6
    %v1084 = vsel %vm1079, %v1081, %v1083
    %1086 = vrot.lane.b32.xlu0 %v269, 96
    %v1087 = vpop.permute.xlu0 %1086
    %v1088 = vsel %vm275, %v1082, 0
    %v1090 = vsel %vm275, %v1084, 0
    %v1092 = vsel %vm275, %v1087, 0
    %1094 = vmatprep.subr.mxu0 0.0
    %1095 = vmatpush1.xpose.msra.mxu0 %v1092
    %1096 = vmatprep.subr.mxu0 0.0
    %1097 = vmatpush1.xpose.msra.mxu0 0.0
    %1098 = vmatprep.subr.mxu0 0.0
    %1099 = vmatpush1.xpose.msra.mxu0 0.0
    %1100 = vmatprep.subr.mxu0 0.0
    %1101 = vmatpush1.xpose.msra.mxu0 0.0
    %1102 = vmatprep.subr.mxu0 0.0
    %1103 = vmatpush1.xpose.msra.mxu0 0.0
    %1104 = vmatprep.subr.mxu0 0.0
    %1105 = vmatpush1.xpose.msra.mxu0 0.0
    %1106 = vmatprep.subr.mxu0 0.0
    %1107 = vmatpush1.xpose.msra.mxu0 0.0
    %1108 = vmatprep.subr.mxu0 0.0
    %1109 = vmatpush1.xpose.msra.mxu0 0.0
    %1110 = vmatprep.subr.mxu0 0.0
    %1111 = vmatpush1.xpose.msra.mxu0 0.0
    %1112 = vmatprep.subr.mxu0 0.0
    %1113 = vmatpush1.xpose.msra.mxu0 0.0
    %1114 = vmatprep.subr.mxu0 0.0
    %1115 = vmatpush1.xpose.msra.mxu0 0.0
    %1116 = vmatprep.subr.mxu0 0.0
    %1117 = vmatpush1.xpose.msra.mxu0 0.0
    %1118 = vmatprep.subr.mxu0 0.0
    %1119 = vmatpush1.xpose.msra.mxu0 0.0
    %1120 = vmatprep.subr.mxu0 0.0
    %1121 = vmatpush1.xpose.msra.mxu0 0.0
    %1122 = vmatprep.subr.mxu0 0.0
    %1123 = vmatpush1.xpose.msra.mxu0 0.0
    %1124 = vmatprep.subr.mxu0 0.0
    %1125 = vmatpush1.xpose.msra.mxu0 0.0
    %1126 = vmatprep.subr.mxu0 0.0
    %1127 = vmatpush1.xpose.msra.mxu0 0.0
    %1128 = vmatprep.subr.mxu0 0.0
    %1129 = vmatpush1.xpose.msra.mxu0 0.0
    %1130 = vmatprep.subr.mxu0 0.0
    %1131 = vmatpush1.xpose.msra.mxu0 0.0
    %1132 = vmatprep.subr.mxu0 0.0
    %1133 = vmatpush1.xpose.msra.mxu0 0.0
    %1134 = vmatprep.subr.mxu0 0.0
    %1135 = vmatpush1.xpose.msra.mxu0 0.0
    %1136 = vmatprep.subr.mxu0 0.0
    %1137 = vmatpush1.xpose.msra.mxu0 0.0
    %1138 = vmatprep.subr.mxu0 0.0
    %1139 = vmatpush1.xpose.msra.mxu0 0.0
    %1140 = vmatprep.subr.mxu0 0.0
    %1141 = vmatpush1.xpose.msra.mxu0 0.0
    %1142 = vmatprep.subr.mxu0 0.0
    %1143 = vmatpush1.xpose.msra.mxu0 0.0
    %1144 = vmatprep.subr.mxu0 0.0
    %1145 = vmatpush1.xpose.msra.mxu0 0.0
    %1146 = vmatprep.subr.mxu0 0.0
    %1147 = vmatpush1.xpose.msra.mxu0 0.0
    %1148 = vmatprep.subr.mxu0 0.0
    %1149 = vmatpush1.xpose.msra.mxu0 0.0
    %1150 = vmatprep.subr.mxu0 0.0
    %1151 = vmatpush1.xpose.msra.mxu0 0.0
    %1152 = vmatprep.subr.mxu0 0.0
    %1153 = vmatpush1.xpose.msra.mxu0 0.0
    %1154 = vmatprep.subr.mxu0 0.0
    %1155 = vmatpush1.xpose.msra.mxu0 0.0
    %1156 = vmatprep.subr.mxu0 0.0
    %1157 = vmatpush1.xpose.msra.mxu0 0.0
    %1158 = vmatprep.mubr.f32.mxu0 0.0
    %1159 = vmatmul.mubr.f32.gmra.mrb[0].mxu0 %v1088
    %v1160 = vpop.f32.mrb[0].mxu0
    %v1161 = vadd.f32 0.0, %v1160
    %v1162 = vpop.f32.mrb[0].mxu0
    %1163 = vmatprep.mubr.f32.mxu0 0.0
    %1164 = vmatmul.mubr.f32.gmra.mrb[0].mxu0 %v1090
    %v1165 = vpop.f32.mrb[0].mxu0
    %v1166 = vadd.f32 0.0, %v1165
    %v1167 = vpop.f32.mrb[0].mxu0
    %1168 = vdwg.mxu0
    %v1169 = vsel %vm275, %v1161, -inf
    %1170 = vmax.xlane.f32.xlu0 %v1169
    %v1171 = vpop.xlane.xlu0 %1170
    %v1172 = vsel %vm362, %v1166, -inf
    %1173 = vmax.xlane.f32.xlu0 %v1172
    %v1174 = vpop.xlane.xlu0 %1173
    %v1175 = vsub.f32 %v1161, %v1171
    %v1176 = vsub.f32 %v1166, %v1174
    %v1177 = vmul.f32 %v1175, 1.442695
    %v1178 = vpow.pop %v1177
    %v1179 = vmul.f32 %v1176, 1.442695
    %v1180 = vpow.pop %v1179
    %v1181 = vsel %vm275, %v1178, 0.0
    %1182 = vadd.xlane.f32.xlu0 %v1181
    %v1183 = vpop.xlane.xlu0 %1182
    %v1184 = vsel %vm362, %v1180, 0.0
    %1185 = vadd.xlane.f32.xlu0 %v1184
    %v1186 = vpop.xlane.xlu0 %1185
    %v1187 = vrcp.pop %v1183
    %v1188 = vrcp.pop %v1186
    %v1189 = vmul.f32 %v1178, %v1187
    %v1190 = vmul.f32 %v1180, %v1188
    %1191 = vrot.lane.b32.xlu0 %v269, 64
    %v1192 = vpop.permute.xlu0 %1191
    %v1195 = vsel %vm275, %v1189, 0
    %v1198 = vsel %vm275, %v1190, 0
    %1200 = vmatprep.subr.mxu0 0.0
    %1201 = vmatpush1.msra.mxu0 %v1192
    %1202 = vmatprep.subr.mxu0 0.0
    %1203 = vmatpush1.msra.mxu0 0.0
    %1204 = vmatprep.subr.mxu0 0.0
    %1205 = vmatpush1.msra.mxu0 0.0
    %1206 = vmatprep.subr.mxu0 0.0
    %1207 = vmatpush1.msra.mxu0 0.0
    %1208 = vmatprep.subr.mxu0 0.0
    %1209 = vmatpush1.msra.mxu0 0.0
    %1210 = vmatprep.subr.mxu0 0.0
    %1211 = vmatpush1.msra.mxu0 0.0
    %1212 = vmatprep.subr.mxu0 0.0
    %1213 = vmatpush1.msra.mxu0 0.0
    %1214 = vmatprep.subr.mxu0 0.0
    %1215 = vmatpush1.msra.mxu0 0.0
    %1216 = vmatprep.subr.mxu0 0.0
    %1217 = vmatpush1.msra.mxu0 0.0
    %1218 = vmatprep.subr.mxu0 0.0
    %1219 = vmatpush1.msra.mxu0 0.0
    %1220 = vmatprep.subr.mxu0 0.0
    %1221 = vmatpush1.msra.mxu0 0.0
    %1222 = vmatprep.subr.mxu0 0.0
    %1223 = vmatpush1.msra.mxu0 0.0
    %1224 = vmatprep.subr.mxu0 0.0
    %1225 = vmatpush1.msra.mxu0 0.0
    %1226 = vmatprep.subr.mxu0 0.0
    %1227 = vmatpush1.msra.mxu0 0.0
    %1228 = vmatprep.subr.mxu0 0.0
    %1229 = vmatpush1.msra.mxu0 0.0
    %1230 = vmatprep.subr.mxu0 0.0
    %1231 = vmatpush1.msra.mxu0 0.0
    %1232 = vmatprep.subr.mxu0 0.0
    %1233 = vmatpush1.msra.mxu0 0.0
    %1234 = vmatprep.subr.mxu0 0.0
    %1235 = vmatpush1.msra.mxu0 0.0
    %1236 = vmatprep.subr.mxu0 0.0
    %1237 = vmatpush1.msra.mxu0 0.0
    %1238 = vmatprep.subr.mxu0 0.0
    %1239 = vmatpush1.msra.mxu0 0.0
    %1240 = vmatprep.subr.mxu0 0.0
    %1241 = vmatpush1.msra.mxu0 0.0
    %1242 = vmatprep.subr.mxu0 0.0
    %1243 = vmatpush1.msra.mxu0 0.0
    %1244 = vmatprep.subr.mxu0 0.0
    %1245 = vmatpush1.msra.mxu0 0.0
    %1246 = vmatprep.subr.mxu0 0.0
    %1247 = vmatpush1.msra.mxu0 0.0
    %1248 = vmatprep.subr.mxu0 0.0
    %1249 = vmatpush1.msra.mxu0 0.0
    %1250 = vmatprep.subr.mxu0 0.0
    %1251 = vmatpush1.msra.mxu0 0.0
    %1252 = vmatprep.subr.mxu0 0.0
    %1253 = vmatpush1.msra.mxu0 0.0
    %1254 = vmatprep.subr.mxu0 0.0
    %1255 = vmatpush1.msra.mxu0 0.0
    %1256 = vmatprep.subr.mxu0 0.0
    %1257 = vmatpush1.msra.mxu0 0.0
    %1258 = vmatprep.subr.mxu0 0.0
    %1259 = vmatpush1.msra.mxu0 0.0
    %1260 = vmatprep.subr.mxu0 0.0
    %1261 = vmatpush1.msra.mxu0 0.0
    %1262 = vmatprep.subr.mxu0 0.0
    %1263 = vmatpush1.msra.mxu0 0.0
    %1264 = vmatprep.mubr.f32.mxu0 0.0
    %1265 = vmatmul.mubr.f32.gmra.mrb[0].mxu0 %v1195
    %v1266 = vpop.f32.mrb[0].mxu0
    %v1267 = vadd.f32 0.0, %v1266
    %v1268 = vpop.f32.mrb[0].mxu0
    %1269 = vmatprep.mubr.f32.mxu0 0.0
    %1270 = vmatmul.mubr.f32.gmra.mrb[0].mxu0 %v1198
    %v1271 = vpop.f32.mrb[0].mxu0
    %v1272 = vadd.f32 0.0, %v1271
    %v1273 = vpop.f32.mrb[0].mxu0
    %1274 = vdwg.mxu0
    %1275 = vrot.lane.b32.xlu0 %v1082, 120
    %v1276 = vpop.permute.xlu0 %1275
    %1277 = vrot.lane.b32.xlu0 %v1084, 120
    %v1278 = vpop.permute.xlu0 %1277
    %1279 = vrot.lane.b32.xlu0 %v269, 88
    %v1280 = vpop.permute.xlu0 %1279
    %v1281 = vsel %vm275, %v1276, 0
    %v1283 = vsel %vm275, %v1278, 0
    %v1285 = vsel %vm275, %v1280, 0
    %1287 = vmatprep.subr.mxu0 0.0
    %1288 = vmatpush1.xpose.msra.mxu0 %v1285
    %1289 = vmatprep.subr.mxu0 0.0
    %1290 = vmatpush1.xpose.msra.mxu0 0.0
    %1291 = vmatprep.subr.mxu0 0.0
    %1292 = vmatpush1.xpose.msra.mxu0 0.0
    %1293 = vmatprep.subr.mxu0 0.0
    %1294 = vmatpush1.xpose.msra.mxu0 0.0
    %1295 = vmatprep.subr.mxu0 0.0
    %1296 = vmatpush1.xpose.msra.mxu0 0.0
    %1297 = vmatprep.subr.mxu0 0.0
    %1298 = vmatpush1.xpose.msra.mxu0 0.0
    %1299 = vmatprep.subr.mxu0 0.0
    %1300 = vmatpush1.xpose.msra.mxu0 0.0
    %1301 = vmatprep.subr.mxu0 0.0
    %1302 = vmatpush1.xpose.msra.mxu0 0.0
    %1303 = vmatprep.subr.mxu0 0.0
    %1304 = vmatpush1.xpose.msra.mxu0 0.0
    %1305 = vmatprep.subr.mxu0 0.0
    %1306 = vmatpush1.xpose.msra.mxu0 0.0
    %1307 = vmatprep.subr.mxu0 0.0
    %1308 = vmatpush1.xpose.msra.mxu0 0.0
    %1309 = vmatprep.subr.mxu0 0.0
    %1310 = vmatpush1.xpose.msra.mxu0 0.0
    %1311 = vmatprep.subr.mxu0 0.0
    %1312 = vmatpush1.xpose.msra.mxu0 0.0
    %1313 = vmatprep.subr.mxu0 0.0
    %1314 = vmatpush1.xpose.msra.mxu0 0.0
    %1315 = vmatprep.subr.mxu0 0.0
    %1316 = vmatpush1.xpose.msra.mxu0 0.0
    %1317 = vmatprep.subr.mxu0 0.0
    %1318 = vmatpush1.xpose.msra.mxu0 0.0
    %1319 = vmatprep.subr.mxu0 0.0
    %1320 = vmatpush1.xpose.msra.mxu0 0.0
    %1321 = vmatprep.subr.mxu0 0.0
    %1322 = vmatpush1.xpose.msra.mxu0 0.0
    %1323 = vmatprep.subr.mxu0 0.0
    %1324 = vmatpush1.xpose.msra.mxu0 0.0
    %1325 = vmatprep.subr.mxu0 0.0
    %1326 = vmatpush1.xpose.msra.mxu0 0.0
    %1327 = vmatprep.subr.mxu0 0.0
    %1328 = vmatpush1.xpose.msra.mxu0 0.0
    %1329 = vmatprep.subr.mxu0 0.0
    %1330 = vmatpush1.xpose.msra.mxu0 0.0
    %1331 = vmatprep.subr.mxu0 0.0
    %1332 = vmatpush1.xpose.msra.mxu0 0.0
    %1333 = vmatprep.subr.mxu0 0.0
    %1334 = vmatpush1.xpose.msra.mxu0 0.0
    %1335 = vmatprep.subr.mxu0 0.0
    %1336 = vmatpush1.xpose.msra.mxu0 0.0
    %1337 = vmatprep.subr.mxu0 0.0
    %1338 = vmatpush1.xpose.msra.mxu0 0.0
    %1339 = vmatprep.subr.mxu0 0.0
    %1340 = vmatpush1.xpose.msra.mxu0 0.0
    %1341 = vmatprep.subr.mxu0 0.0
    %1342 = vmatpush1.xpose.msra.mxu0 0.0
    %1343 = vmatprep.subr.mxu0 0.0
    %1344 = vmatpush1.xpose.msra.mxu0 0.0
    %1345 = vmatprep.subr.mxu0 0.0
    %1346 = vmatpush1.xpose.msra.mxu0 0.0
    %1347 = vmatprep.subr.mxu0 0.0
    %1348 = vmatpush1.xpose.msra.mxu0 0.0
    %1349 = vmatprep.subr.mxu0 0.0
    %1350 = vmatpush1.xpose.msra.mxu0 0.0
    %1351 = vmatprep.mubr.f32.mxu0 0.0
    %1352 = vmatmul.mubr.f32.gmra.mrb[0].mxu0 %v1281
    %v1353 = vpop.f32.mrb[0].mxu0
    %v1354 = vadd.f32 0.0, %v1353
    %v1355 = vpop.f32.mrb[0].mxu0
    %1356 = vmatprep.mubr.f32.mxu0 0.0
    %1357 = vmatmul.mubr.f32.gmra.mrb[0].mxu0 %v1283
    %v1358 = vpop.f32.mrb[0].mxu0
    %v1359 = vadd.f32 0.0, %v1358
    %v1360 = vpop.f32.mrb[0].mxu0
    %1361 = vdwg.mxu0
    %v1362 = vsel %vm275, %v1354, -inf
    %1363 = vmax.xlane.f32.xlu0 %v1362
    %v1364 = vpop.xlane.xlu0 %1363
    %v1365 = vsel %vm362, %v1359, -inf
    %1366 = vmax.xlane.f32.xlu0 %v1365
    %v1367 = vpop.xlane.xlu0 %1366
    %v1368 = vsub.f32 %v1354, %v1364
    %v1369 = vsub.f32 %v1359, %v1367
    %v1370 = vmul.f32 %v1368, 1.442695
    %v1371 = vpow.pop %v1370
    %v1372 = vmul.f32 %v1369, 1.442695
    %v1373 = vpow.pop %v1372
    %v1374 = vsel %vm275, %v1371, 0.0
    %1375 = vadd.xlane.f32.xlu0 %v1374
    %v1376 = vpop.xlane.xlu0 %1375
    %v1377 = vsel %vm362, %v1373, 0.0
    %1378 = vadd.xlane.f32.xlu0 %v1377
    %v1379 = vpop.xlane.xlu0 %1378
    %v1380 = vrcp.pop %v1376
    %v1381 = vrcp.pop %v1379
    %v1382 = vmul.f32 %v1371, %v1380
    %v1383 = vmul.f32 %v1373, %v1381
    %1384 = vrot.lane.b32.xlu0 %v269, 56
    %v1385 = vpop.permute.xlu0 %1384
    %v1388 = vsel %vm275, %v1382, 0
    %v1391 = vsel %vm275, %v1383, 0
    %1393 = vmatprep.subr.mxu0 0.0
    %1394 = vmatpush1.msra.mxu0 %v1385
    %1395 = vmatprep.subr.mxu0 0.0
    %1396 = vmatpush1.msra.mxu0 0.0
    %1397 = vmatprep.subr.mxu0 0.0
    %1398 = vmatpush1.msra.mxu0 0.0
    %1399 = vmatprep.subr.mxu0 0.0
    %1400 = vmatpush1.msra.mxu0 0.0
    %1401 = vmatprep.subr.mxu0 0.0
    %1402 = vmatpush1.msra.mxu0 0.0
    %1403 = vmatprep.subr.mxu0 0.0
    %1404 = vmatpush1.msra.mxu0 0.0
    %1405 = vmatprep.subr.mxu0 0.0
    %1406 = vmatpush1.msra.mxu0 0.0
    %1407 = vmatprep.subr.mxu0 0.0
    %1408 = vmatpush1.msra.mxu0 0.0
    %1409 = vmatprep.subr.mxu0 0.0
    %1410 = vmatpush1.msra.mxu0 0.0
    %1411 = vmatprep.subr.mxu0 0.0
    %1412 = vmatpush1.msra.mxu0 0.0
    %1413 = vmatprep.subr.mxu0 0.0
    %1414 = vmatpush1.msra.mxu0 0.0
    %1415 = vmatprep.subr.mxu0 0.0
    %1416 = vmatpush1.msra.mxu0 0.0
    %1417 = vmatprep.subr.mxu0 0.0
    %1418 = vmatpush1.msra.mxu0 0.0
    %1419 = vmatprep.subr.mxu0 0.0
    %1420 = vmatpush1.msra.mxu0 0.0
    %1421 = vmatprep.subr.mxu0 0.0
    %1422 = vmatpush1.msra.mxu0 0.0
    %1423 = vmatprep.subr.mxu0 0.0
    %1424 = vmatpush1.msra.mxu0 0.0
    %1425 = vmatprep.subr.mxu0 0.0
    %1426 = vmatpush1.msra.mxu0 0.0
    %1427 = vmatprep.subr.mxu0 0.0
    %1428 = vmatpush1.msra.mxu0 0.0
    %1429 = vmatprep.subr.mxu0 0.0
    %1430 = vmatpush1.msra.mxu0 0.0
    %1431 = vmatprep.subr.mxu0 0.0
    %1432 = vmatpush1.msra.mxu0 0.0
    %1433 = vmatprep.subr.mxu0 0.0
    %1434 = vmatpush1.msra.mxu0 0.0
    %1435 = vmatprep.subr.mxu0 0.0
    %1436 = vmatpush1.msra.mxu0 0.0
    %1437 = vmatprep.subr.mxu0 0.0
    %1438 = vmatpush1.msra.mxu0 0.0
    %1439 = vmatprep.subr.mxu0 0.0
    %1440 = vmatpush1.msra.mxu0 0.0
    %1441 = vmatprep.subr.mxu0 0.0
    %1442 = vmatpush1.msra.mxu0 0.0
    %1443 = vmatprep.subr.mxu0 0.0
    %1444 = vmatpush1.msra.mxu0 0.0
    %1445 = vmatprep.subr.mxu0 0.0
    %1446 = vmatpush1.msra.mxu0 0.0
    %1447 = vmatprep.subr.mxu0 0.0
    %1448 = vmatpush1.msra.mxu0 0.0
    %1449 = vmatprep.subr.mxu0 0.0
    %1450 = vmatpush1.msra.mxu0 0.0
    %1451 = vmatprep.subr.mxu0 0.0
    %1452 = vmatpush1.msra.mxu0 0.0
    %1453 = vmatprep.subr.mxu0 0.0
    %1454 = vmatpush1.msra.mxu0 0.0
    %1455 = vmatprep.subr.mxu0 0.0
    %1456 = vmatpush1.msra.mxu0 0.0
    %1457 = vmatprep.mubr.f32.mxu0 0.0
    %1458 = vmatmul.mubr.f32.gmra.mrb[0].mxu0 %v1388
    %v1459 = vpop.f32.mrb[0].mxu0
    %v1460 = vadd.f32 0.0, %v1459
    %v1461 = vpop.f32.mrb[0].mxu0
    %1462 = vmatprep.mubr.f32.mxu0 0.0
    %1463 = vmatmul.mubr.f32.gmra.mrb[0].mxu0 %v1391
    %v1464 = vpop.f32.mrb[0].mxu0
    %v1465 = vadd.f32 0.0, %v1464
    %v1466 = vpop.f32.mrb[0].mxu0
    %1467 = vdwg.mxu0
    %1468 = vrot.lane.b32.xlu0 %v1082, 112
    %v1469 = vpop.permute.xlu0 %1468
    %1470 = vrot.lane.b32.xlu0 %v1084, 112
    %v1471 = vpop.permute.xlu0 %1470
    %1472 = vrot.lane.b32.xlu0 %v269, 80
    %v1473 = vpop.permute.xlu0 %1472
    %v1474 = vsel %vm275, %v1469, 0
    %v1476 = vsel %vm275, %v1471, 0
    %v1478 = vsel %vm275, %v1473, 0
    %1480 = vmatprep.subr.mxu0 0.0
    %1481 = vmatpush1.xpose.msra.mxu0 %v1478
    %1482 = vmatprep.subr.mxu0 0.0
    %1483 = vmatpush1.xpose.msra.mxu0 0.0
    %1484 = vmatprep.subr.mxu0 0.0
    %1485 = vmatpush1.xpose.msra.mxu0 0.0
    %1486 = vmatprep.subr.mxu0 0.0
    %1487 = vmatpush1.xpose.msra.mxu0 0.0
    %1488 = vmatprep.subr.mxu0 0.0
    %1489 = vmatpush1.xpose.msra.mxu0 0.0
    %1490 = vmatprep.subr.mxu0 0.0
    %1491 = vmatpush1.xpose.msra.mxu0 0.0
    %1492 = vmatprep.subr.mxu0 0.0
    %1493 = vmatpush1.xpose.msra.mxu0 0.0
    %1494 = vmatprep.subr.mxu0 0.0
    %1495 = vmatpush1.xpose.msra.mxu0 0.0
    %1496 = vmatprep.subr.mxu0 0.0
    %1497 = vmatpush1.xpose.msra.mxu0 0.0
    %1498 = vmatprep.subr.mxu0 0.0
    %1499 = vmatpush1.xpose.msra.mxu0 0.0
    %1500 = vmatprep.subr.mxu0 0.0
    %1501 = vmatpush1.xpose.msra.mxu0 0.0
    %1502 = vmatprep.subr.mxu0 0.0
    %1503 = vmatpush1.xpose.msra.mxu0 0.0
    %1504 = vmatprep.subr.mxu0 0.0
    %1505 = vmatpush1.xpose.msra.mxu0 0.0
    %1506 = vmatprep.subr.mxu0 0.0
    %1507 = vmatpush1.xpose.msra.mxu0 0.0
    %1508 = vmatprep.subr.mxu0 0.0
    %1509 = vmatpush1.xpose.msra.mxu0 0.0
    %1510 = vmatprep.subr.mxu0 0.0
    %1511 = vmatpush1.xpose.msra.mxu0 0.0
    %1512 = vmatprep.subr.mxu0 0.0
    %1513 = vmatpush1.xpose.msra.mxu0 0.0
    %1514 = vmatprep.subr.mxu0 0.0
    %1515 = vmatpush1.xpose.msra.mxu0 0.0
    %1516 = vmatprep.subr.mxu0 0.0
    %1517 = vmatpush1.xpose.msra.mxu0 0.0
    %1518 = vmatprep.subr.mxu0 0.0
    %1519 = vmatpush1.xpose.msra.mxu0 0.0
    %1520 = vmatprep.subr.mxu0 0.0
    %1521 = vmatpush1.xpose.msra.mxu0 0.0
    %1522 = vmatprep.subr.mxu0 0.0
    %1523 = vmatpush1.xpose.msra.mxu0 0.0
    %1524 = vmatprep.subr.mxu0 0.0
    %1525 = vmatpush1.xpose.msra.mxu0 0.0
    %1526 = vmatprep.subr.mxu0 0.0
    %1527 = vmatpush1.xpose.msra.mxu0 0.0
    %1528 = vmatprep.subr.mxu0 0.0
    %1529 = vmatpush1.xpose.msra.mxu0 0.0
    %1530 = vmatprep.subr.mxu0 0.0
    %1531 = vmatpush1.xpose.msra.mxu0 0.0
    %1532 = vmatprep.subr.mxu0 0.0
    %1533 = vmatpush1.xpose.msra.mxu0 0.0
    %1534 = vmatprep.subr.mxu0 0.0
    %1535 = vmatpush1.xpose.msra.mxu0 0.0
    %1536 = vmatprep.subr.mxu0 0.0
    %1537 = vmatpush1.xpose.msra.mxu0 0.0
    %1538 = vmatprep.subr.mxu0 0.0
    %1539 = vmatpush1.xpose.msra.mxu0 0.0
    %1540 = vmatprep.subr.mxu0 0.0
    %1541 = vmatpush1.xpose.msra.mxu0 0.0
    %1542 = vmatprep.subr.mxu0 0.0
    %1543 = vmatpush1.xpose.msra.mxu0 0.0
    %1544 = vmatprep.mubr.f32.mxu0 0.0
    %1545 = vmatmul.mubr.f32.gmra.mrb[0].mxu0 %v1474
    %v1546 = vpop.f32.mrb[0].mxu0
    %v1547 = vadd.f32 0.0, %v1546
    %v1548 = vpop.f32.mrb[0].mxu0
    %1549 = vmatprep.mubr.f32.mxu0 0.0
    %1550 = vmatmul.mubr.f32.gmra.mrb[0].mxu0 %v1476
    %v1551 = vpop.f32.mrb[0].mxu0
    %v1552 = vadd.f32 0.0, %v1551
    %v1553 = vpop.f32.mrb[0].mxu0
    %1554 = vdwg.mxu0
    %v1555 = vsel %vm275, %v1547, -inf
    %1556 = vmax.xlane.f32.xlu0 %v1555
    %v1557 = vpop.xlane.xlu0 %1556
    %v1558 = vsel %vm362, %v1552, -inf
    %1559 = vmax.xlane.f32.xlu0 %v1558
    %v1560 = vpop.xlane.xlu0 %1559
    %v1561 = vsub.f32 %v1547, %v1557
    %v1562 = vsub.f32 %v1552, %v1560
    %v1563 = vmul.f32 %v1561, 1.442695
    %v1564 = vpow.pop %v1563
    %v1565 = vmul.f32 %v1562, 1.442695
    %v1566 = vpow.pop %v1565
    %v1567 = vsel %vm275, %v1564, 0.0
    %1568 = vadd.xlane.f32.xlu0 %v1567
    %v1569 = vpop.xlane.xlu0 %1568
    %v1570 = vsel %vm362, %v1566, 0.0
    %1571 = vadd.xlane.f32.xlu0 %v1570
    %v1572 = vpop.xlane.xlu0 %1571
    %v1573 = vrcp.pop %v1569
    %v1574 = vrcp.pop %v1572
    %v1575 = vmul.f32 %v1564, %v1573
    %v1576 = vmul.f32 %v1566, %v1574
    %1577 = vrot.lane.b32.xlu0 %v269, 48
    %v1578 = vpop.permute.xlu0 %1577
    %v1581 = vsel %vm275, %v1575, 0
    %v1584 = vsel %vm275, %v1576, 0
    %1586 = vmatprep.subr.mxu0 0.0
    %1587 = vmatpush1.msra.mxu0 %v1578
    %1588 = vmatprep.subr.mxu0 0.0
    %1589 = vmatpush1.msra.mxu0 0.0
    %1590 = vmatprep.subr.mxu0 0.0
    %1591 = vmatpush1.msra.mxu0 0.0
    %1592 = vmatprep.subr.mxu0 0.0
    %1593 = vmatpush1.msra.mxu0 0.0
    %1594 = vmatprep.subr.mxu0 0.0
    %1595 = vmatpush1.msra.mxu0 0.0
    %1596 = vmatprep.subr.mxu0 0.0
    %1597 = vmatpush1.msra.mxu0 0.0
    %1598 = vmatprep.subr.mxu0 0.0
    %1599 = vmatpush1.msra.mxu0 0.0
    %1600 = vmatprep.subr.mxu0 0.0
    %1601 = vmatpush1.msra.mxu0 0.0
    %1602 = vmatprep.subr.mxu0 0.0
    %1603 = vmatpush1.msra.mxu0 0.0
    %1604 = vmatprep.subr.mxu0 0.0
    %1605 = vmatpush1.msra.mxu0 0.0
    %1606 = vmatprep.subr.mxu0 0.0
    %1607 = vmatpush1.msra.mxu0 0.0
    %1608 = vmatprep.subr.mxu0 0.0
    %1609 = vmatpush1.msra.mxu0 0.0
    %1610 = vmatprep.subr.mxu0 0.0
    %1611 = vmatpush1.msra.mxu0 0.0
    %1612 = vmatprep.subr.mxu0 0.0
    %1613 = vmatpush1.msra.mxu0 0.0
    %1614 = vmatprep.subr.mxu0 0.0
    %1615 = vmatpush1.msra.mxu0 0.0
    %1616 = vmatprep.subr.mxu0 0.0
    %1617 = vmatpush1.msra.mxu0 0.0
    %1618 = vmatprep.subr.mxu0 0.0
    %1619 = vmatpush1.msra.mxu0 0.0
    %1620 = vmatprep.subr.mxu0 0.0
    %1621 = vmatpush1.msra.mxu0 0.0
    %1622 = vmatprep.subr.mxu0 0.0
    %1623 = vmatpush1.msra.mxu0 0.0
    %1624 = vmatprep.subr.mxu0 0.0
    %1625 = vmatpush1.msra.mxu0 0.0
    %1626 = vmatprep.subr.mxu0 0.0
    %1627 = vmatpush1.msra.mxu0 0.0
    %1628 = vmatprep.subr.mxu0 0.0
    %1629 = vmatpush1.msra.mxu0 0.0
    %1630 = vmatprep.subr.mxu0 0.0
    %1631 = vmatpush1.msra.mxu0 0.0
    %1632 = vmatprep.subr.mxu0 0.0
    %1633 = vmatpush1.msra.mxu0 0.0
    %1634 = vmatprep.subr.mxu0 0.0
    %1635 = vmatpush1.msra.mxu0 0.0
    %1636 = vmatprep.subr.mxu0 0.0
    %1637 = vmatpush1.msra.mxu0 0.0
    %1638 = vmatprep.subr.mxu0 0.0
    %1639 = vmatpush1.msra.mxu0 0.0
    %1640 = vmatprep.subr.mxu0 0.0
    %1641 = vmatpush1.msra.mxu0 0.0
    %1642 = vmatprep.subr.mxu0 0.0
    %1643 = vmatpush1.msra.mxu0 0.0
    %1644 = vmatprep.subr.mxu0 0.0
    %1645 = vmatpush1.msra.mxu0 0.0
    %1646 = vmatprep.subr.mxu0 0.0
    %1647 = vmatpush1.msra.mxu0 0.0
    %1648 = vmatprep.subr.mxu0 0.0
    %1649 = vmatpush1.msra.mxu0 0.0
    %1650 = vmatprep.mubr.f32.mxu0 0.0
    %1651 = vmatmul.mubr.f32.gmra.mrb[0].mxu0 %v1581
    %v1652 = vpop.f32.mrb[0].mxu0
    %v1653 = vadd.f32 0.0, %v1652
    %v1654 = vpop.f32.mrb[0].mxu0
    %1655 = vmatprep.mubr.f32.mxu0 0.0
    %1656 = vmatmul.mubr.f32.gmra.mrb[0].mxu0 %v1584
    %v1657 = vpop.f32.mrb[0].mxu0
    %v1658 = vadd.f32 0.0, %v1657
    %v1659 = vpop.f32.mrb[0].mxu0
    %1660 = vdwg.mxu0
    %1661 = vrot.lane.b32.xlu0 %v1082, 104
    %v1662 = vpop.permute.xlu0 %1661
    %1663 = vrot.lane.b32.xlu0 %v1084, 104
    %v1664 = vpop.permute.xlu0 %1663
    %1665 = vrot.lane.b32.xlu0 %v269, 72
    %v1666 = vpop.permute.xlu0 %1665
    %v1667 = vsel %vm275, %v1662, 0
    %v1669 = vsel %vm275, %v1664, 0
    %v1671 = vsel %vm275, %v1666, 0
    %1673 = vmatprep.subr.mxu0 0.0
    %1674 = vmatpush1.xpose.msra.mxu0 %v1671
    %1675 = vmatprep.subr.mxu0 0.0
    %1676 = vmatpush1.xpose.msra.mxu0 0.0
    %1677 = vmatprep.subr.mxu0 0.0
    %1678 = vmatpush1.xpose.msra.mxu0 0.0
    %1679 = vmatprep.subr.mxu0 0.0
    %1680 = vmatpush1.xpose.msra.mxu0 0.0
    %1681 = vmatprep.subr.mxu0 0.0
    %1682 = vmatpush1.xpose.msra.mxu0 0.0
    %1683 = vmatprep.subr.mxu0 0.0
    %1684 = vmatpush1.xpose.msra.mxu0 0.0
    %1685 = vmatprep.subr.mxu0 0.0
    %1686 = vmatpush1.xpose.msra.mxu0 0.0
    %1687 = vmatprep.subr.mxu0 0.0
    %1688 = vmatpush1.xpose.msra.mxu0 0.0
    %1689 = vmatprep.subr.mxu0 0.0
    %1690 = vmatpush1.xpose.msra.mxu0 0.0
    %1691 = vmatprep.subr.mxu0 0.0
    %1692 = vmatpush1.xpose.msra.mxu0 0.0
    %1693 = vmatprep.subr.mxu0 0.0
    %1694 = vmatpush1.xpose.msra.mxu0 0.0
    %1695 = vmatprep.subr.mxu0 0.0
    %1696 = vmatpush1.xpose.msra.mxu0 0.0
    %1697 = vmatprep.subr.mxu0 0.0
    %1698 = vmatpush1.xpose.msra.mxu0 0.0
    %1699 = vmatprep.subr.mxu0 0.0
    %1700 = vmatpush1.xpose.msra.mxu0 0.0
    %1701 = vmatprep.subr.mxu0 0.0
    %1702 = vmatpush1.xpose.msra.mxu0 0.0
    %1703 = vmatprep.subr.mxu0 0.0
    %1704 = vmatpush1.xpose.msra.mxu0 0.0
    %1705 = vmatprep.subr.mxu0 0.0
    %1706 = vmatpush1.xpose.msra.mxu0 0.0
    %1707 = vmatprep.subr.mxu0 0.0
    %1708 = vmatpush1.xpose.msra.mxu0 0.0
    %1709 = vmatprep.subr.mxu0 0.0
    %1710 = vmatpush1.xpose.msra.mxu0 0.0
    %1711 = vmatprep.subr.mxu0 0.0
    %1712 = vmatpush1.xpose.msra.mxu0 0.0
    %1713 = vmatprep.subr.mxu0 0.0
    %1714 = vmatpush1.xpose.msra.mxu0 0.0
    %1715 = vmatprep.subr.mxu0 0.0
    %1716 = vmatpush1.xpose.msra.mxu0 0.0
    %1717 = vmatprep.subr.mxu0 0.0
    %1718 = vmatpush1.xpose.msra.mxu0 0.0
    %1719 = vmatprep.subr.mxu0 0.0
    %1720 = vmatpush1.xpose.msra.mxu0 0.0
    %1721 = vmatprep.subr.mxu0 0.0
    %1722 = vmatpush1.xpose.msra.mxu0 0.0
    %1723 = vmatprep.subr.mxu0 0.0
    %1724 = vmatpush1.xpose.msra.mxu0 0.0
    %1725 = vmatprep.subr.mxu0 0.0
    %1726 = vmatpush1.xpose.msra.mxu0 0.0
    %1727 = vmatprep.subr.mxu0 0.0
    %1728 = vmatpush1.xpose.msra.mxu0 0.0
    %1729 = vmatprep.subr.mxu0 0.0
    %1730 = vmatpush1.xpose.msra.mxu0 0.0
    %1731 = vmatprep.subr.mxu0 0.0
    %1732 = vmatpush1.xpose.msra.mxu0 0.0
    %1733 = vmatprep.subr.mxu0 0.0
    %1734 = vmatpush1.xpose.msra.mxu0 0.0
    %1735 = vmatprep.subr.mxu0 0.0
    %1736 = vmatpush1.xpose.msra.mxu0 0.0
    %1737 = vmatprep.mubr.f32.mxu0 0.0
    %1738 = vmatmul.mubr.f32.gmra.mrb[0].mxu0 %v1667
    %v1739 = vpop.f32.mrb[0].mxu0
    %v1740 = vadd.f32 0.0, %v1739
    %v1741 = vpop.f32.mrb[0].mxu0
    %1742 = vmatprep.mubr.f32.mxu0 0.0
    %1743 = vmatmul.mubr.f32.gmra.mrb[0].mxu0 %v1669
    %v1744 = vpop.f32.mrb[0].mxu0
    %v1745 = vadd.f32 0.0, %v1744
    %v1746 = vpop.f32.mrb[0].mxu0
    %1747 = vdwg.mxu0
    %v1748 = vsel %vm275, %v1740, -inf
    %1749 = vmax.xlane.f32.xlu0 %v1748
    %v1750 = vpop.xlane.xlu0 %1749
    %v1751 = vsel %vm362, %v1745, -inf
    %1752 = vmax.xlane.f32.xlu0 %v1751
    %v1753 = vpop.xlane.xlu0 %1752
    %v1754 = vsub.f32 %v1740, %v1750
    %v1755 = vsub.f32 %v1745, %v1753
    %v1756 = vmul.f32 %v1754, 1.442695
    %v1757 = vpow.pop %v1756
    %v1758 = vmul.f32 %v1755, 1.442695
    %v1759 = vpow.pop %v1758
    %v1760 = vsel %vm275, %v1757, 0.0
    %1761 = vadd.xlane.f32.xlu0 %v1760
    %v1762 = vpop.xlane.xlu0 %1761
    %v1763 = vsel %vm362, %v1759, 0.0
    %1764 = vadd.xlane.f32.xlu0 %v1763
    %v1765 = vpop.xlane.xlu0 %1764
    %v1766 = vrcp.pop %v1762
    %v1767 = vrcp.pop %v1765
    %v1768 = vmul.f32 %v1757, %v1766
    %v1769 = vmul.f32 %v1759, %v1767
    %1770 = vrot.lane.b32.xlu0 %v269, 40
    %v1771 = vpop.permute.xlu0 %1770
    %v1774 = vsel %vm275, %v1768, 0
    %v1777 = vsel %vm275, %v1769, 0
    %1779 = vmatprep.subr.mxu0 0.0
    %1780 = vmatpush1.msra.mxu0 %v1771
    %1781 = vmatprep.subr.mxu0 0.0
    %1782 = vmatpush1.msra.mxu0 0.0
    %1783 = vmatprep.subr.mxu0 0.0
    %1784 = vmatpush1.msra.mxu0 0.0
    %1785 = vmatprep.subr.mxu0 0.0
    %1786 = vmatpush1.msra.mxu0 0.0
    %1787 = vmatprep.subr.mxu0 0.0
    %1788 = vmatpush1.msra.mxu0 0.0
    %1789 = vmatprep.subr.mxu0 0.0
    %1790 = vmatpush1.msra.mxu0 0.0
    %1791 = vmatprep.subr.mxu0 0.0
    %1792 = vmatpush1.msra.mxu0 0.0
    %1793 = vmatprep.subr.mxu0 0.0
    %1794 = vmatpush1.msra.mxu0 0.0
    %1795 = vmatprep.subr.mxu0 0.0
    %1796 = vmatpush1.msra.mxu0 0.0
    %1797 = vmatprep.subr.mxu0 0.0
    %1798 = vmatpush1.msra.mxu0 0.0
    %1799 = vmatprep.subr.mxu0 0.0
    %1800 = vmatpush1.msra.mxu0 0.0
    %1801 = vmatprep.subr.mxu0 0.0
    %1802 = vmatpush1.msra.mxu0 0.0
    %1803 = vmatprep.subr.mxu0 0.0
    %1804 = vmatpush1.msra.mxu0 0.0
    %1805 = vmatprep.subr.mxu0 0.0
    %1806 = vmatpush1.msra.mxu0 0.0
    %1807 = vmatprep.subr.mxu0 0.0
    %1808 = vmatpush1.msra.mxu0 0.0
    %1809 = vmatprep.subr.mxu0 0.0
    %1810 = vmatpush1.msra.mxu0 0.0
    %1811 = vmatprep.subr.mxu0 0.0
    %1812 = vmatpush1.msra.mxu0 0.0
    %1813 = vmatprep.subr.mxu0 0.0
    %1814 = vmatpush1.msra.mxu0 0.0
    %1815 = vmatprep.subr.mxu0 0.0
    %1816 = vmatpush1.msra.mxu0 0.0
    %1817 = vmatprep.subr.mxu0 0.0
    %1818 = vmatpush1.msra.mxu0 0.0
    %1819 = vmatprep.subr.mxu0 0.0
    %1820 = vmatpush1.msra.mxu0 0.0
    %1821 = vmatprep.subr.mxu0 0.0
    %1822 = vmatpush1.msra.mxu0 0.0
    %1823 = vmatprep.subr.mxu0 0.0
    %1824 = vmatpush1.msra.mxu0 0.0
    %1825 = vmatprep.subr.mxu0 0.0
    %1826 = vmatpush1.msra.mxu0 0.0
    %1827 = vmatprep.subr.mxu0 0.0
    %1828 = vmatpush1.msra.mxu0 0.0
    %1829 = vmatprep.subr.mxu0 0.0
    %1830 = vmatpush1.msra.mxu0 0.0
    %1831 = vmatprep.subr.mxu0 0.0
    %1832 = vmatpush1.msra.mxu0 0.0
    %1833 = vmatprep.subr.mxu0 0.0
    %1834 = vmatpush1.msra.mxu0 0.0
    %1835 = vmatprep.subr.mxu0 0.0
    %1836 = vmatpush1.msra.mxu0 0.0
    %1837 = vmatprep.subr.mxu0 0.0
    %1838 = vmatpush1.msra.mxu0 0.0
    %1839 = vmatprep.subr.mxu0 0.0
    %1840 = vmatpush1.msra.mxu0 0.0
    %1841 = vmatprep.subr.mxu0 0.0
    %1842 = vmatpush1.msra.mxu0 0.0
    %1843 = vmatprep.mubr.f32.mxu0 0.0
    %1844 = vmatmul.mubr.f32.gmra.mrb[0].mxu0 %v1774
    %v1845 = vpop.f32.mrb[0].mxu0
    %v1846 = vadd.f32 0.0, %v1845
    %v1847 = vpop.f32.mrb[0].mxu0
    %1848 = vmatprep.mubr.f32.mxu0 0.0
    %1849 = vmatmul.mubr.f32.gmra.mrb[0].mxu0 %v1777
    %v1850 = vpop.f32.mrb[0].mxu0
    %v1851 = vadd.f32 0.0, %v1850
    %v1852 = vpop.f32.mrb[0].mxu0
    %1853 = vdwg.mxu0
    %1856 = vrot.lane.b32.xlu0 %v1460, 8
    %v1857 = vpop.permute.xlu0 %1856
    %1858 = vrot.lane.b32.xlu0 %v1465, 8
    %v1859 = vpop.permute.xlu0 %1858
    %1864 = vrot.lane.b32.xlu0 %v1653, 16
    %v1865 = vpop.permute.xlu0 %1864
    %1866 = vrot.lane.b32.xlu0 %v1658, 16
    %v1867 = vpop.permute.xlu0 %1866
    %1872 = vrot.lane.b32.xlu0 %v1846, 24
    %v1873 = vpop.permute.xlu0 %1872
    %1874 = vrot.lane.b32.xlu0 %v1851, 24
    %v1875 = vpop.permute.xlu0 %1874
    %v1878 = vsel %vm275, %v1267, %v1857
    %v1879 = vsel %vm275, %v1272, %v1859
    %v1880 = vsel %vm1071, %v1878, %v1865
    %v1881 = vsel %vm1071, %v1879, %v1867
    %v1882 = vsel %vm1074, %v1880, %v1873
    %v1883 = vsel %vm1074, %v1881, %v1875
    %vm1886 = vcmask 1045504
    %v1887 = vrot.slane %v1882, 2
    %v1888 = vrot.slane %v1883, 2
    %v1889 = vsel %vm1886, %v1887, %v1888
    %v1891 = vsel %vm1886, %v1076, %v1887
    %v1893 = vsel %vm93, %v1075, 0
    %v1896 = vsel %vm93, %v1891, 0
    %v1898 = vsel %vm93, %v1889, 0
    %v1900 = vsel %vm93, %v1888, 0
    %1902 = vmatprep.subr.mxu0 0.0
    %1903 = vmatpush1.msra.mxu0 %v83
    %1904 = vmatprep.subr.mxu0 0.0
    %1905 = vmatpush1.msra.mxu0 %v84
    %1906 = vmatprep.subr.mxu0 0.0
    %1907 = vmatpush1.msra.mxu0 %v85
    %1908 = vmatprep.subr.mxu0 0.0
    %1909 = vmatpush1.msra.mxu0 %v86
    %1910 = vmatprep.subr.mxu0 0.0
    %1911 = vmatpush1.msra.mxu0 0.0
    %1912 = vmatprep.subr.mxu0 0.0
    %1913 = vmatpush1.msra.mxu0 0.0
    %1914 = vmatprep.subr.mxu0 0.0
    %1915 = vmatpush1.msra.mxu0 0.0
    %1916 = vmatprep.subr.mxu0 0.0
    %1917 = vmatpush1.msra.mxu0 0.0
    %1918 = vmatprep.subr.mxu0 0.0
    %1919 = vmatpush1.msra.mxu0 0.0
    %1920 = vmatprep.subr.mxu0 0.0
    %1921 = vmatpush1.msra.mxu0 0.0
    %1922 = vmatprep.subr.mxu0 0.0
    %1923 = vmatpush1.msra.mxu0 0.0
    %1924 = vmatprep.subr.mxu0 0.0
    %1925 = vmatpush1.msra.mxu0 0.0
    %1926 = vmatprep.subr.mxu0 0.0
    %1927 = vmatpush1.msra.mxu0 0.0
    %1928 = vmatprep.subr.mxu0 0.0
    %1929 = vmatpush1.msra.mxu0 0.0
    %1930 = vmatprep.subr.mxu0 0.0
    %1931 = vmatpush1.msra.mxu0 0.0
    %1932 = vmatprep.subr.mxu0 0.0
    %1933 = vmatpush1.msra.mxu0 0.0
    %1934 = vmatprep.subr.mxu0 0.0
    %1935 = vmatpush1.msra.mxu0 0.0
    %1936 = vmatprep.subr.mxu0 0.0
    %1937 = vmatpush1.msra.mxu0 0.0
    %1938 = vmatprep.subr.mxu0 0.0
    %1939 = vmatpush1.msra.mxu0 0.0
    %1940 = vmatprep.subr.mxu0 0.0
    %1941 = vmatpush1.msra.mxu0 0.0
    %1942 = vmatprep.subr.mxu0 0.0
    %1943 = vmatpush1.msra.mxu0 0.0
    %1944 = vmatprep.subr.mxu0 0.0
    %1945 = vmatpush1.msra.mxu0 0.0
    %1946 = vmatprep.subr.mxu0 0.0
    %1947 = vmatpush1.msra.mxu0 0.0
    %1948 = vmatprep.subr.mxu0 0.0
    %1949 = vmatpush1.msra.mxu0 0.0
    %1950 = vmatprep.subr.mxu0 0.0
    %1951 = vmatpush1.msra.mxu0 0.0
    %1952 = vmatprep.subr.mxu0 0.0
    %1953 = vmatpush1.msra.mxu0 0.0
    %1954 = vmatprep.subr.mxu0 0.0
    %1955 = vmatpush1.msra.mxu0 0.0
    %1956 = vmatprep.subr.mxu0 0.0
    %1957 = vmatpush1.msra.mxu0 0.0
    %1958 = vmatprep.subr.mxu0 0.0
    %1959 = vmatpush1.msra.mxu0 0.0
    %1960 = vmatprep.subr.mxu0 0.0
    %1961 = vmatpush1.msra.mxu0 0.0
    %1962 = vmatprep.subr.mxu0 0.0
    %1963 = vmatpush1.msra.mxu0 0.0
    %1964 = vmatprep.subr.mxu0 0.0
    %1965 = vmatpush1.msra.mxu0 0.0
    %1966 = vmatprep.mubr.f32.mxu0 0.0
    %1967 = vmatmul.mubr.f32.gmra.mrb[0].mxu0 %v1893
    %v1968 = vpop.f32.mrb[0].mxu0
    %v1969 = vadd.f32 0.0, %v1968
    %v1970 = vpop.f32.mrb[0].mxu0
    %1971 = vmatprep.mubr.f32.mxu0 0.0
    %1972 = vmatmul.mubr.f32.gmra.mrb[0].mxu0 %v1896
    %v1973 = vpop.f32.mrb[0].mxu0
    %v1974 = vadd.f32 0.0, %v1973
    %v1975 = vpop.f32.mrb[0].mxu0
    %1976 = vmatprep.mubr.f32.mxu0 0.0
    %1977 = vmatmul.mubr.f32.gmra.mrb[0].mxu0 %v1898
    %v1978 = vpop.f32.mrb[0].mxu0
    %v1979 = vadd.f32 0.0, %v1978
    %v1980 = vpop.f32.mrb[0].mxu0
    %1981 = vmatprep.mubr.f32.mxu0 0.0
    %1982 = vmatmul.mubr.f32.gmra.mrb[0].mxu0 %v1900
    %v1983 = vpop.f32.mrb[0].mxu0
    %v1984 = vadd.f32 0.0, %v1983
    %v1985 = vpop.f32.mrb[0].mxu0
    %1986 = vdwg.mxu0
    %v1987 = vlaneseq
    %v1988 = vshrl.u32 %v1987, 7
    %v1989 = vsub.s32 0, %v1988
    %v1990 = vrot.slane %v88, %v1989
    %1992 = vrot.lane.b32.xlu0 %v1990, 96
    %v1993 = vpop.permute.xlu0 %1992
    %v1995 = vadd.f32 %v1969, %v1993
    %v1996 = vadd.f32 %v1974, %v1993
    %v1997 = vadd.f32 %v1979, %v1993
    %v1998 = vadd.f32 %v1984, %v1993
    %1999 = vrot.lane.b32.xlu0 %v73, 96
    %v2000 = vpop.permute.xlu0 %1999
    %2001 = vrot.lane.b32.xlu0 %v74, 96
    %v2002 = vpop.permute.xlu0 %2001
    %2003 = vrot.lane.b32.xlu0 %v75, 96
    %v2004 = vpop.permute.xlu0 %2003
    %2005 = vrot.lane.b32.xlu0 %v76, 96
    %v2006 = vpop.permute.xlu0 %2005
    %v2011 = vadd.f32 %v1995, %v2000
    %v2012 = vadd.f32 %v1996, %v2002
    %v2013 = vadd.f32 %v1997, %v2004
    %v2014 = vadd.f32 %v1998, %v2006
    %2019 = vrot.lane.b32.xlu0 %v2011, 32
    %v2020 = vpop.permute.xlu0 %2019
    %2021 = vrot.lane.b32.xlu0 %v2012, 32
    %v2022 = vpop.permute.xlu0 %2021
    %2023 = vrot.lane.b32.xlu0 %v2013, 32
    %v2024 = vpop.permute.xlu0 %2023
    %2025 = vrot.lane.b32.xlu0 %v2014, 32
    %v2026 = vpop.permute.xlu0 %2025
    %v2031 = vsel %vm93, %v2020, 0.0
    %2032 = vadd.xlane.f32.xlu0 %v2031
    %v2033 = vpop.xlane.xlu0 %2032
    %v2034 = vsel %vm93, %v2022, 0.0
    %2035 = vadd.xlane.f32.xlu0 %v2034
    %v2036 = vpop.xlane.xlu0 %2035
    %v2037 = vsel %vm93, %v2024, 0.0
    %2038 = vadd.xlane.f32.xlu0 %v2037
    %v2039 = vpop.xlane.xlu0 %2038
    %vm2040 = vcmask 257024
    %v2041 = vsel %vm2040, %v2026, 0.0
    %2042 = vadd.xlane.f32.xlu0 %v2041
    %v2043 = vpop.xlane.xlu0 %2042
    %v2044 = vrcp.pop 32.0
    %v2045 = vmul.f32 %v2033, %v2044
    %v2046 = vmul.f32 %v2036, %v2044
    %v2047 = vmul.f32 %v2039, %v2044
    %v2048 = vmul.f32 %v2043, %v2044
    %v2049 = vsub.f32 %v2011, %v2045
    %v2050 = vsub.f32 %v2012, %v2046
    %v2051 = vsub.f32 %v2013, %v2047
    %v2052 = vsub.f32 %v2014, %v2048
    %v2053 = vmul.f32 %v2049, %v2049
    %v2054 = vmul.f32 %v2050, %v2050
    %v2055 = vmul.f32 %v2051, %v2051
    %v2056 = vmul.f32 %v2052, %v2052
    %2061 = vrot.lane.b32.xlu0 %v2053, 32
    %v2062 = vpop.permute.xlu0 %2061
    %2063 = vrot.lane.b32.xlu0 %v2054, 32
    %v2064 = vpop.permute.xlu0 %2063
    %2065 = vrot.lane.b32.xlu0 %v2055, 32
    %v2066 = vpop.permute.xlu0 %2065
    %2067 = vrot.lane.b32.xlu0 %v2056, 32
    %v2068 = vpop.permute.xlu0 %2067
    %v2073 = vsel %vm93, %v2062, 0.0
    %2074 = vadd.xlane.f32.xlu0 %v2073
    %v2075 = vpop.xlane.xlu0 %2074
    %v2076 = vsel %vm93, %v2064, 0.0
    %2077 = vadd.xlane.f32.xlu0 %v2076
    %v2078 = vpop.xlane.xlu0 %2077
    %v2079 = vsel %vm93, %v2066, 0.0
    %2080 = vadd.xlane.f32.xlu0 %v2079
    %v2081 = vpop.xlane.xlu0 %2080
    %v2082 = vsel %vm2040, %v2068, 0.0
    %2083 = vadd.xlane.f32.xlu0 %v2082
    %v2084 = vpop.xlane.xlu0 %2083
    %v2085 = vmul.f32 %v2075, %v2044
    %v2086 = vmul.f32 %v2078, %v2044
    %v2087 = vmul.f32 %v2081, %v2044
    %v2088 = vmul.f32 %v2084, %v2044
    %v2089 = vadd.f32 %v2085, 1e-05
    %v2090 = vadd.f32 %v2086, 1e-05
    %v2091 = vadd.f32 %v2087, 1e-05
    %v2092 = vadd.f32 %v2088, 1e-05
    %v2093 = vrsqrt.pop %v2089
    %v2094 = vrsqrt.pop %v2090
    %v2095 = vrsqrt.pop %v2091
    %v2096 = vrsqrt.pop %v2092
    %v2097 = vmul.f32 %v2049, %v2093
    %v2098 = vmul.f32 %v2050, %v2094
    %v2099 = vmul.f32 %v2051, %v2095
    %v2100 = vmul.f32 %v2052, %v2096
    %2101 = vrot.lane.b32.xlu0 %v1990, 64
    %v2102 = vpop.permute.xlu0 %2101
    %v2104 = vmul.f32 %v2097, %v2102
    %v2105 = vmul.f32 %v2098, %v2102
    %v2106 = vmul.f32 %v2099, %v2102
    %v2107 = vmul.f32 %v2100, %v2102
    %2108 = vrot.lane.b32.xlu0 %v1990, 32
    %v2109 = vpop.permute.xlu0 %2108
    %v2111 = vadd.f32 %v2104, %v2109
    %v2112 = vadd.f32 %v2105, %v2109
    %v2113 = vadd.f32 %v2106, %v2109
    %v2114 = vadd.f32 %v2107, %v2109
    %v2115 = vld [vmem:[#allocation8 + $0x30] sm:$0xff]
    %v2116 = vld [vmem:[#allocation8 + $0x38] sm:$0xff]
    %v2117 = vld [vmem:[#allocation8 + $0x40] sm:$0xff]
    %v2118 = vld [vmem:[#allocation8 + $0x48] sm:$0xff]
    %v2119 = vld [vmem:[#allocation8 + $0x50] sm:$0x1]
    %v2120 = vld [vmem:[#allocation8 + $0x58] sm:$0x1]
    %v2121 = vlaneseq
    %v2122 = vshrl.u32 %v2121, 7
    %v2123 = vsub.s32 0, %v2122
    %v2124 = vrot.slane %v2119, %v2123
    %2129 = vrot.lane.b32.xlu0 %v2111, 32
    %v2130 = vpop.permute.xlu0 %2129
    %2131 = vrot.lane.b32.xlu0 %v2112, 32
    %v2132 = vpop.permute.xlu0 %2131
    %2133 = vrot.lane.b32.xlu0 %v2113, 32
    %v2134 = vpop.permute.xlu0 %2133
    %2135 = vrot.lane.b32.xlu0 %v2114, 32
    %v2136 = vpop.permute.xlu0 %2135
    %v2137 = vsel %vm93, %v2130, 0
    %v2139 = vsel %vm93, %v2132, 0
    %v2141 = vsel %vm93, %v2134, 0
    %v2143 = vsel %vm93, %v2136, 0
    %2145 = vmatprep.subr.mxu0 0.0
    %2146 = vmatpush1.msra.mxu0 %v2115
    %2147 = vmatprep.subr.mxu0 0.0
    %2148 = vmatpush1.msra.mxu0 %v2116
    %2149 = vmatprep.subr.mxu0 0.0
    %2150 = vmatpush1.msra.mxu0 %v2117
    %2151 = vmatprep.subr.mxu0 0.0
    %2152 = vmatpush1.msra.mxu0 %v2118
    %2153 = vmatprep.subr.mxu0 0.0
    %2154 = vmatpush1.msra.mxu0 0.0
    %2155 = vmatprep.subr.mxu0 0.0
    %2156 = vmatpush1.msra.mxu0 0.0
    %2157 = vmatprep.subr.mxu0 0.0
    %2158 = vmatpush1.msra.mxu0 0.0
    %2159 = vmatprep.subr.mxu0 0.0
    %2160 = vmatpush1.msra.mxu0 0.0
    %2161 = vmatprep.subr.mxu0 0.0
    %2162 = vmatpush1.msra.mxu0 0.0
    %2163 = vmatprep.subr.mxu0 0.0
    %2164 = vmatpush1.msra.mxu0 0.0
    %2165 = vmatprep.subr.mxu0 0.0
    %2166 = vmatpush1.msra.mxu0 0.0
    %2167 = vmatprep.subr.mxu0 0.0
    %2168 = vmatpush1.msra.mxu0 0.0
    %2169 = vmatprep.subr.mxu0 0.0
    %2170 = vmatpush1.msra.mxu0 0.0
    %2171 = vmatprep.subr.mxu0 0.0
    %2172 = vmatpush1.msra.mxu0 0.0
    %2173 = vmatprep.subr.mxu0 0.0
    %2174 = vmatpush1.msra.mxu0 0.0
    %2175 = vmatprep.subr.mxu0 0.0
    %2176 = vmatpush1.msra.mxu0 0.0
    %2177 = vmatprep.subr.mxu0 0.0
    %2178 = vmatpush1.msra.mxu0 0.0
    %2179 = vmatprep.subr.mxu0 0.0
    %2180 = vmatpush1.msra.mxu0 0.0
    %2181 = vmatprep.subr.mxu0 0.0
    %2182 = vmatpush1.msra.mxu0 0.0
    %2183 = vmatprep.subr.mxu0 0.0
    %2184 = vmatpush1.msra.mxu0 0.0
    %2185 = vmatprep.subr.mxu0 0.0
    %2186 = vmatpush1.msra.mxu0 0.0
    %2187 = vmatprep.subr.mxu0 0.0
    %2188 = vmatpush1.msra.mxu0 0.0
    %2189 = vmatprep.subr.mxu0 0.0
    %2190 = vmatpush1.msra.mxu0 0.0
    %2191 = vmatprep.subr.mxu0 0.0
    %2192 = vmatpush1.msra.mxu0 0.0
    %2193 = vmatprep.subr.mxu0 0.0
    %2194 = vmatpush1.msra.mxu0 0.0
    %2195 = vmatprep.subr.mxu0 0.0
    %2196 = vmatpush1.msra.mxu0 0.0
    %2197 = vmatprep.subr.mxu0 0.0
    %2198 = vmatpush1.msra.mxu0 0.0
    %2199 = vmatprep.subr.mxu0 0.0
    %2200 = vmatpush1.msra.mxu0 0.0
    %2201 = vmatprep.subr.mxu0 0.0
    %2202 = vmatpush1.msra.mxu0 0.0
    %2203 = vmatprep.subr.mxu0 0.0
    %2204 = vmatpush1.msra.mxu0 0.0
    %2205 = vmatprep.subr.mxu0 0.0
    %2206 = vmatpush1.msra.mxu0 0.0
    %2207 = vmatprep.subr.mxu0 0.0
    %2208 = vmatpush1.msra.mxu0 0.0
    %2209 = vmatprep.mubr.f32.mxu0 0.0
    %2210 = vmatmul.mubr.f32.gmra.mrb[0].mxu0 %v2137
    %v2211 = vpop.f32.mrb[0].mxu0
    %v2212 = vadd.f32 %v2124, %v2211
    %v2213 = vpop.f32.mrb[0].mxu0
    %2214 = vmatprep.mubr.f32.mxu0 0.0
    %2215 = vmatmul.mubr.f32.gmra.mrb[0].mxu0 %v2139
    %v2216 = vpop.f32.mrb[0].mxu0
    %v2217 = vadd.f32 %v2124, %v2216
    %v2218 = vpop.f32.mrb[0].mxu0
    %2219 = vmatprep.mubr.f32.mxu0 0.0
    %2220 = vmatmul.mubr.f32.gmra.mrb[0].mxu0 %v2141
    %v2221 = vpop.f32.mrb[0].mxu0
    %v2222 = vadd.f32 %v2124, %v2221
    %v2223 = vpop.f32.mrb[0].mxu0
    %2224 = vmatprep.mubr.f32.mxu0 0.0
    %2225 = vmatmul.mubr.f32.gmra.mrb[0].mxu0 %v2143
    %v2226 = vpop.f32.mrb[0].mxu0
    %v2227 = vadd.f32 %v2124, %v2226
    %v2228 = vpop.f32.mrb[0].mxu0
    %2229 = vdwg.mxu0
    %2232 = vrot.lane.b32.xlu0 %v2212, 96
    %v2233 = vpop.permute.xlu0 %2232
    %2234 = vrot.lane.b32.xlu0 %v2217, 96
    %v2235 = vpop.permute.xlu0 %2234
    %v2236 = vsel %vm275, %v2212, 0
    %v2238 = vsel %vm275, %v2217, 0
    %v2240 = vsel %vm275, %v2233, 0
    %v2242 = vsel %vm275, %v2235, 0
    %2244 = vmatprep.subr.mxu0 0.0
    %2245 = vmatpush1.xpose.msra.mxu0 %v2240
    %2246 = vmatprep.subr.mxu0 0.0
    %2247 = vmatpush1.xpose.msra.mxu0 %v2242
    %2248 = vmatprep.subr.mxu0 0.0
    %2249 = vmatpush1.xpose.msra.mxu0 0.0
    %2250 = vmatprep.subr.mxu0 0.0
    %2251 = vmatpush1.xpose.msra.mxu0 0.0
    %2252 = vmatprep.subr.mxu0 0.0
    %2253 = vmatpush1.xpose.msra.mxu0 0.0
    %2254 = vmatprep.subr.mxu0 0.0
    %2255 = vmatpush1.xpose.msra.mxu0 0.0
    %2256 = vmatprep.subr.mxu0 0.0
    %2257 = vmatpush1.xpose.msra.mxu0 0.0
    %2258 = vmatprep.subr.mxu0 0.0
    %2259 = vmatpush1.xpose.msra.mxu0 0.0
    %2260 = vmatprep.subr.mxu0 0.0
    %2261 = vmatpush1.xpose.msra.mxu0 0.0
    %2262 = vmatprep.subr.mxu0 0.0
    %2263 = vmatpush1.xpose.msra.mxu0 0.0
    %2264 = vmatprep.subr.mxu0 0.0
    %2265 = vmatpush1.xpose.msra.mxu0 0.0
    %2266 = vmatprep.subr.mxu0 0.0
    %2267 = vmatpush1.xpose.msra.mxu0 0.0
    %2268 = vmatprep.subr.mxu0 0.0
    %2269 = vmatpush1.xpose.msra.mxu0 0.0
    %2270 = vmatprep.subr.mxu0 0.0
    %2271 = vmatpush1.xpose.msra.mxu0 0.0
    %2272 = vmatprep.subr.mxu0 0.0
    %2273 = vmatpush1.xpose.msra.mxu0 0.0
    %2274 = vmatprep.subr.mxu0 0.0
    %2275 = vmatpush1.xpose.msra.mxu0 0.0
    %2276 = vmatprep.subr.mxu0 0.0
    %2277 = vmatpush1.xpose.msra.mxu0 0.0
    %2278 = vmatprep.subr.mxu0 0.0
    %2279 = vmatpush1.xpose.msra.mxu0 0.0
    %2280 = vmatprep.subr.mxu0 0.0
    %2281 = vmatpush1.xpose.msra.mxu0 0.0
    %2282 = vmatprep.subr.mxu0 0.0
    %2283 = vmatpush1.xpose.msra.mxu0 0.0
    %2284 = vmatprep.subr.mxu0 0.0
    %2285 = vmatpush1.xpose.msra.mxu0 0.0
    %2286 = vmatprep.subr.mxu0 0.0
    %2287 = vmatpush1.xpose.msra.mxu0 0.0
    %2288 = vmatprep.subr.mxu0 0.0
    %2289 = vmatpush1.xpose.msra.mxu0 0.0
    %2290 = vmatprep.subr.mxu0 0.0
    %2291 = vmatpush1.xpose.msra.mxu0 0.0
    %2292 = vmatprep.subr.mxu0 0.0
    %2293 = vmatpush1.xpose.msra.mxu0 0.0
    %2294 = vmatprep.subr.mxu0 0.0
    %2295 = vmatpush1.xpose.msra.mxu0 0.0
    %2296 = vmatprep.subr.mxu0 0.0
    %2297 = vmatpush1.xpose.msra.mxu0 0.0
    %2298 = vmatprep.subr.mxu0 0.0
    %2299 = vmatpush1.xpose.msra.mxu0 0.0
    %2300 = vmatprep.subr.mxu0 0.0
    %2301 = vmatpush1.xpose.msra.mxu0 0.0
    %2302 = vmatprep.subr.mxu0 0.0
    %2303 = vmatpush1.xpose.msra.mxu0 0.0
    %2304 = vmatprep.subr.mxu0 0.0
    %2305 = vmatpush1.xpose.msra.mxu0 0.0
    %2306 = vmatprep.subr.mxu0 0.0
    %2307 = vmatpush1.xpose.msra.mxu0 0.0
    %2308 = vmatprep.mubr.f32.mxu0 0.0
    %2309 = vmatmul.mubr.f32.gmra.mrb[0].mxu0 %v2236
    %v2310 = vpop.f32.mrb[0].mxu0
    %v2311 = vadd.f32 0.0, %v2310
    %v2312 = vpop.f32.mrb[0].mxu0
    %2313 = vmatprep.mubr.f32.mxu0 0.0
    %2314 = vmatmul.mubr.f32.gmra.mrb[0].mxu0 %v2238
    %v2315 = vpop.f32.mrb[0].mxu0
    %v2316 = vadd.f32 0.0, %v2315
    %v2317 = vpop.f32.mrb[0].mxu0
    %2318 = vdwg.mxu0
    %vm2319 = vcmask 113664
    %v2320 = vsel %vm2319, %v2311, -inf
    %2321 = vmax.xlane.f32.xlu0 %v2320
    %v2322 = vpop.xlane.xlu0 %2321
    %vm2323 = vcmask 111616
    %v2324 = vsel %vm2323, %v2316, -inf
    %2325 = vmax.xlane.f32.xlu0 %v2324
    %v2326 = vpop.xlane.xlu0 %2325
    %v2327 = vsub.f32 %v2311, %v2322
    %v2328 = vsub.f32 %v2316, %v2326
    %v2329 = vmul.f32 %v2327, 1.442695
    %v2330 = vpow.pop %v2329
    %v2331 = vmul.f32 %v2328, 1.442695
    %v2332 = vpow.pop %v2331
    %v2333 = vsel %vm2319, %v2330, 0.0
    %2334 = vadd.xlane.f32.xlu0 %v2333
    %v2335 = vpop.xlane.xlu0 %2334
    %v2336 = vsel %vm2323, %v2332, 0.0
    %2337 = vadd.xlane.f32.xlu0 %v2336
    %v2338 = vpop.xlane.xlu0 %2337
    %v2339 = vrcp.pop %v2335
    %v2340 = vrcp.pop %v2338
    %v2341 = vmul.f32 %v2330, %v2339
    %v2342 = vmul.f32 %v2332, %v2340
    %2343 = vrot.lane.b32.xlu0 %v2212, 64
    %v2344 = vpop.permute.xlu0 %2343
    %2345 = vrot.lane.b32.xlu0 %v2217, 64
    %v2346 = vpop.permute.xlu0 %2345
    %v2349 = vsel %vm2319, %v2341, 0
    %v2352 = vsel %vm2319, %v2342, 0
    %v2354 = vsel %vm1886, %v2346, 0
    %2356 = vmatprep.subr.mxu0 0.0
    %2357 = vmatpush1.msra.mxu0 %v2344
    %2358 = vmatprep.subr.mxu0 0.0
    %2359 = vmatpush1.msra.mxu0 %v2354
    %2360 = vmatprep.subr.mxu0 0.0
    %2361 = vmatpush1.msra.mxu0 0.0
    %2362 = vmatprep.subr.mxu0 0.0
    %2363 = vmatpush1.msra.mxu0 0.0
    %2364 = vmatprep.subr.mxu0 0.0
    %2365 = vmatpush1.msra.mxu0 0.0
    %2366 = vmatprep.subr.mxu0 0.0
    %2367 = vmatpush1.msra.mxu0 0.0
    %2368 = vmatprep.subr.mxu0 0.0
    %2369 = vmatpush1.msra.mxu0 0.0
    %2370 = vmatprep.subr.mxu0 0.0
    %2371 = vmatpush1.msra.mxu0 0.0
    %2372 = vmatprep.subr.mxu0 0.0
    %2373 = vmatpush1.msra.mxu0 0.0
    %2374 = vmatprep.subr.mxu0 0.0
    %2375 = vmatpush1.msra.mxu0 0.0
    %2376 = vmatprep.subr.mxu0 0.0
    %2377 = vmatpush1.msra.mxu0 0.0
    %2378 = vmatprep.subr.mxu0 0.0
    %2379 = vmatpush1.msra.mxu0 0.0
    %2380 = vmatprep.subr.mxu0 0.0
    %2381 = vmatpush1.msra.mxu0 0.0
    %2382 = vmatprep.subr.mxu0 0.0
    %2383 = vmatpush1.msra.mxu0 0.0
    %2384 = vmatprep.subr.mxu0 0.0
    %2385 = vmatpush1.msra.mxu0 0.0
    %2386 = vmatprep.subr.mxu0 0.0
    %2387 = vmatpush1.msra.mxu0 0.0
    %2388 = vmatprep.subr.mxu0 0.0
    %2389 = vmatpush1.msra.mxu0 0.0
    %2390 = vmatprep.subr.mxu0 0.0
    %2391 = vmatpush1.msra.mxu0 0.0
    %2392 = vmatprep.subr.mxu0 0.0
    %2393 = vmatpush1.msra.mxu0 0.0
    %2394 = vmatprep.subr.mxu0 0.0
    %2395 = vmatpush1.msra.mxu0 0.0
    %2396 = vmatprep.subr.mxu0 0.0
    %2397 = vmatpush1.msra.mxu0 0.0
    %2398 = vmatprep.subr.mxu0 0.0
    %2399 = vmatpush1.msra.mxu0 0.0
    %2400 = vmatprep.subr.mxu0 0.0
    %2401 = vmatpush1.msra.mxu0 0.0
    %2402 = vmatprep.subr.mxu0 0.0
    %2403 = vmatpush1.msra.mxu0 0.0
    %2404 = vmatprep.subr.mxu0 0.0
    %2405 = vmatpush1.msra.mxu0 0.0
    %2406 = vmatprep.subr.mxu0 0.0
    %2407 = vmatpush1.msra.mxu0 0.0
    %2408 = vmatprep.subr.mxu0 0.0
    %2409 = vmatpush1.msra.mxu0 0.0
    %2410 = vmatprep.subr.mxu0 0.0
    %2411 = vmatpush1.msra.mxu0 0.0
    %2412 = vmatprep.subr.mxu0 0.0
    %2413 = vmatpush1.msra.mxu0 0.0
    %2414 = vmatprep.subr.mxu0 0.0
    %2415 = vmatpush1.msra.mxu0 0.0
    %2416 = vmatprep.subr.mxu0 0.0
    %2417 = vmatpush1.msra.mxu0 0.0
    %2418 = vmatprep.subr.mxu0 0.0
    %2419 = vmatpush1.msra.mxu0 0.0
    %2420 = vmatprep.mubr.f32.mxu0 0.0
    %2421 = vmatmul.mubr.f32.gmra.mrb[0].mxu0 %v2349
    %v2422 = vpop.f32.mrb[0].mxu0
    %v2423 = vadd.f32 0.0, %v2422
    %v2424 = vpop.f32.mrb[0].mxu0
    %2425 = vmatprep.mubr.f32.mxu0 0.0
    %2426 = vmatmul.mubr.f32.gmra.mrb[0].mxu0 %v2352
    %v2427 = vpop.f32.mrb[0].mxu0
    %v2428 = vadd.f32 0.0, %v2427
    %v2429 = vpop.f32.mrb[0].mxu0
    %2430 = vdwg.mxu0
    %2431 = vrot.lane.b32.xlu0 %v2212, 120
    %v2432 = vpop.permute.xlu0 %2431
    %2433 = vrot.lane.b32.xlu0 %v2217, 120
    %v2434 = vpop.permute.xlu0 %2433
    %2435 = vrot.lane.b32.xlu0 %v2212, 88
    %v2436 = vpop.permute.xlu0 %2435
    %2437 = vrot.lane.b32.xlu0 %v2217, 88
    %v2438 = vpop.permute.xlu0 %2437
    %v2439 = vsel %vm275, %v2432, 0
    %v2441 = vsel %vm275, %v2434, 0
    %v2443 = vsel %vm275, %v2436, 0
    %v2445 = vsel %vm275, %v2438, 0
    %2447 = vmatprep.subr.mxu0 0.0
    %2448 = vmatpush1.xpose.msra.mxu0 %v2443
    %2449 = vmatprep.subr.mxu0 0.0
    %2450 = vmatpush1.xpose.msra.mxu0 %v2445
    %2451 = vmatprep.subr.mxu0 0.0
    %2452 = vmatpush1.xpose.msra.mxu0 0.0
    %2453 = vmatprep.subr.mxu0 0.0
    %2454 = vmatpush1.xpose.msra.mxu0 0.0
    %2455 = vmatprep.subr.mxu0 0.0
    %2456 = vmatpush1.xpose.msra.mxu0 0.0
    %2457 = vmatprep.subr.mxu0 0.0
    %2458 = vmatpush1.xpose.msra.mxu0 0.0
    %2459 = vmatprep.subr.mxu0 0.0
    %2460 = vmatpush1.xpose.msra.mxu0 0.0
    %2461 = vmatprep.subr.mxu0 0.0
    %2462 = vmatpush1.xpose.msra.mxu0 0.0
    %2463 = vmatprep.subr.mxu0 0.0
    %2464 = vmatpush1.xpose.msra.mxu0 0.0
    %2465 = vmatprep.subr.mxu0 0.0
    %2466 = vmatpush1.xpose.msra.mxu0 0.0
    %2467 = vmatprep.subr.mxu0 0.0
    %2468 = vmatpush1.xpose.msra.mxu0 0.0
    %2469 = vmatprep.subr.mxu0 0.0
    %2470 = vmatpush1.xpose.msra.mxu0 0.0
    %2471 = vmatprep.subr.mxu0 0.0
    %2472 = vmatpush1.xpose.msra.mxu0 0.0
    %2473 = vmatprep.subr.mxu0 0.0
    %2474 = vmatpush1.xpose.msra.mxu0 0.0
    %2475 = vmatprep.subr.mxu0 0.0
    %2476 = vmatpush1.xpose.msra.mxu0 0.0
    %2477 = vmatprep.subr.mxu0 0.0
    %2478 = vmatpush1.xpose.msra.mxu0 0.0
    %2479 = vmatprep.subr.mxu0 0.0
    %2480 = vmatpush1.xpose.msra.mxu0 0.0
    %2481 = vmatprep.subr.mxu0 0.0
    %2482 = vmatpush1.xpose.msra.mxu0 0.0
    %2483 = vmatprep.subr.mxu0 0.0
    %2484 = vmatpush1.xpose.msra.mxu0 0.0
    %2485 = vmatprep.subr.mxu0 0.0
    %2486 = vmatpush1.xpose.msra.mxu0 0.0
    %2487 = vmatprep.subr.mxu0 0.0
    %2488 = vmatpush1.xpose.msra.mxu0 0.0
    %2489 = vmatprep.subr.mxu0 0.0
    %2490 = vmatpush1.xpose.msra.mxu0 0.0
    %2491 = vmatprep.subr.mxu0 0.0
    %2492 = vmatpush1.xpose.msra.mxu0 0.0
    %2493 = vmatprep.subr.mxu0 0.0
    %2494 = vmatpush1.xpose.msra.mxu0 0.0
    %2495 = vmatprep.subr.mxu0 0.0
    %2496 = vmatpush1.xpose.msra.mxu0 0.0
    %2497 = vmatprep.subr.mxu0 0.0
    %2498 = vmatpush1.xpose.msra.mxu0 0.0
    %2499 = vmatprep.subr.mxu0 0.0
    %2500 = vmatpush1.xpose.msra.mxu0 0.0
    %2501 = vmatprep.subr.mxu0 0.0
    %2502 = vmatpush1.xpose.msra.mxu0 0.0
    %2503 = vmatprep.subr.mxu0 0.0
    %2504 = vmatpush1.xpose.msra.mxu0 0.0
    %2505 = vmatprep.subr.mxu0 0.0
    %2506 = vmatpush1.xpose.msra.mxu0 0.0
    %2507 = vmatprep.subr.mxu0 0.0
    %2508 = vmatpush1.xpose.msra.mxu0 0.0
    %2509 = vmatprep.subr.mxu0 0.0
    %2510 = vmatpush1.xpose.msra.mxu0 0.0
    %2511 = vmatprep.mubr.f32.mxu0 0.0
    %2512 = vmatmul.mubr.f32.gmra.mrb[0].mxu0 %v2439
    %v2513 = vpop.f32.mrb[0].mxu0
    %v2514 = vadd.f32 0.0, %v2513
    %v2515 = vpop.f32.mrb[0].mxu0
    %2516 = vmatprep.mubr.f32.mxu0 0.0
    %2517 = vmatmul.mubr.f32.gmra.mrb[0].mxu0 %v2441
    %v2518 = vpop.f32.mrb[0].mxu0
    %v2519 = vadd.f32 0.0, %v2518
    %v2520 = vpop.f32.mrb[0].mxu0
    %2521 = vdwg.mxu0
    %v2522 = vsel %vm2319, %v2514, -inf
    %2523 = vmax.xlane.f32.xlu0 %v2522
    %v2524 = vpop.xlane.xlu0 %2523
    %v2525 = vsel %vm2323, %v2519, -inf
    %2526 = vmax.xlane.f32.xlu0 %v2525
    %v2527 = vpop.xlane.xlu0 %2526
    %v2528 = vsub.f32 %v2514, %v2524
    %v2529 = vsub.f32 %v2519, %v2527
    %v2530 = vmul.f32 %v2528, 1.442695
    %v2531 = vpow.pop %v2530
    %v2532 = vmul.f32 %v2529, 1.442695
    %v2533 = vpow.pop %v2532
    %v2534 = vsel %vm2319, %v2531, 0.0
    %2535 = vadd.xlane.f32.xlu0 %v2534
    %v2536 = vpop.xlane.xlu0 %2535
    %v2537 = vsel %vm2323, %v2533, 0.0
    %2538 = vadd.xlane.f32.xlu0 %v2537
    %v2539 = vpop.xlane.xlu0 %2538
    %v2540 = vrcp.pop %v2536
    %v2541 = vrcp.pop %v2539
    %v2542 = vmul.f32 %v2531, %v2540
    %v2543 = vmul.f32 %v2533, %v2541
    %2544 = vrot.lane.b32.xlu0 %v2212, 56
    %v2545 = vpop.permute.xlu0 %2544
    %2546 = vrot.lane.b32.xlu0 %v2217, 56
    %v2547 = vpop.permute.xlu0 %2546
    %v2550 = vsel %vm2319, %v2542, 0
    %v2553 = vsel %vm2319, %v2543, 0
    %v2555 = vsel %vm1886, %v2547, 0
    %2557 = vmatprep.subr.mxu0 0.0
    %2558 = vmatpush1.msra.mxu0 %v2545
    %2559 = vmatprep.subr.mxu0 0.0
    %2560 = vmatpush1.msra.mxu0 %v2555
    %2561 = vmatprep.subr.mxu0 0.0
    %2562 = vmatpush1.msra.mxu0 0.0
    %2563 = vmatprep.subr.mxu0 0.0
    %2564 = vmatpush1.msra.mxu0 0.0
    %2565 = vmatprep.subr.mxu0 0.0
    %2566 = vmatpush1.msra.mxu0 0.0
    %2567 = vmatprep.subr.mxu0 0.0
    %2568 = vmatpush1.msra.mxu0 0.0
    %2569 = vmatprep.subr.mxu0 0.0
    %2570 = vmatpush1.msra.mxu0 0.0
    %2571 = vmatprep.subr.mxu0 0.0
    %2572 = vmatpush1.msra.mxu0 0.0
    %2573 = vmatprep.subr.mxu0 0.0
    %2574 = vmatpush1.msra.mxu0 0.0
    %2575 = vmatprep.subr.mxu0 0.0
    %2576 = vmatpush1.msra.mxu0 0.0
    %2577 = vmatprep.subr.mxu0 0.0
    %2578 = vmatpush1.msra.mxu0 0.0
    %2579 = vmatprep.subr.mxu0 0.0
    %2580 = vmatpush1.msra.mxu0 0.0
    %2581 = vmatprep.subr.mxu0 0.0
    %2582 = vmatpush1.msra.mxu0 0.0
    %2583 = vmatprep.subr.mxu0 0.0
    %2584 = vmatpush1.msra.mxu0 0.0
    %2585 = vmatprep.subr.mxu0 0.0
    %2586 = vmatpush1.msra.mxu0 0.0
    %2587 = vmatprep.subr.mxu0 0.0
    %2588 = vmatpush1.msra.mxu0 0.0
    %2589 = vmatprep.subr.mxu0 0.0
    %2590 = vmatpush1.msra.mxu0 0.0
    %2591 = vmatprep.subr.mxu0 0.0
    %2592 = vmatpush1.msra.mxu0 0.0
    %2593 = vmatprep.subr.mxu0 0.0
    %2594 = vmatpush1.msra.mxu0 0.0
    %2595 = vmatprep.subr.mxu0 0.0
    %2596 = vmatpush1.msra.mxu0 0.0
    %2597 = vmatprep.subr.mxu0 0.0
    %2598 = vmatpush1.msra.mxu0 0.0
    %2599 = vmatprep.subr.mxu0 0.0
    %2600 = vmatpush1.msra.mxu0 0.0
    %2601 = vmatprep.subr.mxu0 0.0
    %2602 = vmatpush1.msra.mxu0 0.0
    %2603 = vmatprep.subr.mxu0 0.0
    %2604 = vmatpush1.msra.mxu0 0.0
    %2605 = vmatprep.subr.mxu0 0.0
    %2606 = vmatpush1.msra.mxu0 0.0
    %2607 = vmatprep.subr.mxu0 0.0
    %2608 = vmatpush1.msra.mxu0 0.0
    %2609 = vmatprep.subr.mxu0 0.0
    %2610 = vmatpush1.msra.mxu0 0.0
    %2611 = vmatprep.subr.mxu0 0.0
    %2612 = vmatpush1.msra.mxu0 0.0
    %2613 = vmatprep.subr.mxu0 0.0
    %2614 = vmatpush1.msra.mxu0 0.0
    %2615 = vmatprep.subr.mxu0 0.0
    %2616 = vmatpush1.msra.mxu0 0.0
    %2617 = vmatprep.subr.mxu0 0.0
    %2618 = vmatpush1.msra.mxu0 0.0
    %2619 = vmatprep.subr.mxu0 0.0
    %2620 = vmatpush1.msra.mxu0 0.0
    %2621 = vmatprep.mubr.f32.mxu0 0.0
    %2622 = vmatmul.mubr.f32.gmra.mrb[0].mxu0 %v2550
    %v2623 = vpop.f32.mrb[0].mxu0
    %v2624 = vadd.f32 0.0, %v2623
    %v2625 = vpop.f32.mrb[0].mxu0
    %2626 = vmatprep.mubr.f32.mxu0 0.0
    %2627 = vmatmul.mubr.f32.gmra.mrb[0].mxu0 %v2553
    %v2628 = vpop.f32.mrb[0].mxu0
    %v2629 = vadd.f32 0.0, %v2628
    %v2630 = vpop.f32.mrb[0].mxu0
    %2631 = vdwg.mxu0
    %2632 = vrot.lane.b32.xlu0 %v2212, 112
    %v2633 = vpop.permute.xlu0 %2632
    %2634 = vrot.lane.b32.xlu0 %v2217, 112
    %v2635 = vpop.permute.xlu0 %2634
    %2636 = vrot.lane.b32.xlu0 %v2212, 80
    %v2637 = vpop.permute.xlu0 %2636
    %2638 = vrot.lane.b32.xlu0 %v2217, 80
    %v2639 = vpop.permute.xlu0 %2638
    %v2640 = vsel %vm275, %v2633, 0
    %v2642 = vsel %vm275, %v2635, 0
    %v2644 = vsel %vm275, %v2637, 0
    %v2646 = vsel %vm275, %v2639, 0
    %2648 = vmatprep.subr.mxu0 0.0
    %2649 = vmatpush1.xpose.msra.mxu0 %v2644
    %2650 = vmatprep.subr.mxu0 0.0
    %2651 = vmatpush1.xpose.msra.mxu0 %v2646
    %2652 = vmatprep.subr.mxu0 0.0
    %2653 = vmatpush1.xpose.msra.mxu0 0.0
    %2654 = vmatprep.subr.mxu0 0.0
    %2655 = vmatpush1.xpose.msra.mxu0 0.0
    %2656 = vmatprep.subr.mxu0 0.0
    %2657 = vmatpush1.xpose.msra.mxu0 0.0
    %2658 = vmatprep.subr.mxu0 0.0
    %2659 = vmatpush1.xpose.msra.mxu0 0.0
    %2660 = vmatprep.subr.mxu0 0.0
    %2661 = vmatpush1.xpose.msra.mxu0 0.0
    %2662 = vmatprep.subr.mxu0 0.0
    %2663 = vmatpush1.xpose.msra.mxu0 0.0
    %2664 = vmatprep.subr.mxu0 0.0
    %2665 = vmatpush1.xpose.msra.mxu0 0.0
    %2666 = vmatprep.subr.mxu0 0.0
    %2667 = vmatpush1.xpose.msra.mxu0 0.0
    %2668 = vmatprep.subr.mxu0 0.0
    %2669 = vmatpush1.xpose.msra.mxu0 0.0
    %2670 = vmatprep.subr.mxu0 0.0
    %2671 = vmatpush1.xpose.msra.mxu0 0.0
    %2672 = vmatprep.subr.mxu0 0.0
    %2673 = vmatpush1.xpose.msra.mxu0 0.0
    %2674 = vmatprep.subr.mxu0 0.0
    %2675 = vmatpush1.xpose.msra.mxu0 0.0
    %2676 = vmatprep.subr.mxu0 0.0
    %2677 = vmatpush1.xpose.msra.mxu0 0.0
    %2678 = vmatprep.subr.mxu0 0.0
    %2679 = vmatpush1.xpose.msra.mxu0 0.0
    %2680 = vmatprep.subr.mxu0 0.0
    %2681 = vmatpush1.xpose.msra.mxu0 0.0
    %2682 = vmatprep.subr.mxu0 0.0
    %2683 = vmatpush1.xpose.msra.mxu0 0.0
    %2684 = vmatprep.subr.mxu0 0.0
    %2685 = vmatpush1.xpose.msra.mxu0 0.0
    %2686 = vmatprep.subr.mxu0 0.0
    %2687 = vmatpush1.xpose.msra.mxu0 0.0
    %2688 = vmatprep.subr.mxu0 0.0
    %2689 = vmatpush1.xpose.msra.mxu0 0.0
    %2690 = vmatprep.subr.mxu0 0.0
    %2691 = vmatpush1.xpose.msra.mxu0 0.0
    %2692 = vmatprep.subr.mxu0 0.0
    %2693 = vmatpush1.xpose.msra.mxu0 0.0
    %2694 = vmatprep.subr.mxu0 0.0
    %2695 = vmatpush1.xpose.msra.mxu0 0.0
    %2696 = vmatprep.subr.mxu0 0.0
    %2697 = vmatpush1.xpose.msra.mxu0 0.0
    %2698 = vmatprep.subr.mxu0 0.0
    %2699 = vmatpush1.xpose.msra.mxu0 0.0
    %2700 = vmatprep.subr.mxu0 0.0
    %2701 = vmatpush1.xpose.msra.mxu0 0.0
    %2702 = vmatprep.subr.mxu0 0.0
    %2703 = vmatpush1.xpose.msra.mxu0 0.0
    %2704 = vmatprep.subr.mxu0 0.0
    %2705 = vmatpush1.xpose.msra.mxu0 0.0
    %2706 = vmatprep.subr.mxu0 0.0
    %2707 = vmatpush1.xpose.msra.mxu0 0.0
    %2708 = vmatprep.subr.mxu0 0.0
    %2709 = vmatpush1.xpose.msra.mxu0 0.0
    %2710 = vmatprep.subr.mxu0 0.0
    %2711 = vmatpush1.xpose.msra.mxu0 0.0
    %2712 = vmatprep.mubr.f32.mxu0 0.0
    %2713 = vmatmul.mubr.f32.gmra.mrb[0].mxu0 %v2640
    %v2714 = vpop.f32.mrb[0].mxu0
    %v2715 = vadd.f32 0.0, %v2714
    %v2716 = vpop.f32.mrb[0].mxu0
    %2717 = vmatprep.mubr.f32.mxu0 0.0
    %2718 = vmatmul.mubr.f32.gmra.mrb[0].mxu0 %v2642
    %v2719 = vpop.f32.mrb[0].mxu0
    %v2720 = vadd.f32 0.0, %v2719
    %v2721 = vpop.f32.mrb[0].mxu0
    %2722 = vdwg.mxu0
    %v2723 = vsel %vm2319, %v2715, -inf
    %2724 = vmax.xlane.f32.xlu0 %v2723
    %v2725 = vpop.xlane.xlu0 %2724
    %v2726 = vsel %vm2323, %v2720, -inf
    %2727 = vmax.xlane.f32.xlu0 %v2726
    %v2728 = vpop.xlane.xlu0 %2727
    %v2729 = vsub.f32 %v2715, %v2725
    %v2730 = vsub.f32 %v2720, %v2728
    %v2731 = vmul.f32 %v2729, 1.442695
    %v2732 = vpow.pop %v2731
    %v2733 = vmul.f32 %v2730, 1.442695
    %v2734 = vpow.pop %v2733
    %v2735 = vsel %vm2319, %v2732, 0.0
    %2736 = vadd.xlane.f32.xlu0 %v2735
    %v2737 = vpop.xlane.xlu0 %2736
    %v2738 = vsel %vm2323, %v2734, 0.0
    %2739 = vadd.xlane.f32.xlu0 %v2738
    %v2740 = vpop.xlane.xlu0 %2739
    %v2741 = vrcp.pop %v2737
    %v2742 = vrcp.pop %v2740
    %v2743 = vmul.f32 %v2732, %v2741
    %v2744 = vmul.f32 %v2734, %v2742
    %2745 = vrot.lane.b32.xlu0 %v2212, 48
    %v2746 = vpop.permute.xlu0 %2745
    %2747 = vrot.lane.b32.xlu0 %v2217, 48
    %v2748 = vpop.permute.xlu0 %2747
    %v2751 = vsel %vm2319, %v2743, 0
    %v2754 = vsel %vm2319, %v2744, 0
    %v2756 = vsel %vm1886, %v2748, 0
    %2758 = vmatprep.subr.mxu0 0.0
    %2759 = vmatpush1.msra.mxu0 %v2746
    %2760 = vmatprep.subr.mxu0 0.0
    %2761 = vmatpush1.msra.mxu0 %v2756
    %2762 = vmatprep.subr.mxu0 0.0
    %2763 = vmatpush1.msra.mxu0 0.0
    %2764 = vmatprep.subr.mxu0 0.0
    %2765 = vmatpush1.msra.mxu0 0.0
    %2766 = vmatprep.subr.mxu0 0.0
    %2767 = vmatpush1.msra.mxu0 0.0
    %2768 = vmatprep.subr.mxu0 0.0
    %2769 = vmatpush1.msra.mxu0 0.0
    %2770 = vmatprep.subr.mxu0 0.0
    %2771 = vmatpush1.msra.mxu0 0.0
    %2772 = vmatprep.subr.mxu0 0.0
    %2773 = vmatpush1.msra.mxu0 0.0
    %2774 = vmatprep.subr.mxu0 0.0
    %2775 = vmatpush1.msra.mxu0 0.0
    %2776 = vmatprep.subr.mxu0 0.0
    %2777 = vmatpush1.msra.mxu0 0.0
    %2778 = vmatprep.subr.mxu0 0.0
    %2779 = vmatpush1.msra.mxu0 0.0
    %2780 = vmatprep.subr.mxu0 0.0
    %2781 = vmatpush1.msra.mxu0 0.0
    %2782 = vmatprep.subr.mxu0 0.0
    %2783 = vmatpush1.msra.mxu0 0.0
    %2784 = vmatprep.subr.mxu0 0.0
    %2785 = vmatpush1.msra.mxu0 0.0
    %2786 = vmatprep.subr.mxu0 0.0
    %2787 = vmatpush1.msra.mxu0 0.0
    %2788 = vmatprep.subr.mxu0 0.0
    %2789 = vmatpush1.msra.mxu0 0.0
    %2790 = vmatprep.subr.mxu0 0.0
    %2791 = vmatpush1.msra.mxu0 0.0
    %2792 = vmatprep.subr.mxu0 0.0
    %2793 = vmatpush1.msra.mxu0 0.0
    %2794 = vmatprep.subr.mxu0 0.0
    %2795 = vmatpush1.msra.mxu0 0.0
    %2796 = vmatprep.subr.mxu0 0.0
    %2797 = vmatpush1.msra.mxu0 0.0
    %2798 = vmatprep.subr.mxu0 0.0
    %2799 = vmatpush1.msra.mxu0 0.0
    %2800 = vmatprep.subr.mxu0 0.0
    %2801 = vmatpush1.msra.mxu0 0.0
    %2802 = vmatprep.subr.mxu0 0.0
    %2803 = vmatpush1.msra.mxu0 0.0
    %2804 = vmatprep.subr.mxu0 0.0
    %2805 = vmatpush1.msra.mxu0 0.0
    %2806 = vmatprep.subr.mxu0 0.0
    %2807 = vmatpush1.msra.mxu0 0.0
    %2808 = vmatprep.subr.mxu0 0.0
    %2809 = vmatpush1.msra.mxu0 0.0
    %2810 = vmatprep.subr.mxu0 0.0
    %2811 = vmatpush1.msra.mxu0 0.0
    %2812 = vmatprep.subr.mxu0 0.0
    %2813 = vmatpush1.msra.mxu0 0.0
    %2814 = vmatprep.subr.mxu0 0.0
    %2815 = vmatpush1.msra.mxu0 0.0
    %2816 = vmatprep.subr.mxu0 0.0
    %2817 = vmatpush1.msra.mxu0 0.0
    %2818 = vmatprep.subr.mxu0 0.0
    %2819 = vmatpush1.msra.mxu0 0.0
    %2820 = vmatprep.subr.mxu0 0.0
    %2821 = vmatpush1.msra.mxu0 0.0
    %2822 = vmatprep.mubr.f32.mxu0 0.0
    %2823 = vmatmul.mubr.f32.gmra.mrb[0].mxu0 %v2751
    %v2824 = vpop.f32.mrb[0].mxu0
    %v2825 = vadd.f32 0.0, %v2824
    %v2826 = vpop.f32.mrb[0].mxu0
    %2827 = vmatprep.mubr.f32.mxu0 0.0
    %2828 = vmatmul.mubr.f32.gmra.mrb[0].mxu0 %v2754
    %v2829 = vpop.f32.mrb[0].mxu0
    %v2830 = vadd.f32 0.0, %v2829
    %v2831 = vpop.f32.mrb[0].mxu0
    %2832 = vdwg.mxu0
    %2833 = vrot.lane.b32.xlu0 %v2212, 104
    %v2834 = vpop.permute.xlu0 %2833
    %2835 = vrot.lane.b32.xlu0 %v2217, 104
    %v2836 = vpop.permute.xlu0 %2835
    %2837 = vrot.lane.b32.xlu0 %v2212, 72
    %v2838 = vpop.permute.xlu0 %2837
    %2839 = vrot.lane.b32.xlu0 %v2217, 72
    %v2840 = vpop.permute.xlu0 %2839
    %v2841 = vsel %vm275, %v2834, 0
    %v2843 = vsel %vm275, %v2836, 0
    %v2845 = vsel %vm275, %v2838, 0
    %v2847 = vsel %vm275, %v2840, 0
    %2849 = vmatprep.subr.mxu0 0.0
    %2850 = vmatpush1.xpose.msra.mxu0 %v2845
    %2851 = vmatprep.subr.mxu0 0.0
    %2852 = vmatpush1.xpose.msra.mxu0 %v2847
    %2853 = vmatprep.subr.mxu0 0.0
    %2854 = vmatpush1.xpose.msra.mxu0 0.0
    %2855 = vmatprep.subr.mxu0 0.0
    %2856 = vmatpush1.xpose.msra.mxu0 0.0
    %2857 = vmatprep.subr.mxu0 0.0
    %2858 = vmatpush1.xpose.msra.mxu0 0.0
    %2859 = vmatprep.subr.mxu0 0.0
    %2860 = vmatpush1.xpose.msra.mxu0 0.0
    %2861 = vmatprep.subr.mxu0 0.0
    %2862 = vmatpush1.xpose.msra.mxu0 0.0
    %2863 = vmatprep.subr.mxu0 0.0
    %2864 = vmatpush1.xpose.msra.mxu0 0.0
    %2865 = vmatprep.subr.mxu0 0.0
    %2866 = vmatpush1.xpose.msra.mxu0 0.0
    %2867 = vmatprep.subr.mxu0 0.0
    %2868 = vmatpush1.xpose.msra.mxu0 0.0
    %2869 = vmatprep.subr.mxu0 0.0
    %2870 = vmatpush1.xpose.msra.mxu0 0.0
    %2871 = vmatprep.subr.mxu0 0.0
    %2872 = vmatpush1.xpose.msra.mxu0 0.0
    %2873 = vmatprep.subr.mxu0 0.0
    %2874 = vmatpush1.xpose.msra.mxu0 0.0
    %2875 = vmatprep.subr.mxu0 0.0
    %2876 = vmatpush1.xpose.msra.mxu0 0.0
    %2877 = vmatprep.subr.mxu0 0.0
    %2878 = vmatpush1.xpose.msra.mxu0 0.0
    %2879 = vmatprep.subr.mxu0 0.0
    %2880 = vmatpush1.xpose.msra.mxu0 0.0
    %2881 = vmatprep.subr.mxu0 0.0
    %2882 = vmatpush1.xpose.msra.mxu0 0.0
    %2883 = vmatprep.subr.mxu0 0.0
    %2884 = vmatpush1.xpose.msra.mxu0 0.0
    %2885 = vmatprep.subr.mxu0 0.0
    %2886 = vmatpush1.xpose.msra.mxu0 0.0
    %2887 = vmatprep.subr.mxu0 0.0
    %2888 = vmatpush1.xpose.msra.mxu0 0.0
    %2889 = vmatprep.subr.mxu0 0.0
    %2890 = vmatpush1.xpose.msra.mxu0 0.0
    %2891 = vmatprep.subr.mxu0 0.0
    %2892 = vmatpush1.xpose.msra.mxu0 0.0
    %2893 = vmatprep.subr.mxu0 0.0
    %2894 = vmatpush1.xpose.msra.mxu0 0.0
    %2895 = vmatprep.subr.mxu0 0.0
    %2896 = vmatpush1.xpose.msra.mxu0 0.0
    %2897 = vmatprep.subr.mxu0 0.0
    %2898 = vmatpush1.xpose.msra.mxu0 0.0
    %2899 = vmatprep.subr.mxu0 0.0
    %2900 = vmatpush1.xpose.msra.mxu0 0.0
    %2901 = vmatprep.subr.mxu0 0.0
    %2902 = vmatpush1.xpose.msra.mxu0 0.0
    %2903 = vmatprep.subr.mxu0 0.0
    %2904 = vmatpush1.xpose.msra.mxu0 0.0
    %2905 = vmatprep.subr.mxu0 0.0
    %2906 = vmatpush1.xpose.msra.mxu0 0.0
    %2907 = vmatprep.subr.mxu0 0.0
    %2908 = vmatpush1.xpose.msra.mxu0 0.0
    %2909 = vmatprep.subr.mxu0 0.0
    %2910 = vmatpush1.xpose.msra.mxu0 0.0
    %2911 = vmatprep.subr.mxu0 0.0
    %2912 = vmatpush1.xpose.msra.mxu0 0.0
    %2913 = vmatprep.mubr.f32.mxu0 0.0
    %2914 = vmatmul.mubr.f32.gmra.mrb[0].mxu0 %v2841
    %v2915 = vpop.f32.mrb[0].mxu0
    %v2916 = vadd.f32 0.0, %v2915
    %v2917 = vpop.f32.mrb[0].mxu0
    %2918 = vmatprep.mubr.f32.mxu0 0.0
    %2919 = vmatmul.mubr.f32.gmra.mrb[0].mxu0 %v2843
    %v2920 = vpop.f32.mrb[0].mxu0
    %v2921 = vadd.f32 0.0, %v2920
    %v2922 = vpop.f32.mrb[0].mxu0
    %2923 = vdwg.mxu0
    %v2924 = vsel %vm2319, %v2916, -inf
    %2925 = vmax.xlane.f32.xlu0 %v2924
    %v2926 = vpop.xlane.xlu0 %2925
    %v2927 = vsel %vm2323, %v2921, -inf
    %2928 = vmax.xlane.f32.xlu0 %v2927
    %v2929 = vpop.xlane.xlu0 %2928
    %v2930 = vsub.f32 %v2916, %v2926
    %v2931 = vsub.f32 %v2921, %v2929
    %v2932 = vmul.f32 %v2930, 1.442695
    %v2933 = vpow.pop %v2932
    %v2934 = vmul.f32 %v2931, 1.442695
    %v2935 = vpow.pop %v2934
    %v2936 = vsel %vm2319, %v2933, 0.0
    %2937 = vadd.xlane.f32.xlu0 %v2936
    %v2938 = vpop.xlane.xlu0 %2937
    %v2939 = vsel %vm2323, %v2935, 0.0
    %2940 = vadd.xlane.f32.xlu0 %v2939
    %v2941 = vpop.xlane.xlu0 %2940
    %v2942 = vrcp.pop %v2938
    %v2943 = vrcp.pop %v2941
    %v2944 = vmul.f32 %v2933, %v2942
    %v2945 = vmul.f32 %v2935, %v2943
    %2946 = vrot.lane.b32.xlu0 %v2212, 40
    %v2947 = vpop.permute.xlu0 %2946
    %2948 = vrot.lane.b32.xlu0 %v2217, 40
    %v2949 = vpop.permute.xlu0 %2948
    %v2952 = vsel %vm2319, %v2944, 0
    %v2955 = vsel %vm2319, %v2945, 0
    %v2957 = vsel %vm1886, %v2949, 0
    %2959 = vmatprep.subr.mxu0 0.0
    %2960 = vmatpush1.msra.mxu0 %v2947
    %2961 = vmatprep.subr.mxu0 0.0
    %2962 = vmatpush1.msra.mxu0 %v2957
    %2963 = vmatprep.subr.mxu0 0.0
    %2964 = vmatpush1.msra.mxu0 0.0
    %2965 = vmatprep.subr.mxu0 0.0
    %2966 = vmatpush1.msra.mxu0 0.0
    %2967 = vmatprep.subr.mxu0 0.0
    %2968 = vmatpush1.msra.mxu0 0.0
    %2969 = vmatprep.subr.mxu0 0.0
    %2970 = vmatpush1.msra.mxu0 0.0
    %2971 = vmatprep.subr.mxu0 0.0
    %2972 = vmatpush1.msra.mxu0 0.0
    %2973 = vmatprep.subr.mxu0 0.0
    %2974 = vmatpush1.msra.mxu0 0.0
    %2975 = vmatprep.subr.mxu0 0.0
    %2976 = vmatpush1.msra.mxu0 0.0
    %2977 = vmatprep.subr.mxu0 0.0
    %2978 = vmatpush1.msra.mxu0 0.0
    %2979 = vmatprep.subr.mxu0 0.0
    %2980 = vmatpush1.msra.mxu0 0.0
    %2981 = vmatprep.subr.mxu0 0.0
    %2982 = vmatpush1.msra.mxu0 0.0
    %2983 = vmatprep.subr.mxu0 0.0
    %2984 = vmatpush1.msra.mxu0 0.0
    %2985 = vmatprep.subr.mxu0 0.0
    %2986 = vmatpush1.msra.mxu0 0.0
    %2987 = vmatprep.subr.mxu0 0.0
    %2988 = vmatpush1.msra.mxu0 0.0
    %2989 = vmatprep.subr.mxu0 0.0
    %2990 = vmatpush1.msra.mxu0 0.0
    %2991 = vmatprep.subr.mxu0 0.0
    %2992 = vmatpush1.msra.mxu0 0.0
    %2993 = vmatprep.subr.mxu0 0.0
    %2994 = vmatpush1.msra.mxu0 0.0
    %2995 = vmatprep.subr.mxu0 0.0
    %2996 = vmatpush1.msra.mxu0 0.0
    %2997 = vmatprep.subr.mxu0 0.0
    %2998 = vmatpush1.msra.mxu0 0.0
    %2999 = vmatprep.subr.mxu0 0.0
    %3000 = vmatpush1.msra.mxu0 0.0
    %3001 = vmatprep.subr.mxu0 0.0
    %3002 = vmatpush1.msra.mxu0 0.0
    %3003 = vmatprep.subr.mxu0 0.0
    %3004 = vmatpush1.msra.mxu0 0.0
    %3005 = vmatprep.subr.mxu0 0.0
    %3006 = vmatpush1.msra.mxu0 0.0
    %3007 = vmatprep.subr.mxu0 0.0
    %3008 = vmatpush1.msra.mxu0 0.0
    %3009 = vmatprep.subr.mxu0 0.0
    %3010 = vmatpush1.msra.mxu0 0.0
    %3011 = vmatprep.subr.mxu0 0.0
    %3012 = vmatpush1.msra.mxu0 0.0
    %3013 = vmatprep.subr.mxu0 0.0
    %3014 = vmatpush1.msra.mxu0 0.0
    %3015 = vmatprep.subr.mxu0 0.0
    %3016 = vmatpush1.msra.mxu0 0.0
    %3017 = vmatprep.subr.mxu0 0.0
    %3018 = vmatpush1.msra.mxu0 0.0
    %3019 = vmatprep.subr.mxu0 0.0
    %3020 = vmatpush1.msra.mxu0 0.0
    %3021 = vmatprep.subr.mxu0 0.0
    %3022 = vmatpush1.msra.mxu0 0.0
    %3023 = vmatprep.mubr.f32.mxu0 0.0
    %3024 = vmatmul.mubr.f32.gmra.mrb[0].mxu0 %v2952
    %v3025 = vpop.f32.mrb[0].mxu0
    %v3026 = vadd.f32 0.0, %v3025
    %v3027 = vpop.f32.mrb[0].mxu0
    %3028 = vmatprep.mubr.f32.mxu0 0.0
    %3029 = vmatmul.mubr.f32.gmra.mrb[0].mxu0 %v2955
    %v3030 = vpop.f32.mrb[0].mxu0
    %v3031 = vadd.f32 0.0, %v3030
    %v3032 = vpop.f32.mrb[0].mxu0
    %3033 = vdwg.mxu0
    %3036 = vrot.lane.b32.xlu0 %v2624, 8
    %v3037 = vpop.permute.xlu0 %3036
    %3038 = vrot.lane.b32.xlu0 %v2629, 8
    %v3039 = vpop.permute.xlu0 %3038
    %3044 = vrot.lane.b32.xlu0 %v2825, 16
    %v3045 = vpop.permute.xlu0 %3044
    %3046 = vrot.lane.b32.xlu0 %v2830, 16
    %v3047 = vpop.permute.xlu0 %3046
    %3052 = vrot.lane.b32.xlu0 %v3026, 24
    %v3053 = vpop.permute.xlu0 %3052
    %3054 = vrot.lane.b32.xlu0 %v3031, 24
    %v3055 = vpop.permute.xlu0 %3054
    %v3058 = vsel %vm275, %v2423, %v3037
    %v3059 = vsel %vm275, %v2428, %v3039
    %v3060 = vsel %vm1071, %v3058, %v3045
    %v3061 = vsel %vm1071, %v3059, %v3047
    %v3062 = vsel %vm1074, %v3060, %v3053
    %v3063 = vsel %vm1074, %v3061, %v3055
    %v3066 = vrot.slane %v2217, 6
    %v3067 = vrot.slane %v2222, 6
    %v3068 = vsel %vm1079, %v3066, %v3067
    %v3069 = vrot.slane %v2227, 6
    %v3070 = vsel %vm1079, %v3067, %v3069
    %3071 = vrot.lane.b32.xlu0 %v3068, 96
    %v3072 = vpop.permute.xlu0 %3071
    %3073 = vrot.lane.b32.xlu0 %v3070, 96
    %v3074 = vpop.permute.xlu0 %3073
    %v3075 = vsel %vm275, %v3068, 0
    %v3077 = vsel %vm275, %v3070, 0
    %v3079 = vsel %vm275, %v3072, 0
    %v3081 = vsel %vm275, %v3074, 0
    %3083 = vmatprep.subr.mxu0 0.0
    %3084 = vmatpush1.xpose.msra.mxu0 %v3079
    %3085 = vmatprep.subr.mxu0 0.0
    %3086 = vmatpush1.xpose.msra.mxu0 %v3081
    %3087 = vmatprep.subr.mxu0 0.0
    %3088 = vmatpush1.xpose.msra.mxu0 0.0
    %3089 = vmatprep.subr.mxu0 0.0
    %3090 = vmatpush1.xpose.msra.mxu0 0.0
    %3091 = vmatprep.subr.mxu0 0.0
    %3092 = vmatpush1.xpose.msra.mxu0 0.0
    %3093 = vmatprep.subr.mxu0 0.0
    %3094 = vmatpush1.xpose.msra.mxu0 0.0
    %3095 = vmatprep.subr.mxu0 0.0
    %3096 = vmatpush1.xpose.msra.mxu0 0.0
    %3097 = vmatprep.subr.mxu0 0.0
    %3098 = vmatpush1.xpose.msra.mxu0 0.0
    %3099 = vmatprep.subr.mxu0 0.0
    %3100 = vmatpush1.xpose.msra.mxu0 0.0
    %3101 = vmatprep.subr.mxu0 0.0
    %3102 = vmatpush1.xpose.msra.mxu0 0.0
    %3103 = vmatprep.subr.mxu0 0.0
    %3104 = vmatpush1.xpose.msra.mxu0 0.0
    %3105 = vmatprep.subr.mxu0 0.0
    %3106 = vmatpush1.xpose.msra.mxu0 0.0
    %3107 = vmatprep.subr.mxu0 0.0
    %3108 = vmatpush1.xpose.msra.mxu0 0.0
    %3109 = vmatprep.subr.mxu0 0.0
    %3110 = vmatpush1.xpose.msra.mxu0 0.0
    %3111 = vmatprep.subr.mxu0 0.0
    %3112 = vmatpush1.xpose.msra.mxu0 0.0
    %3113 = vmatprep.subr.mxu0 0.0
    %3114 = vmatpush1.xpose.msra.mxu0 0.0
    %3115 = vmatprep.subr.mxu0 0.0
    %3116 = vmatpush1.xpose.msra.mxu0 0.0
    %3117 = vmatprep.subr.mxu0 0.0
    %3118 = vmatpush1.xpose.msra.mxu0 0.0
    %3119 = vmatprep.subr.mxu0 0.0
    %3120 = vmatpush1.xpose.msra.mxu0 0.0
    %3121 = vmatprep.subr.mxu0 0.0
    %3122 = vmatpush1.xpose.msra.mxu0 0.0
    %3123 = vmatprep.subr.mxu0 0.0
    %3124 = vmatpush1.xpose.msra.mxu0 0.0
    %3125 = vmatprep.subr.mxu0 0.0
    %3126 = vmatpush1.xpose.msra.mxu0 0.0
    %3127 = vmatprep.subr.mxu0 0.0
    %3128 = vmatpush1.xpose.msra.mxu0 0.0
    %3129 = vmatprep.subr.mxu0 0.0
    %3130 = vmatpush1.xpose.msra.mxu0 0.0
    %3131 = vmatprep.subr.mxu0 0.0
    %3132 = vmatpush1.xpose.msra.mxu0 0.0
    %3133 = vmatprep.subr.mxu0 0.0
    %3134 = vmatpush1.xpose.msra.mxu0 0.0
    %3135 = vmatprep.subr.mxu0 0.0
    %3136 = vmatpush1.xpose.msra.mxu0 0.0
    %3137 = vmatprep.subr.mxu0 0.0
    %3138 = vmatpush1.xpose.msra.mxu0 0.0
    %3139 = vmatprep.subr.mxu0 0.0
    %3140 = vmatpush1.xpose.msra.mxu0 0.0
    %3141 = vmatprep.subr.mxu0 0.0
    %3142 = vmatpush1.xpose.msra.mxu0 0.0
    %3143 = vmatprep.subr.mxu0 0.0
    %3144 = vmatpush1.xpose.msra.mxu0 0.0
    %3145 = vmatprep.subr.mxu0 0.0
    %3146 = vmatpush1.xpose.msra.mxu0 0.0
    %3147 = vmatprep.mubr.f32.mxu0 0.0
    %3148 = vmatmul.mubr.f32.gmra.mrb[0].mxu0 %v3075
    %v3149 = vpop.f32.mrb[0].mxu0
    %v3150 = vadd.f32 0.0, %v3149
    %v3151 = vpop.f32.mrb[0].mxu0
    %3152 = vmatprep.mubr.f32.mxu0 0.0
    %3153 = vmatmul.mubr.f32.gmra.mrb[0].mxu0 %v3077
    %v3154 = vpop.f32.mrb[0].mxu0
    %v3155 = vadd.f32 0.0, %v3154
    %v3156 = vpop.f32.mrb[0].mxu0
    %3157 = vdwg.mxu0
    %v3158 = vsel %vm2319, %v3150, -inf
    %3159 = vmax.xlane.f32.xlu0 %v3158
    %v3160 = vpop.xlane.xlu0 %3159
    %v3161 = vsel %vm2323, %v3155, -inf
    %3162 = vmax.xlane.f32.xlu0 %v3161
    %v3163 = vpop.xlane.xlu0 %3162
    %v3164 = vsub.f32 %v3150, %v3160
    %v3165 = vsub.f32 %v3155, %v3163
    %v3166 = vmul.f32 %v3164, 1.442695
    %v3167 = vpow.pop %v3166
    %v3168 = vmul.f32 %v3165, 1.442695
    %v3169 = vpow.pop %v3168
    %v3170 = vsel %vm2319, %v3167, 0.0
    %3171 = vadd.xlane.f32.xlu0 %v3170
    %v3172 = vpop.xlane.xlu0 %3171
    %v3173 = vsel %vm2323, %v3169, 0.0
    %3174 = vadd.xlane.f32.xlu0 %v3173
    %v3175 = vpop.xlane.xlu0 %3174
    %v3176 = vrcp.pop %v3172
    %v3177 = vrcp.pop %v3175
    %v3178 = vmul.f32 %v3167, %v3176
    %v3179 = vmul.f32 %v3169, %v3177
    %3180 = vrot.lane.b32.xlu0 %v3068, 64
    %v3181 = vpop.permute.xlu0 %3180
    %3182 = vrot.lane.b32.xlu0 %v3070, 64
    %v3183 = vpop.permute.xlu0 %3182
    %v3186 = vsel %vm2319, %v3178, 0
    %v3189 = vsel %vm2319, %v3179, 0
    %v3191 = vsel %vm1886, %v3183, 0
    %3193 = vmatprep.subr.mxu0 0.0
    %3194 = vmatpush1.msra.mxu0 %v3181
    %3195 = vmatprep.subr.mxu0 0.0
    %3196 = vmatpush1.msra.mxu0 %v3191
    %3197 = vmatprep.subr.mxu0 0.0
    %3198 = vmatpush1.msra.mxu0 0.0
    %3199 = vmatprep.subr.mxu0 0.0
    %3200 = vmatpush1.msra.mxu0 0.0
    %3201 = vmatprep.subr.mxu0 0.0
    %3202 = vmatpush1.msra.mxu0 0.0
    %3203 = vmatprep.subr.mxu0 0.0
    %3204 = vmatpush1.msra.mxu0 0.0
    %3205 = vmatprep.subr.mxu0 0.0
    %3206 = vmatpush1.msra.mxu0 0.0
    %3207 = vmatprep.subr.mxu0 0.0
    %3208 = vmatpush1.msra.mxu0 0.0
    %3209 = vmatprep.subr.mxu0 0.0
    %3210 = vmatpush1.msra.mxu0 0.0
    %3211 = vmatprep.subr.mxu0 0.0
    %3212 = vmatpush1.msra.mxu0 0.0
    %3213 = vmatprep.subr.mxu0 0.0
    %3214 = vmatpush1.msra.mxu0 0.0
    %3215 = vmatprep.subr.mxu0 0.0
    %3216 = vmatpush1.msra.mxu0 0.0
    %3217 = vmatprep.subr.mxu0 0.0
    %3218 = vmatpush1.msra.mxu0 0.0
    %3219 = vmatprep.subr.mxu0 0.0
    %3220 = vmatpush1.msra.mxu0 0.0
    %3221 = vmatprep.subr.mxu0 0.0
    %3222 = vmatpush1.msra.mxu0 0.0
    %3223 = vmatprep.subr.mxu0 0.0
    %3224 = vmatpush1.msra.mxu0 0.0
    %3225 = vmatprep.subr.mxu0 0.0
    %3226 = vmatpush1.msra.mxu0 0.0
    %3227 = vmatprep.subr.mxu0 0.0
    %3228 = vmatpush1.msra.mxu0 0.0
    %3229 = vmatprep.subr.mxu0 0.0
    %3230 = vmatpush1.msra.mxu0 0.0
    %3231 = vmatprep.subr.mxu0 0.0
    %3232 = vmatpush1.msra.mxu0 0.0
    %3233 = vmatprep.subr.mxu0 0.0
    %3234 = vmatpush1.msra.mxu0 0.0
    %3235 = vmatprep.subr.mxu0 0.0
    %3236 = vmatpush1.msra.mxu0 0.0
    %3237 = vmatprep.subr.mxu0 0.0
    %3238 = vmatpush1.msra.mxu0 0.0
    %3239 = vmatprep.subr.mxu0 0.0
    %3240 = vmatpush1.msra.mxu0 0.0
    %3241 = vmatprep.subr.mxu0 0.0
    %3242 = vmatpush1.msra.mxu0 0.0
    %3243 = vmatprep.subr.mxu0 0.0
    %3244 = vmatpush1.msra.mxu0 0.0
    %3245 = vmatprep.subr.mxu0 0.0
    %3246 = vmatpush1.msra.mxu0 0.0
    %3247 = vmatprep.subr.mxu0 0.0
    %3248 = vmatpush1.msra.mxu0 0.0
    %3249 = vmatprep.subr.mxu0 0.0
    %3250 = vmatpush1.msra.mxu0 0.0
    %3251 = vmatprep.subr.mxu0 0.0
    %3252 = vmatpush1.msra.mxu0 0.0
    %3253 = vmatprep.subr.mxu0 0.0
    %3254 = vmatpush1.msra.mxu0 0.0
    %3255 = vmatprep.subr.mxu0 0.0
    %3256 = vmatpush1.msra.mxu0 0.0
    %3257 = vmatprep.mubr.f32.mxu0 0.0
    %3258 = vmatmul.mubr.f32.gmra.mrb[0].mxu0 %v3186
    %v3259 = vpop.f32.mrb[0].mxu0
    %v3260 = vadd.f32 0.0, %v3259
    %v3261 = vpop.f32.mrb[0].mxu0
    %3262 = vmatprep.mubr.f32.mxu0 0.0
    %3263 = vmatmul.mubr.f32.gmra.mrb[0].mxu0 %v3189
    %v3264 = vpop.f32.mrb[0].mxu0
    %v3265 = vadd.f32 0.0, %v3264
    %v3266 = vpop.f32.mrb[0].mxu0
    %3267 = vdwg.mxu0
    %3268 = vrot.lane.b32.xlu0 %v3068, 120
    %v3269 = vpop.permute.xlu0 %3268
    %3270 = vrot.lane.b32.xlu0 %v3070, 120
    %v3271 = vpop.permute.xlu0 %3270
    %3272 = vrot.lane.b32.xlu0 %v3068, 88
    %v3273 = vpop.permute.xlu0 %3272
    %3274 = vrot.lane.b32.xlu0 %v3070, 88
    %v3275 = vpop.permute.xlu0 %3274
    %v3276 = vsel %vm275, %v3269, 0
    %v3278 = vsel %vm275, %v3271, 0
    %v3280 = vsel %vm275, %v3273, 0
    %v3282 = vsel %vm275, %v3275, 0
    %3284 = vmatprep.subr.mxu0 0.0
    %3285 = vmatpush1.xpose.msra.mxu0 %v3280
    %3286 = vmatprep.subr.mxu0 0.0
    %3287 = vmatpush1.xpose.msra.mxu0 %v3282
    %3288 = vmatprep.subr.mxu0 0.0
    %3289 = vmatpush1.xpose.msra.mxu0 0.0
    %3290 = vmatprep.subr.mxu0 0.0
    %3291 = vmatpush1.xpose.msra.mxu0 0.0
    %3292 = vmatprep.subr.mxu0 0.0
    %3293 = vmatpush1.xpose.msra.mxu0 0.0
    %3294 = vmatprep.subr.mxu0 0.0
    %3295 = vmatpush1.xpose.msra.mxu0 0.0
    %3296 = vmatprep.subr.mxu0 0.0
    %3297 = vmatpush1.xpose.msra.mxu0 0.0
    %3298 = vmatprep.subr.mxu0 0.0
    %3299 = vmatpush1.xpose.msra.mxu0 0.0
    %3300 = vmatprep.subr.mxu0 0.0
    %3301 = vmatpush1.xpose.msra.mxu0 0.0
    %3302 = vmatprep.subr.mxu0 0.0
    %3303 = vmatpush1.xpose.msra.mxu0 0.0
    %3304 = vmatprep.subr.mxu0 0.0
    %3305 = vmatpush1.xpose.msra.mxu0 0.0
    %3306 = vmatprep.subr.mxu0 0.0
    %3307 = vmatpush1.xpose.msra.mxu0 0.0
    %3308 = vmatprep.subr.mxu0 0.0
    %3309 = vmatpush1.xpose.msra.mxu0 0.0
    %3310 = vmatprep.subr.mxu0 0.0
    %3311 = vmatpush1.xpose.msra.mxu0 0.0
    %3312 = vmatprep.subr.mxu0 0.0
    %3313 = vmatpush1.xpose.msra.mxu0 0.0
    %3314 = vmatprep.subr.mxu0 0.0
    %3315 = vmatpush1.xpose.msra.mxu0 0.0
    %3316 = vmatprep.subr.mxu0 0.0
    %3317 = vmatpush1.xpose.msra.mxu0 0.0
    %3318 = vmatprep.subr.mxu0 0.0
    %3319 = vmatpush1.xpose.msra.mxu0 0.0
    %3320 = vmatprep.subr.mxu0 0.0
    %3321 = vmatpush1.xpose.msra.mxu0 0.0
    %3322 = vmatprep.subr.mxu0 0.0
    %3323 = vmatpush1.xpose.msra.mxu0 0.0
    %3324 = vmatprep.subr.mxu0 0.0
    %3325 = vmatpush1.xpose.msra.mxu0 0.0
    %3326 = vmatprep.subr.mxu0 0.0
    %3327 = vmatpush1.xpose.msra.mxu0 0.0
    %3328 = vmatprep.subr.mxu0 0.0
    %3329 = vmatpush1.xpose.msra.mxu0 0.0
    %3330 = vmatprep.subr.mxu0 0.0
    %3331 = vmatpush1.xpose.msra.mxu0 0.0
    %3332 = vmatprep.subr.mxu0 0.0
    %3333 = vmatpush1.xpose.msra.mxu0 0.0
    %3334 = vmatprep.subr.mxu0 0.0
    %3335 = vmatpush1.xpose.msra.mxu0 0.0
    %3336 = vmatprep.subr.mxu0 0.0
    %3337 = vmatpush1.xpose.msra.mxu0 0.0
    %3338 = vmatprep.subr.mxu0 0.0
    %3339 = vmatpush1.xpose.msra.mxu0 0.0
    %3340 = vmatprep.subr.mxu0 0.0
    %3341 = vmatpush1.xpose.msra.mxu0 0.0
    %3342 = vmatprep.subr.mxu0 0.0
    %3343 = vmatpush1.xpose.msra.mxu0 0.0
    %3344 = vmatprep.subr.mxu0 0.0
    %3345 = vmatpush1.xpose.msra.mxu0 0.0
    %3346 = vmatprep.subr.mxu0 0.0
    %3347 = vmatpush1.xpose.msra.mxu0 0.0
    %3348 = vmatprep.mubr.f32.mxu0 0.0
    %3349 = vmatmul.mubr.f32.gmra.mrb[0].mxu0 %v3276
    %v3350 = vpop.f32.mrb[0].mxu0
    %v3351 = vadd.f32 0.0, %v3350
    %v3352 = vpop.f32.mrb[0].mxu0
    %3353 = vmatprep.mubr.f32.mxu0 0.0
    %3354 = vmatmul.mubr.f32.gmra.mrb[0].mxu0 %v3278
    %v3355 = vpop.f32.mrb[0].mxu0
    %v3356 = vadd.f32 0.0, %v3355
    %v3357 = vpop.f32.mrb[0].mxu0
    %3358 = vdwg.mxu0
    %v3359 = vsel %vm2319, %v3351, -inf
    %3360 = vmax.xlane.f32.xlu0 %v3359
    %v3361 = vpop.xlane.xlu0 %3360
    %v3362 = vsel %vm2323, %v3356, -inf
    %3363 = vmax.xlane.f32.xlu0 %v3362
    %v3364 = vpop.xlane.xlu0 %3363
    %v3365 = vsub.f32 %v3351, %v3361
    %v3366 = vsub.f32 %v3356, %v3364
    %v3367 = vmul.f32 %v3365, 1.442695
    %v3368 = vpow.pop %v3367
    %v3369 = vmul.f32 %v3366, 1.442695
    %v3370 = vpow.pop %v3369
    %v3371 = vsel %vm2319, %v3368, 0.0
    %3372 = vadd.xlane.f32.xlu0 %v3371
    %v3373 = vpop.xlane.xlu0 %3372
    %v3374 = vsel %vm2323, %v3370, 0.0
    %3375 = vadd.xlane.f32.xlu0 %v3374
    %v3376 = vpop.xlane.xlu0 %3375
    %v3377 = vrcp.pop %v3373
    %v3378 = vrcp.pop %v3376
    %v3379 = vmul.f32 %v3368, %v3377
    %v3380 = vmul.f32 %v3370, %v3378
    %3381 = vrot.lane.b32.xlu0 %v3068, 56
    %v3382 = vpop.permute.xlu0 %3381
    %3383 = vrot.lane.b32.xlu0 %v3070, 56
    %v3384 = vpop.permute.xlu0 %3383
    %v3387 = vsel %vm2319, %v3379, 0
    %v3390 = vsel %vm2319, %v3380, 0
    %v3392 = vsel %vm1886, %v3384, 0
    %3394 = vmatprep.subr.mxu0 0.0
    %3395 = vmatpush1.msra.mxu0 %v3382
    %3396 = vmatprep.subr.mxu0 0.0
    %3397 = vmatpush1.msra.mxu0 %v3392
    %3398 = vmatprep.subr.mxu0 0.0
    %3399 = vmatpush1.msra.mxu0 0.0
    %3400 = vmatprep.subr.mxu0 0.0
    %3401 = vmatpush1.msra.mxu0 0.0
    %3402 = vmatprep.subr.mxu0 0.0
    %3403 = vmatpush1.msra.mxu0 0.0
    %3404 = vmatprep.subr.mxu0 0.0
    %3405 = vmatpush1.msra.mxu0 0.0
    %3406 = vmatprep.subr.mxu0 0.0
    %3407 = vmatpush1.msra.mxu0 0.0
    %3408 = vmatprep.subr.mxu0 0.0
    %3409 = vmatpush1.msra.mxu0 0.0
    %3410 = vmatprep.subr.mxu0 0.0
    %3411 = vmatpush1.msra.mxu0 0.0
    %3412 = vmatprep.subr.mxu0 0.0
    %3413 = vmatpush1.msra.mxu0 0.0
    %3414 = vmatprep.subr.mxu0 0.0
    %3415 = vmatpush1.msra.mxu0 0.0
    %3416 = vmatprep.subr.mxu0 0.0
    %3417 = vmatpush1.msra.mxu0 0.0
    %3418 = vmatprep.subr.mxu0 0.0
    %3419 = vmatpush1.msra.mxu0 0.0
    %3420 = vmatprep.subr.mxu0 0.0
    %3421 = vmatpush1.msra.mxu0 0.0
    %3422 = vmatprep.subr.mxu0 0.0
    %3423 = vmatpush1.msra.mxu0 0.0
    %3424 = vmatprep.subr.mxu0 0.0
    %3425 = vmatpush1.msra.mxu0 0.0
    %3426 = vmatprep.subr.mxu0 0.0
    %3427 = vmatpush1.msra.mxu0 0.0
    %3428 = vmatprep.subr.mxu0 0.0
    %3429 = vmatpush1.msra.mxu0 0.0
    %3430 = vmatprep.subr.mxu0 0.0
    %3431 = vmatpush1.msra.mxu0 0.0
    %3432 = vmatprep.subr.mxu0 0.0
    %3433 = vmatpush1.msra.mxu0 0.0
    %3434 = vmatprep.subr.mxu0 0.0
    %3435 = vmatpush1.msra.mxu0 0.0
    %3436 = vmatprep.subr.mxu0 0.0
    %3437 = vmatpush1.msra.mxu0 0.0
    %3438 = vmatprep.subr.mxu0 0.0
    %3439 = vmatpush1.msra.mxu0 0.0
    %3440 = vmatprep.subr.mxu0 0.0
    %3441 = vmatpush1.msra.mxu0 0.0
    %3442 = vmatprep.subr.mxu0 0.0
    %3443 = vmatpush1.msra.mxu0 0.0
    %3444 = vmatprep.subr.mxu0 0.0
    %3445 = vmatpush1.msra.mxu0 0.0
    %3446 = vmatprep.subr.mxu0 0.0
    %3447 = vmatpush1.msra.mxu0 0.0
    %3448 = vmatprep.subr.mxu0 0.0
    %3449 = vmatpush1.msra.mxu0 0.0
    %3450 = vmatprep.subr.mxu0 0.0
    %3451 = vmatpush1.msra.mxu0 0.0
    %3452 = vmatprep.subr.mxu0 0.0
    %3453 = vmatpush1.msra.mxu0 0.0
    %3454 = vmatprep.subr.mxu0 0.0
    %3455 = vmatpush1.msra.mxu0 0.0
    %3456 = vmatprep.subr.mxu0 0.0
    %3457 = vmatpush1.msra.mxu0 0.0
    %3458 = vmatprep.mubr.f32.mxu0 0.0
    %3459 = vmatmul.mubr.f32.gmra.mrb[0].mxu0 %v3387
    %v3460 = vpop.f32.mrb[0].mxu0
    %v3461 = vadd.f32 0.0, %v3460
    %v3462 = vpop.f32.mrb[0].mxu0
    %3463 = vmatprep.mubr.f32.mxu0 0.0
    %3464 = vmatmul.mubr.f32.gmra.mrb[0].mxu0 %v3390
    %v3465 = vpop.f32.mrb[0].mxu0
    %v3466 = vadd.f32 0.0, %v3465
    %v3467 = vpop.f32.mrb[0].mxu0
    %3468 = vdwg.mxu0
    %3469 = vrot.lane.b32.xlu0 %v3068, 112
    %v3470 = vpop.permute.xlu0 %3469
    %3471 = vrot.lane.b32.xlu0 %v3070, 112
    %v3472 = vpop.permute.xlu0 %3471
    %3473 = vrot.lane.b32.xlu0 %v3068, 80
    %v3474 = vpop.permute.xlu0 %3473
    %3475 = vrot.lane.b32.xlu0 %v3070, 80
    %v3476 = vpop.permute.xlu0 %3475
    %v3477 = vsel %vm275, %v3470, 0
    %v3479 = vsel %vm275, %v3472, 0
    %v3481 = vsel %vm275, %v3474, 0
    %v3483 = vsel %vm275, %v3476, 0
    %3485 = vmatprep.subr.mxu0 0.0
    %3486 = vmatpush1.xpose.msra.mxu0 %v3481
    %3487 = vmatprep.subr.mxu0 0.0
    %3488 = vmatpush1.xpose.msra.mxu0 %v3483
    %3489 = vmatprep.subr.mxu0 0.0
    %3490 = vmatpush1.xpose.msra.mxu0 0.0
    %3491 = vmatprep.subr.mxu0 0.0
    %3492 = vmatpush1.xpose.msra.mxu0 0.0
    %3493 = vmatprep.subr.mxu0 0.0
    %3494 = vmatpush1.xpose.msra.mxu0 0.0
    %3495 = vmatprep.subr.mxu0 0.0
    %3496 = vmatpush1.xpose.msra.mxu0 0.0
    %3497 = vmatprep.subr.mxu0 0.0
    %3498 = vmatpush1.xpose.msra.mxu0 0.0
    %3499 = vmatprep.subr.mxu0 0.0
    %3500 = vmatpush1.xpose.msra.mxu0 0.0
    %3501 = vmatprep.subr.mxu0 0.0
    %3502 = vmatpush1.xpose.msra.mxu0 0.0
    %3503 = vmatprep.subr.mxu0 0.0
    %3504 = vmatpush1.xpose.msra.mxu0 0.0
    %3505 = vmatprep.subr.mxu0 0.0
    %3506 = vmatpush1.xpose.msra.mxu0 0.0
    %3507 = vmatprep.subr.mxu0 0.0
    %3508 = vmatpush1.xpose.msra.mxu0 0.0
    %3509 = vmatprep.subr.mxu0 0.0
    %3510 = vmatpush1.xpose.msra.mxu0 0.0
    %3511 = vmatprep.subr.mxu0 0.0
    %3512 = vmatpush1.xpose.msra.mxu0 0.0
    %3513 = vmatprep.subr.mxu0 0.0
    %3514 = vmatpush1.xpose.msra.mxu0 0.0
    %3515 = vmatprep.subr.mxu0 0.0
    %3516 = vmatpush1.xpose.msra.mxu0 0.0
    %3517 = vmatprep.subr.mxu0 0.0
    %3518 = vmatpush1.xpose.msra.mxu0 0.0
    %3519 = vmatprep.subr.mxu0 0.0
    %3520 = vmatpush1.xpose.msra.mxu0 0.0
    %3521 = vmatprep.subr.mxu0 0.0
    %3522 = vmatpush1.xpose.msra.mxu0 0.0
    %3523 = vmatprep.subr.mxu0 0.0
    %3524 = vmatpush1.xpose.msra.mxu0 0.0
    %3525 = vmatprep.subr.mxu0 0.0
    %3526 = vmatpush1.xpose.msra.mxu0 0.0
    %3527 = vmatprep.subr.mxu0 0.0
    %3528 = vmatpush1.xpose.msra.mxu0 0.0
    %3529 = vmatprep.subr.mxu0 0.0
    %3530 = vmatpush1.xpose.msra.mxu0 0.0
    %3531 = vmatprep.subr.mxu0 0.0
    %3532 = vmatpush1.xpose.msra.mxu0 0.0
    %3533 = vmatprep.subr.mxu0 0.0
    %3534 = vmatpush1.xpose.msra.mxu0 0.0
    %3535 = vmatprep.subr.mxu0 0.0
    %3536 = vmatpush1.xpose.msra.mxu0 0.0
    %3537 = vmatprep.subr.mxu0 0.0
    %3538 = vmatpush1.xpose.msra.mxu0 0.0
    %3539 = vmatprep.subr.mxu0 0.0
    %3540 = vmatpush1.xpose.msra.mxu0 0.0
    %3541 = vmatprep.subr.mxu0 0.0
    %3542 = vmatpush1.xpose.msra.mxu0 0.0
    %3543 = vmatprep.subr.mxu0 0.0
    %3544 = vmatpush1.xpose.msra.mxu0 0.0
    %3545 = vmatprep.subr.mxu0 0.0
    %3546 = vmatpush1.xpose.msra.mxu0 0.0
    %3547 = vmatprep.subr.mxu0 0.0
    %3548 = vmatpush1.xpose.msra.mxu0 0.0
    %3549 = vmatprep.mubr.f32.mxu0 0.0
    %3550 = vmatmul.mubr.f32.gmra.mrb[0].mxu0 %v3477
    %v3551 = vpop.f32.mrb[0].mxu0
    %v3552 = vadd.f32 0.0, %v3551
    %v3553 = vpop.f32.mrb[0].mxu0
    %3554 = vmatprep.mubr.f32.mxu0 0.0
    %3555 = vmatmul.mubr.f32.gmra.mrb[0].mxu0 %v3479
    %v3556 = vpop.f32.mrb[0].mxu0
    %v3557 = vadd.f32 0.0, %v3556
    %v3558 = vpop.f32.mrb[0].mxu0
    %3559 = vdwg.mxu0
    %v3560 = vsel %vm2319, %v3552, -inf
    %3561 = vmax.xlane.f32.xlu0 %v3560
    %v3562 = vpop.xlane.xlu0 %3561
    %v3563 = vsel %vm2323, %v3557, -inf
    %3564 = vmax.xlane.f32.xlu0 %v3563
    %v3565 = vpop.xlane.xlu0 %3564
    %v3566 = vsub.f32 %v3552, %v3562
    %v3567 = vsub.f32 %v3557, %v3565
    %v3568 = vmul.f32 %v3566, 1.442695
    %v3569 = vpow.pop %v3568
    %v3570 = vmul.f32 %v3567, 1.442695
    %v3571 = vpow.pop %v3570
    %v3572 = vsel %vm2319, %v3569, 0.0
    %3573 = vadd.xlane.f32.xlu0 %v3572
    %v3574 = vpop.xlane.xlu0 %3573
    %v3575 = vsel %vm2323, %v3571, 0.0
    %3576 = vadd.xlane.f32.xlu0 %v3575
    %v3577 = vpop.xlane.xlu0 %3576
    %v3578 = vrcp.pop %v3574
    %v3579 = vrcp.pop %v3577
    %v3580 = vmul.f32 %v3569, %v3578
    %v3581 = vmul.f32 %v3571, %v3579
    %3582 = vrot.lane.b32.xlu0 %v3068, 48
    %v3583 = vpop.permute.xlu0 %3582
    %3584 = vrot.lane.b32.xlu0 %v3070, 48
    %v3585 = vpop.permute.xlu0 %3584
    %v3588 = vsel %vm2319, %v3580, 0
    %v3591 = vsel %vm2319, %v3581, 0
    %v3593 = vsel %vm1886, %v3585, 0
    %3595 = vmatprep.subr.mxu0 0.0
    %3596 = vmatpush1.msra.mxu0 %v3583
    %3597 = vmatprep.subr.mxu0 0.0
    %3598 = vmatpush1.msra.mxu0 %v3593
    %3599 = vmatprep.subr.mxu0 0.0
    %3600 = vmatpush1.msra.mxu0 0.0
    %3601 = vmatprep.subr.mxu0 0.0
    %3602 = vmatpush1.msra.mxu0 0.0
    %3603 = vmatprep.subr.mxu0 0.0
    %3604 = vmatpush1.msra.mxu0 0.0
    %3605 = vmatprep.subr.mxu0 0.0
    %3606 = vmatpush1.msra.mxu0 0.0
    %3607 = vmatprep.subr.mxu0 0.0
    %3608 = vmatpush1.msra.mxu0 0.0
    %3609 = vmatprep.subr.mxu0 0.0
    %3610 = vmatpush1.msra.mxu0 0.0
    %3611 = vmatprep.subr.mxu0 0.0
    %3612 = vmatpush1.msra.mxu0 0.0
    %3613 = vmatprep.subr.mxu0 0.0
    %3614 = vmatpush1.msra.mxu0 0.0
    %3615 = vmatprep.subr.mxu0 0.0
    %3616 = vmatpush1.msra.mxu0 0.0
    %3617 = vmatprep.subr.mxu0 0.0
    %3618 = vmatpush1.msra.mxu0 0.0
    %3619 = vmatprep.subr.mxu0 0.0
    %3620 = vmatpush1.msra.mxu0 0.0
    %3621 = vmatprep.subr.mxu0 0.0
    %3622 = vmatpush1.msra.mxu0 0.0
    %3623 = vmatprep.subr.mxu0 0.0
    %3624 = vmatpush1.msra.mxu0 0.0
    %3625 = vmatprep.subr.mxu0 0.0
    %3626 = vmatpush1.msra.mxu0 0.0
    %3627 = vmatprep.subr.mxu0 0.0
    %3628 = vmatpush1.msra.mxu0 0.0
    %3629 = vmatprep.subr.mxu0 0.0
    %3630 = vmatpush1.msra.mxu0 0.0
    %3631 = vmatprep.subr.mxu0 0.0
    %3632 = vmatpush1.msra.mxu0 0.0
    %3633 = vmatprep.subr.mxu0 0.0
    %3634 = vmatpush1.msra.mxu0 0.0
    %3635 = vmatprep.subr.mxu0 0.0
    %3636 = vmatpush1.msra.mxu0 0.0
    %3637 = vmatprep.subr.mxu0 0.0
    %3638 = vmatpush1.msra.mxu0 0.0
    %3639 = vmatprep.subr.mxu0 0.0
    %3640 = vmatpush1.msra.mxu0 0.0
    %3641 = vmatprep.subr.mxu0 0.0
    %3642 = vmatpush1.msra.mxu0 0.0
    %3643 = vmatprep.subr.mxu0 0.0
    %3644 = vmatpush1.msra.mxu0 0.0
    %3645 = vmatprep.subr.mxu0 0.0
    %3646 = vmatpush1.msra.mxu0 0.0
    %3647 = vmatprep.subr.mxu0 0.0
    %3648 = vmatpush1.msra.mxu0 0.0
    %3649 = vmatprep.subr.mxu0 0.0
    %3650 = vmatpush1.msra.mxu0 0.0
    %3651 = vmatprep.subr.mxu0 0.0
    %3652 = vmatpush1.msra.mxu0 0.0
    %3653 = vmatprep.subr.mxu0 0.0
    %3654 = vmatpush1.msra.mxu0 0.0
    %3655 = vmatprep.subr.mxu0 0.0
    %3656 = vmatpush1.msra.mxu0 0.0
    %3657 = vmatprep.subr.mxu0 0.0
    %3658 = vmatpush1.msra.mxu0 0.0
    %3659 = vmatprep.mubr.f32.mxu0 0.0
    %3660 = vmatmul.mubr.f32.gmra.mrb[0].mxu0 %v3588
    %v3661 = vpop.f32.mrb[0].mxu0
    %v3662 = vadd.f32 0.0, %v3661
    %v3663 = vpop.f32.mrb[0].mxu0
    %3664 = vmatprep.mubr.f32.mxu0 0.0
    %3665 = vmatmul.mubr.f32.gmra.mrb[0].mxu0 %v3591
    %v3666 = vpop.f32.mrb[0].mxu0
    %v3667 = vadd.f32 0.0, %v3666
    %v3668 = vpop.f32.mrb[0].mxu0
    %3669 = vdwg.mxu0
    %3670 = vrot.lane.b32.xlu0 %v3068, 104
    %v3671 = vpop.permute.xlu0 %3670
    %3672 = vrot.lane.b32.xlu0 %v3070, 104
    %v3673 = vpop.permute.xlu0 %3672
    %3674 = vrot.lane.b32.xlu0 %v3068, 72
    %v3675 = vpop.permute.xlu0 %3674
    %3676 = vrot.lane.b32.xlu0 %v3070, 72
    %v3677 = vpop.permute.xlu0 %3676
    %v3678 = vsel %vm275, %v3671, 0
    %v3680 = vsel %vm275, %v3673, 0
    %v3682 = vsel %vm275, %v3675, 0
    %v3684 = vsel %vm275, %v3677, 0
    %3686 = vmatprep.subr.mxu0 0.0
    %3687 = vmatpush1.xpose.msra.mxu0 %v3682
    %3688 = vmatprep.subr.mxu0 0.0
    %3689 = vmatpush1.xpose.msra.mxu0 %v3684
    %3690 = vmatprep.subr.mxu0 0.0
    %3691 = vmatpush1.xpose.msra.mxu0 0.0
    %3692 = vmatprep.subr.mxu0 0.0
    %3693 = vmatpush1.xpose.msra.mxu0 0.0
    %3694 = vmatprep.subr.mxu0 0.0
    %3695 = vmatpush1.xpose.msra.mxu0 0.0
    %3696 = vmatprep.subr.mxu0 0.0
    %3697 = vmatpush1.xpose.msra.mxu0 0.0
    %3698 = vmatprep.subr.mxu0 0.0
    %3699 = vmatpush1.xpose.msra.mxu0 0.0
    %3700 = vmatprep.subr.mxu0 0.0
    %3701 = vmatpush1.xpose.msra.mxu0 0.0
    %3702 = vmatprep.subr.mxu0 0.0
    %3703 = vmatpush1.xpose.msra.mxu0 0.0
    %3704 = vmatprep.subr.mxu0 0.0
    %3705 = vmatpush1.xpose.msra.mxu0 0.0
    %3706 = vmatprep.subr.mxu0 0.0
    %3707 = vmatpush1.xpose.msra.mxu0 0.0
    %3708 = vmatprep.subr.mxu0 0.0
    %3709 = vmatpush1.xpose.msra.mxu0 0.0
    %3710 = vmatprep.subr.mxu0 0.0
    %3711 = vmatpush1.xpose.msra.mxu0 0.0
    %3712 = vmatprep.subr.mxu0 0.0
    %3713 = vmatpush1.xpose.msra.mxu0 0.0
    %3714 = vmatprep.subr.mxu0 0.0
    %3715 = vmatpush1.xpose.msra.mxu0 0.0
    %3716 = vmatprep.subr.mxu0 0.0
    %3717 = vmatpush1.xpose.msra.mxu0 0.0
    %3718 = vmatprep.subr.mxu0 0.0
    %3719 = vmatpush1.xpose.msra.mxu0 0.0
    %3720 = vmatprep.subr.mxu0 0.0
    %3721 = vmatpush1.xpose.msra.mxu0 0.0
    %3722 = vmatprep.subr.mxu0 0.0
    %3723 = vmatpush1.xpose.msra.mxu0 0.0
    %3724 = vmatprep.subr.mxu0 0.0
    %3725 = vmatpush1.xpose.msra.mxu0 0.0
    %3726 = vmatprep.subr.mxu0 0.0
    %3727 = vmatpush1.xpose.msra.mxu0 0.0
    %3728 = vmatprep.subr.mxu0 0.0
    %3729 = vmatpush1.xpose.msra.mxu0 0.0
    %3730 = vmatprep.subr.mxu0 0.0
    %3731 = vmatpush1.xpose.msra.mxu0 0.0
    %3732 = vmatprep.subr.mxu0 0.0
    %3733 = vmatpush1.xpose.msra.mxu0 0.0
    %3734 = vmatprep.subr.mxu0 0.0
    %3735 = vmatpush1.xpose.msra.mxu0 0.0
    %3736 = vmatprep.subr.mxu0 0.0
    %3737 = vmatpush1.xpose.msra.mxu0 0.0
    %3738 = vmatprep.subr.mxu0 0.0
    %3739 = vmatpush1.xpose.msra.mxu0 0.0
    %3740 = vmatprep.subr.mxu0 0.0
    %3741 = vmatpush1.xpose.msra.mxu0 0.0
    %3742 = vmatprep.subr.mxu0 0.0
    %3743 = vmatpush1.xpose.msra.mxu0 0.0
    %3744 = vmatprep.subr.mxu0 0.0
    %3745 = vmatpush1.xpose.msra.mxu0 0.0
    %3746 = vmatprep.subr.mxu0 0.0
    %3747 = vmatpush1.xpose.msra.mxu0 0.0
    %3748 = vmatprep.subr.mxu0 0.0
    %3749 = vmatpush1.xpose.msra.mxu0 0.0
    %3750 = vmatprep.mubr.f32.mxu0 0.0
    %3751 = vmatmul.mubr.f32.gmra.mrb[0].mxu0 %v3678
    %v3752 = vpop.f32.mrb[0].mxu0
    %v3753 = vadd.f32 0.0, %v3752
    %v3754 = vpop.f32.mrb[0].mxu0
    %3755 = vmatprep.mubr.f32.mxu0 0.0
    %3756 = vmatmul.mubr.f32.gmra.mrb[0].mxu0 %v3680
    %v3757 = vpop.f32.mrb[0].mxu0
    %v3758 = vadd.f32 0.0, %v3757
    %v3759 = vpop.f32.mrb[0].mxu0
    %3760 = vdwg.mxu0
    %v3761 = vsel %vm2319, %v3753, -inf
    %3762 = vmax.xlane.f32.xlu0 %v3761
    %v3763 = vpop.xlane.xlu0 %3762
    %v3764 = vsel %vm2323, %v3758, -inf
    %3765 = vmax.xlane.f32.xlu0 %v3764
    %v3766 = vpop.xlane.xlu0 %3765
    %v3767 = vsub.f32 %v3753, %v3763
    %v3768 = vsub.f32 %v3758, %v3766
    %v3769 = vmul.f32 %v3767, 1.442695
    %v3770 = vpow.pop %v3769
    %v3771 = vmul.f32 %v3768, 1.442695
    %v3772 = vpow.pop %v3771
    %v3773 = vsel %vm2319, %v3770, 0.0
    %3774 = vadd.xlane.f32.xlu0 %v3773
    %v3775 = vpop.xlane.xlu0 %3774
    %v3776 = vsel %vm2323, %v3772, 0.0
    %3777 = vadd.xlane.f32.xlu0 %v3776
    %v3778 = vpop.xlane.xlu0 %3777
    %v3779 = vrcp.pop %v3775
    %v3780 = vrcp.pop %v3778
    %v3781 = vmul.f32 %v3770, %v3779
    %v3782 = vmul.f32 %v3772, %v3780
    %3783 = vrot.lane.b32.xlu0 %v3068, 40
    %v3784 = vpop.permute.xlu0 %3783
    %3785 = vrot.lane.b32.xlu0 %v3070, 40
    %v3786 = vpop.permute.xlu0 %3785
    %v3789 = vsel %vm2319, %v3781, 0
    %v3792 = vsel %vm2319, %v3782, 0
    %v3794 = vsel %vm1886, %v3786, 0
    %3796 = vmatprep.subr.mxu0 0.0
    %3797 = vmatpush1.msra.mxu0 %v3784
    %3798 = vmatprep.subr.mxu0 0.0
    %3799 = vmatpush1.msra.mxu0 %v3794
    %3800 = vmatprep.subr.mxu0 0.0
    %3801 = vmatpush1.msra.mxu0 0.0
    %3802 = vmatprep.subr.mxu0 0.0
    %3803 = vmatpush1.msra.mxu0 0.0
    %3804 = vmatprep.subr.mxu0 0.0
    %3805 = vmatpush1.msra.mxu0 0.0
    %3806 = vmatprep.subr.mxu0 0.0
    %3807 = vmatpush1.msra.mxu0 0.0
    %3808 = vmatprep.subr.mxu0 0.0
    %3809 = vmatpush1.msra.mxu0 0.0
    %3810 = vmatprep.subr.mxu0 0.0
    %3811 = vmatpush1.msra.mxu0 0.0
    %3812 = vmatprep.subr.mxu0 0.0
    %3813 = vmatpush1.msra.mxu0 0.0
    %3814 = vmatprep.subr.mxu0 0.0
    %3815 = vmatpush1.msra.mxu0 0.0
    %3816 = vmatprep.subr.mxu0 0.0
    %3817 = vmatpush1.msra.mxu0 0.0
    %3818 = vmatprep.subr.mxu0 0.0
    %3819 = vmatpush1.msra.mxu0 0.0
    %3820 = vmatprep.subr.mxu0 0.0
    %3821 = vmatpush1.msra.mxu0 0.0
    %3822 = vmatprep.subr.mxu0 0.0
    %3823 = vmatpush1.msra.mxu0 0.0
    %3824 = vmatprep.subr.mxu0 0.0
    %3825 = vmatpush1.msra.mxu0 0.0
    %3826 = vmatprep.subr.mxu0 0.0
    %3827 = vmatpush1.msra.mxu0 0.0
    %3828 = vmatprep.subr.mxu0 0.0
    %3829 = vmatpush1.msra.mxu0 0.0
    %3830 = vmatprep.subr.mxu0 0.0
    %3831 = vmatpush1.msra.mxu0 0.0
    %3832 = vmatprep.subr.mxu0 0.0
    %3833 = vmatpush1.msra.mxu0 0.0
    %3834 = vmatprep.subr.mxu0 0.0
    %3835 = vmatpush1.msra.mxu0 0.0
    %3836 = vmatprep.subr.mxu0 0.0
    %3837 = vmatpush1.msra.mxu0 0.0
    %3838 = vmatprep.subr.mxu0 0.0
    %3839 = vmatpush1.msra.mxu0 0.0
    %3840 = vmatprep.subr.mxu0 0.0
    %3841 = vmatpush1.msra.mxu0 0.0
    %3842 = vmatprep.subr.mxu0 0.0
    %3843 = vmatpush1.msra.mxu0 0.0
    %3844 = vmatprep.subr.mxu0 0.0
    %3845 = vmatpush1.msra.mxu0 0.0
    %3846 = vmatprep.subr.mxu0 0.0
    %3847 = vmatpush1.msra.mxu0 0.0
    %3848 = vmatprep.subr.mxu0 0.0
    %3849 = vmatpush1.msra.mxu0 0.0
    %3850 = vmatprep.subr.mxu0 0.0
    %3851 = vmatpush1.msra.mxu0 0.0
    %3852 = vmatprep.subr.mxu0 0.0
    %3853 = vmatpush1.msra.mxu0 0.0
    %3854 = vmatprep.subr.mxu0 0.0
    %3855 = vmatpush1.msra.mxu0 0.0
    %3856 = vmatprep.subr.mxu0 0.0
    %3857 = vmatpush1.msra.mxu0 0.0
    %3858 = vmatprep.subr.mxu0 0.0
    %3859 = vmatpush1.msra.mxu0 0.0
    %3860 = vmatprep.mubr.f32.mxu0 0.0
    %3861 = vmatmul.mubr.f32.gmra.mrb[0].mxu0 %v3789
    %v3862 = vpop.f32.mrb[0].mxu0
    %v3863 = vadd.f32 0.0, %v3862
    %v3864 = vpop.f32.mrb[0].mxu0
    %3865 = vmatprep.mubr.f32.mxu0 0.0
    %3866 = vmatmul.mubr.f32.gmra.mrb[0].mxu0 %v3792
    %v3867 = vpop.f32.mrb[0].mxu0
    %v3868 = vadd.f32 0.0, %v3867
    %v3869 = vpop.f32.mrb[0].mxu0
    %3870 = vdwg.mxu0
    %3873 = vrot.lane.b32.xlu0 %v3461, 8
    %v3874 = vpop.permute.xlu0 %3873
    %3875 = vrot.lane.b32.xlu0 %v3466, 8
    %v3876 = vpop.permute.xlu0 %3875
    %3881 = vrot.lane.b32.xlu0 %v3662, 16
    %v3882 = vpop.permute.xlu0 %3881
    %3883 = vrot.lane.b32.xlu0 %v3667, 16
    %v3884 = vpop.permute.xlu0 %3883
    %3889 = vrot.lane.b32.xlu0 %v3863, 24
    %v3890 = vpop.permute.xlu0 %3889
    %3891 = vrot.lane.b32.xlu0 %v3868, 24
    %v3892 = vpop.permute.xlu0 %3891
    %v3895 = vsel %vm275, %v3260, %v3874
    %v3896 = vsel %vm275, %v3265, %v3876
    %v3897 = vsel %vm1071, %v3895, %v3882
    %v3898 = vsel %vm1071, %v3896, %v3884
    %v3899 = vsel %vm1074, %v3897, %v3890
    %v3900 = vsel %vm1074, %v3898, %v3892
    %v3903 = vrot.slane %v3899, 2
    %v3904 = vrot.slane %v3900, 2
    %v3905 = vsel %vm1886, %v3903, %v3904
    %v3907 = vsel %vm1886, %v3063, %v3903
    %v3909 = vsel %vm93, %v3062, 0
    %v3912 = vsel %vm93, %v3907, 0
    %v3914 = vsel %vm93, %v3905, 0
    %v3916 = vsel %vm93, %v3904, 0
    %3918 = vmatprep.subr.mxu0 0.0
    %3919 = vmatpush1.msra.mxu0 %v2115
    %3920 = vmatprep.subr.mxu0 0.0
    %3921 = vmatpush1.msra.mxu0 %v2116
    %3922 = vmatprep.subr.mxu0 0.0
    %3923 = vmatpush1.msra.mxu0 %v2117
    %3924 = vmatprep.subr.mxu0 0.0
    %3925 = vmatpush1.msra.mxu0 %v2118
    %3926 = vmatprep.subr.mxu0 0.0
    %3927 = vmatpush1.msra.mxu0 0.0
    %3928 = vmatprep.subr.mxu0 0.0
    %3929 = vmatpush1.msra.mxu0 0.0
    %3930 = vmatprep.subr.mxu0 0.0
    %3931 = vmatpush1.msra.mxu0 0.0
    %3932 = vmatprep.subr.mxu0 0.0
    %3933 = vmatpush1.msra.mxu0 0.0
    %3934 = vmatprep.subr.mxu0 0.0
    %3935 = vmatpush1.msra.mxu0 0.0
    %3936 = vmatprep.subr.mxu0 0.0
    %3937 = vmatpush1.msra.mxu0 0.0
    %3938 = vmatprep.subr.mxu0 0.0
    %3939 = vmatpush1.msra.mxu0 0.0
    %3940 = vmatprep.subr.mxu0 0.0
    %3941 = vmatpush1.msra.mxu0 0.0
    %3942 = vmatprep.subr.mxu0 0.0
    %3943 = vmatpush1.msra.mxu0 0.0
    %3944 = vmatprep.subr.mxu0 0.0
    %3945 = vmatpush1.msra.mxu0 0.0
    %3946 = vmatprep.subr.mxu0 0.0
    %3947 = vmatpush1.msra.mxu0 0.0
    %3948 = vmatprep.subr.mxu0 0.0
    %3949 = vmatpush1.msra.mxu0 0.0
    %3950 = vmatprep.subr.mxu0 0.0
    %3951 = vmatpush1.msra.mxu0 0.0
    %3952 = vmatprep.subr.mxu0 0.0
    %3953 = vmatpush1.msra.mxu0 0.0
    %3954 = vmatprep.subr.mxu0 0.0
    %3955 = vmatpush1.msra.mxu0 0.0
    %3956 = vmatprep.subr.mxu0 0.0
    %3957 = vmatpush1.msra.mxu0 0.0
    %3958 = vmatprep.subr.mxu0 0.0
    %3959 = vmatpush1.msra.mxu0 0.0
    %3960 = vmatprep.subr.mxu0 0.0
    %3961 = vmatpush1.msra.mxu0 0.0
    %3962 = vmatprep.subr.mxu0 0.0
    %3963 = vmatpush1.msra.mxu0 0.0
    %3964 = vmatprep.subr.mxu0 0.0
    %3965 = vmatpush1.msra.mxu0 0.0
    %3966 = vmatprep.subr.mxu0 0.0
    %3967 = vmatpush1.msra.mxu0 0.0
    %3968 = vmatprep.subr.mxu0 0.0
    %3969 = vmatpush1.msra.mxu0 0.0
    %3970 = vmatprep.subr.mxu0 0.0
    %3971 = vmatpush1.msra.mxu0 0.0
    %3972 = vmatprep.subr.mxu0 0.0
    %3973 = vmatpush1.msra.mxu0 0.0
    %3974 = vmatprep.subr.mxu0 0.0
    %3975 = vmatpush1.msra.mxu0 0.0
    %3976 = vmatprep.subr.mxu0 0.0
    %3977 = vmatpush1.msra.mxu0 0.0
    %3978 = vmatprep.subr.mxu0 0.0
    %3979 = vmatpush1.msra.mxu0 0.0
    %3980 = vmatprep.subr.mxu0 0.0
    %3981 = vmatpush1.msra.mxu0 0.0
    %3982 = vmatprep.mubr.f32.mxu0 0.0
    %3983 = vmatmul.mubr.f32.gmra.mrb[0].mxu0 %v3909
    %v3984 = vpop.f32.mrb[0].mxu0
    %v3985 = vadd.f32 0.0, %v3984
    %v3986 = vpop.f32.mrb[0].mxu0
    %3987 = vmatprep.mubr.f32.mxu0 0.0
    %3988 = vmatmul.mubr.f32.gmra.mrb[0].mxu0 %v3912
    %v3989 = vpop.f32.mrb[0].mxu0
    %v3990 = vadd.f32 0.0, %v3989
    %v3991 = vpop.f32.mrb[0].mxu0
    %3992 = vmatprep.mubr.f32.mxu0 0.0
    %3993 = vmatmul.mubr.f32.gmra.mrb[0].mxu0 %v3914
    %v3994 = vpop.f32.mrb[0].mxu0
    %v3995 = vadd.f32 0.0, %v3994
    %v3996 = vpop.f32.mrb[0].mxu0
    %3997 = vmatprep.mubr.f32.mxu0 0.0
    %3998 = vmatmul.mubr.f32.gmra.mrb[0].mxu0 %v3916
    %v3999 = vpop.f32.mrb[0].mxu0
    %v4000 = vadd.f32 0.0, %v3999
    %v4001 = vpop.f32.mrb[0].mxu0
    %4002 = vdwg.mxu0
    %v4003 = vlaneseq
    %v4004 = vshrl.u32 %v4003, 7
    %v4005 = vsub.s32 0, %v4004
    %v4006 = vrot.slane %v2120, %v4005
    %4008 = vrot.lane.b32.xlu0 %v4006, 96
    %v4009 = vpop.permute.xlu0 %4008
    %v4011 = vadd.f32 %v3985, %v4009
    %v4012 = vadd.f32 %v3990, %v4009
    %v4013 = vadd.f32 %v3995, %v4009
    %v4014 = vadd.f32 %v4000, %v4009
    %v4015 = vadd.f32 %v4011, %v2111
    %v4016 = vadd.f32 %v4012, %v2112
    %v4017 = vadd.f32 %v4013, %v2113
    %v4018 = vadd.f32 %v4014, %v2114
    %4023 = vrot.lane.b32.xlu0 %v4015, 32
    %v4024 = vpop.permute.xlu0 %4023
    %4025 = vrot.lane.b32.xlu0 %v4016, 32
    %v4026 = vpop.permute.xlu0 %4025
    %4027 = vrot.lane.b32.xlu0 %v4017, 32
    %v4028 = vpop.permute.xlu0 %4027
    %4029 = vrot.lane.b32.xlu0 %v4018, 32
    %v4030 = vpop.permute.xlu0 %4029
    %v4035 = vsel %vm93, %v4024, 0.0
    %4036 = vadd.xlane.f32.xlu0 %v4035
    %v4037 = vpop.xlane.xlu0 %4036
    %v4038 = vsel %vm93, %v4026, 0.0
    %4039 = vadd.xlane.f32.xlu0 %v4038
    %v4040 = vpop.xlane.xlu0 %4039
    %v4041 = vsel %vm93, %v4028, 0.0
    %4042 = vadd.xlane.f32.xlu0 %v4041
    %v4043 = vpop.xlane.xlu0 %4042
    %v4044 = vsel %vm2040, %v4030, 0.0
    %4045 = vadd.xlane.f32.xlu0 %v4044
    %v4046 = vpop.xlane.xlu0 %4045
    %v4047 = vmul.f32 %v4037, %v2044
    %v4048 = vmul.f32 %v4040, %v2044
    %v4049 = vmul.f32 %v4043, %v2044
    %v4050 = vmul.f32 %v4046, %v2044
    %v4051 = vsub.f32 %v4015, %v4047
    %v4052 = vsub.f32 %v4016, %v4048
    %v4053 = vsub.f32 %v4017, %v4049
    %v4054 = vsub.f32 %v4018, %v4050
    %v4055 = vmul.f32 %v4051, %v4051
    %v4056 = vmul.f32 %v4052, %v4052
    %v4057 = vmul.f32 %v4053, %v4053
    %v4058 = vmul.f32 %v4054, %v4054
    %4063 = vrot.lane.b32.xlu0 %v4055, 32
    %v4064 = vpop.permute.xlu0 %4063
    %4065 = vrot.lane.b32.xlu0 %v4056, 32
    %v4066 = vpop.permute.xlu0 %4065
    %4067 = vrot.lane.b32.xlu0 %v4057, 32
    %v4068 = vpop.permute.xlu0 %4067
    %4069 = vrot.lane.b32.xlu0 %v4058, 32
    %v4070 = vpop.permute.xlu0 %4069
    %v4075 = vsel %vm93, %v4064, 0.0
    %4076 = vadd.xlane.f32.xlu0 %v4075
    %v4077 = vpop.xlane.xlu0 %4076
    %v4078 = vsel %vm93, %v4066, 0.0
    %4079 = vadd.xlane.f32.xlu0 %v4078
    %v4080 = vpop.xlane.xlu0 %4079
    %v4081 = vsel %vm93, %v4068, 0.0
    %4082 = vadd.xlane.f32.xlu0 %v4081
    %v4083 = vpop.xlane.xlu0 %4082
    %v4084 = vsel %vm2040, %v4070, 0.0
    %4085 = vadd.xlane.f32.xlu0 %v4084
    %v4086 = vpop.xlane.xlu0 %4085
    %v4087 = vmul.f32 %v4077, %v2044
    %v4088 = vmul.f32 %v4080, %v2044
    %v4089 = vmul.f32 %v4083, %v2044
    %v4090 = vmul.f32 %v4086, %v2044
    %v4091 = vadd.f32 %v4087, 1e-05
    %v4092 = vadd.f32 %v4088, 1e-05
    %v4093 = vadd.f32 %v4089, 1e-05
    %v4094 = vadd.f32 %v4090, 1e-05
    %v4095 = vrsqrt.pop %v4091
    %v4096 = vrsqrt.pop %v4092
    %v4097 = vrsqrt.pop %v4093
    %v4098 = vrsqrt.pop %v4094
    %v4099 = vmul.f32 %v4051, %v4095
    %v4100 = vmul.f32 %v4052, %v4096
    %v4101 = vmul.f32 %v4053, %v4097
    %v4102 = vmul.f32 %v4054, %v4098
    %4103 = vrot.lane.b32.xlu0 %v4006, 64
    %v4104 = vpop.permute.xlu0 %4103
    %v4106 = vmul.f32 %v4099, %v4104
    %v4107 = vmul.f32 %v4100, %v4104
    %v4108 = vmul.f32 %v4101, %v4104
    %v4109 = vmul.f32 %v4102, %v4104
    %4110 = vrot.lane.b32.xlu0 %v4006, 32
    %v4111 = vpop.permute.xlu0 %4110
    %v4113 = vadd.f32 %v4106, %v4111
    %v4114 = vadd.f32 %v4107, %v4111
    %v4115 = vadd.f32 %v4108, %v4111
    %v4116 = vadd.f32 %v4109, %v4111
    %v4117 = vld [vmem:[#allocation8 + $0x60] sm:$0xff]
    %v4118 = vld [vmem:[#allocation8 + $0x68] sm:$0xff]
    %v4119 = vld [vmem:[#allocation8 + $0x70] sm:$0xff]
    %v4120 = vld [vmem:[#allocation8 + $0x78] sm:$0xff]
    %v4121 = vld [vmem:[#allocation8 + $0x80] sm:$0x1]
    %v4122 = vld [vmem:[#allocation8 + $0x88] sm:$0x1]
    %v4123 = vlaneseq
    %v4124 = vshrl.u32 %v4123, 7
    %v4125 = vsub.s32 0, %v4124
    %v4126 = vrot.slane %v4121, %v4125
    %4131 = vrot.lane.b32.xlu0 %v4113, 32
    %v4132 = vpop.permute.xlu0 %4131
    %4133 = vrot.lane.b32.xlu0 %v4114, 32
    %v4134 = vpop.permute.xlu0 %4133
    %4135 = vrot.lane.b32.xlu0 %v4115, 32
    %v4136 = vpop.permute.xlu0 %4135
    %4137 = vrot.lane.b32.xlu0 %v4116, 32
    %v4138 = vpop.permute.xlu0 %4137
    %v4139 = vsel %vm93, %v4132, 0
    %v4141 = vsel %vm93, %v4134, 0
    %v4143 = vsel %vm93, %v4136, 0
    %v4145 = vsel %vm93, %v4138, 0
    %4147 = vmatprep.subr.mxu0 0.0
    %4148 = vmatpush1.msra.mxu0 %v4117
    %4149 = vmatprep.subr.mxu0 0.0
    %4150 = vmatpush1.msra.mxu0 %v4118
    %4151 = vmatprep.subr.mxu0 0.0
    %4152 = vmatpush1.msra.mxu0 %v4119
    %4153 = vmatprep.subr.mxu0 0.0
    %4154 = vmatpush1.msra.mxu0 %v4120
    %4155 = vmatprep.subr.mxu0 0.0
    %4156 = vmatpush1.msra.mxu0 0.0
    %4157 = vmatprep.subr.mxu0 0.0
    %4158 = vmatpush1.msra.mxu0 0.0
    %4159 = vmatprep.subr.mxu0 0.0
    %4160 = vmatpush1.msra.mxu0 0.0
    %4161 = vmatprep.subr.mxu0 0.0
    %4162 = vmatpush1.msra.mxu0 0.0
    %4163 = vmatprep.subr.mxu0 0.0
    %4164 = vmatpush1.msra.mxu0 0.0
    %4165 = vmatprep.subr.mxu0 0.0
    %4166 = vmatpush1.msra.mxu0 0.0
    %4167 = vmatprep.subr.mxu0 0.0
    %4168 = vmatpush1.msra.mxu0 0.0
    %4169 = vmatprep.subr.mxu0 0.0
    %4170 = vmatpush1.msra.mxu0 0.0
    %4171 = vmatprep.subr.mxu0 0.0
    %4172 = vmatpush1.msra.mxu0 0.0
    %4173 = vmatprep.subr.mxu0 0.0
    %4174 = vmatpush1.msra.mxu0 0.0
    %4175 = vmatprep.subr.mxu0 0.0
    %4176 = vmatpush1.msra.mxu0 0.0
    %4177 = vmatprep.subr.mxu0 0.0
    %4178 = vmatpush1.msra.mxu0 0.0
    %4179 = vmatprep.subr.mxu0 0.0
    %4180 = vmatpush1.msra.mxu0 0.0
    %4181 = vmatprep.subr.mxu0 0.0
    %4182 = vmatpush1.msra.mxu0 0.0
    %4183 = vmatprep.subr.mxu0 0.0
    %4184 = vmatpush1.msra.mxu0 0.0
    %4185 = vmatprep.subr.mxu0 0.0
    %4186 = vmatpush1.msra.mxu0 0.0
    %4187 = vmatprep.subr.mxu0 0.0
    %4188 = vmatpush1.msra.mxu0 0.0
    %4189 = vmatprep.subr.mxu0 0.0
    %4190 = vmatpush1.msra.mxu0 0.0
    %4191 = vmatprep.subr.mxu0 0.0
    %4192 = vmatpush1.msra.mxu0 0.0
    %4193 = vmatprep.subr.mxu0 0.0
    %4194 = vmatpush1.msra.mxu0 0.0
    %4195 = vmatprep.subr.mxu0 0.0
    %4196 = vmatpush1.msra.mxu0 0.0
    %4197 = vmatprep.subr.mxu0 0.0
    %4198 = vmatpush1.msra.mxu0 0.0
    %4199 = vmatprep.subr.mxu0 0.0
    %4200 = vmatpush1.msra.mxu0 0.0
    %4201 = vmatprep.subr.mxu0 0.0
    %4202 = vmatpush1.msra.mxu0 0.0
    %4203 = vmatprep.subr.mxu0 0.0
    %4204 = vmatpush1.msra.mxu0 0.0
    %4205 = vmatprep.subr.mxu0 0.0
    %4206 = vmatpush1.msra.mxu0 0.0
    %4207 = vmatprep.subr.mxu0 0.0
    %4208 = vmatpush1.msra.mxu0 0.0
    %4209 = vmatprep.subr.mxu0 0.0
    %4210 = vmatpush1.msra.mxu0 0.0
    %4211 = vmatprep.mubr.f32.mxu0 0.0
    %4212 = vmatmul.mubr.f32.gmra.mrb[0].mxu0 %v4139
    %v4213 = vpop.f32.mrb[0].mxu0
    %v4214 = vadd.f32 %v4126, %v4213
    %v4215 = vpop.f32.mrb[0].mxu0
    %4216 = vmatprep.mubr.f32.mxu0 0.0
    %4217 = vmatmul.mubr.f32.gmra.mrb[0].mxu0 %v4141
    %v4218 = vpop.f32.mrb[0].mxu0
    %v4219 = vadd.f32 %v4126, %v4218
    %v4220 = vpop.f32.mrb[0].mxu0
    %4221 = vmatprep.mubr.f32.mxu0 0.0
    %4222 = vmatmul.mubr.f32.gmra.mrb[0].mxu0 %v4143
    %v4223 = vpop.f32.mrb[0].mxu0
    %v4224 = vadd.f32 %v4126, %v4223
    %v4225 = vpop.f32.mrb[0].mxu0
    %4226 = vmatprep.mubr.f32.mxu0 0.0
    %4227 = vmatmul.mubr.f32.gmra.mrb[0].mxu0 %v4145
    %v4228 = vpop.f32.mrb[0].mxu0
    %v4229 = vadd.f32 %v4126, %v4228
    %v4230 = vpop.f32.mrb[0].mxu0
    %4231 = vdwg.mxu0
    %v4233 = vsel %vm93, %v77, 0
    %v4236 = vsel %vm93, %v78, 0
    %v4239 = vsel %vm93, %v79, 0
    %v4242 = vsel %vm93, %v80, 0
    %4244 = vmatprep.subr.mxu0 0.0
    %4245 = vmatpush1.msra.mxu0 %v4117
    %4246 = vmatprep.subr.mxu0 0.0
    %4247 = vmatpush1.msra.mxu0 %v4118
    %4248 = vmatprep.subr.mxu0 0.0
    %4249 = vmatpush1.msra.mxu0 %v4119
    %4250 = vmatprep.subr.mxu0 0.0
    %4251 = vmatpush1.msra.mxu0 %v4120
    %4252 = vmatprep.subr.mxu0 0.0
    %4253 = vmatpush1.msra.mxu0 0.0
    %4254 = vmatprep.subr.mxu0 0.0
    %4255 = vmatpush1.msra.mxu0 0.0
    %4256 = vmatprep.subr.mxu0 0.0
    %4257 = vmatpush1.msra.mxu0 0.0
    %4258 = vmatprep.subr.mxu0 0.0
    %4259 = vmatpush1.msra.mxu0 0.0
    %4260 = vmatprep.subr.mxu0 0.0
    %4261 = vmatpush1.msra.mxu0 0.0
    %4262 = vmatprep.subr.mxu0 0.0
    %4263 = vmatpush1.msra.mxu0 0.0
    %4264 = vmatprep.subr.mxu0 0.0
    %4265 = vmatpush1.msra.mxu0 0.0
    %4266 = vmatprep.subr.mxu0 0.0
    %4267 = vmatpush1.msra.mxu0 0.0
    %4268 = vmatprep.subr.mxu0 0.0
    %4269 = vmatpush1.msra.mxu0 0.0
    %4270 = vmatprep.subr.mxu0 0.0
    %4271 = vmatpush1.msra.mxu0 0.0
    %4272 = vmatprep.subr.mxu0 0.0
    %4273 = vmatpush1.msra.mxu0 0.0
    %4274 = vmatprep.subr.mxu0 0.0
    %4275 = vmatpush1.msra.mxu0 0.0
    %4276 = vmatprep.subr.mxu0 0.0
    %4277 = vmatpush1.msra.mxu0 0.0
    %4278 = vmatprep.subr.mxu0 0.0
    %4279 = vmatpush1.msra.mxu0 0.0
    %4280 = vmatprep.subr.mxu0 0.0
    %4281 = vmatpush1.msra.mxu0 0.0
    %4282 = vmatprep.subr.mxu0 0.0
    %4283 = vmatpush1.msra.mxu0 0.0
    %4284 = vmatprep.subr.mxu0 0.0
    %4285 = vmatpush1.msra.mxu0 0.0
    %4286 = vmatprep.subr.mxu0 0.0
    %4287 = vmatpush1.msra.mxu0 0.0
    %4288 = vmatprep.subr.mxu0 0.0
    %4289 = vmatpush1.msra.mxu0 0.0
    %4290 = vmatprep.subr.mxu0 0.0
    %4291 = vmatpush1.msra.mxu0 0.0
    %4292 = vmatprep.subr.mxu0 0.0
    %4293 = vmatpush1.msra.mxu0 0.0
    %4294 = vmatprep.subr.mxu0 0.0
    %4295 = vmatpush1.msra.mxu0 0.0
    %4296 = vmatprep.subr.mxu0 0.0
    %4297 = vmatpush1.msra.mxu0 0.0
    %4298 = vmatprep.subr.mxu0 0.0
    %4299 = vmatpush1.msra.mxu0 0.0
    %4300 = vmatprep.subr.mxu0 0.0
    %4301 = vmatpush1.msra.mxu0 0.0
    %4302 = vmatprep.subr.mxu0 0.0
    %4303 = vmatpush1.msra.mxu0 0.0
    %4304 = vmatprep.subr.mxu0 0.0
    %4305 = vmatpush1.msra.mxu0 0.0
    %4306 = vmatprep.subr.mxu0 0.0
    %4307 = vmatpush1.msra.mxu0 0.0
    %4308 = vmatprep.mubr.f32.mxu0 0.0
    %4309 = vmatmul.mubr.f32.gmra.mrb[0].mxu0 %v4233
    %v4310 = vpop.f32.mrb[0].mxu0
    %v4311 = vadd.f32 %v4126, %v4310
    %v4312 = vpop.f32.mrb[0].mxu0
    %4313 = vmatprep.mubr.f32.mxu0 0.0
    %4314 = vmatmul.mubr.f32.gmra.mrb[0].mxu0 %v4236
    %v4315 = vpop.f32.mrb[0].mxu0
    %v4316 = vadd.f32 %v4126, %v4315
    %v4317 = vpop.f32.mrb[0].mxu0
    %4318 = vmatprep.mubr.f32.mxu0 0.0
    %4319 = vmatmul.mubr.f32.gmra.mrb[0].mxu0 %v4239
    %v4320 = vpop.f32.mrb[0].mxu0
    %v4321 = vadd.f32 %v4126, %v4320
    %v4322 = vpop.f32.mrb[0].mxu0
    %4323 = vmatprep.mubr.f32.mxu0 0.0
    %4324 = vmatmul.mubr.f32.gmra.mrb[0].mxu0 %v4242
    %v4325 = vpop.f32.mrb[0].mxu0
    %v4326 = vadd.f32 %v4126, %v4325
    %v4327 = vpop.f32.mrb[0].mxu0
    %4328 = vdwg.mxu0
    %4331 = vrot.lane.b32.xlu0 %v4311, 96
    %v4332 = vpop.permute.xlu0 %4331
    %4333 = vrot.lane.b32.xlu0 %v4316, 96
    %v4334 = vpop.permute.xlu0 %4333
    %v4336 = vsel %vm275, %v4214, 0
    %v4339 = vsel %vm275, %v4219, 0
    %v4341 = vsel %vm275, %v4332, 0
    %v4343 = vsel %vm275, %v4334, 0
    %4345 = vmatprep.subr.mxu0 0.0
    %4346 = vmatpush1.xpose.msra.mxu0 %v4341
    %4347 = vmatprep.subr.mxu0 0.0
    %4348 = vmatpush1.xpose.msra.mxu0 %v4343
    %4349 = vmatprep.subr.mxu0 0.0
    %4350 = vmatpush1.xpose.msra.mxu0 0.0
    %4351 = vmatprep.subr.mxu0 0.0
    %4352 = vmatpush1.xpose.msra.mxu0 0.0
    %4353 = vmatprep.subr.mxu0 0.0
    %4354 = vmatpush1.xpose.msra.mxu0 0.0
    %4355 = vmatprep.subr.mxu0 0.0
    %4356 = vmatpush1.xpose.msra.mxu0 0.0
    %4357 = vmatprep.subr.mxu0 0.0
    %4358 = vmatpush1.xpose.msra.mxu0 0.0
    %4359 = vmatprep.subr.mxu0 0.0
    %4360 = vmatpush1.xpose.msra.mxu0 0.0
    %4361 = vmatprep.subr.mxu0 0.0
    %4362 = vmatpush1.xpose.msra.mxu0 0.0
    %4363 = vmatprep.subr.mxu0 0.0
    %4364 = vmatpush1.xpose.msra.mxu0 0.0
    %4365 = vmatprep.subr.mxu0 0.0
    %4366 = vmatpush1.xpose.msra.mxu0 0.0
    %4367 = vmatprep.subr.mxu0 0.0
    %4368 = vmatpush1.xpose.msra.mxu0 0.0
    %4369 = vmatprep.subr.mxu0 0.0
    %4370 = vmatpush1.xpose.msra.mxu0 0.0
    %4371 = vmatprep.subr.mxu0 0.0
    %4372 = vmatpush1.xpose.msra.mxu0 0.0
    %4373 = vmatprep.subr.mxu0 0.0
    %4374 = vmatpush1.xpose.msra.mxu0 0.0
    %4375 = vmatprep.subr.mxu0 0.0
    %4376 = vmatpush1.xpose.msra.mxu0 0.0
    %4377 = vmatprep.subr.mxu0 0.0
    %4378 = vmatpush1.xpose.msra.mxu0 0.0
    %4379 = vmatprep.subr.mxu0 0.0
    %4380 = vmatpush1.xpose.msra.mxu0 0.0
    %4381 = vmatprep.subr.mxu0 0.0
    %4382 = vmatpush1.xpose.msra.mxu0 0.0
    %4383 = vmatprep.subr.mxu0 0.0
    %4384 = vmatpush1.xpose.msra.mxu0 0.0
    %4385 = vmatprep.subr.mxu0 0.0
    %4386 = vmatpush1.xpose.msra.mxu0 0.0
    %4387 = vmatprep.subr.mxu0 0.0
    %4388 = vmatpush1.xpose.msra.mxu0 0.0
    %4389 = vmatprep.subr.mxu0 0.0
    %4390 = vmatpush1.xpose.msra.mxu0 0.0
    %4391 = vmatprep.subr.mxu0 0.0
    %4392 = vmatpush1.xpose.msra.mxu0 0.0
    %4393 = vmatprep.subr.mxu0 0.0
    %4394 = vmatpush1.xpose.msra.mxu0 0.0
    %4395 = vmatprep.subr.mxu0 0.0
    %4396 = vmatpush1.xpose.msra.mxu0 0.0
    %4397 = vmatprep.subr.mxu0 0.0
    %4398 = vmatpush1.xpose.msra.mxu0 0.0
    %4399 = vmatprep.subr.mxu0 0.0
    %4400 = vmatpush1.xpose.msra.mxu0 0.0
    %4401 = vmatprep.subr.mxu0 0.0
    %4402 = vmatpush1.xpose.msra.mxu0 0.0
    %4403 = vmatprep.subr.mxu0 0.0
    %4404 = vmatpush1.xpose.msra.mxu0 0.0
    %4405 = vmatprep.subr.mxu0 0.0
    %4406 = vmatpush1.xpose.msra.mxu0 0.0
    %4407 = vmatprep.subr.mxu0 0.0
    %4408 = vmatpush1.xpose.msra.mxu0 0.0
    %4409 = vmatprep.mubr.f32.mxu0 0.0
    %4410 = vmatmul.mubr.f32.gmra.mrb[0].mxu0 %v4336
    %v4411 = vpop.f32.mrb[0].mxu0
    %v4412 = vadd.f32 0.0, %v4411
    %v4413 = vpop.f32.mrb[0].mxu0
    %4414 = vmatprep.mubr.f32.mxu0 0.0
    %4415 = vmatmul.mubr.f32.gmra.mrb[0].mxu0 %v4339
    %v4416 = vpop.f32.mrb[0].mxu0
    %v4417 = vadd.f32 0.0, %v4416
    %v4418 = vpop.f32.mrb[0].mxu0
    %4419 = vdwg.mxu0
    %v4420 = vsel %vm1071, %v4412, -inf
    %4421 = vmax.xlane.f32.xlu0 %v4420
    %v4422 = vpop.xlane.xlu0 %4421
    %vm4423 = vcmask 128000
    %v4424 = vsel %vm4423, %v4417, -inf
    %4425 = vmax.xlane.f32.xlu0 %v4424
    %v4426 = vpop.xlane.xlu0 %4425
    %v4427 = vsub.f32 %v4412, %v4422
    %v4428 = vsub.f32 %v4417, %v4426
    %v4429 = vmul.f32 %v4427, 1.442695
    %v4430 = vpow.pop %v4429
    %v4431 = vmul.f32 %v4428, 1.442695
    %v4432 = vpow.pop %v4431
    %v4433 = vsel %vm1071, %v4430, 0.0
    %4434 = vadd.xlane.f32.xlu0 %v4433
    %v4435 = vpop.xlane.xlu0 %4434
    %v4436 = vsel %vm4423, %v4432, 0.0
    %4437 = vadd.xlane.f32.xlu0 %v4436
    %v4438 = vpop.xlane.xlu0 %4437
    %v4439 = vrcp.pop %v4435
    %v4440 = vrcp.pop %v4438
    %v4441 = vmul.f32 %v4430, %v4439
    %v4442 = vmul.f32 %v4432, %v4440
    %4443 = vrot.lane.b32.xlu0 %v4311, 64
    %v4444 = vpop.permute.xlu0 %4443
    %4445 = vrot.lane.b32.xlu0 %v4316, 64
    %v4446 = vpop.permute.xlu0 %4445
    %v4450 = vsel %vm1071, %v4441, 0
    %v4453 = vsel %vm1071, %v4442, 0
    %4455 = vmatprep.subr.mxu0 0.0
    %4456 = vmatpush1.msra.mxu0 %v4444
    %4457 = vmatprep.subr.mxu0 0.0
    %4458 = vmatpush1.msra.mxu0 %v4446
    %4459 = vmatprep.subr.mxu0 0.0
    %4460 = vmatpush1.msra.mxu0 0.0
    %4461 = vmatprep.subr.mxu0 0.0
    %4462 = vmatpush1.msra.mxu0 0.0
    %4463 = vmatprep.subr.mxu0 0.0
    %4464 = vmatpush1.msra.mxu0 0.0
    %4465 = vmatprep.subr.mxu0 0.0
    %4466 = vmatpush1.msra.mxu0 0.0
    %4467 = vmatprep.subr.mxu0 0.0
    %4468 = vmatpush1.msra.mxu0 0.0
    %4469 = vmatprep.subr.mxu0 0.0
    %4470 = vmatpush1.msra.mxu0 0.0
    %4471 = vmatprep.subr.mxu0 0.0
    %4472 = vmatpush1.msra.mxu0 0.0
    %4473 = vmatprep.subr.mxu0 0.0
    %4474 = vmatpush1.msra.mxu0 0.0
    %4475 = vmatprep.subr.mxu0 0.0
    %4476 = vmatpush1.msra.mxu0 0.0
    %4477 = vmatprep.subr.mxu0 0.0
    %4478 = vmatpush1.msra.mxu0 0.0
    %4479 = vmatprep.subr.mxu0 0.0
    %4480 = vmatpush1.msra.mxu0 0.0
    %4481 = vmatprep.subr.mxu0 0.0
    %4482 = vmatpush1.msra.mxu0 0.0
    %4483 = vmatprep.subr.mxu0 0.0
    %4484 = vmatpush1.msra.mxu0 0.0
    %4485 = vmatprep.subr.mxu0 0.0
    %4486 = vmatpush1.msra.mxu0 0.0
    %4487 = vmatprep.subr.mxu0 0.0
    %4488 = vmatpush1.msra.mxu0 0.0
    %4489 = vmatprep.subr.mxu0 0.0
    %4490 = vmatpush1.msra.mxu0 0.0
    %4491 = vmatprep.subr.mxu0 0.0
    %4492 = vmatpush1.msra.mxu0 0.0
    %4493 = vmatprep.subr.mxu0 0.0
    %4494 = vmatpush1.msra.mxu0 0.0
    %4495 = vmatprep.subr.mxu0 0.0
    %4496 = vmatpush1.msra.mxu0 0.0
    %4497 = vmatprep.subr.mxu0 0.0
    %4498 = vmatpush1.msra.mxu0 0.0
    %4499 = vmatprep.subr.mxu0 0.0
    %4500 = vmatpush1.msra.mxu0 0.0
    %4501 = vmatprep.subr.mxu0 0.0
    %4502 = vmatpush1.msra.mxu0 0.0
    %4503 = vmatprep.subr.mxu0 0.0
    %4504 = vmatpush1.msra.mxu0 0.0
    %4505 = vmatprep.subr.mxu0 0.0
    %4506 = vmatpush1.msra.mxu0 0.0
    %4507 = vmatprep.subr.mxu0 0.0
    %4508 = vmatpush1.msra.mxu0 0.0
    %4509 = vmatprep.subr.mxu0 0.0
    %4510 = vmatpush1.msra.mxu0 0.0
    %4511 = vmatprep.subr.mxu0 0.0
    %4512 = vmatpush1.msra.mxu0 0.0
    %4513 = vmatprep.subr.mxu0 0.0
    %4514 = vmatpush1.msra.mxu0 0.0
    %4515 = vmatprep.subr.mxu0 0.0
    %4516 = vmatpush1.msra.mxu0 0.0
    %4517 = vmatprep.subr.mxu0 0.0
    %4518 = vmatpush1.msra.mxu0 0.0
    %4519 = vmatprep.mubr.f32.mxu0 0.0
    %4520 = vmatmul.mubr.f32.gmra.mrb[0].mxu0 %v4450
    %v4521 = vpop.f32.mrb[0].mxu0
    %v4522 = vadd.f32 0.0, %v4521
    %v4523 = vpop.f32.mrb[0].mxu0
    %4524 = vmatprep.mubr.f32.mxu0 0.0
    %4525 = vmatmul.mubr.f32.gmra.mrb[0].mxu0 %v4453
    %v4526 = vpop.f32.mrb[0].mxu0
    %v4527 = vadd.f32 0.0, %v4526
    %v4528 = vpop.f32.mrb[0].mxu0
    %4529 = vdwg.mxu0
    %4530 = vrot.lane.b32.xlu0 %v4214, 120
    %v4531 = vpop.permute.xlu0 %4530
    %4532 = vrot.lane.b32.xlu0 %v4219, 120
    %v4533 = vpop.permute.xlu0 %4532
    %4534 = vrot.lane.b32.xlu0 %v4311, 88
    %v4535 = vpop.permute.xlu0 %4534
    %4536 = vrot.lane.b32.xlu0 %v4316, 88
    %v4537 = vpop.permute.xlu0 %4536
    %v4538 = vsel %vm275, %v4531, 0
    %v4540 = vsel %vm275, %v4533, 0
    %v4542 = vsel %vm275, %v4535, 0
    %v4544 = vsel %vm275, %v4537, 0
    %4546 = vmatprep.subr.mxu0 0.0
    %4547 = vmatpush1.xpose.msra.mxu0 %v4542
    %4548 = vmatprep.subr.mxu0 0.0
    %4549 = vmatpush1.xpose.msra.mxu0 %v4544
    %4550 = vmatprep.subr.mxu0 0.0
    %4551 = vmatpush1.xpose.msra.mxu0 0.0
    %4552 = vmatprep.subr.mxu0 0.0
    %4553 = vmatpush1.xpose.msra.mxu0 0.0
    %4554 = vmatprep.subr.mxu0 0.0
    %4555 = vmatpush1.xpose.msra.mxu0 0.0
    %4556 = vmatprep.subr.mxu0 0.0
    %4557 = vmatpush1.xpose.msra.mxu0 0.0
    %4558 = vmatprep.subr.mxu0 0.0
    %4559 = vmatpush1.xpose.msra.mxu0 0.0
    %4560 = vmatprep.subr.mxu0 0.0
    %4561 = vmatpush1.xpose.msra.mxu0 0.0
    %4562 = vmatprep.subr.mxu0 0.0
    %4563 = vmatpush1.xpose.msra.mxu0 0.0
    %4564 = vmatprep.subr.mxu0 0.0
    %4565 = vmatpush1.xpose.msra.mxu0 0.0
    %4566 = vmatprep.subr.mxu0 0.0
    %4567 = vmatpush1.xpose.msra.mxu0 0.0
    %4568 = vmatprep.subr.mxu0 0.0
    %4569 = vmatpush1.xpose.msra.mxu0 0.0
    %4570 = vmatprep.subr.mxu0 0.0
    %4571 = vmatpush1.xpose.msra.mxu0 0.0
    %4572 = vmatprep.subr.mxu0 0.0
    %4573 = vmatpush1.xpose.msra.mxu0 0.0
    %4574 = vmatprep.subr.mxu0 0.0
    %4575 = vmatpush1.xpose.msra.mxu0 0.0
    %4576 = vmatprep.subr.mxu0 0.0
    %4577 = vmatpush1.xpose.msra.mxu0 0.0
    %4578 = vmatprep.subr.mxu0 0.0
    %4579 = vmatpush1.xpose.msra.mxu0 0.0
    %4580 = vmatprep.subr.mxu0 0.0
    %4581 = vmatpush1.xpose.msra.mxu0 0.0
    %4582 = vmatprep.subr.mxu0 0.0
    %4583 = vmatpush1.xpose.msra.mxu0 0.0
    %4584 = vmatprep.subr.mxu0 0.0
    %4585 = vmatpush1.xpose.msra.mxu0 0.0
    %4586 = vmatprep.subr.mxu0 0.0
    %4587 = vmatpush1.xpose.msra.mxu0 0.0
    %4588 = vmatprep.subr.mxu0 0.0
    %4589 = vmatpush1.xpose.msra.mxu0 0.0
    %4590 = vmatprep.subr.mxu0 0.0
    %4591 = vmatpush1.xpose.msra.mxu0 0.0
    %4592 = vmatprep.subr.mxu0 0.0
    %4593 = vmatpush1.xpose.msra.mxu0 0.0
    %4594 = vmatprep.subr.mxu0 0.0
    %4595 = vmatpush1.xpose.msra.mxu0 0.0
    %4596 = vmatprep.subr.mxu0 0.0
    %4597 = vmatpush1.xpose.msra.mxu0 0.0
    %4598 = vmatprep.subr.mxu0 0.0
    %4599 = vmatpush1.xpose.msra.mxu0 0.0
    %4600 = vmatprep.subr.mxu0 0.0
    %4601 = vmatpush1.xpose.msra.mxu0 0.0
    %4602 = vmatprep.subr.mxu0 0.0
    %4603 = vmatpush1.xpose.msra.mxu0 0.0
    %4604 = vmatprep.subr.mxu0 0.0
    %4605 = vmatpush1.xpose.msra.mxu0 0.0
    %4606 = vmatprep.subr.mxu0 0.0
    %4607 = vmatpush1.xpose.msra.mxu0 0.0
    %4608 = vmatprep.subr.mxu0 0.0
    %4609 = vmatpush1.xpose.msra.mxu0 0.0
    %4610 = vmatprep.mubr.f32.mxu0 0.0
    %4611 = vmatmul.mubr.f32.gmra.mrb[0].mxu0 %v4538
    %v4612 = vpop.f32.mrb[0].mxu0
    %v4613 = vadd.f32 0.0, %v4612
    %v4614 = vpop.f32.mrb[0].mxu0
    %4615 = vmatprep.mubr.f32.mxu0 0.0
    %4616 = vmatmul.mubr.f32.gmra.mrb[0].mxu0 %v4540
    %v4617 = vpop.f32.mrb[0].mxu0
    %v4618 = vadd.f32 0.0, %v4617
    %v4619 = vpop.f32.mrb[0].mxu0
    %4620 = vdwg.mxu0
    %v4621 = vsel %vm1071, %v4613, -inf
    %4622 = vmax.xlane.f32.xlu0 %v4621
    %v4623 = vpop.xlane.xlu0 %4622
    %v4624 = vsel %vm4423, %v4618, -inf
    %4625 = vmax.xlane.f32.xlu0 %v4624
    %v4626 = vpop.xlane.xlu0 %4625
    %v4627 = vsub.f32 %v4613, %v4623
    %v4628 = vsub.f32 %v4618, %v4626
    %v4629 = vmul.f32 %v4627, 1.442695
    %v4630 = vpow.pop %v4629
    %v4631 = vmul.f32 %v4628, 1.442695
    %v4632 = vpow.pop %v4631
    %v4633 = vsel %vm1071, %v4630, 0.0
    %4634 = vadd.xlane.f32.xlu0 %v4633
    %v4635 = vpop.xlane.xlu0 %4634
    %v4636 = vsel %vm4423, %v4632, 0.0
    %4637 = vadd.xlane.f32.xlu0 %v4636
    %v4638 = vpop.xlane.xlu0 %4637
    %v4639 = vrcp.pop %v4635
    %v4640 = vrcp.pop %v4638
    %v4641 = vmul.f32 %v4630, %v4639
    %v4642 = vmul.f32 %v4632, %v4640
    %4643 = vrot.lane.b32.xlu0 %v4311, 56
    %v4644 = vpop.permute.xlu0 %4643
    %4645 = vrot.lane.b32.xlu0 %v4316, 56
    %v4646 = vpop.permute.xlu0 %4645
    %v4650 = vsel %vm1071, %v4641, 0
    %v4653 = vsel %vm1071, %v4642, 0
    %4655 = vmatprep.subr.mxu0 0.0
    %4656 = vmatpush1.msra.mxu0 %v4644
    %4657 = vmatprep.subr.mxu0 0.0
    %4658 = vmatpush1.msra.mxu0 %v4646
    %4659 = vmatprep.subr.mxu0 0.0
    %4660 = vmatpush1.msra.mxu0 0.0
    %4661 = vmatprep.subr.mxu0 0.0
    %4662 = vmatpush1.msra.mxu0 0.0
    %4663 = vmatprep.subr.mxu0 0.0
    %4664 = vmatpush1.msra.mxu0 0.0
    %4665 = vmatprep.subr.mxu0 0.0
    %4666 = vmatpush1.msra.mxu0 0.0
    %4667 = vmatprep.subr.mxu0 0.0
    %4668 = vmatpush1.msra.mxu0 0.0
    %4669 = vmatprep.subr.mxu0 0.0
    %4670 = vmatpush1.msra.mxu0 0.0
    %4671 = vmatprep.subr.mxu0 0.0
    %4672 = vmatpush1.msra.mxu0 0.0
    %4673 = vmatprep.subr.mxu0 0.0
    %4674 = vmatpush1.msra.mxu0 0.0
    %4675 = vmatprep.subr.mxu0 0.0
    %4676 = vmatpush1.msra.mxu0 0.0
    %4677 = vmatprep.subr.mxu0 0.0
    %4678 = vmatpush1.msra.mxu0 0.0
    %4679 = vmatprep.subr.mxu0 0.0
    %4680 = vmatpush1.msra.mxu0 0.0
    %4681 = vmatprep.subr.mxu0 0.0
    %4682 = vmatpush1.msra.mxu0 0.0
    %4683 = vmatprep.subr.mxu0 0.0
    %4684 = vmatpush1.msra.mxu0 0.0
    %4685 = vmatprep.subr.mxu0 0.0
    %4686 = vmatpush1.msra.mxu0 0.0
    %4687 = vmatprep.subr.mxu0 0.0
    %4688 = vmatpush1.msra.mxu0 0.0
    %4689 = vmatprep.subr.mxu0 0.0
    %4690 = vmatpush1.msra.mxu0 0.0
    %4691 = vmatprep.subr.mxu0 0.0
    %4692 = vmatpush1.msra.mxu0 0.0
    %4693 = vmatprep.subr.mxu0 0.0
    %4694 = vmatpush1.msra.mxu0 0.0
    %4695 = vmatprep.subr.mxu0 0.0
    %4696 = vmatpush1.msra.mxu0 0.0
    %4697 = vmatprep.subr.mxu0 0.0
    %4698 = vmatpush1.msra.mxu0 0.0
    %4699 = vmatprep.subr.mxu0 0.0
    %4700 = vmatpush1.msra.mxu0 0.0
    %4701 = vmatprep.subr.mxu0 0.0
    %4702 = vmatpush1.msra.mxu0 0.0
    %4703 = vmatprep.subr.mxu0 0.0
    %4704 = vmatpush1.msra.mxu0 0.0
    %4705 = vmatprep.subr.mxu0 0.0
    %4706 = vmatpush1.msra.mxu0 0.0
    %4707 = vmatprep.subr.mxu0 0.0
    %4708 = vmatpush1.msra.mxu0 0.0
    %4709 = vmatprep.subr.mxu0 0.0
    %4710 = vmatpush1.msra.mxu0 0.0
    %4711 = vmatprep.subr.mxu0 0.0
    %4712 = vmatpush1.msra.mxu0 0.0
    %4713 = vmatprep.subr.mxu0 0.0
    %4714 = vmatpush1.msra.mxu0 0.0
    %4715 = vmatprep.subr.mxu0 0.0
    %4716 = vmatpush1.msra.mxu0 0.0
    %4717 = vmatprep.subr.mxu0 0.0
    %4718 = vmatpush1.msra.mxu0 0.0
    %4719 = vmatprep.mubr.f32.mxu0 0.0
    %4720 = vmatmul.mubr.f32.gmra.mrb[0].mxu0 %v4650
    %v4721 = vpop.f32.mrb[0].mxu0
    %v4722 = vadd.f32 0.0, %v4721
    %v4723 = vpop.f32.mrb[0].mxu0
    %4724 = vmatprep.mubr.f32.mxu0 0.0
    %4725 = vmatmul.mubr.f32.gmra.mrb[0].mxu0 %v4653
    %v4726 = vpop.f32.mrb[0].mxu0
    %v4727 = vadd.f32 0.0, %v4726
    %v4728 = vpop.f32.mrb[0].mxu0
    %4729 = vdwg.mxu0
    %v4730 = vadd.f32 %v4441, %v4641
    %v4731 = vadd.f32 %v4442, %v4642
    %4732 = vrot.lane.b32.xlu0 %v4214, 112
    %v4733 = vpop.permute.xlu0 %4732
    %4734 = vrot.lane.b32.xlu0 %v4219, 112
    %v4735 = vpop.permute.xlu0 %4734
    %4736 = vrot.lane.b32.xlu0 %v4311, 80
    %v4737 = vpop.permute.xlu0 %4736
    %4738 = vrot.lane.b32.xlu0 %v4316, 80
    %v4739 = vpop.permute.xlu0 %4738
    %v4740 = vsel %vm275, %v4733, 0
    %v4742 = vsel %vm275, %v4735, 0
    %v4744 = vsel %vm275, %v4737, 0
    %v4746 = vsel %vm275, %v4739, 0
    %4748 = vmatprep.subr.mxu0 0.0
    %4749 = vmatpush1.xpose.msra.mxu0 %v4744
    %4750 = vmatprep.subr.mxu0 0.0
    %4751 = vmatpush1.xpose.msra.mxu0 %v4746
    %4752 = vmatprep.subr.mxu0 0.0
    %4753 = vmatpush1.xpose.msra.mxu0 0.0
    %4754 = vmatprep.subr.mxu0 0.0
    %4755 = vmatpush1.xpose.msra.mxu0 0.0
    %4756 = vmatprep.subr.mxu0 0.0
    %4757 = vmatpush1.xpose.msra.mxu0 0.0
    %4758 = vmatprep.subr.mxu0 0.0
    %4759 = vmatpush1.xpose.msra.mxu0 0.0
    %4760 = vmatprep.subr.mxu0 0.0
    %4761 = vmatpush1.xpose.msra.mxu0 0.0
    %4762 = vmatprep.subr.mxu0 0.0
    %4763 = vmatpush1.xpose.msra.mxu0 0.0
    %4764 = vmatprep.subr.mxu0 0.0
    %4765 = vmatpush1.xpose.msra.mxu0 0.0
    %4766 = vmatprep.subr.mxu0 0.0
    %4767 = vmatpush1.xpose.msra.mxu0 0.0
    %4768 = vmatprep.subr.mxu0 0.0
    %4769 = vmatpush1.xpose.msra.mxu0 0.0
    %4770 = vmatprep.subr.mxu0 0.0
    %4771 = vmatpush1.xpose.msra.mxu0 0.0
    %4772 = vmatprep.subr.mxu0 0.0
    %4773 = vmatpush1.xpose.msra.mxu0 0.0
    %4774 = vmatprep.subr.mxu0 0.0
    %4775 = vmatpush1.xpose.msra.mxu0 0.0
    %4776 = vmatprep.subr.mxu0 0.0
    %4777 = vmatpush1.xpose.msra.mxu0 0.0
    %4778 = vmatprep.subr.mxu0 0.0
    %4779 = vmatpush1.xpose.msra.mxu0 0.0
    %4780 = vmatprep.subr.mxu0 0.0
    %4781 = vmatpush1.xpose.msra.mxu0 0.0
    %4782 = vmatprep.subr.mxu0 0.0
    %4783 = vmatpush1.xpose.msra.mxu0 0.0
    %4784 = vmatprep.subr.mxu0 0.0
    %4785 = vmatpush1.xpose.msra.mxu0 0.0
    %4786 = vmatprep.subr.mxu0 0.0
    %4787 = vmatpush1.xpose.msra.mxu0 0.0
    %4788 = vmatprep.subr.mxu0 0.0
    %4789 = vmatpush1.xpose.msra.mxu0 0.0
    %4790 = vmatprep.subr.mxu0 0.0
    %4791 = vmatpush1.xpose.msra.mxu0 0.0
    %4792 = vmatprep.subr.mxu0 0.0
    %4793 = vmatpush1.xpose.msra.mxu0 0.0
    %4794 = vmatprep.subr.mxu0 0.0
    %4795 = vmatpush1.xpose.msra.mxu0 0.0
    %4796 = vmatprep.subr.mxu0 0.0
    %4797 = vmatpush1.xpose.msra.mxu0 0.0
    %4798 = vmatprep.subr.mxu0 0.0
    %4799 = vmatpush1.xpose.msra.mxu0 0.0
    %4800 = vmatprep.subr.mxu0 0.0
    %4801 = vmatpush1.xpose.msra.mxu0 0.0
    %4802 = vmatprep.subr.mxu0 0.0
    %4803 = vmatpush1.xpose.msra.mxu0 0.0
    %4804 = vmatprep.subr.mxu0 0.0
    %4805 = vmatpush1.xpose.msra.mxu0 0.0
    %4806 = vmatprep.subr.mxu0 0.0
    %4807 = vmatpush1.xpose.msra.mxu0 0.0
    %4808 = vmatprep.subr.mxu0 0.0
    %4809 = vmatpush1.xpose.msra.mxu0 0.0
    %4810 = vmatprep.subr.mxu0 0.0
    %4811 = vmatpush1.xpose.msra.mxu0 0.0
    %4812 = vmatprep.mubr.f32.mxu0 0.0
    %4813 = vmatmul.mubr.f32.gmra.mrb[0].mxu0 %v4740
    %v4814 = vpop.f32.mrb[0].mxu0
    %v4815 = vadd.f32 0.0, %v4814
    %v4816 = vpop.f32.mrb[0].mxu0
    %4817 = vmatprep.mubr.f32.mxu0 0.0
    %4818 = vmatmul.mubr.f32.gmra.mrb[0].mxu0 %v4742
    %v4819 = vpop.f32.mrb[0].mxu0
    %v4820 = vadd.f32 0.0, %v4819
    %v4821 = vpop.f32.mrb[0].mxu0
    %4822 = vdwg.mxu0
    %v4823 = vsel %vm1071, %v4815, -inf
    %4824 = vmax.xlane.f32.xlu0 %v4823
    %v4825 = vpop.xlane.xlu0 %4824
    %v4826 = vsel %vm4423, %v4820, -inf
    %4827 = vmax.xlane.f32.xlu0 %v4826
    %v4828 = vpop.xlane.xlu0 %4827
    %v4829 = vsub.f32 %v4815, %v4825
    %v4830 = vsub.f32 %v4820, %v4828
    %v4831 = vmul.f32 %v4829, 1.442695
    %v4832 = vpow.pop %v4831
    %v4833 = vmul.f32 %v4830, 1.442695
    %v4834 = vpow.pop %v4833
    %v4835 = vsel %vm1071, %v4832, 0.0
    %4836 = vadd.xlane.f32.xlu0 %v4835
    %v4837 = vpop.xlane.xlu0 %4836
    %v4838 = vsel %vm4423, %v4834, 0.0
    %4839 = vadd.xlane.f32.xlu0 %v4838
    %v4840 = vpop.xlane.xlu0 %4839
    %v4841 = vrcp.pop %v4837
    %v4842 = vrcp.pop %v4840
    %v4843 = vmul.f32 %v4832, %v4841
    %v4844 = vmul.f32 %v4834, %v4842
    %4845 = vrot.lane.b32.xlu0 %v4311, 48
    %v4846 = vpop.permute.xlu0 %4845
    %4847 = vrot.lane.b32.xlu0 %v4316, 48
    %v4848 = vpop.permute.xlu0 %4847
    %v4852 = vsel %vm1071, %v4843, 0
    %v4855 = vsel %vm1071, %v4844, 0
    %4857 = vmatprep.subr.mxu0 0.0
    %4858 = vmatpush1.msra.mxu0 %v4846
    %4859 = vmatprep.subr.mxu0 0.0
    %4860 = vmatpush1.msra.mxu0 %v4848
    %4861 = vmatprep.subr.mxu0 0.0
    %4862 = vmatpush1.msra.mxu0 0.0
    %4863 = vmatprep.subr.mxu0 0.0
    %4864 = vmatpush1.msra.mxu0 0.0
    %4865 = vmatprep.subr.mxu0 0.0
    %4866 = vmatpush1.msra.mxu0 0.0
    %4867 = vmatprep.subr.mxu0 0.0
    %4868 = vmatpush1.msra.mxu0 0.0
    %4869 = vmatprep.subr.mxu0 0.0
    %4870 = vmatpush1.msra.mxu0 0.0
    %4871 = vmatprep.subr.mxu0 0.0
    %4872 = vmatpush1.msra.mxu0 0.0
    %4873 = vmatprep.subr.mxu0 0.0
    %4874 = vmatpush1.msra.mxu0 0.0
    %4875 = vmatprep.subr.mxu0 0.0
    %4876 = vmatpush1.msra.mxu0 0.0
    %4877 = vmatprep.subr.mxu0 0.0
    %4878 = vmatpush1.msra.mxu0 0.0
    %4879 = vmatprep.subr.mxu0 0.0
    %4880 = vmatpush1.msra.mxu0 0.0
    %4881 = vmatprep.subr.mxu0 0.0
    %4882 = vmatpush1.msra.mxu0 0.0
    %4883 = vmatprep.subr.mxu0 0.0
    %4884 = vmatpush1.msra.mxu0 0.0
    %4885 = vmatprep.subr.mxu0 0.0
    %4886 = vmatpush1.msra.mxu0 0.0
    %4887 = vmatprep.subr.mxu0 0.0
    %4888 = vmatpush1.msra.mxu0 0.0
    %4889 = vmatprep.subr.mxu0 0.0
    %4890 = vmatpush1.msra.mxu0 0.0
    %4891 = vmatprep.subr.mxu0 0.0
    %4892 = vmatpush1.msra.mxu0 0.0
    %4893 = vmatprep.subr.mxu0 0.0
    %4894 = vmatpush1.msra.mxu0 0.0
    %4895 = vmatprep.subr.mxu0 0.0
    %4896 = vmatpush1.msra.mxu0 0.0
    %4897 = vmatprep.subr.mxu0 0.0
    %4898 = vmatpush1.msra.mxu0 0.0
    %4899 = vmatprep.subr.mxu0 0.0
    %4900 = vmatpush1.msra.mxu0 0.0
    %4901 = vmatprep.subr.mxu0 0.0
    %4902 = vmatpush1.msra.mxu0 0.0
    %4903 = vmatprep.subr.mxu0 0.0
    %4904 = vmatpush1.msra.mxu0 0.0
    %4905 = vmatprep.subr.mxu0 0.0
    %4906 = vmatpush1.msra.mxu0 0.0
    %4907 = vmatprep.subr.mxu0 0.0
    %4908 = vmatpush1.msra.mxu0 0.0
    %4909 = vmatprep.subr.mxu0 0.0
    %4910 = vmatpush1.msra.mxu0 0.0
    %4911 = vmatprep.subr.mxu0 0.0
    %4912 = vmatpush1.msra.mxu0 0.0
    %4913 = vmatprep.subr.mxu0 0.0
    %4914 = vmatpush1.msra.mxu0 0.0
    %4915 = vmatprep.subr.mxu0 0.0
    %4916 = vmatpush1.msra.mxu0 0.0
    %4917 = vmatprep.subr.mxu0 0.0
    %4918 = vmatpush1.msra.mxu0 0.0
    %4919 = vmatprep.subr.mxu0 0.0
    %4920 = vmatpush1.msra.mxu0 0.0
    %4921 = vmatprep.mubr.f32.mxu0 0.0
    %4922 = vmatmul.mubr.f32.gmra.mrb[0].mxu0 %v4852
    %v4923 = vpop.f32.mrb[0].mxu0
    %v4924 = vadd.f32 0.0, %v4923
    %v4925 = vpop.f32.mrb[0].mxu0
    %4926 = vmatprep.mubr.f32.mxu0 0.0
    %4927 = vmatmul.mubr.f32.gmra.mrb[0].mxu0 %v4855
    %v4928 = vpop.f32.mrb[0].mxu0
    %v4929 = vadd.f32 0.0, %v4928
    %v4930 = vpop.f32.mrb[0].mxu0
    %4931 = vdwg.mxu0
    %v4932 = vadd.f32 %v4730, %v4843
    %v4933 = vadd.f32 %v4731, %v4844
    %4934 = vrot.lane.b32.xlu0 %v4214, 104
    %v4935 = vpop.permute.xlu0 %4934
    %4936 = vrot.lane.b32.xlu0 %v4219, 104
    %v4937 = vpop.permute.xlu0 %4936
    %4938 = vrot.lane.b32.xlu0 %v4311, 72
    %v4939 = vpop.permute.xlu0 %4938
    %4940 = vrot.lane.b32.xlu0 %v4316, 72
    %v4941 = vpop.permute.xlu0 %4940
    %v4942 = vsel %vm275, %v4935, 0
    %v4944 = vsel %vm275, %v4937, 0
    %v4946 = vsel %vm275, %v4939, 0
    %v4948 = vsel %vm275, %v4941, 0
    %4950 = vmatprep.subr.mxu0 0.0
    %4951 = vmatpush1.xpose.msra.mxu0 %v4946
    %4952 = vmatprep.subr.mxu0 0.0
    %4953 = vmatpush1.xpose.msra.mxu0 %v4948
    %4954 = vmatprep.subr.mxu0 0.0
    %4955 = vmatpush1.xpose.msra.mxu0 0.0
    %4956 = vmatprep.subr.mxu0 0.0
    %4957 = vmatpush1.xpose.msra.mxu0 0.0
    %4958 = vmatprep.subr.mxu0 0.0
    %4959 = vmatpush1.xpose.msra.mxu0 0.0
    %4960 = vmatprep.subr.mxu0 0.0
    %4961 = vmatpush1.xpose.msra.mxu0 0.0
    %4962 = vmatprep.subr.mxu0 0.0
    %4963 = vmatpush1.xpose.msra.mxu0 0.0
    %4964 = vmatprep.subr.mxu0 0.0
    %4965 = vmatpush1.xpose.msra.mxu0 0.0
    %4966 = vmatprep.subr.mxu0 0.0
    %4967 = vmatpush1.xpose.msra.mxu0 0.0
    %4968 = vmatprep.subr.mxu0 0.0
    %4969 = vmatpush1.xpose.msra.mxu0 0.0
    %4970 = vmatprep.subr.mxu0 0.0
    %4971 = vmatpush1.xpose.msra.mxu0 0.0
    %4972 = vmatprep.subr.mxu0 0.0
    %4973 = vmatpush1.xpose.msra.mxu0 0.0
    %4974 = vmatprep.subr.mxu0 0.0
    %4975 = vmatpush1.xpose.msra.mxu0 0.0
    %4976 = vmatprep.subr.mxu0 0.0
    %4977 = vmatpush1.xpose.msra.mxu0 0.0
    %4978 = vmatprep.subr.mxu0 0.0
    %4979 = vmatpush1.xpose.msra.mxu0 0.0
    %4980 = vmatprep.subr.mxu0 0.0
    %4981 = vmatpush1.xpose.msra.mxu0 0.0
    %4982 = vmatprep.subr.mxu0 0.0
    %4983 = vmatpush1.xpose.msra.mxu0 0.0
    %4984 = vmatprep.subr.mxu0 0.0
    %4985 = vmatpush1.xpose.msra.mxu0 0.0
    %4986 = vmatprep.subr.mxu0 0.0
    %4987 = vmatpush1.xpose.msra.mxu0 0.0
    %4988 = vmatprep.subr.mxu0 0.0
    %4989 = vmatpush1.xpose.msra.mxu0 0.0
    %4990 = vmatprep.subr.mxu0 0.0
    %4991 = vmatpush1.xpose.msra.mxu0 0.0
    %4992 = vmatprep.subr.mxu0 0.0
    %4993 = vmatpush1.xpose.msra.mxu0 0.0
    %4994 = vmatprep.subr.mxu0 0.0
    %4995 = vmatpush1.xpose.msra.mxu0 0.0
    %4996 = vmatprep.subr.mxu0 0.0
    %4997 = vmatpush1.xpose.msra.mxu0 0.0
    %4998 = vmatprep.subr.mxu0 0.0
    %4999 = vmatpush1.xpose.msra.mxu0 0.0
    %5000 = vmatprep.subr.mxu0 0.0
    %5001 = vmatpush1.xpose.msra.mxu0 0.0
    %5002 = vmatprep.subr.mxu0 0.0
    %5003 = vmatpush1.xpose.msra.mxu0 0.0
    %5004 = vmatprep.subr.mxu0 0.0
    %5005 = vmatpush1.xpose.msra.mxu0 0.0
    %5006 = vmatprep.subr.mxu0 0.0
    %5007 = vmatpush1.xpose.msra.mxu0 0.0
    %5008 = vmatprep.subr.mxu0 0.0
    %5009 = vmatpush1.xpose.msra.mxu0 0.0
    %5010 = vmatprep.subr.mxu0 0.0
    %5011 = vmatpush1.xpose.msra.mxu0 0.0
    %5012 = vmatprep.subr.mxu0 0.0
    %5013 = vmatpush1.xpose.msra.mxu0 0.0
    %5014 = vmatprep.mubr.f32.mxu0 0.0
    %5015 = vmatmul.mubr.f32.gmra.mrb[0].mxu0 %v4942
    %v5016 = vpop.f32.mrb[0].mxu0
    %v5017 = vadd.f32 0.0, %v5016
    %v5018 = vpop.f32.mrb[0].mxu0
    %5019 = vmatprep.mubr.f32.mxu0 0.0
    %5020 = vmatmul.mubr.f32.gmra.mrb[0].mxu0 %v4944
    %v5021 = vpop.f32.mrb[0].mxu0
    %v5022 = vadd.f32 0.0, %v5021
    %v5023 = vpop.f32.mrb[0].mxu0
    %5024 = vdwg.mxu0
    %v5025 = vsel %vm1071, %v5017, -inf
    %5026 = vmax.xlane.f32.xlu0 %v5025
    %v5027 = vpop.xlane.xlu0 %5026
    %v5028 = vsel %vm4423, %v5022, -inf
    %5029 = vmax.xlane.f32.xlu0 %v5028
    %v5030 = vpop.xlane.xlu0 %5029
    %v5031 = vsub.f32 %v5017, %v5027
    %v5032 = vsub.f32 %v5022, %v5030
    %v5033 = vmul.f32 %v5031, 1.442695
    %v5034 = vpow.pop %v5033
    %v5035 = vmul.f32 %v5032, 1.442695
    %v5036 = vpow.pop %v5035
    %v5037 = vsel %vm1071, %v5034, 0.0
    %5038 = vadd.xlane.f32.xlu0 %v5037
    %v5039 = vpop.xlane.xlu0 %5038
    %v5040 = vsel %vm4423, %v5036, 0.0
    %5041 = vadd.xlane.f32.xlu0 %v5040
    %v5042 = vpop.xlane.xlu0 %5041
    %v5043 = vrcp.pop %v5039
    %v5044 = vrcp.pop %v5042
    %v5045 = vmul.f32 %v5034, %v5043
    %v5046 = vmul.f32 %v5036, %v5044
    %5047 = vrot.lane.b32.xlu0 %v4311, 40
    %v5048 = vpop.permute.xlu0 %5047
    %5049 = vrot.lane.b32.xlu0 %v4316, 40
    %v5050 = vpop.permute.xlu0 %5049
    %v5054 = vsel %vm1071, %v5045, 0
    %v5057 = vsel %vm1071, %v5046, 0
    %5059 = vmatprep.subr.mxu0 0.0
    %5060 = vmatpush1.msra.mxu0 %v5048
    %5061 = vmatprep.subr.mxu0 0.0
    %5062 = vmatpush1.msra.mxu0 %v5050
    %5063 = vmatprep.subr.mxu0 0.0
    %5064 = vmatpush1.msra.mxu0 0.0
    %5065 = vmatprep.subr.mxu0 0.0
    %5066 = vmatpush1.msra.mxu0 0.0
    %5067 = vmatprep.subr.mxu0 0.0
    %5068 = vmatpush1.msra.mxu0 0.0
    %5069 = vmatprep.subr.mxu0 0.0
    %5070 = vmatpush1.msra.mxu0 0.0
    %5071 = vmatprep.subr.mxu0 0.0
    %5072 = vmatpush1.msra.mxu0 0.0
    %5073 = vmatprep.subr.mxu0 0.0
    %5074 = vmatpush1.msra.mxu0 0.0
    %5075 = vmatprep.subr.mxu0 0.0
    %5076 = vmatpush1.msra.mxu0 0.0
    %5077 = vmatprep.subr.mxu0 0.0
    %5078 = vmatpush1.msra.mxu0 0.0
    %5079 = vmatprep.subr.mxu0 0.0
    %5080 = vmatpush1.msra.mxu0 0.0
    %5081 = vmatprep.subr.mxu0 0.0
    %5082 = vmatpush1.msra.mxu0 0.0
    %5083 = vmatprep.subr.mxu0 0.0
    %5084 = vmatpush1.msra.mxu0 0.0
    %5085 = vmatprep.subr.mxu0 0.0
    %5086 = vmatpush1.msra.mxu0 0.0
    %5087 = vmatprep.subr.mxu0 0.0
    %5088 = vmatpush1.msra.mxu0 0.0
    %5089 = vmatprep.subr.mxu0 0.0
    %5090 = vmatpush1.msra.mxu0 0.0
    %5091 = vmatprep.subr.mxu0 0.0
    %5092 = vmatpush1.msra.mxu0 0.0
    %5093 = vmatprep.subr.mxu0 0.0
    %5094 = vmatpush1.msra.mxu0 0.0
    %5095 = vmatprep.subr.mxu0 0.0
    %5096 = vmatpush1.msra.mxu0 0.0
    %5097 = vmatprep.subr.mxu0 0.0
    %5098 = vmatpush1.msra.mxu0 0.0
    %5099 = vmatprep.subr.mxu0 0.0
    %5100 = vmatpush1.msra.mxu0 0.0
    %5101 = vmatprep.subr.mxu0 0.0
    %5102 = vmatpush1.msra.mxu0 0.0
    %5103 = vmatprep.subr.mxu0 0.0
    %5104 = vmatpush1.msra.mxu0 0.0
    %5105 = vmatprep.subr.mxu0 0.0
    %5106 = vmatpush1.msra.mxu0 0.0
    %5107 = vmatprep.subr.mxu0 0.0
    %5108 = vmatpush1.msra.mxu0 0.0
    %5109 = vmatprep.subr.mxu0 0.0
    %5110 = vmatpush1.msra.mxu0 0.0
    %5111 = vmatprep.subr.mxu0 0.0
    %5112 = vmatpush1.msra.mxu0 0.0
    %5113 = vmatprep.subr.mxu0 0.0
    %5114 = vmatpush1.msra.mxu0 0.0
    %5115 = vmatprep.subr.mxu0 0.0
    %5116 = vmatpush1.msra.mxu0 0.0
    %5117 = vmatprep.subr.mxu0 0.0
    %5118 = vmatpush1.msra.mxu0 0.0
    %5119 = vmatprep.subr.mxu0 0.0
    %5120 = vmatpush1.msra.mxu0 0.0
    %5121 = vmatprep.subr.mxu0 0.0
    %5122 = vmatpush1.msra.mxu0 0.0
    %5123 = vmatprep.mubr.f32.mxu0 0.0
    %5124 = vmatmul.mubr.f32.gmra.mrb[0].mxu0 %v5054
    %v5125 = vpop.f32.mrb[0].mxu0
    %v5126 = vadd.f32 0.0, %v5125
    %v5127 = vpop.f32.mrb[0].mxu0
    %5128 = vmatprep.mubr.f32.mxu0 0.0
    %5129 = vmatmul.mubr.f32.gmra.mrb[0].mxu0 %v5057
    %v5130 = vpop.f32.mrb[0].mxu0
    %v5131 = vadd.f32 0.0, %v5130
    %v5132 = vpop.f32.mrb[0].mxu0
    %5133 = vdwg.mxu0
    %v5134 = vadd.f32 %v4932, %v5045
    %v5135 = vadd.f32 %v4933, %v5046
    %5138 = vrot.lane.b32.xlu0 %v4722, 8
    %v5139 = vpop.permute.xlu0 %5138
    %5140 = vrot.lane.b32.xlu0 %v4727, 8
    %v5141 = vpop.permute.xlu0 %5140
    %5146 = vrot.lane.b32.xlu0 %v4924, 16
    %v5147 = vpop.permute.xlu0 %5146
    %5148 = vrot.lane.b32.xlu0 %v4929, 16
    %v5149 = vpop.permute.xlu0 %5148
    %5154 = vrot.lane.b32.xlu0 %v5126, 24
    %v5155 = vpop.permute.xlu0 %5154
    %5156 = vrot.lane.b32.xlu0 %v5131, 24
    %v5157 = vpop.permute.xlu0 %5156
    %v5160 = vsel %vm275, %v4522, %v5139
    %v5161 = vsel %vm275, %v4527, %v5141
    %v5162 = vsel %vm1071, %v5160, %v5147
    %v5163 = vsel %vm1071, %v5161, %v5149
    %v5164 = vsel %vm1074, %v5162, %v5155
    %v5165 = vsel %vm1074, %v5163, %v5157
    %v5166 = vmul.f32 %v5134, 0.25
    %v5167 = vmul.f32 %v5135, 0.25
    %v5170 = vrot.slane %v4219, 6
    %v5171 = vrot.slane %v4224, 6
    %v5172 = vsel %vm1079, %v5170, %v5171
    %v5173 = vrot.slane %v4229, 6
    %v5174 = vsel %vm1079, %v5171, %v5173
    %5177 = vrot.lane.b32.xlu0 %v4321, 96
    %v5178 = vpop.permute.xlu0 %5177
    %5179 = vrot.lane.b32.xlu0 %v4326, 96
    %v5180 = vpop.permute.xlu0 %5179
    %v5181 = vsel %vm275, %v5172, 0
    %v5183 = vsel %vm275, %v5174, 0
    %v5185 = vsel %vm275, %v5178, 0
    %v5187 = vsel %vm275, %v5180, 0
    %5189 = vmatprep.subr.mxu0 0.0
    %5190 = vmatpush1.xpose.msra.mxu0 %v5185
    %5191 = vmatprep.subr.mxu0 0.0
    %5192 = vmatpush1.xpose.msra.mxu0 %v5187
    %5193 = vmatprep.subr.mxu0 0.0
    %5194 = vmatpush1.xpose.msra.mxu0 0.0
    %5195 = vmatprep.subr.mxu0 0.0
    %5196 = vmatpush1.xpose.msra.mxu0 0.0
    %5197 = vmatprep.subr.mxu0 0.0
    %5198 = vmatpush1.xpose.msra.mxu0 0.0
    %5199 = vmatprep.subr.mxu0 0.0
    %5200 = vmatpush1.xpose.msra.mxu0 0.0
    %5201 = vmatprep.subr.mxu0 0.0
    %5202 = vmatpush1.xpose.msra.mxu0 0.0
    %5203 = vmatprep.subr.mxu0 0.0
    %5204 = vmatpush1.xpose.msra.mxu0 0.0
    %5205 = vmatprep.subr.mxu0 0.0
    %5206 = vmatpush1.xpose.msra.mxu0 0.0
    %5207 = vmatprep.subr.mxu0 0.0
    %5208 = vmatpush1.xpose.msra.mxu0 0.0
    %5209 = vmatprep.subr.mxu0 0.0
    %5210 = vmatpush1.xpose.msra.mxu0 0.0
    %5211 = vmatprep.subr.mxu0 0.0
    %5212 = vmatpush1.xpose.msra.mxu0 0.0
    %5213 = vmatprep.subr.mxu0 0.0
    %5214 = vmatpush1.xpose.msra.mxu0 0.0
    %5215 = vmatprep.subr.mxu0 0.0
    %5216 = vmatpush1.xpose.msra.mxu0 0.0
    %5217 = vmatprep.subr.mxu0 0.0
    %5218 = vmatpush1.xpose.msra.mxu0 0.0
    %5219 = vmatprep.subr.mxu0 0.0
    %5220 = vmatpush1.xpose.msra.mxu0 0.0
    %5221 = vmatprep.subr.mxu0 0.0
    %5222 = vmatpush1.xpose.msra.mxu0 0.0
    %5223 = vmatprep.subr.mxu0 0.0
    %5224 = vmatpush1.xpose.msra.mxu0 0.0
    %5225 = vmatprep.subr.mxu0 0.0
    %5226 = vmatpush1.xpose.msra.mxu0 0.0
    %5227 = vmatprep.subr.mxu0 0.0
    %5228 = vmatpush1.xpose.msra.mxu0 0.0
    %5229 = vmatprep.subr.mxu0 0.0
    %5230 = vmatpush1.xpose.msra.mxu0 0.0
    %5231 = vmatprep.subr.mxu0 0.0
    %5232 = vmatpush1.xpose.msra.mxu0 0.0
    %5233 = vmatprep.subr.mxu0 0.0
    %5234 = vmatpush1.xpose.msra.mxu0 0.0
    %5235 = vmatprep.subr.mxu0 0.0
    %5236 = vmatpush1.xpose.msra.mxu0 0.0
    %5237 = vmatprep.subr.mxu0 0.0
    %5238 = vmatpush1.xpose.msra.mxu0 0.0
    %5239 = vmatprep.subr.mxu0 0.0
    %5240 = vmatpush1.xpose.msra.mxu0 0.0
    %5241 = vmatprep.subr.mxu0 0.0
    %5242 = vmatpush1.xpose.msra.mxu0 0.0
    %5243 = vmatprep.subr.mxu0 0.0
    %5244 = vmatpush1.xpose.msra.mxu0 0.0
    %5245 = vmatprep.subr.mxu0 0.0
    %5246 = vmatpush1.xpose.msra.mxu0 0.0
    %5247 = vmatprep.subr.mxu0 0.0
    %5248 = vmatpush1.xpose.msra.mxu0 0.0
    %5249 = vmatprep.subr.mxu0 0.0
    %5250 = vmatpush1.xpose.msra.mxu0 0.0
    %5251 = vmatprep.subr.mxu0 0.0
    %5252 = vmatpush1.xpose.msra.mxu0 0.0
    %5253 = vmatprep.mubr.f32.mxu0 0.0
    %5254 = vmatmul.mubr.f32.gmra.mrb[0].mxu0 %v5181
    %v5255 = vpop.f32.mrb[0].mxu0
    %v5256 = vadd.f32 0.0, %v5255
    %v5257 = vpop.f32.mrb[0].mxu0
    %5258 = vmatprep.mubr.f32.mxu0 0.0
    %5259 = vmatmul.mubr.f32.gmra.mrb[0].mxu0 %v5183
    %v5260 = vpop.f32.mrb[0].mxu0
    %v5261 = vadd.f32 0.0, %v5260
    %v5262 = vpop.f32.mrb[0].mxu0
    %5263 = vdwg.mxu0
    %v5264 = vsel %vm1071, %v5256, -inf
    %5265 = vmax.xlane.f32.xlu0 %v5264
    %v5266 = vpop.xlane.xlu0 %5265
    %v5267 = vsel %vm4423, %v5261, -inf
    %5268 = vmax.xlane.f32.xlu0 %v5267
    %v5269 = vpop.xlane.xlu0 %5268
    %v5270 = vsub.f32 %v5256, %v5266
    %v5271 = vsub.f32 %v5261, %v5269
    %v5272 = vmul.f32 %v5270, 1.442695
    %v5273 = vpow.pop %v5272
    %v5274 = vmul.f32 %v5271, 1.442695
    %v5275 = vpow.pop %v5274
    %v5276 = vsel %vm1071, %v5273, 0.0
    %5277 = vadd.xlane.f32.xlu0 %v5276
    %v5278 = vpop.xlane.xlu0 %5277
    %v5279 = vsel %vm4423, %v5275, 0.0
    %5280 = vadd.xlane.f32.xlu0 %v5279
    %v5281 = vpop.xlane.xlu0 %5280
    %v5282 = vrcp.pop %v5278
    %v5283 = vrcp.pop %v5281
    %v5284 = vmul.f32 %v5273, %v5282
    %v5285 = vmul.f32 %v5275, %v5283
    %5286 = vrot.lane.b32.xlu0 %v4321, 64
    %v5287 = vpop.permute.xlu0 %5286
    %5288 = vrot.lane.b32.xlu0 %v4326, 64
    %v5289 = vpop.permute.xlu0 %5288
    %v5293 = vsel %vm1071, %v5284, 0
    %v5296 = vsel %vm1071, %v5285, 0
    %5298 = vmatprep.subr.mxu0 0.0
    %5299 = vmatpush1.msra.mxu0 %v5287
    %5300 = vmatprep.subr.mxu0 0.0
    %5301 = vmatpush1.msra.mxu0 %v5289
    %5302 = vmatprep.subr.mxu0 0.0
    %5303 = vmatpush1.msra.mxu0 0.0
    %5304 = vmatprep.subr.mxu0 0.0
    %5305 = vmatpush1.msra.mxu0 0.0
    %5306 = vmatprep.subr.mxu0 0.0
    %5307 = vmatpush1.msra.mxu0 0.0
    %5308 = vmatprep.subr.mxu0 0.0
    %5309 = vmatpush1.msra.mxu0 0.0
    %5310 = vmatprep.subr.mxu0 0.0
    %5311 = vmatpush1.msra.mxu0 0.0
    %5312 = vmatprep.subr.mxu0 0.0
    %5313 = vmatpush1.msra.mxu0 0.0
    %5314 = vmatprep.subr.mxu0 0.0
    %5315 = vmatpush1.msra.mxu0 0.0
    %5316 = vmatprep.subr.mxu0 0.0
    %5317 = vmatpush1.msra.mxu0 0.0
    %5318 = vmatprep.subr.mxu0 0.0
    %5319 = vmatpush1.msra.mxu0 0.0
    %5320 = vmatprep.subr.mxu0 0.0
    %5321 = vmatpush1.msra.mxu0 0.0
    %5322 = vmatprep.subr.mxu0 0.0
    %5323 = vmatpush1.msra.mxu0 0.0
    %5324 = vmatprep.subr.mxu0 0.0
    %5325 = vmatpush1.msra.mxu0 0.0
    %5326 = vmatprep.subr.mxu0 0.0
    %5327 = vmatpush1.msra.mxu0 0.0
    %5328 = vmatprep.subr.mxu0 0.0
    %5329 = vmatpush1.msra.mxu0 0.0
    %5330 = vmatprep.subr.mxu0 0.0
    %5331 = vmatpush1.msra.mxu0 0.0
    %5332 = vmatprep.subr.mxu0 0.0
    %5333 = vmatpush1.msra.mxu0 0.0
    %5334 = vmatprep.subr.mxu0 0.0
    %5335 = vmatpush1.msra.mxu0 0.0
    %5336 = vmatprep.subr.mxu0 0.0
    %5337 = vmatpush1.msra.mxu0 0.0
    %5338 = vmatprep.subr.mxu0 0.0
    %5339 = vmatpush1.msra.mxu0 0.0
    %5340 = vmatprep.subr.mxu0 0.0
    %5341 = vmatpush1.msra.mxu0 0.0
    %5342 = vmatprep.subr.mxu0 0.0
    %5343 = vmatpush1.msra.mxu0 0.0
    %5344 = vmatprep.subr.mxu0 0.0
    %5345 = vmatpush1.msra.mxu0 0.0
    %5346 = vmatprep.subr.mxu0 0.0
    %5347 = vmatpush1.msra.mxu0 0.0
    %5348 = vmatprep.subr.mxu0 0.0
    %5349 = vmatpush1.msra.mxu0 0.0
    %5350 = vmatprep.subr.mxu0 0.0
    %5351 = vmatpush1.msra.mxu0 0.0
    %5352 = vmatprep.subr.mxu0 0.0
    %5353 = vmatpush1.msra.mxu0 0.0
    %5354 = vmatprep.subr.mxu0 0.0
    %5355 = vmatpush1.msra.mxu0 0.0
    %5356 = vmatprep.subr.mxu0 0.0
    %5357 = vmatpush1.msra.mxu0 0.0
    %5358 = vmatprep.subr.mxu0 0.0
    %5359 = vmatpush1.msra.mxu0 0.0
    %5360 = vmatprep.subr.mxu0 0.0
    %5361 = vmatpush1.msra.mxu0 0.0
    %5362 = vmatprep.mubr.f32.mxu0 0.0
    %5363 = vmatmul.mubr.f32.gmra.mrb[0].mxu0 %v5293
    %v5364 = vpop.f32.mrb[0].mxu0
    %v5365 = vadd.f32 0.0, %v5364
    %v5366 = vpop.f32.mrb[0].mxu0
    %5367 = vmatprep.mubr.f32.mxu0 0.0
    %5368 = vmatmul.mubr.f32.gmra.mrb[0].mxu0 %v5296
    %v5369 = vpop.f32.mrb[0].mxu0
    %v5370 = vadd.f32 0.0, %v5369
    %v5371 = vpop.f32.mrb[0].mxu0
    %5372 = vdwg.mxu0
    %5373 = vrot.lane.b32.xlu0 %v5172, 120
    %v5374 = vpop.permute.xlu0 %5373
    %5375 = vrot.lane.b32.xlu0 %v5174, 120
    %v5376 = vpop.permute.xlu0 %5375
    %5377 = vrot.lane.b32.xlu0 %v4321, 88
    %v5378 = vpop.permute.xlu0 %5377
    %5379 = vrot.lane.b32.xlu0 %v4326, 88
    %v5380 = vpop.permute.xlu0 %5379
    %v5381 = vsel %vm275, %v5374, 0
    %v5383 = vsel %vm275, %v5376, 0
    %v5385 = vsel %vm275, %v5378, 0
    %v5387 = vsel %vm275, %v5380, 0
    %5389 = vmatprep.subr.mxu0 0.0
    %5390 = vmatpush1.xpose.msra.mxu0 %v5385
    %5391 = vmatprep.subr.mxu0 0.0
    %5392 = vmatpush1.xpose.msra.mxu0 %v5387
    %5393 = vmatprep.subr.mxu0 0.0
    %5394 = vmatpush1.xpose.msra.mxu0 0.0
    %5395 = vmatprep.subr.mxu0 0.0
    %5396 = vmatpush1.xpose.msra.mxu0 0.0
    %5397 = vmatprep.subr.mxu0 0.0
    %5398 = vmatpush1.xpose.msra.mxu0 0.0
    %5399 = vmatprep.subr.mxu0 0.0
    %5400 = vmatpush1.xpose.msra.mxu0 0.0
    %5401 = vmatprep.subr.mxu0 0.0
    %5402 = vmatpush1.xpose.msra.mxu0 0.0
    %5403 = vmatprep.subr.mxu0 0.0
    %5404 = vmatpush1.xpose.msra.mxu0 0.0
    %5405 = vmatprep.subr.mxu0 0.0
    %5406 = vmatpush1.xpose.msra.mxu0 0.0
    %5407 = vmatprep.subr.mxu0 0.0
    %5408 = vmatpush1.xpose.msra.mxu0 0.0
    %5409 = vmatprep.subr.mxu0 0.0
    %5410 = vmatpush1.xpose.msra.mxu0 0.0
    %5411 = vmatprep.subr.mxu0 0.0
    %5412 = vmatpush1.xpose.msra.mxu0 0.0
    %5413 = vmatprep.subr.mxu0 0.0
    %5414 = vmatpush1.xpose.msra.mxu0 0.0
    %5415 = vmatprep.subr.mxu0 0.0
    %5416 = vmatpush1.xpose.msra.mxu0 0.0
    %5417 = vmatprep.subr.mxu0 0.0
    %5418 = vmatpush1.xpose.msra.mxu0 0.0
    %5419 = vmatprep.subr.mxu0 0.0
    %5420 = vmatpush1.xpose.msra.mxu0 0.0
    %5421 = vmatprep.subr.mxu0 0.0
    %5422 = vmatpush1.xpose.msra.mxu0 0.0
    %5423 = vmatprep.subr.mxu0 0.0
    %5424 = vmatpush1.xpose.msra.mxu0 0.0
    %5425 = vmatprep.subr.mxu0 0.0
    %5426 = vmatpush1.xpose.msra.mxu0 0.0
    %5427 = vmatprep.subr.mxu0 0.0
    %5428 = vmatpush1.xpose.msra.mxu0 0.0
    %5429 = vmatprep.subr.mxu0 0.0
    %5430 = vmatpush1.xpose.msra.mxu0 0.0
    %5431 = vmatprep.subr.mxu0 0.0
    %5432 = vmatpush1.xpose.msra.mxu0 0.0
    %5433 = vmatprep.subr.mxu0 0.0
    %5434 = vmatpush1.xpose.msra.mxu0 0.0
    %5435 = vmatprep.subr.mxu0 0.0
    %5436 = vmatpush1.xpose.msra.mxu0 0.0
    %5437 = vmatprep.subr.mxu0 0.0
    %5438 = vmatpush1.xpose.msra.mxu0 0.0
    %5439 = vmatprep.subr.mxu0 0.0
    %5440 = vmatpush1.xpose.msra.mxu0 0.0
    %5441 = vmatprep.subr.mxu0 0.0
    %5442 = vmatpush1.xpose.msra.mxu0 0.0
    %5443 = vmatprep.subr.mxu0 0.0
    %5444 = vmatpush1.xpose.msra.mxu0 0.0
    %5445 = vmatprep.subr.mxu0 0.0
    %5446 = vmatpush1.xpose.msra.mxu0 0.0
    %5447 = vmatprep.subr.mxu0 0.0
    %5448 = vmatpush1.xpose.msra.mxu0 0.0
    %5449 = vmatprep.subr.mxu0 0.0
    %5450 = vmatpush1.xpose.msra.mxu0 0.0
    %5451 = vmatprep.subr.mxu0 0.0
    %5452 = vmatpush1.xpose.msra.mxu0 0.0
    %5453 = vmatprep.mubr.f32.mxu0 0.0
    %5454 = vmatmul.mubr.f32.gmra.mrb[0].mxu0 %v5381
    %v5455 = vpop.f32.mrb[0].mxu0
    %v5456 = vadd.f32 0.0, %v5455
    %v5457 = vpop.f32.mrb[0].mxu0
    %5458 = vmatprep.mubr.f32.mxu0 0.0
    %5459 = vmatmul.mubr.f32.gmra.mrb[0].mxu0 %v5383
    %v5460 = vpop.f32.mrb[0].mxu0
    %v5461 = vadd.f32 0.0, %v5460
    %v5462 = vpop.f32.mrb[0].mxu0
    %5463 = vdwg.mxu0
    %v5464 = vsel %vm1071, %v5456, -inf
    %5465 = vmax.xlane.f32.xlu0 %v5464
    %v5466 = vpop.xlane.xlu0 %5465
    %v5467 = vsel %vm4423, %v5461, -inf
    %5468 = vmax.xlane.f32.xlu0 %v5467
    %v5469 = vpop.xlane.xlu0 %5468
    %v5470 = vsub.f32 %v5456, %v5466
    %v5471 = vsub.f32 %v5461, %v5469
    %v5472 = vmul.f32 %v5470, 1.442695
    %v5473 = vpow.pop %v5472
    %v5474 = vmul.f32 %v5471, 1.442695
    %v5475 = vpow.pop %v5474
    %v5476 = vsel %vm1071, %v5473, 0.0
    %5477 = vadd.xlane.f32.xlu0 %v5476
    %v5478 = vpop.xlane.xlu0 %5477
    %v5479 = vsel %vm4423, %v5475, 0.0
    %5480 = vadd.xlane.f32.xlu0 %v5479
    %v5481 = vpop.xlane.xlu0 %5480
    %v5482 = vrcp.pop %v5478
    %v5483 = vrcp.pop %v5481
    %v5484 = vmul.f32 %v5473, %v5482
    %v5485 = vmul.f32 %v5475, %v5483
    %5486 = vrot.lane.b32.xlu0 %v4321, 56
    %v5487 = vpop.permute.xlu0 %5486
    %5488 = vrot.lane.b32.xlu0 %v4326, 56
    %v5489 = vpop.permute.xlu0 %5488
    %v5493 = vsel %vm1071, %v5484, 0
    %v5496 = vsel %vm1071, %v5485, 0
    %5498 = vmatprep.subr.mxu0 0.0
    %5499 = vmatpush1.msra.mxu0 %v5487
    %5500 = vmatprep.subr.mxu0 0.0
    %5501 = vmatpush1.msra.mxu0 %v5489
    %5502 = vmatprep.subr.mxu0 0.0
    %5503 = vmatpush1.msra.mxu0 0.0
    %5504 = vmatprep.subr.mxu0 0.0
    %5505 = vmatpush1.msra.mxu0 0.0
    %5506 = vmatprep.subr.mxu0 0.0
    %5507 = vmatpush1.msra.mxu0 0.0
    %5508 = vmatprep.subr.mxu0 0.0
    %5509 = vmatpush1.msra.mxu0 0.0
    %5510 = vmatprep.subr.mxu0 0.0
    %5511 = vmatpush1.msra.mxu0 0.0
    %5512 = vmatprep.subr.mxu0 0.0
    %5513 = vmatpush1.msra.mxu0 0.0
    %5514 = vmatprep.subr.mxu0 0.0
    %5515 = vmatpush1.msra.mxu0 0.0
    %5516 = vmatprep.subr.mxu0 0.0
    %5517 = vmatpush1.msra.mxu0 0.0
    %5518 = vmatprep.subr.mxu0 0.0
    %5519 = vmatpush1.msra.mxu0 0.0
    %5520 = vmatprep.subr.mxu0 0.0
    %5521 = vmatpush1.msra.mxu0 0.0
    %5522 = vmatprep.subr.mxu0 0.0
    %5523 = vmatpush1.msra.mxu0 0.0
    %5524 = vmatprep.subr.mxu0 0.0
    %5525 = vmatpush1.msra.mxu0 0.0
    %5526 = vmatprep.subr.mxu0 0.0
    %5527 = vmatpush1.msra.mxu0 0.0
    %5528 = vmatprep.subr.mxu0 0.0
    %5529 = vmatpush1.msra.mxu0 0.0
    %5530 = vmatprep.subr.mxu0 0.0
    %5531 = vmatpush1.msra.mxu0 0.0
    %5532 = vmatprep.subr.mxu0 0.0
    %5533 = vmatpush1.msra.mxu0 0.0
    %5534 = vmatprep.subr.mxu0 0.0
    %5535 = vmatpush1.msra.mxu0 0.0
    %5536 = vmatprep.subr.mxu0 0.0
    %5537 = vmatpush1.msra.mxu0 0.0
    %5538 = vmatprep.subr.mxu0 0.0
    %5539 = vmatpush1.msra.mxu0 0.0
    %5540 = vmatprep.subr.mxu0 0.0
    %5541 = vmatpush1.msra.mxu0 0.0
    %5542 = vmatprep.subr.mxu0 0.0
    %5543 = vmatpush1.msra.mxu0 0.0
    %5544 = vmatprep.subr.mxu0 0.0
    %5545 = vmatpush1.msra.mxu0 0.0
    %5546 = vmatprep.subr.mxu0 0.0
    %5547 = vmatpush1.msra.mxu0 0.0
    %5548 = vmatprep.subr.mxu0 0.0
    %5549 = vmatpush1.msra.mxu0 0.0
    %5550 = vmatprep.subr.mxu0 0.0
    %5551 = vmatpush1.msra.mxu0 0.0
    %5552 = vmatprep.subr.mxu0 0.0
    %5553 = vmatpush1.msra.mxu0 0.0
    %5554 = vmatprep.subr.mxu0 0.0
    %5555 = vmatpush1.msra.mxu0 0.0
    %5556 = vmatprep.subr.mxu0 0.0
    %5557 = vmatpush1.msra.mxu0 0.0
    %5558 = vmatprep.subr.mxu0 0.0
    %5559 = vmatpush1.msra.mxu0 0.0
    %5560 = vmatprep.subr.mxu0 0.0
    %5561 = vmatpush1.msra.mxu0 0.0
    %5562 = vmatprep.mubr.f32.mxu0 0.0
    %5563 = vmatmul.mubr.f32.gmra.mrb[0].mxu0 %v5493
    %v5564 = vpop.f32.mrb[0].mxu0
    %v5565 = vadd.f32 0.0, %v5564
    %v5566 = vpop.f32.mrb[0].mxu0
    %5567 = vmatprep.mubr.f32.mxu0 0.0
    %5568 = vmatmul.mubr.f32.gmra.mrb[0].mxu0 %v5496
    %v5569 = vpop.f32.mrb[0].mxu0
    %v5570 = vadd.f32 0.0, %v5569
    %v5571 = vpop.f32.mrb[0].mxu0
    %5572 = vdwg.mxu0
    %v5573 = vadd.f32 %v5284, %v5484
    %v5574 = vadd.f32 %v5285, %v5485
    %5575 = vrot.lane.b32.xlu0 %v5172, 112
    %v5576 = vpop.permute.xlu0 %5575
    %5577 = vrot.lane.b32.xlu0 %v5174, 112
    %v5578 = vpop.permute.xlu0 %5577
    %5579 = vrot.lane.b32.xlu0 %v4321, 80
    %v5580 = vpop.permute.xlu0 %5579
    %5581 = vrot.lane.b32.xlu0 %v4326, 80
    %v5582 = vpop.permute.xlu0 %5581
    %v5583 = vsel %vm275, %v5576, 0
    %v5585 = vsel %vm275, %v5578, 0
    %v5587 = vsel %vm275, %v5580, 0
    %v5589 = vsel %vm275, %v5582, 0
    %5591 = vmatprep.subr.mxu0 0.0
    %5592 = vmatpush1.xpose.msra.mxu0 %v5587
    %5593 = vmatprep.subr.mxu0 0.0
    %5594 = vmatpush1.xpose.msra.mxu0 %v5589
    %5595 = vmatprep.subr.mxu0 0.0
    %5596 = vmatpush1.xpose.msra.mxu0 0.0
    %5597 = vmatprep.subr.mxu0 0.0
    %5598 = vmatpush1.xpose.msra.mxu0 0.0
    %5599 = vmatprep.subr.mxu0 0.0
    %5600 = vmatpush1.xpose.msra.mxu0 0.0
    %5601 = vmatprep.subr.mxu0 0.0
    %5602 = vmatpush1.xpose.msra.mxu0 0.0
    %5603 = vmatprep.subr.mxu0 0.0
    %5604 = vmatpush1.xpose.msra.mxu0 0.0
    %5605 = vmatprep.subr.mxu0 0.0
    %5606 = vmatpush1.xpose.msra.mxu0 0.0
    %5607 = vmatprep.subr.mxu0 0.0
    %5608 = vmatpush1.xpose.msra.mxu0 0.0
    %5609 = vmatprep.subr.mxu0 0.0
    %5610 = vmatpush1.xpose.msra.mxu0 0.0
    %5611 = vmatprep.subr.mxu0 0.0
    %5612 = vmatpush1.xpose.msra.mxu0 0.0
    %5613 = vmatprep.subr.mxu0 0.0
    %5614 = vmatpush1.xpose.msra.mxu0 0.0
    %5615 = vmatprep.subr.mxu0 0.0
    %5616 = vmatpush1.xpose.msra.mxu0 0.0
    %5617 = vmatprep.subr.mxu0 0.0
    %5618 = vmatpush1.xpose.msra.mxu0 0.0
    %5619 = vmatprep.subr.mxu0 0.0
    %5620 = vmatpush1.xpose.msra.mxu0 0.0
    %5621 = vmatprep.subr.mxu0 0.0
    %5622 = vmatpush1.xpose.msra.mxu0 0.0
    %5623 = vmatprep.subr.mxu0 0.0
    %5624 = vmatpush1.xpose.msra.mxu0 0.0
    %5625 = vmatprep.subr.mxu0 0.0
    %5626 = vmatpush1.xpose.msra.mxu0 0.0
    %5627 = vmatprep.subr.mxu0 0.0
    %5628 = vmatpush1.xpose.msra.mxu0 0.0
    %5629 = vmatprep.subr.mxu0 0.0
    %5630 = vmatpush1.xpose.msra.mxu0 0.0
    %5631 = vmatprep.subr.mxu0 0.0
    %5632 = vmatpush1.xpose.msra.mxu0 0.0
    %5633 = vmatprep.subr.mxu0 0.0
    %5634 = vmatpush1.xpose.msra.mxu0 0.0
    %5635 = vmatprep.subr.mxu0 0.0
    %5636 = vmatpush1.xpose.msra.mxu0 0.0
    %5637 = vmatprep.subr.mxu0 0.0
    %5638 = vmatpush1.xpose.msra.mxu0 0.0
    %5639 = vmatprep.subr.mxu0 0.0
    %5640 = vmatpush1.xpose.msra.mxu0 0.0
    %5641 = vmatprep.subr.mxu0 0.0
    %5642 = vmatpush1.xpose.msra.mxu0 0.0
    %5643 = vmatprep.subr.mxu0 0.0
    %5644 = vmatpush1.xpose.msra.mxu0 0.0
    %5645 = vmatprep.subr.mxu0 0.0
    %5646 = vmatpush1.xpose.msra.mxu0 0.0
    %5647 = vmatprep.subr.mxu0 0.0
    %5648 = vmatpush1.xpose.msra.mxu0 0.0
    %5649 = vmatprep.subr.mxu0 0.0
    %5650 = vmatpush1.xpose.msra.mxu0 0.0
    %5651 = vmatprep.subr.mxu0 0.0
    %5652 = vmatpush1.xpose.msra.mxu0 0.0
    %5653 = vmatprep.subr.mxu0 0.0
    %5654 = vmatpush1.xpose.msra.mxu0 0.0
    %5655 = vmatprep.mubr.f32.mxu0 0.0
    %5656 = vmatmul.mubr.f32.gmra.mrb[0].mxu0 %v5583
    %v5657 = vpop.f32.mrb[0].mxu0
    %v5658 = vadd.f32 0.0, %v5657
    %v5659 = vpop.f32.mrb[0].mxu0
    %5660 = vmatprep.mubr.f32.mxu0 0.0
    %5661 = vmatmul.mubr.f32.gmra.mrb[0].mxu0 %v5585
    %v5662 = vpop.f32.mrb[0].mxu0
    %v5663 = vadd.f32 0.0, %v5662
    %v5664 = vpop.f32.mrb[0].mxu0
    %5665 = vdwg.mxu0
    %v5666 = vsel %vm1071, %v5658, -inf
    %5667 = vmax.xlane.f32.xlu0 %v5666
    %v5668 = vpop.xlane.xlu0 %5667
    %v5669 = vsel %vm4423, %v5663, -inf
    %5670 = vmax.xlane.f32.xlu0 %v5669
    %v5671 = vpop.xlane.xlu0 %5670
    %v5672 = vsub.f32 %v5658, %v5668
    %v5673 = vsub.f32 %v5663, %v5671
    %v5674 = vmul.f32 %v5672, 1.442695
    %v5675 = vpow.pop %v5674
    %v5676 = vmul.f32 %v5673, 1.442695
    %v5677 = vpow.pop %v5676
    %v5678 = vsel %vm1071, %v5675, 0.0
    %5679 = vadd.xlane.f32.xlu0 %v5678
    %v5680 = vpop.xlane.xlu0 %5679
    %v5681 = vsel %vm4423, %v5677, 0.0
    %5682 = vadd.xlane.f32.xlu0 %v5681
    %v5683 = vpop.xlane.xlu0 %5682
    %v5684 = vrcp.pop %v5680
    %v5685 = vrcp.pop %v5683
    %v5686 = vmul.f32 %v5675, %v5684
    %v5687 = vmul.f32 %v5677, %v5685
    %5688 = vrot.lane.b32.xlu0 %v4321, 48
    %v5689 = vpop.permute.xlu0 %5688
    %5690 = vrot.lane.b32.xlu0 %v4326, 48
    %v5691 = vpop.permute.xlu0 %5690
    %v5695 = vsel %vm1071, %v5686, 0
    %v5698 = vsel %vm1071, %v5687, 0
    %5700 = vmatprep.subr.mxu0 0.0
    %5701 = vmatpush1.msra.mxu0 %v5689
    %5702 = vmatprep.subr.mxu0 0.0
    %5703 = vmatpush1.msra.mxu0 %v5691
    %5704 = vmatprep.subr.mxu0 0.0
    %5705 = vmatpush1.msra.mxu0 0.0
    %5706 = vmatprep.subr.mxu0 0.0
    %5707 = vmatpush1.msra.mxu0 0.0
    %5708 = vmatprep.subr.mxu0 0.0
    %5709 = vmatpush1.msra.mxu0 0.0
    %5710 = vmatprep.subr.mxu0 0.0
    %5711 = vmatpush1.msra.mxu0 0.0
    %5712 = vmatprep.subr.mxu0 0.0
    %5713 = vmatpush1.msra.mxu0 0.0
    %5714 = vmatprep.subr.mxu0 0.0
    %5715 = vmatpush1.msra.mxu0 0.0
    %5716 = vmatprep.subr.mxu0 0.0
    %5717 = vmatpush1.msra.mxu0 0.0
    %5718 = vmatprep.subr.mxu0 0.0
    %5719 = vmatpush1.msra.mxu0 0.0
    %5720 = vmatprep.subr.mxu0 0.0
    %5721 = vmatpush1.msra.mxu0 0.0
    %5722 = vmatprep.subr.mxu0 0.0
    %5723 = vmatpush1.msra.mxu0 0.0
    %5724 = vmatprep.subr.mxu0 0.0
    %5725 = vmatpush1.msra.mxu0 0.0
    %5726 = vmatprep.subr.mxu0 0.0
    %5727 = vmatpush1.msra.mxu0 0.0
    %5728 = vmatprep.subr.mxu0 0.0
    %5729 = vmatpush1.msra.mxu0 0.0
    %5730 = vmatprep.subr.mxu0 0.0
    %5731 = vmatpush1.msra.mxu0 0.0
    %5732 = vmatprep.subr.mxu0 0.0
    %5733 = vmatpush1.msra.mxu0 0.0
    %5734 = vmatprep.subr.mxu0 0.0
    %5735 = vmatpush1.msra.mxu0 0.0
    %5736 = vmatprep.subr.mxu0 0.0
    %5737 = vmatpush1.msra.mxu0 0.0
    %5738 = vmatprep.subr.mxu0 0.0
    %5739 = vmatpush1.msra.mxu0 0.0
    %5740 = vmatprep.subr.mxu0 0.0
    %5741 = vmatpush1.msra.mxu0 0.0
    %5742 = vmatprep.subr.mxu0 0.0
    %5743 = vmatpush1.msra.mxu0 0.0
    %5744 = vmatprep.subr.mxu0 0.0
    %5745 = vmatpush1.msra.mxu0 0.0
    %5746 = vmatprep.subr.mxu0 0.0
    %5747 = vmatpush1.msra.mxu0 0.0
    %5748 = vmatprep.subr.mxu0 0.0
    %5749 = vmatpush1.msra.mxu0 0.0
    %5750 = vmatprep.subr.mxu0 0.0
    %5751 = vmatpush1.msra.mxu0 0.0
    %5752 = vmatprep.subr.mxu0 0.0
    %5753 = vmatpush1.msra.mxu0 0.0
    %5754 = vmatprep.subr.mxu0 0.0
    %5755 = vmatpush1.msra.mxu0 0.0
    %5756 = vmatprep.subr.mxu0 0.0
    %5757 = vmatpush1.msra.mxu0 0.0
    %5758 = vmatprep.subr.mxu0 0.0
    %5759 = vmatpush1.msra.mxu0 0.0
    %5760 = vmatprep.subr.mxu0 0.0
    %5761 = vmatpush1.msra.mxu0 0.0
    %5762 = vmatprep.subr.mxu0 0.0
    %5763 = vmatpush1.msra.mxu0 0.0
    %5764 = vmatprep.mubr.f32.mxu0 0.0
    %5765 = vmatmul.mubr.f32.gmra.mrb[0].mxu0 %v5695
    %v5766 = vpop.f32.mrb[0].mxu0
    %v5767 = vadd.f32 0.0, %v5766
    %v5768 = vpop.f32.mrb[0].mxu0
    %5769 = vmatprep.mubr.f32.mxu0 0.0
    %5770 = vmatmul.mubr.f32.gmra.mrb[0].mxu0 %v5698
    %v5771 = vpop.f32.mrb[0].mxu0
    %v5772 = vadd.f32 0.0, %v5771
    %v5773 = vpop.f32.mrb[0].mxu0
    %5774 = vdwg.mxu0
    %v5775 = vadd.f32 %v5573, %v5686
    %v5776 = vadd.f32 %v5574, %v5687
    %5777 = vrot.lane.b32.xlu0 %v5172, 104
    %v5778 = vpop.permute.xlu0 %5777
    %5779 = vrot.lane.b32.xlu0 %v5174, 104
    %v5780 = vpop.permute.xlu0 %5779
    %5781 = vrot.lane.b32.xlu0 %v4321, 72
    %v5782 = vpop.permute.xlu0 %5781
    %5783 = vrot.lane.b32.xlu0 %v4326, 72
    %v5784 = vpop.permute.xlu0 %5783
    %v5785 = vsel %vm275, %v5778, 0
    %v5787 = vsel %vm275, %v5780, 0
    %v5789 = vsel %vm275, %v5782, 0
    %v5791 = vsel %vm275, %v5784, 0
    %5793 = vmatprep.subr.mxu0 0.0
    %5794 = vmatpush1.xpose.msra.mxu0 %v5789
    %5795 = vmatprep.subr.mxu0 0.0
    %5796 = vmatpush1.xpose.msra.mxu0 %v5791
    %5797 = vmatprep.subr.mxu0 0.0
    %5798 = vmatpush1.xpose.msra.mxu0 0.0
    %5799 = vmatprep.subr.mxu0 0.0
    %5800 = vmatpush1.xpose.msra.mxu0 0.0
    %5801 = vmatprep.subr.mxu0 0.0
    %5802 = vmatpush1.xpose.msra.mxu0 0.0
    %5803 = vmatprep.subr.mxu0 0.0
    %5804 = vmatpush1.xpose.msra.mxu0 0.0
    %5805 = vmatprep.subr.mxu0 0.0
    %5806 = vmatpush1.xpose.msra.mxu0 0.0
    %5807 = vmatprep.subr.mxu0 0.0
    %5808 = vmatpush1.xpose.msra.mxu0 0.0
    %5809 = vmatprep.subr.mxu0 0.0
    %5810 = vmatpush1.xpose.msra.mxu0 0.0
    %5811 = vmatprep.subr.mxu0 0.0
    %5812 = vmatpush1.xpose.msra.mxu0 0.0
    %5813 = vmatprep.subr.mxu0 0.0
    %5814 = vmatpush1.xpose.msra.mxu0 0.0
    %5815 = vmatprep.subr.mxu0 0.0
    %5816 = vmatpush1.xpose.msra.mxu0 0.0
    %5817 = vmatprep.subr.mxu0 0.0
    %5818 = vmatpush1.xpose.msra.mxu0 0.0
    %5819 = vmatprep.subr.mxu0 0.0
    %5820 = vmatpush1.xpose.msra.mxu0 0.0
    %5821 = vmatprep.subr.mxu0 0.0
    %5822 = vmatpush1.xpose.msra.mxu0 0.0
    %5823 = vmatprep.subr.mxu0 0.0
    %5824 = vmatpush1.xpose.msra.mxu0 0.0
    %5825 = vmatprep.subr.mxu0 0.0
    %5826 = vmatpush1.xpose.msra.mxu0 0.0
    %5827 = vmatprep.subr.mxu0 0.0
    %5828 = vmatpush1.xpose.msra.mxu0 0.0
    %5829 = vmatprep.subr.mxu0 0.0
    %5830 = vmatpush1.xpose.msra.mxu0 0.0
    %5831 = vmatprep.subr.mxu0 0.0
    %5832 = vmatpush1.xpose.msra.mxu0 0.0
    %5833 = vmatprep.subr.mxu0 0.0
    %5834 = vmatpush1.xpose.msra.mxu0 0.0
    %5835 = vmatprep.subr.mxu0 0.0
    %5836 = vmatpush1.xpose.msra.mxu0 0.0
    %5837 = vmatprep.subr.mxu0 0.0
    %5838 = vmatpush1.xpose.msra.mxu0 0.0
    %5839 = vmatprep.subr.mxu0 0.0
    %5840 = vmatpush1.xpose.msra.mxu0 0.0
    %5841 = vmatprep.subr.mxu0 0.0
    %5842 = vmatpush1.xpose.msra.mxu0 0.0
    %5843 = vmatprep.subr.mxu0 0.0
    %5844 = vmatpush1.xpose.msra.mxu0 0.0
    %5845 = vmatprep.subr.mxu0 0.0
    %5846 = vmatpush1.xpose.msra.mxu0 0.0
    %5847 = vmatprep.subr.mxu0 0.0
    %5848 = vmatpush1.xpose.msra.mxu0 0.0
    %5849 = vmatprep.subr.mxu0 0.0
    %5850 = vmatpush1.xpose.msra.mxu0 0.0
    %5851 = vmatprep.subr.mxu0 0.0
    %5852 = vmatpush1.xpose.msra.mxu0 0.0
    %5853 = vmatprep.subr.mxu0 0.0
    %5854 = vmatpush1.xpose.msra.mxu0 0.0
    %5855 = vmatprep.subr.mxu0 0.0
    %5856 = vmatpush1.xpose.msra.mxu0 0.0
    %5857 = vmatprep.mubr.f32.mxu0 0.0
    %5858 = vmatmul.mubr.f32.gmra.mrb[0].mxu0 %v5785
    %v5859 = vpop.f32.mrb[0].mxu0
    %v5860 = vadd.f32 0.0, %v5859
    %v5861 = vpop.f32.mrb[0].mxu0
    %5862 = vmatprep.mubr.f32.mxu0 0.0
    %5863 = vmatmul.mubr.f32.gmra.mrb[0].mxu0 %v5787
    %v5864 = vpop.f32.mrb[0].mxu0
    %v5865 = vadd.f32 0.0, %v5864
    %v5866 = vpop.f32.mrb[0].mxu0
    %5867 = vdwg.mxu0
    %v5868 = vsel %vm1071, %v5860, -inf
    %5869 = vmax.xlane.f32.xlu0 %v5868
    %v5870 = vpop.xlane.xlu0 %5869
    %v5871 = vsel %vm4423, %v5865, -inf
    %5872 = vmax.xlane.f32.xlu0 %v5871
    %v5873 = vpop.xlane.xlu0 %5872
    %v5874 = vsub.f32 %v5860, %v5870
    %v5875 = vsub.f32 %v5865, %v5873
    %v5876 = vmul.f32 %v5874, 1.442695
    %v5877 = vpow.pop %v5876
    %v5878 = vmul.f32 %v5875, 1.442695
    %v5879 = vpow.pop %v5878
    %v5880 = vsel %vm1071, %v5877, 0.0
    %5881 = vadd.xlane.f32.xlu0 %v5880
    %v5882 = vpop.xlane.xlu0 %5881
    %v5883 = vsel %vm4423, %v5879, 0.0
    %5884 = vadd.xlane.f32.xlu0 %v5883
    %v5885 = vpop.xlane.xlu0 %5884
    %v5886 = vrcp.pop %v5882
    %v5887 = vrcp.pop %v5885
    %v5888 = vmul.f32 %v5877, %v5886
    %v5889 = vmul.f32 %v5879, %v5887
    %5890 = vrot.lane.b32.xlu0 %v4321, 40
    %v5891 = vpop.permute.xlu0 %5890
    %5892 = vrot.lane.b32.xlu0 %v4326, 40
    %v5893 = vpop.permute.xlu0 %5892
    %v5897 = vsel %vm1071, %v5888, 0
    %v5900 = vsel %vm1071, %v5889, 0
    %5902 = vmatprep.subr.mxu0 0.0
    %5903 = vmatpush1.msra.mxu0 %v5891
    %5904 = vmatprep.subr.mxu0 0.0
    %5905 = vmatpush1.msra.mxu0 %v5893
    %5906 = vmatprep.subr.mxu0 0.0
    %5907 = vmatpush1.msra.mxu0 0.0
    %5908 = vmatprep.subr.mxu0 0.0
    %5909 = vmatpush1.msra.mxu0 0.0
    %5910 = vmatprep.subr.mxu0 0.0
    %5911 = vmatpush1.msra.mxu0 0.0
    %5912 = vmatprep.subr.mxu0 0.0
    %5913 = vmatpush1.msra.mxu0 0.0
    %5914 = vmatprep.subr.mxu0 0.0
    %5915 = vmatpush1.msra.mxu0 0.0
    %5916 = vmatprep.subr.mxu0 0.0
    %5917 = vmatpush1.msra.mxu0 0.0
    %5918 = vmatprep.subr.mxu0 0.0
    %5919 = vmatpush1.msra.mxu0 0.0
    %5920 = vmatprep.subr.mxu0 0.0
    %5921 = vmatpush1.msra.mxu0 0.0
    %5922 = vmatprep.subr.mxu0 0.0
    %5923 = vmatpush1.msra.mxu0 0.0
    %5924 = vmatprep.subr.mxu0 0.0
    %5925 = vmatpush1.msra.mxu0 0.0
    %5926 = vmatprep.subr.mxu0 0.0
    %5927 = vmatpush1.msra.mxu0 0.0
    %5928 = vmatprep.subr.mxu0 0.0
    %5929 = vmatpush1.msra.mxu0 0.0
    %5930 = vmatprep.subr.mxu0 0.0
    %5931 = vmatpush1.msra.mxu0 0.0
    %5932 = vmatprep.subr.mxu0 0.0
    %5933 = vmatpush1.msra.mxu0 0.0
    %5934 = vmatprep.subr.mxu0 0.0
    %5935 = vmatpush1.msra.mxu0 0.0
    %5936 = vmatprep.subr.mxu0 0.0
    %5937 = vmatpush1.msra.mxu0 0.0
    %5938 = vmatprep.subr.mxu0 0.0
    %5939 = vmatpush1.msra.mxu0 0.0
    %5940 = vmatprep.subr.mxu0 0.0
    %5941 = vmatpush1.msra.mxu0 0.0
    %5942 = vmatprep.subr.mxu0 0.0
    %5943 = vmatpush1.msra.mxu0 0.0
    %5944 = vmatprep.subr.mxu0 0.0
    %5945 = vmatpush1.msra.mxu0 0.0
    %5946 = vmatprep.subr.mxu0 0.0
    %5947 = vmatpush1.msra.mxu0 0.0
    %5948 = vmatprep.subr.mxu0 0.0
    %5949 = vmatpush1.msra.mxu0 0.0
    %5950 = vmatprep.subr.mxu0 0.0
    %5951 = vmatpush1.msra.mxu0 0.0
    %5952 = vmatprep.subr.mxu0 0.0
    %5953 = vmatpush1.msra.mxu0 0.0
    %5954 = vmatprep.subr.mxu0 0.0
    %5955 = vmatpush1.msra.mxu0 0.0
    %5956 = vmatprep.subr.mxu0 0.0
    %5957 = vmatpush1.msra.mxu0 0.0
    %5958 = vmatprep.subr.mxu0 0.0
    %5959 = vmatpush1.msra.mxu0 0.0
    %5960 = vmatprep.subr.mxu0 0.0
    %5961 = vmatpush1.msra.mxu0 0.0
    %5962 = vmatprep.subr.mxu0 0.0
    %5963 = vmatpush1.msra.mxu0 0.0
    %5964 = vmatprep.subr.mxu0 0.0
    %5965 = vmatpush1.msra.mxu0 0.0
    %5966 = vmatprep.mubr.f32.mxu0 0.0
    %5967 = vmatmul.mubr.f32.gmra.mrb[0].mxu0 %v5897
    %v5968 = vpop.f32.mrb[0].mxu0
    %v5969 = vadd.f32 0.0, %v5968
    %v5970 = vpop.f32.mrb[0].mxu0
    %5971 = vmatprep.mubr.f32.mxu0 0.0
    %5972 = vmatmul.mubr.f32.gmra.mrb[0].mxu0 %v5900
    %v5973 = vpop.f32.mrb[0].mxu0
    %v5974 = vadd.f32 0.0, %v5973
    %v5975 = vpop.f32.mrb[0].mxu0
    %5976 = vdwg.mxu0
    %v5977 = vadd.f32 %v5775, %v5888
    %v5978 = vadd.f32 %v5776, %v5889
    %5981 = vrot.lane.b32.xlu0 %v5565, 8
    %v5982 = vpop.permute.xlu0 %5981
    %5983 = vrot.lane.b32.xlu0 %v5570, 8
    %v5984 = vpop.permute.xlu0 %5983
    %5989 = vrot.lane.b32.xlu0 %v5767, 16
    %v5990 = vpop.permute.xlu0 %5989
    %5991 = vrot.lane.b32.xlu0 %v5772, 16
    %v5992 = vpop.permute.xlu0 %5991
    %5997 = vrot.lane.b32.xlu0 %v5969, 24
    %v5998 = vpop.permute.xlu0 %5997
    %5999 = vrot.lane.b32.xlu0 %v5974, 24
    %v6000 = vpop.permute.xlu0 %5999
    %v6003 = vsel %vm275, %v5365, %v5982
    %v6004 = vsel %vm275, %v5370, %v5984
    %v6005 = vsel %vm1071, %v6003, %v5990
    %v6006 = vsel %vm1071, %v6004, %v5992
    %v6007 = vsel %vm1074, %v6005, %v5998
    %v6008 = vsel %vm1074, %v6006, %v6000
    %v6009 = vmul.f32 %v5977, 0.25
    %v6010 = vmul.f32 %v5978, 0.25
    %v6013 = vrot.slane %v6007, 2
    %v6014 = vrot.slane %v6008, 2
    %v6015 = vsel %vm1886, %v6013, %v6014
    %v6017 = vsel %vm1886, %v5165, %v6013
    %v6019 = vsel %vm93, %v5164, 0
    %v6022 = vsel %vm93, %v6017, 0
    %v6024 = vsel %vm93, %v6015, 0
    %v6026 = vsel %vm93, %v6014, 0
    %6028 = vmatprep.subr.mxu0 0.0
    %6029 = vmatpush1.msra.mxu0 %v4117
    %6030 = vmatprep.subr.mxu0 0.0
    %6031 = vmatpush1.msra.mxu0 %v4118
    %6032 = vmatprep.subr.mxu0 0.0
    %6033 = vmatpush1.msra.mxu0 %v4119
    %6034 = vmatprep.subr.mxu0 0.0
    %6035 = vmatpush1.msra.mxu0 %v4120
    %6036 = vmatprep.subr.mxu0 0.0
    %6037 = vmatpush1.msra.mxu0 0.0
    %6038 = vmatprep.subr.mxu0 0.0
    %6039 = vmatpush1.msra.mxu0 0.0
    %6040 = vmatprep.subr.mxu0 0.0
    %6041 = vmatpush1.msra.mxu0 0.0
    %6042 = vmatprep.subr.mxu0 0.0
    %6043 = vmatpush1.msra.mxu0 0.0
    %6044 = vmatprep.subr.mxu0 0.0
    %6045 = vmatpush1.msra.mxu0 0.0
    %6046 = vmatprep.subr.mxu0 0.0
    %6047 = vmatpush1.msra.mxu0 0.0
    %6048 = vmatprep.subr.mxu0 0.0
    %6049 = vmatpush1.msra.mxu0 0.0
    %6050 = vmatprep.subr.mxu0 0.0
    %6051 = vmatpush1.msra.mxu0 0.0
    %6052 = vmatprep.subr.mxu0 0.0
    %6053 = vmatpush1.msra.mxu0 0.0
    %6054 = vmatprep.subr.mxu0 0.0
    %6055 = vmatpush1.msra.mxu0 0.0
    %6056 = vmatprep.subr.mxu0 0.0
    %6057 = vmatpush1.msra.mxu0 0.0
    %6058 = vmatprep.subr.mxu0 0.0
    %6059 = vmatpush1.msra.mxu0 0.0
    %6060 = vmatprep.subr.mxu0 0.0
    %6061 = vmatpush1.msra.mxu0 0.0
    %6062 = vmatprep.subr.mxu0 0.0
    %6063 = vmatpush1.msra.mxu0 0.0
    %6064 = vmatprep.subr.mxu0 0.0
    %6065 = vmatpush1.msra.mxu0 0.0
    %6066 = vmatprep.subr.mxu0 0.0
    %6067 = vmatpush1.msra.mxu0 0.0
    %6068 = vmatprep.subr.mxu0 0.0
    %6069 = vmatpush1.msra.mxu0 0.0
    %6070 = vmatprep.subr.mxu0 0.0
    %6071 = vmatpush1.msra.mxu0 0.0
    %6072 = vmatprep.subr.mxu0 0.0
    %6073 = vmatpush1.msra.mxu0 0.0
    %6074 = vmatprep.subr.mxu0 0.0
    %6075 = vmatpush1.msra.mxu0 0.0
    %6076 = vmatprep.subr.mxu0 0.0
    %6077 = vmatpush1.msra.mxu0 0.0
    %6078 = vmatprep.subr.mxu0 0.0
    %6079 = vmatpush1.msra.mxu0 0.0
    %6080 = vmatprep.subr.mxu0 0.0
    %6081 = vmatpush1.msra.mxu0 0.0
    %6082 = vmatprep.subr.mxu0 0.0
    %6083 = vmatpush1.msra.mxu0 0.0
    %6084 = vmatprep.subr.mxu0 0.0
    %6085 = vmatpush1.msra.mxu0 0.0
    %6086 = vmatprep.subr.mxu0 0.0
    %6087 = vmatpush1.msra.mxu0 0.0
    %6088 = vmatprep.subr.mxu0 0.0
    %6089 = vmatpush1.msra.mxu0 0.0
    %6090 = vmatprep.subr.mxu0 0.0
    %6091 = vmatpush1.msra.mxu0 0.0
    %6092 = vmatprep.mubr.f32.mxu0 0.0
    %6093 = vmatmul.mubr.f32.gmra.mrb[0].mxu0 %v6019
    %v6094 = vpop.f32.mrb[0].mxu0
    %v6095 = vadd.f32 0.0, %v6094
    %v6096 = vpop.f32.mrb[0].mxu0
    %6097 = vmatprep.mubr.f32.mxu0 0.0
    %6098 = vmatmul.mubr.f32.gmra.mrb[0].mxu0 %v6022
    %v6099 = vpop.f32.mrb[0].mxu0
    %v6100 = vadd.f32 0.0, %v6099
    %v6101 = vpop.f32.mrb[0].mxu0
    %6102 = vmatprep.mubr.f32.mxu0 0.0
    %6103 = vmatmul.mubr.f32.gmra.mrb[0].mxu0 %v6024
    %v6104 = vpop.f32.mrb[0].mxu0
    %v6105 = vadd.f32 0.0, %v6104
    %v6106 = vpop.f32.mrb[0].mxu0
    %6107 = vmatprep.mubr.f32.mxu0 0.0
    %6108 = vmatmul.mubr.f32.gmra.mrb[0].mxu0 %v6026
    %v6109 = vpop.f32.mrb[0].mxu0
    %v6110 = vadd.f32 0.0, %v6109
    %v6111 = vpop.f32.mrb[0].mxu0
    %6112 = vdwg.mxu0
    %v6113 = vlaneseq
    %v6114 = vshrl.u32 %v6113, 7
    %v6115 = vsub.s32 0, %v6114
    %v6116 = vrot.slane %v4122, %v6115
    %6118 = vrot.lane.b32.xlu0 %v6116, 96
    %v6119 = vpop.permute.xlu0 %6118
    %v6121 = vadd.f32 %v6095, %v6119
    %v6122 = vadd.f32 %v6100, %v6119
    %v6123 = vadd.f32 %v6105, %v6119
    %v6124 = vadd.f32 %v6110, %v6119
    %v6125 = vadd.f32 %v6121, %v4113
    %v6126 = vadd.f32 %v6122, %v4114
    %v6127 = vadd.f32 %v6123, %v4115
    %v6128 = vadd.f32 %v6124, %v4116
    %6133 = vrot.lane.b32.xlu0 %v6125, 32
    %v6134 = vpop.permute.xlu0 %6133
    %6135 = vrot.lane.b32.xlu0 %v6126, 32
    %v6136 = vpop.permute.xlu0 %6135
    %6137 = vrot.lane.b32.xlu0 %v6127, 32
    %v6138 = vpop.permute.xlu0 %6137
    %6139 = vrot.lane.b32.xlu0 %v6128, 32
    %v6140 = vpop.permute.xlu0 %6139
    %v6145 = vsel %vm93, %v6134, 0.0
    %6146 = vadd.xlane.f32.xlu0 %v6145
    %v6147 = vpop.xlane.xlu0 %6146
    %v6148 = vsel %vm93, %v6136, 0.0
    %6149 = vadd.xlane.f32.xlu0 %v6148
    %v6150 = vpop.xlane.xlu0 %6149
    %v6151 = vsel %vm93, %v6138, 0.0
    %6152 = vadd.xlane.f32.xlu0 %v6151
    %v6153 = vpop.xlane.xlu0 %6152
    %v6154 = vsel %vm2040, %v6140, 0.0
    %6155 = vadd.xlane.f32.xlu0 %v6154
    %v6156 = vpop.xlane.xlu0 %6155
    %v6157 = vmul.f32 %v6147, %v2044
    %v6158 = vmul.f32 %v6150, %v2044
    %v6159 = vmul.f32 %v6153, %v2044
    %v6160 = vmul.f32 %v6156, %v2044
    %v6161 = vsub.f32 %v6125, %v6157
    %v6162 = vsub.f32 %v6126, %v6158
    %v6163 = vsub.f32 %v6127, %v6159
    %v6164 = vsub.f32 %v6128, %v6160
    %v6165 = vmul.f32 %v6161, %v6161
    %v6166 = vmul.f32 %v6162, %v6162
    %v6167 = vmul.f32 %v6163, %v6163
    %v6168 = vmul.f32 %v6164, %v6164
    %6173 = vrot.lane.b32.xlu0 %v6165, 32
    %v6174 = vpop.permute.xlu0 %6173
    %6175 = vrot.lane.b32.xlu0 %v6166, 32
    %v6176 = vpop.permute.xlu0 %6175
    %6177 = vrot.lane.b32.xlu0 %v6167, 32
    %v6178 = vpop.permute.xlu0 %6177
    %6179 = vrot.lane.b32.xlu0 %v6168, 32
    %v6180 = vpop.permute.xlu0 %6179
    %v6185 = vsel %vm93, %v6174, 0.0
    %6186 = vadd.xlane.f32.xlu0 %v6185
    %v6187 = vpop.xlane.xlu0 %6186
    %v6188 = vsel %vm93, %v6176, 0.0
    %6189 = vadd.xlane.f32.xlu0 %v6188
    %v6190 = vpop.xlane.xlu0 %6189
    %v6191 = vsel %vm93, %v6178, 0.0
    %6192 = vadd.xlane.f32.xlu0 %v6191
    %v6193 = vpop.xlane.xlu0 %6192
    %v6194 = vsel %vm2040, %v6180, 0.0
    %6195 = vadd.xlane.f32.xlu0 %v6194
    %v6196 = vpop.xlane.xlu0 %6195
    %v6197 = vmul.f32 %v6187, %v2044
    %v6198 = vmul.f32 %v6190, %v2044
    %v6199 = vmul.f32 %v6193, %v2044
    %v6200 = vmul.f32 %v6196, %v2044
    %v6201 = vadd.f32 %v6197, 1e-05
    %v6202 = vadd.f32 %v6198, 1e-05
    %v6203 = vadd.f32 %v6199, 1e-05
    %v6204 = vadd.f32 %v6200, 1e-05
    %v6205 = vrsqrt.pop %v6201
    %v6206 = vrsqrt.pop %v6202
    %v6207 = vrsqrt.pop %v6203
    %v6208 = vrsqrt.pop %v6204
    %v6209 = vmul.f32 %v6161, %v6205
    %v6210 = vmul.f32 %v6162, %v6206
    %v6211 = vmul.f32 %v6163, %v6207
    %v6212 = vmul.f32 %v6164, %v6208
    %6213 = vrot.lane.b32.xlu0 %v6116, 64
    %v6214 = vpop.permute.xlu0 %6213
    %v6216 = vmul.f32 %v6209, %v6214
    %v6217 = vmul.f32 %v6210, %v6214
    %v6218 = vmul.f32 %v6211, %v6214
    %v6219 = vmul.f32 %v6212, %v6214
    %6220 = vrot.lane.b32.xlu0 %v6116, 32
    %v6221 = vpop.permute.xlu0 %6220
    %v6223 = vadd.f32 %v6216, %v6221
    %v6224 = vadd.f32 %v6217, %v6221
    %v6225 = vadd.f32 %v6218, %v6221
    %v6226 = vadd.f32 %v6219, %v6221
    %v6229 = vrot.slane %v6009, 2
    %v6230 = vrot.slane %v6010, 2
    %v6231 = vsel %vm1886, %v6229, %v6230
    %v6233 = vsel %vm1886, %v5167, %v6229
    %v6234 = vld [vmem:[#allocation8 + $0x90] sm:$0xff]
    %v6235 = vld [vmem:[#allocation8 + $0x98] sm:$0xff]
    %v6236 = vld [vmem:[#allocation8 + $0xa0] sm:$0xff]
    %v6237 = vld [vmem:[#allocation8 + $0xa8] sm:$0xff]
    %v6238 = vld [vmem:[#allocation8 + $0xb0] sm:$0x1]
    %v6239 = vld [vmem:[#allocation8 + $0xb8] sm:$0xff]
    %v6240 = vld [vmem:[#allocation8 + $0xc0] sm:$0xff]
    %v6241 = vld [vmem:[#allocation8 + $0xc8] sm:$0xff]
    %v6242 = vld [vmem:[#allocation8 + $0xd0] sm:$0xff]
    %v6243 = vld [vmem:[#allocation8 + $0xd8] sm:$0xff]
    %v6244 = vld [vmem:[#allocation8 + $0xe0] sm:$0xff]
    %v6245 = vld [vmem:[#allocation8 + $0xe8] sm:$0xff]
    %v6246 = vld [vmem:[#allocation8 + $0xf0] sm:$0xff]
    %v6247 = vld [vmem:[#allocation8 + $0xf8] sm:$0xff]
    %v6248 = vld [vmem:[#allocation8 + $0x100] sm:$0xff]
    %v6249 = vld [vmem:[#allocation8 + $0x108] sm:$0xff]
    %v6250 = vld [vmem:[#allocation8 + $0x110] sm:$0xff]
    %v6251 = vld [vmem:[#allocation8 + $0x118] sm:$0xff]
    %v6252 = vld [vmem:[#allocation8 + $0x120] sm:$0xff]
    %v6253 = vld [vmem:[#allocation8 + $0x128] sm:$0xff]
    %v6254 = vld [vmem:[#allocation8 + $0x130] sm:$0xff]
    %v6255 = vld [vmem:[#allocation8 + $0x138] sm:$0x1]
    %v6256 = vlaneseq
    %v6257 = vshrl.u32 %v6256, 7
    %v6258 = vsub.s32 0, %v6257
    %v6259 = vrot.slane %v6238, %v6258
    %6264 = vrot.lane.b32.xlu0 %v6223, 32
    %v6265 = vpop.permute.xlu0 %6264
    %6266 = vrot.lane.b32.xlu0 %v6224, 32
    %v6267 = vpop.permute.xlu0 %6266
    %6268 = vrot.lane.b32.xlu0 %v6225, 32
    %v6269 = vpop.permute.xlu0 %6268
    %6270 = vrot.lane.b32.xlu0 %v6226, 32
    %v6271 = vpop.permute.xlu0 %6270
    %v6272 = vsel %vm93, %v6265, 0
    %v6274 = vsel %vm93, %v6267, 0
    %v6276 = vsel %vm93, %v6269, 0
    %v6278 = vsel %vm93, %v6271, 0
    %6280 = vmatprep.subr.mxu0 0.0
    %6281 = vmatpush1.msra.mxu0 %v6234
    %6282 = vmatprep.subr.mxu0 0.0
    %6283 = vmatpush1.msra.mxu0 %v6235
    %6284 = vmatprep.subr.mxu0 0.0
    %6285 = vmatpush1.msra.mxu0 %v6236
    %6286 = vmatprep.subr.mxu0 0.0
    %6287 = vmatpush1.msra.mxu0 %v6237
    %6288 = vmatprep.subr.mxu0 0.0
    %6289 = vmatpush1.msra.mxu0 0.0
    %6290 = vmatprep.subr.mxu0 0.0
    %6291 = vmatpush1.msra.mxu0 0.0
    %6292 = vmatprep.subr.mxu0 0.0
    %6293 = vmatpush1.msra.mxu0 0.0
    %6294 = vmatprep.subr.mxu0 0.0
    %6295 = vmatpush1.msra.mxu0 0.0
    %6296 = vmatprep.subr.mxu0 0.0
    %6297 = vmatpush1.msra.mxu0 0.0
    %6298 = vmatprep.subr.mxu0 0.0
    %6299 = vmatpush1.msra.mxu0 0.0
    %6300 = vmatprep.subr.mxu0 0.0
    %6301 = vmatpush1.msra.mxu0 0.0
    %6302 = vmatprep.subr.mxu0 0.0
    %6303 = vmatpush1.msra.mxu0 0.0
    %6304 = vmatprep.subr.mxu0 0.0
    %6305 = vmatpush1.msra.mxu0 0.0
    %6306 = vmatprep.subr.mxu0 0.0
    %6307 = vmatpush1.msra.mxu0 0.0
    %6308 = vmatprep.subr.mxu0 0.0
    %6309 = vmatpush1.msra.mxu0 0.0
    %6310 = vmatprep.subr.mxu0 0.0
    %6311 = vmatpush1.msra.mxu0 0.0
    %6312 = vmatprep.subr.mxu0 0.0
    %6313 = vmatpush1.msra.mxu0 0.0
    %6314 = vmatprep.subr.mxu0 0.0
    %6315 = vmatpush1.msra.mxu0 0.0
    %6316 = vmatprep.subr.mxu0 0.0
    %6317 = vmatpush1.msra.mxu0 0.0
    %6318 = vmatprep.subr.mxu0 0.0
    %6319 = vmatpush1.msra.mxu0 0.0
    %6320 = vmatprep.subr.mxu0 0.0
    %6321 = vmatpush1.msra.mxu0 0.0
    %6322 = vmatprep.subr.mxu0 0.0
    %6323 = vmatpush1.msra.mxu0 0.0
    %6324 = vmatprep.subr.mxu0 0.0
    %6325 = vmatpush1.msra.mxu0 0.0
    %6326 = vmatprep.subr.mxu0 0.0
    %6327 = vmatpush1.msra.mxu0 0.0
    %6328 = vmatprep.subr.mxu0 0.0
    %6329 = vmatpush1.msra.mxu0 0.0
    %6330 = vmatprep.subr.mxu0 0.0
    %6331 = vmatpush1.msra.mxu0 0.0
    %6332 = vmatprep.subr.mxu0 0.0
    %6333 = vmatpush1.msra.mxu0 0.0
    %6334 = vmatprep.subr.mxu0 0.0
    %6335 = vmatpush1.msra.mxu0 0.0
    %6336 = vmatprep.subr.mxu0 0.0
    %6337 = vmatpush1.msra.mxu0 0.0
    %6338 = vmatprep.subr.mxu0 0.0
    %6339 = vmatpush1.msra.mxu0 0.0
    %6340 = vmatprep.subr.mxu0 0.0
    %6341 = vmatpush1.msra.mxu0 0.0
    %6342 = vmatprep.subr.mxu0 0.0
    %6343 = vmatpush1.msra.mxu0 0.0
    %6344 = vmatprep.mubr.f32.mxu0 0.0
    %6345 = vmatmul.mubr.f32.gmra.mrb[0].mxu0 %v6272
    %v6346 = vpop.f32.mrb[0].mxu0
    %v6347 = vadd.f32 %v6259, %v6346
    %v6348 = vpop.f32.mrb[0].mxu0
    %6349 = vmatprep.mubr.f32.mxu0 0.0
    %6350 = vmatmul.mubr.f32.gmra.mrb[0].mxu0 %v6274
    %v6351 = vpop.f32.mrb[0].mxu0
    %v6352 = vadd.f32 %v6259, %v6351
    %v6353 = vpop.f32.mrb[0].mxu0
    %6354 = vmatprep.mubr.f32.mxu0 0.0
    %6355 = vmatmul.mubr.f32.gmra.mrb[0].mxu0 %v6276
    %v6356 = vpop.f32.mrb[0].mxu0
    %v6357 = vadd.f32 %v6259, %v6356
    %v6358 = vpop.f32.mrb[0].mxu0
    %6359 = vmatprep.mubr.f32.mxu0 0.0
    %6360 = vmatmul.mubr.f32.gmra.mrb[0].mxu0 %v6278
    %v6361 = vpop.f32.mrb[0].mxu0
    %v6362 = vadd.f32 %v6259, %v6361
    %v6363 = vpop.f32.mrb[0].mxu0
    %6364 = vdwg.mxu0
    %v6365 = vmax.f32 %v6347, 0.0
    %v6366 = vmax.f32 %v6352, 0.0
    %v6367 = vmax.f32 %v6357, 0.0
    %v6368 = vmax.f32 %v6362, 0.0
    %v6369 = vlaneseq
    %v6370 = vshrl.u32 %v6369, 7
    %v6371 = vsub.s32 0, %v6370
    %v6372 = vrot.slane %v6255, %v6371
    %6373 = vmatprep.subr.mxu0 0.0
    %6374 = vmatpush1.msra.mxu0 %v6239
    %6375 = vmatprep.subr.mxu0 0.0
    %6376 = vmatpush1.msra.mxu0 %v6240
    %6377 = vmatprep.subr.mxu0 0.0
    %6378 = vmatpush1.msra.mxu0 %v6241
    %6379 = vmatprep.subr.mxu0 0.0
    %6380 = vmatpush1.msra.mxu0 %v6242
    %6381 = vmatprep.subr.mxu0 0.0
    %6382 = vmatpush1.msra.mxu0 %v6243
    %6383 = vmatprep.subr.mxu0 0.0
    %6384 = vmatpush1.msra.mxu0 %v6244
    %6385 = vmatprep.subr.mxu0 0.0
    %6386 = vmatpush1.msra.mxu0 %v6245
    %6387 = vmatprep.subr.mxu0 0.0
    %6388 = vmatpush1.msra.mxu0 %v6246
    %6389 = vmatprep.subr.mxu0 0.0
    %6390 = vmatpush1.msra.mxu0 %v6247
    %6391 = vmatprep.subr.mxu0 0.0
    %6392 = vmatpush1.msra.mxu0 %v6248
    %6393 = vmatprep.subr.mxu0 0.0
    %6394 = vmatpush1.msra.mxu0 %v6249
    %6395 = vmatprep.subr.mxu0 0.0
    %6396 = vmatpush1.msra.mxu0 %v6250
    %6397 = vmatprep.subr.mxu0 0.0
    %6398 = vmatpush1.msra.mxu0 %v6251
    %6399 = vmatprep.subr.mxu0 0.0
    %6400 = vmatpush1.msra.mxu0 %v6252
    %6401 = vmatprep.subr.mxu0 0.0
    %6402 = vmatpush1.msra.mxu0 %v6253
    %6403 = vmatprep.subr.mxu0 0.0
    %6404 = vmatpush1.msra.mxu0 %v6254
    %6405 = vmatprep.subr.mxu0 0.0
    %6406 = vmatpush1.msra.mxu0 0.0
    %6407 = vmatprep.subr.mxu0 0.0
    %6408 = vmatpush1.msra.mxu0 0.0
    %6409 = vmatprep.subr.mxu0 0.0
    %6410 = vmatpush1.msra.mxu0 0.0
    %6411 = vmatprep.subr.mxu0 0.0
    %6412 = vmatpush1.msra.mxu0 0.0
    %6413 = vmatprep.subr.mxu0 0.0
    %6414 = vmatpush1.msra.mxu0 0.0
    %6415 = vmatprep.subr.mxu0 0.0
    %6416 = vmatpush1.msra.mxu0 0.0
    %6417 = vmatprep.subr.mxu0 0.0
    %6418 = vmatpush1.msra.mxu0 0.0
    %6419 = vmatprep.subr.mxu0 0.0
    %6420 = vmatpush1.msra.mxu0 0.0
    %6421 = vmatprep.subr.mxu0 0.0
    %6422 = vmatpush1.msra.mxu0 0.0
    %6423 = vmatprep.subr.mxu0 0.0
    %6424 = vmatpush1.msra.mxu0 0.0
    %6425 = vmatprep.subr.mxu0 0.0
    %6426 = vmatpush1.msra.mxu0 0.0
    %6427 = vmatprep.subr.mxu0 0.0
    %6428 = vmatpush1.msra.mxu0 0.0
    %6429 = vmatprep.subr.mxu0 0.0
    %6430 = vmatpush1.msra.mxu0 0.0
    %6431 = vmatprep.subr.mxu0 0.0
    %6432 = vmatpush1.msra.mxu0 0.0
    %6433 = vmatprep.subr.mxu0 0.0
    %6434 = vmatpush1.msra.mxu0 0.0
    %6435 = vmatprep.subr.mxu0 0.0
    %6436 = vmatpush1.msra.mxu0 0.0
    %6437 = vmatprep.mubr.f32.mxu0 0.0
    %6438 = vmatmul.mubr.f32.gmra.mrb[0].mxu0 %v6365
    %v6439 = vpop.f32.mrb[0].mxu0
    %v6440 = vadd.f32 %v6372, %v6439
    %v6441 = vpop.f32.mrb[0].mxu0
    %6442 = vmatprep.mubr.f32.mxu0 0.0
    %6443 = vmatmul.mubr.f32.gmra.mrb[0].mxu0 %v6366
    %v6444 = vpop.f32.mrb[0].mxu0
    %v6445 = vadd.f32 %v6372, %v6444
    %v6446 = vpop.f32.mrb[0].mxu0
    %6447 = vmatprep.mubr.f32.mxu0 0.0
    %6448 = vmatmul.mubr.f32.gmra.mrb[0].mxu0 %v6367
    %v6449 = vpop.f32.mrb[0].mxu0
    %v6450 = vadd.f32 %v6372, %v6449
    %v6451 = vpop.f32.mrb[0].mxu0
    %6452 = vmatprep.mubr.f32.mxu0 0.0
    %6453 = vmatmul.mubr.f32.gmra.mrb[0].mxu0 %v6368
    %v6454 = vpop.f32.mrb[0].mxu0
    %v6455 = vadd.f32 %v6372, %v6454
    %v6456 = vpop.f32.mrb[0].mxu0
    %6457 = vdwg.mxu0
    %v6462 = vadd.f32 %v6440, %v6265
    %v6463 = vadd.f32 %v6445, %v6267
    %v6464 = vadd.f32 %v6450, %v6269
    %v6465 = vadd.f32 %v6455, %v6271
    %v6466 = vsel %vm93, %v6462, 0.0
    %6467 = vadd.xlane.f32.xlu0 %v6466
    %v6468 = vpop.xlane.xlu0 %6467
    %v6469 = vsel %vm93, %v6463, 0.0
    %6470 = vadd.xlane.f32.xlu0 %v6469
    %v6471 = vpop.xlane.xlu0 %6470
    %v6472 = vsel %vm93, %v6464, 0.0
    %6473 = vadd.xlane.f32.xlu0 %v6472
    %v6474 = vpop.xlane.xlu0 %6473
    %v6475 = vsel %vm2040, %v6465, 0.0
    %6476 = vadd.xlane.f32.xlu0 %v6475
    %v6477 = vpop.xlane.xlu0 %6476
    %v6478 = vmul.f32 %v6468, %v2044
    %v6479 = vmul.f32 %v6471, %v2044
    %v6480 = vmul.f32 %v6474, %v2044
    %v6481 = vmul.f32 %v6477, %v2044
    %v6482 = vsub.f32 %v6462, %v6478
    %v6483 = vsub.f32 %v6463, %v6479
    %v6484 = vsub.f32 %v6464, %v6480
    %v6485 = vsub.f32 %v6465, %v6481
    %v6486 = vmul.f32 %v6482, %v6482
    %v6487 = vmul.f32 %v6483, %v6483
    %v6488 = vmul.f32 %v6484, %v6484
    %v6489 = vmul.f32 %v6485, %v6485
    %v6490 = vsel %vm93, %v6486, 0.0
    %6491 = vadd.xlane.f32.xlu0 %v6490
    %v6492 = vpop.xlane.xlu0 %6491
    %v6493 = vsel %vm93, %v6487, 0.0
    %6494 = vadd.xlane.f32.xlu0 %v6493
    %v6495 = vpop.xlane.xlu0 %6494
    %v6496 = vsel %vm93, %v6488, 0.0
    %6497 = vadd.xlane.f32.xlu0 %v6496
    %v6498 = vpop.xlane.xlu0 %6497
    %v6499 = vsel %vm2040, %v6489, 0.0
    %6500 = vadd.xlane.f32.xlu0 %v6499
    %v6501 = vpop.xlane.xlu0 %6500
    %v6502 = vmul.f32 %v6492, %v2044
    %v6503 = vmul.f32 %v6495, %v2044
    %v6504 = vmul.f32 %v6498, %v2044
    %v6505 = vmul.f32 %v6501, %v2044
    %v6506 = vadd.f32 %v6502, 1e-05
    %v6507 = vadd.f32 %v6503, 1e-05
    %v6508 = vadd.f32 %v6504, 1e-05
    %v6509 = vadd.f32 %v6505, 1e-05
    %v6510 = vrsqrt.pop %v6506
    %v6511 = vrsqrt.pop %v6507
    %v6512 = vrsqrt.pop %v6508
    %v6513 = vrsqrt.pop %v6509
    %v6514 = vmul.f32 %v6482, %v6510
    %v6515 = vmul.f32 %v6483, %v6511
    %v6516 = vmul.f32 %v6484, %v6512
    %v6517 = vmul.f32 %v6485, %v6513
    %6519 = vrot.lane.b32.xlu0 %v6372, 96
    %v6520 = vpop.permute.xlu0 %6519
    %v6522 = vmul.f32 %v6514, %v6520
    %v6523 = vmul.f32 %v6515, %v6520
    %v6524 = vmul.f32 %v6516, %v6520
    %v6525 = vmul.f32 %v6517, %v6520
    %6526 = vrot.lane.b32.xlu0 %v6372, 64
    %v6527 = vpop.permute.xlu0 %6526
    %v6529 = vadd.f32 %v6522, %v6527
    %v6530 = vadd.f32 %v6523, %v6527
    %v6531 = vadd.f32 %v6524, %v6527
    %v6532 = vadd.f32 %v6525, %v6527
    %6535 = vrot.lane.b32.xlu0 %v5166, 32
    %v6536 = vpop.permute.xlu0 %6535
    %6537 = vrot.lane.b32.xlu0 %v6233, 32
    %v6538 = vpop.permute.xlu0 %6537
    %6539 = vrot.lane.b32.xlu0 %v6231, 32
    %v6540 = vpop.permute.xlu0 %6539
    %6541 = vrot.lane.b32.xlu0 %v6230, 32
    %v6542 = vpop.permute.xlu0 %6541
    %v6547 = vsel %vm93, %v6529, %v6536
    %v6548 = vsel %vm93, %v6530, %v6538
    %v6549 = vsel %vm93, %v6531, %v6540
    %v6550 = vsel %vm93, %v6532, %v6542
    %vm6551 = vcmask 392192
    %v6552 = vsel %vm6551, %v6547, 0.0
    %v6553 = vsel %vm6551, %v6548, 0.0
    %v6554 = vsel %vm6551, %v6549, 0.0
    %v6555 = vsel %vm6551, %v6550, 0.0
    %6556 = vst [vmem:[#allocation10] sm:$0xff] %v6552
    %6557 = vst [vmem:[#allocation10 + $0x8] sm:$0xff] %v6553
    %6558 = vst [vmem:[#allocation10 + $0x10] sm:$0xff] %v6554
    %6559 = vst [vmem:[#allocation10 + $0x18] sm:$0xf] %v6555
    // Predicated region
    $region34: #{tpu_custom_call.1} parent=1 // pred_check
      _
    $region35: #{tpu_custom_call.1} parent=1 // pred_check_branch
      %6561 = sbr.rel (0) target = $region37
    $region36: #{tpu_custom_call.1} parent=1 // pred_region
      %s6563 = ssub.s32 512, 512
      %6564 = vsyncadd [#allocation4], %s6563
      %s6565 = sshll.u32 [#allocation10], 4
      %s6566 = int_to_ptr.vmem [resolvable:$true] %s6565
      %6571 = dma.vmem_to_hbm [thread:$0]  %s6566, 512, %s4, [#allocation4], 128, 128, 8
    $region37: #{tpu_custom_call.1} parent=1 // pred_fallthru
      _
    // Predicated region
    $region38: #{tpu_custom_call.1} parent=1 // pred_check
      _
    $region39: #{tpu_custom_call.1} parent=1 // pred_check_branch
      %6573 = sbr.rel (0) target = $region41
    $region40: #{tpu_custom_call.1} parent=1 // pred_region
      %6574 = dma.done [#allocation4], 512
    $region41: #{tpu_custom_call.1} parent=1 // pred_fallthru
      _
    %6575 = vsyncpa [#allocation3], 1
    %6576 = vsyncpa [#allocation6], 1
    %6577 = vsyncpa [#allocation9], 1
    %6578 = vsyncpa [#allocation4], 1

</llo_original>
